<compile_context>
chip_gen: v7x
topology: tpu7x:2x2x1
jax: 0.10.0
libtpu: 0.0.40
codegen_flags: <defaults>
</compile_context>

<pallas_src>
import functools

import jax
import jax.numpy as jnp
from jax.experimental import pallas as pl
from jax.experimental.pallas import tpu as pltpu

LN_EPS = 1e-5     # nn.LayerNorm default
L2_EPS = 1e-12    # F.normalize default


def _rpq_kernel(x_ref, proj_ref, cbt_ref, idx_ref):
    """One tile of rows.

    x_ref   : (TM, D)     f32 rows (batch*seq flattened)
    proj_ref: (D, H*E)    fused random projections (resident across the grid)
    cbt_ref : (H, E, C)   pre-L2-normalized codebooks, transposed (resident)
    idx_ref : (H, TM)     int32 indices, lane-dense output layout
    """
    x = x_ref[...]                                                # f32 (cast in wrapper)

    # --- LayerNorm over feature dim (no affine), rsqrt-based ---
    mean = jnp.mean(x, axis=-1, keepdims=True)
    xc = x - mean
    var = jnp.mean(xc * xc, axis=-1, keepdims=True)
    xn = xc * jax.lax.rsqrt(var + LN_EPS)                         # (TM, D)

    # --- one wide projection matmul for all heads (MXU), f32 accumulation ---
    y_all = jnp.dot(xn.astype(proj_ref.dtype), proj_ref[...],
                    preferred_element_type=jnp.float32)           # (TM, H*E)

    num_heads, e_dim, num_codes = cbt_ref.shape
    for h in range(num_heads):                                    # static, small H
        # NOTE: per-row L2 norm of y is intentionally dropped — argmax over codes
        # is invariant to the positive per-row scale (indices-only path).
        y = y_all[:, h * e_dim:(h + 1) * e_dim]                   # (TM, E) static slice
        sim = jnp.dot(y.astype(cbt_ref.dtype), cbt_ref[h],
                      preferred_element_type=jnp.float32)         # (TM, C)
        max_sim = jnp.max(sim, axis=-1, keepdims=True)
        code_iota = jax.lax.broadcasted_iota(jnp.int32, sim.shape, 1)
        masked = jnp.where(sim == max_sim, code_iota, num_codes)  # first-max tie-break
        idx_ref[h, :] = jnp.min(masked, axis=-1).astype(jnp.int32)


@functools.partial(jax.jit, static_argnames=("tm", "compute_dtype"))
def random_projection_quantize(x, rand_projs, codebooks, *, tm=256,
                               compute_dtype=jnp.float32):
    """x: (B, N, D); rand_projs: (H, D, E); codebooks: (H, C, E) -> int32 indices.

    tm: row tile, multiple of 128 (sweep 256/512/1024 per generation).
    compute_dtype: jnp.bfloat16 on v6e/v7x for MXU throughput (f32 accumulation kept);
                   default f32 matches the PyTorch reference bit-for-bit on argmax.
    """
    B, N, D = x.shape
    H, Dp, E = rand_projs.shape
    assert Dp == D
    C = codebooks.shape[1]
    assert tm % 128 == 0, "tm must be a multiple of 128 (lane-dense output tile)"
    M = B * N

    # --- one-time prep, hoisted out of the kernel ---
    # Fuse per-head projections: (H, D, E) -> (D, H*E)
    proj_fused = jnp.transpose(rand_projs.astype(jnp.float32), (1, 0, 2))
    proj_fused = proj_fused.reshape(D, H * E).astype(compute_dtype)
    # Pre-L2-normalize codebooks once, transpose to (H, E, C) for direct MXU use.
    cb = codebooks.astype(jnp.float32)
    inv = jax.lax.rsqrt(jnp.maximum(jnp.sum(cb * cb, axis=-1, keepdims=True),
                                    L2_EPS * L2_EPS))
    cbt = jnp.transpose(cb * inv, (0, 2, 1)).astype(compute_dtype)   # (H, E, C)

    # Flatten rows and pad to a multiple of tm (padded rows produce garbage
    # indices that are sliced off afterwards).
    x2d = x.reshape(M, D).astype(jnp.float32)
    m_pad = pl.cdiv(M, tm) * tm
    if m_pad != M:
        x2d = jnp.pad(x2d, ((0, m_pad - M), (0, 0)))

    out = pl.pallas_call(
        _rpq_kernel,
        out_shape=jax.ShapeDtypeStruct((H, m_pad), jnp.int32),
        grid_spec=pltpu.PrefetchScalarGridSpec(
            num_scalar_prefetch=0,
            grid=(m_pad // tm,),
            in_specs=[
                pl.BlockSpec((tm, D), lambda i: (i, 0)),         # x row tile
                pl.BlockSpec((D, H * E), lambda i: (0, 0)),      # fused projections
                pl.BlockSpec((H, E, C), lambda i: (0, 0, 0)),    # normalized codebooks^T
            ],
            out_specs=pl.BlockSpec((H, tm), lambda i: (0, i)),   # lane-dense output
        ),
        compiler_params=pltpu.CompilerParams(
            dimension_semantics=("parallel",),                   # shards rows over TCs (v7x)
        ),
    )(x2d, proj_fused, cbt)

    idx = out[:, :M].T.reshape(B, N, H)                          # (B, N, H) int32
    # TODO(synk): widen to int64 outside the kernel if downstream indexing requires it.
    if H == 1:
        idx = idx[..., 0]
    return idx


def init_params(key, *, dim, codebook_size, codebook_dim, num_codebooks):
    """Deterministic synthetic parameters matching module shapes."""
    k_proj, k_cb = jax.random.split(key)
    # xavier_normal_ on tensor (H, dim, codebook_dim):
    fan_in = dim * codebook_dim
    fan_out = num_codebooks * codebook_dim
    std = (2.0 / (fan_in + fan_out)) ** 0.5
    rand_projs = std * jax.random.normal(
        k_proj, (num_codebooks, dim, codebook_dim), dtype=jnp.float32
    )
    codebooks = jax.random.normal(
        k_cb, (num_codebooks, codebook_size, codebook_dim), dtype=jnp.float32
    )
    return rand_projs, codebooks


if __name__ == "__main__":
    B, N, D = 2, 8, 32          # batch, seq, dim
    H, E, C = 2, 16, 64         # num_codebooks, codebook_dim, codebook_size

    key = jax.random.PRNGKey(0)
    k_x, k_params = jax.random.split(key)
    x = jax.random.normal(k_x, (B, N, D), dtype=jnp.float32)
    rand_projs, codebooks = init_params(
        k_params, dim=D, codebook_size=C, codebook_dim=E, num_codebooks=H
    )

    indices = random_projection_quantize(x, rand_projs, codebooks, tm=256)
    jax.block_until_ready(indices)

    assert indices.shape == (B, N, H)
    assert indices.dtype == jnp.int32
    assert bool(jnp.all((indices >= 0) & (indices < C)))

    # Cross-check against a pure-JAX reference of the PyTorch forward.
    xr = x.astype(jnp.float32)
    mean = xr.mean(-1, keepdims=True)
    var = ((xr - mean) ** 2).mean(-1, keepdims=True)
    xn = (xr - mean) / jnp.sqrt(var + LN_EPS)
    proj = jnp.einsum('bnd,hde->bnhe', xn, rand_projs)
    proj = proj / jnp.maximum(jnp.linalg.norm(proj, axis=-1, keepdims=True), L2_EPS)
    cbn = codebooks / jnp.maximum(
        jnp.linalg.norm(codebooks, axis=-1, keepdims=True), L2_EPS)
    sim = jnp.einsum('bnhe,hce->bnhc', proj, cbn)
    ref_idx = jnp.argmax(sim, axis=-1).astype(jnp.int32)
    assert bool(jnp.all(ref_idx == indices)), "kernel indices differ from reference"

    print("KERNEL_OK")
</pallas_src>

<mosaic_0001>
module attributes {stable_mosaic.version = 11 : i64} {
  func.func @_rpq_kernel(%arg0: i32, %arg1: memref<256x32xf32, #tpu.memory_space<vmem>>, %arg2: memref<32x32xf32, #tpu.memory_space<vmem>>, %arg3: memref<2x16x64xf32, #tpu.memory_space<vmem>>, %arg4: memref<2x256xi32, #tpu.memory_space<vmem>>) attributes {dimension_semantics = [#tpu.dimension_semantics<parallel>], iteration_bounds = array<i64: 1>, scalar_prefetch = 0 : i64, scratch_operands = 0 : i64, tpu.core_type = #tpu.core_type<tc>, window_params = [{transform_indices = @transform_0, window_bounds = array<i64: 256, 32>}, {pipeline_mode = #tpu.pipeline_mode<synchronous>, transform_indices = @transform_1, window_bounds = array<i64: 32, 32>}, {pipeline_mode = #tpu.pipeline_mode<synchronous>, transform_indices = @transform_2, window_bounds = array<i64: 2, 16, 64>}, {transform_indices = @transform_3, window_bounds = array<i64: 2, 256>}]} {
    %c0 = arith.constant 0 : index
    %c0_0 = arith.constant 0 : index
    %0 = vector.load %arg1[%c0, %c0_0] : memref<256x32xf32, #tpu.memory_space<vmem>>, vector<256x32xf32>
    %cst = arith.constant dense<0.000000e+00> : vector<256xf32>
    %1 = vector.multi_reduction <add>, %0, %cst [1] : vector<256x32xf32> to vector<256xf32>
    %2 = vector.shape_cast %1 : vector<256xf32> to vector<256x1xf32>
    %cst_1 = arith.constant 3.200000e+01 : f32
    %3 = vector.broadcast %cst_1 : f32 to vector<256x1xf32>
    %4 = arith.divf %2, %3 : vector<256x1xf32>
    %5 = vector.broadcast %4 : vector<256x1xf32> to vector<256x32xf32>
    %6 = arith.subf %0, %5 : vector<256x32xf32>
    %7 = arith.mulf %6, %6 : vector<256x32xf32>
    %cst_2 = arith.constant dense<0.000000e+00> : vector<256xf32>
    %8 = vector.multi_reduction <add>, %7, %cst_2 [1] : vector<256x32xf32> to vector<256xf32>
    %9 = vector.shape_cast %8 : vector<256xf32> to vector<256x1xf32>
    %cst_3 = arith.constant 3.200000e+01 : f32
    %10 = vector.broadcast %cst_3 : f32 to vector<256x1xf32>
    %11 = arith.divf %9, %10 : vector<256x1xf32>
    %cst_4 = arith.constant 9.99999974E-6 : f32
    %12 = vector.broadcast %cst_4 : f32 to vector<256x1xf32>
    %13 = arith.addf %11, %12 : vector<256x1xf32>
    %14 = math.rsqrt %13 : vector<256x1xf32>
    %15 = vector.broadcast %14 : vector<256x1xf32> to vector<256x32xf32>
    %16 = arith.mulf %6, %15 : vector<256x32xf32>
    %c0_5 = arith.constant 0 : index
    %c0_6 = arith.constant 0 : index
    %17 = vector.load %arg2[%c0_5, %c0_6] : memref<32x32xf32, #tpu.memory_space<vmem>>, vector<32x32xf32>
    %cst_7 = arith.constant dense<0.000000e+00> : vector<256x32xf32>
    %18 = tpu.matmul %16, %17, %cst_7 {dimension_numbers = #tpu.dot_dimension_numbers<[1], [0], [0], [1], [0, 0, 1, 1], [], []>} : vector<256x32xf32>, vector<32x32xf32>, vector<256x32xf32> -> vector<256x32xf32>
    %19 = vector.extract_strided_slice %18 {offsets = [0, 0], sizes = [256, 16], strides = [1, 1]} : vector<256x32xf32> to vector<256x16xf32>
    %c0_8 = arith.constant 0 : index
    %c0_9 = arith.constant 0 : index
    %c0_10 = arith.constant 0 : index
    %20 = vector.load %arg3[%c0_8, %c0_9, %c0_10] : memref<2x16x64xf32, #tpu.memory_space<vmem>>, vector<1x16x64xf32>
    %21 = vector.shape_cast %20 : vector<1x16x64xf32> to vector<16x64xf32>
    %cst_11 = arith.constant dense<0.000000e+00> : vector<256x64xf32>
    %22 = tpu.matmul %19, %21, %cst_11 {dimension_numbers = #tpu.dot_dimension_numbers<[1], [0], [0], [1], [0, 0, 1, 1], [], []>} : vector<256x16xf32>, vector<16x64xf32>, vector<256x64xf32> -> vector<256x64xf32>
    %cst_12 = arith.constant dense<0xFF800000> : vector<256xf32>
    %23 = vector.multi_reduction <maximumf>, %22, %cst_12 [1] : vector<256x64xf32> to vector<256xf32>
    %24 = vector.shape_cast %23 : vector<256xf32> to vector<256x1xf32>
    %25 = tpu.iota {dimensions = array<i32: 1>} : vector<256x64xi32>
    %26 = vector.broadcast %24 : vector<256x1xf32> to vector<256x64xf32>
    %27 = arith.cmpf oeq, %22, %26 : vector<256x64xf32>
    %c64_i32 = arith.constant 64 : i32
    %28 = vector.broadcast %c64_i32 : i32 to vector<256x64xi32>
    %29 = arith.select %27, %25, %28 : vector<256x64xi1>, vector<256x64xi32>
    %cst_13 = arith.constant dense<2147483647> : vector<256xi32>
    %30 = vector.multi_reduction <minsi>, %29, %cst_13 [1] : vector<256x64xi32> to vector<256xi32>
    %c0_14 = arith.constant 0 : index
    %c0_15 = arith.constant 0 : index
    %31 = vector.load %arg4[%c0_14, %c0_15] : memref<2x256xi32, #tpu.memory_space<vmem>>, vector<1x256xi32>
    %32 = vector.shape_cast %31 : vector<1x256xi32> to vector<256xi32>
    %33 = vector.shape_cast %30 : vector<256xi32> to vector<1x256xi32>
    tpu.vector_store %arg4[%c0_14, %c0_15], %33 {strides = array<i32>} : memref<2x256xi32, #tpu.memory_space<vmem>>, vector<1x256xi32>,
    %34 = vector.extract_strided_slice %18 {offsets = [0, 16], sizes = [256, 16], strides = [1, 1]} : vector<256x32xf32> to vector<256x16xf32>
    %c1 = arith.constant 1 : index
    %c0_16 = arith.constant 0 : index
    %c0_17 = arith.constant 0 : index
    %35 = vector.load %arg3[%c1, %c0_16, %c0_17] : memref<2x16x64xf32, #tpu.memory_space<vmem>>, vector<1x16x64xf32>
    %36 = vector.shape_cast %35 : vector<1x16x64xf32> to vector<16x64xf32>
    %cst_18 = arith.constant dense<0.000000e+00> : vector<256x64xf32>
    %37 = tpu.matmul %34, %36, %cst_18 {dimension_numbers = #tpu.dot_dimension_numbers<[1], [0], [0], [1], [0, 0, 1, 1], [], []>} : vector<256x16xf32>, vector<16x64xf32>, vector<256x64xf32> -> vector<256x64xf32>
    %cst_19 = arith.constant dense<0xFF800000> : vector<256xf32>
    %38 = vector.multi_reduction <maximumf>, %37, %cst_19 [1] : vector<256x64xf32> to vector<256xf32>
    %39 = vector.shape_cast %38 : vector<256xf32> to vector<256x1xf32>
    %40 = tpu.iota {dimensions = array<i32: 1>} : vector<256x64xi32>
    %41 = vector.broadcast %39 : vector<256x1xf32> to vector<256x64xf32>
    %42 = arith.cmpf oeq, %37, %41 : vector<256x64xf32>
    %c64_i32_20 = arith.constant 64 : i32
    %43 = vector.broadcast %c64_i32_20 : i32 to vector<256x64xi32>
    %44 = arith.select %42, %40, %43 : vector<256x64xi1>, vector<256x64xi32>
    %cst_21 = arith.constant dense<2147483647> : vector<256xi32>
    %45 = vector.multi_reduction <minsi>, %44, %cst_21 [1] : vector<256x64xi32> to vector<256xi32>
    %c1_22 = arith.constant 1 : index
    %c0_23 = arith.constant 0 : index
    %46 = vector.load %arg4[%c1_22, %c0_23] : memref<2x256xi32, #tpu.memory_space<vmem>>, vector<1x256xi32>
    %47 = vector.shape_cast %46 : vector<1x256xi32> to vector<256xi32>
    %48 = vector.shape_cast %45 : vector<256xi32> to vector<1x256xi32>
    tpu.vector_store %arg4[%c1_22, %c0_23], %48 {strides = array<i32>} : memref<2x256xi32, #tpu.memory_space<vmem>>, vector<1x256xi32>,
    return
  }
  func.func @transform_0(%arg0: i32) -> (i32, i32) {
    %c0_i32 = arith.constant 0 : i32
    %c0_i32_0 = arith.constant 0 : i32
    return %arg0, %c0_i32 : i32, i32
  }
  func.func @transform_1(%arg0: i32) -> (i32, i32) {
    %c0_i32 = arith.constant 0 : i32
    %c0_i32_0 = arith.constant 0 : i32
    %c0_i32_1 = arith.constant 0 : i32
    return %c0_i32, %c0_i32_0 : i32, i32
  }
  func.func @transform_2(%arg0: i32) -> (i32, i32, i32) {
    %c0_i32 = arith.constant 0 : i32
    %c0_i32_0 = arith.constant 0 : i32
    %c0_i32_1 = arith.constant 0 : i32
    %c0_i32_2 = arith.constant 0 : i32
    return %c0_i32, %c0_i32_0, %c0_i32_1 : i32, i32, i32
  }
  func.func @transform_3(%arg0: i32) -> (i32, i32) {
    %c0_i32 = arith.constant 0 : i32
    %c0_i32_0 = arith.constant 0 : i32
    return %c0_i32, %arg0 : i32, i32
  }
}

</mosaic_0001>

<llo_original>
// kernel: random_projection_quantize.1
$region0: #{random_projection_quantize.1}
  #allocation0 [shape = 'u32[]', space=smem, size = 0x4, offset = 0x4, fixed_abs, tag = 'smem constant byte address 0x4 - core index']
  #allocation1 [shape = 'u32[144,128]{1,0:T(1,128)}', space=vmem, size = 0x12000, scoped, tag = 'internal scratch']
  %s0 = inlined_call_operand.vmem [shape: f32[256,32], index: 0, kind: input, shape index: {}]
  %s1 = inlined_call_operand.vmem [shape: f32[32,32], index: 1, kind: input, shape index: {}]
  %s2 = inlined_call_operand.vmem [shape: f32[2,16,64], index: 2, kind: input, shape index: {}]
  %s3 = inlined_call_operand.vmem [shape: s32[2,256], index: 3, kind: output, shape index: {}]
  %s4 = sld [smem:[#allocation0]]
  $region22: #{random_projection_quantize.1} parent=0
    _
  %s6 = ssub.s32 1, %s4
  %s7 = scalar_select 0, %s6, %s4
  // Predicated region
  $region2: #{random_projection_quantize.1} parent=0 // pred_check
    _
  $region3: #{random_projection_quantize.1} parent=0 // pred_check_branch
    %9 = sbr.rel (0) target = $region5
  $region4: #{random_projection_quantize.1} parent=0 // pred_region
    _
  $region5: #{random_projection_quantize.1} parent=0 // pred_fallthru
    _
  // Predicated region
  $region6: #{random_projection_quantize.1} parent=0 // pred_check
    _
  $region7: #{random_projection_quantize.1} parent=0 // pred_check_branch
    %11 = sbr.rel (0) target = $region9
  $region8: #{random_projection_quantize.1} parent=0 // pred_region
    _
  $region9: #{random_projection_quantize.1} parent=0 // pred_fallthru
    _
  // Predicated region
  $region10: #{random_projection_quantize.1} parent=0 // pred_check
    _
  $region11: #{random_projection_quantize.1} parent=0 // pred_check_branch
    %13 = sbr.rel (0) target = $region13
  $region12: #{random_projection_quantize.1} parent=0 // pred_region
    _
  $region13: #{random_projection_quantize.1} parent=0 // pred_fallthru
    _
  %v14 = vld [vmem:[%s0] sm:$0xff]
  %v15 = vld [vmem:[%s0 + $0x8] sm:$0xff]
  %v16 = vld [vmem:[%s0 + $0x10] sm:$0xff]
  %v17 = vld [vmem:[%s0 + $0x18] sm:$0xff]
  %v18 = vld [vmem:[%s0 + $0x20] sm:$0xff]
  %v19 = vld [vmem:[%s0 + $0x28] sm:$0xff]
  %v20 = vld [vmem:[%s0 + $0x30] sm:$0xff]
  %v21 = vld [vmem:[%s0 + $0x38] sm:$0xff]
  %v22 = vld [vmem:[%s0 + $0x40] sm:$0xff]
  %v23 = vld [vmem:[%s0 + $0x48] sm:$0xff]
  %v24 = vld [vmem:[%s0 + $0x50] sm:$0xff]
  %v25 = vld [vmem:[%s0 + $0x58] sm:$0xff]
  %v26 = vld [vmem:[%s0 + $0x60] sm:$0xff]
  %v27 = vld [vmem:[%s0 + $0x68] sm:$0xff]
  %v28 = vld [vmem:[%s0 + $0x70] sm:$0xff]
  %v29 = vld [vmem:[%s0 + $0x78] sm:$0xff]
  %v30 = vld [vmem:[%s0 + $0x80] sm:$0xff]
  %v31 = vld [vmem:[%s0 + $0x88] sm:$0xff]
  %v32 = vld [vmem:[%s0 + $0x90] sm:$0xff]
  %v33 = vld [vmem:[%s0 + $0x98] sm:$0xff]
  %v34 = vld [vmem:[%s0 + $0xa0] sm:$0xff]
  %v35 = vld [vmem:[%s0 + $0xa8] sm:$0xff]
  %v36 = vld [vmem:[%s0 + $0xb0] sm:$0xff]
  %v37 = vld [vmem:[%s0 + $0xb8] sm:$0xff]
  %v38 = vld [vmem:[%s0 + $0xc0] sm:$0xff]
  %v39 = vld [vmem:[%s0 + $0xc8] sm:$0xff]
  %v40 = vld [vmem:[%s0 + $0xd0] sm:$0xff]
  %v41 = vld [vmem:[%s0 + $0xd8] sm:$0xff]
  %v42 = vld [vmem:[%s0 + $0xe0] sm:$0xff]
  %v43 = vld [vmem:[%s0 + $0xe8] sm:$0xff]
  %v44 = vld [vmem:[%s0 + $0xf0] sm:$0xff]
  %v45 = vld [vmem:[%s0 + $0xf8] sm:$0xff]
  %vm46 = vcmask 261120
  %v47 = vsel %vm46, %v14, 0.0
  %48 = vadd.xlane.f32.xlu0 %v47
  %v49 = vpop.xlane.xlu0 %48
  %v50 = vsel %vm46, %v15, 0.0
  %51 = vadd.xlane.f32.xlu0 %v50
  %v52 = vpop.xlane.xlu0 %51
  %v53 = vsel %vm46, %v16, 0.0
  %54 = vadd.xlane.f32.xlu0 %v53
  %v55 = vpop.xlane.xlu0 %54
  %v56 = vsel %vm46, %v17, 0.0
  %57 = vadd.xlane.f32.xlu0 %v56
  %v58 = vpop.xlane.xlu0 %57
  %v59 = vsel %vm46, %v18, 0.0
  %60 = vadd.xlane.f32.xlu0 %v59
  %v61 = vpop.xlane.xlu0 %60
  %v62 = vsel %vm46, %v19, 0.0
  %63 = vadd.xlane.f32.xlu0 %v62
  %v64 = vpop.xlane.xlu0 %63
  %v65 = vsel %vm46, %v20, 0.0
  %66 = vadd.xlane.f32.xlu0 %v65
  %v67 = vpop.xlane.xlu0 %66
  %v68 = vsel %vm46, %v21, 0.0
  %69 = vadd.xlane.f32.xlu0 %v68
  %v70 = vpop.xlane.xlu0 %69
  %v71 = vsel %vm46, %v22, 0.0
  %72 = vadd.xlane.f32.xlu0 %v71
  %v73 = vpop.xlane.xlu0 %72
  %v74 = vsel %vm46, %v23, 0.0
  %75 = vadd.xlane.f32.xlu0 %v74
  %v76 = vpop.xlane.xlu0 %75
  %v77 = vsel %vm46, %v24, 0.0
  %78 = vadd.xlane.f32.xlu0 %v77
  %v79 = vpop.xlane.xlu0 %78
  %v80 = vsel %vm46, %v25, 0.0
  %81 = vadd.xlane.f32.xlu0 %v80
  %v82 = vpop.xlane.xlu0 %81
  %v83 = vsel %vm46, %v26, 0.0
  %84 = vadd.xlane.f32.xlu0 %v83
  %v85 = vpop.xlane.xlu0 %84
  %v86 = vsel %vm46, %v27, 0.0
  %87 = vadd.xlane.f32.xlu0 %v86
  %v88 = vpop.xlane.xlu0 %87
  %v89 = vsel %vm46, %v28, 0.0
  %90 = vadd.xlane.f32.xlu0 %v89
  %v91 = vpop.xlane.xlu0 %90
  %v92 = vsel %vm46, %v29, 0.0
  %93 = vadd.xlane.f32.xlu0 %v92
  %v94 = vpop.xlane.xlu0 %93
  %v95 = vsel %vm46, %v30, 0.0
  %96 = vadd.xlane.f32.xlu0 %v95
  %v97 = vpop.xlane.xlu0 %96
  %v98 = vsel %vm46, %v31, 0.0
  %99 = vadd.xlane.f32.xlu0 %v98
  %v100 = vpop.xlane.xlu0 %99
  %v101 = vsel %vm46, %v32, 0.0
  %102 = vadd.xlane.f32.xlu0 %v101
  %v103 = vpop.xlane.xlu0 %102
  %v104 = vsel %vm46, %v33, 0.0
  %105 = vadd.xlane.f32.xlu0 %v104
  %v106 = vpop.xlane.xlu0 %105
  %v107 = vsel %vm46, %v34, 0.0
  %108 = vadd.xlane.f32.xlu0 %v107
  %v109 = vpop.xlane.xlu0 %108
  %v110 = vsel %vm46, %v35, 0.0
  %111 = vadd.xlane.f32.xlu0 %v110
  %v112 = vpop.xlane.xlu0 %111
  %v113 = vsel %vm46, %v36, 0.0
  %114 = vadd.xlane.f32.xlu0 %v113
  %v115 = vpop.xlane.xlu0 %114
  %v116 = vsel %vm46, %v37, 0.0
  %117 = vadd.xlane.f32.xlu0 %v116
  %v118 = vpop.xlane.xlu0 %117
  %v119 = vsel %vm46, %v38, 0.0
  %120 = vadd.xlane.f32.xlu0 %v119
  %v121 = vpop.xlane.xlu0 %120
  %v122 = vsel %vm46, %v39, 0.0
  %123 = vadd.xlane.f32.xlu0 %v122
  %v124 = vpop.xlane.xlu0 %123
  %v125 = vsel %vm46, %v40, 0.0
  %126 = vadd.xlane.f32.xlu0 %v125
  %v127 = vpop.xlane.xlu0 %126
  %v128 = vsel %vm46, %v41, 0.0
  %129 = vadd.xlane.f32.xlu0 %v128
  %v130 = vpop.xlane.xlu0 %129
  %v131 = vsel %vm46, %v42, 0.0
  %132 = vadd.xlane.f32.xlu0 %v131
  %v133 = vpop.xlane.xlu0 %132
  %v134 = vsel %vm46, %v43, 0.0
  %135 = vadd.xlane.f32.xlu0 %v134
  %v136 = vpop.xlane.xlu0 %135
  %v137 = vsel %vm46, %v44, 0.0
  %138 = vadd.xlane.f32.xlu0 %v137
  %v139 = vpop.xlane.xlu0 %138
  %v140 = vsel %vm46, %v45, 0.0
  %141 = vadd.xlane.f32.xlu0 %v140
  %v142 = vpop.xlane.xlu0 %141
  %v143 = vrcp.pop 32.0
  %v144 = vmul.f32 %v49, %v143
  %v145 = vmul.f32 %v52, %v143
  %v146 = vmul.f32 %v55, %v143
  %v147 = vmul.f32 %v58, %v143
  %v148 = vmul.f32 %v61, %v143
  %v149 = vmul.f32 %v64, %v143
  %v150 = vmul.f32 %v67, %v143
  %v151 = vmul.f32 %v70, %v143
  %v152 = vmul.f32 %v73, %v143
  %v153 = vmul.f32 %v76, %v143
  %v154 = vmul.f32 %v79, %v143
  %v155 = vmul.f32 %v82, %v143
  %v156 = vmul.f32 %v85, %v143
  %v157 = vmul.f32 %v88, %v143
  %v158 = vmul.f32 %v91, %v143
  %v159 = vmul.f32 %v94, %v143
  %v160 = vmul.f32 %v97, %v143
  %v161 = vmul.f32 %v100, %v143
  %v162 = vmul.f32 %v103, %v143
  %v163 = vmul.f32 %v106, %v143
  %v164 = vmul.f32 %v109, %v143
  %v165 = vmul.f32 %v112, %v143
  %v166 = vmul.f32 %v115, %v143
  %v167 = vmul.f32 %v118, %v143
  %v168 = vmul.f32 %v121, %v143
  %v169 = vmul.f32 %v124, %v143
  %v170 = vmul.f32 %v127, %v143
  %v171 = vmul.f32 %v130, %v143
  %v172 = vmul.f32 %v133, %v143
  %v173 = vmul.f32 %v136, %v143
  %v174 = vmul.f32 %v139, %v143
  %v175 = vmul.f32 %v142, %v143
  %v176 = vsub.f32 %v14, %v144
  %v177 = vsub.f32 %v15, %v145
  %v178 = vsub.f32 %v16, %v146
  %v179 = vsub.f32 %v17, %v147
  %v180 = vsub.f32 %v18, %v148
  %v181 = vsub.f32 %v19, %v149
  %v182 = vsub.f32 %v20, %v150
  %v183 = vsub.f32 %v21, %v151
  %v184 = vsub.f32 %v22, %v152
  %v185 = vsub.f32 %v23, %v153
  %v186 = vsub.f32 %v24, %v154
  %v187 = vsub.f32 %v25, %v155
  %v188 = vsub.f32 %v26, %v156
  %v189 = vsub.f32 %v27, %v157
  %v190 = vsub.f32 %v28, %v158
  %v191 = vsub.f32 %v29, %v159
  %v192 = vsub.f32 %v30, %v160
  %v193 = vsub.f32 %v31, %v161
  %v194 = vsub.f32 %v32, %v162
  %v195 = vsub.f32 %v33, %v163
  %v196 = vsub.f32 %v34, %v164
  %v197 = vsub.f32 %v35, %v165
  %v198 = vsub.f32 %v36, %v166
  %v199 = vsub.f32 %v37, %v167
  %v200 = vsub.f32 %v38, %v168
  %v201 = vsub.f32 %v39, %v169
  %v202 = vsub.f32 %v40, %v170
  %v203 = vsub.f32 %v41, %v171
  %v204 = vsub.f32 %v42, %v172
  %v205 = vsub.f32 %v43, %v173
  %v206 = vsub.f32 %v44, %v174
  %v207 = vsub.f32 %v45, %v175
  %v208 = vmul.f32 %v176, %v176
  %v209 = vmul.f32 %v177, %v177
  %v210 = vmul.f32 %v178, %v178
  %v211 = vmul.f32 %v179, %v179
  %v212 = vmul.f32 %v180, %v180
  %v213 = vmul.f32 %v181, %v181
  %v214 = vmul.f32 %v182, %v182
  %v215 = vmul.f32 %v183, %v183
  %v216 = vmul.f32 %v184, %v184
  %v217 = vmul.f32 %v185, %v185
  %v218 = vmul.f32 %v186, %v186
  %v219 = vmul.f32 %v187, %v187
  %v220 = vmul.f32 %v188, %v188
  %v221 = vmul.f32 %v189, %v189
  %v222 = vmul.f32 %v190, %v190
  %v223 = vmul.f32 %v191, %v191
  %v224 = vmul.f32 %v192, %v192
  %v225 = vmul.f32 %v193, %v193
  %v226 = vmul.f32 %v194, %v194
  %v227 = vmul.f32 %v195, %v195
  %v228 = vmul.f32 %v196, %v196
  %v229 = vmul.f32 %v197, %v197
  %v230 = vmul.f32 %v198, %v198
  %v231 = vmul.f32 %v199, %v199
  %v232 = vmul.f32 %v200, %v200
  %v233 = vmul.f32 %v201, %v201
  %v234 = vmul.f32 %v202, %v202
  %v235 = vmul.f32 %v203, %v203
  %v236 = vmul.f32 %v204, %v204
  %v237 = vmul.f32 %v205, %v205
  %v238 = vmul.f32 %v206, %v206
  %v239 = vmul.f32 %v207, %v207
  %v240 = vsel %vm46, %v208, 0.0
  %241 = vadd.xlane.f32.xlu0 %v240
  %v242 = vpop.xlane.xlu0 %241
  %v243 = vsel %vm46, %v209, 0.0
  %244 = vadd.xlane.f32.xlu0 %v243
  %v245 = vpop.xlane.xlu0 %244
  %v246 = vsel %vm46, %v210, 0.0
  %247 = vadd.xlane.f32.xlu0 %v246
  %v248 = vpop.xlane.xlu0 %247
  %v249 = vsel %vm46, %v211, 0.0
  %250 = vadd.xlane.f32.xlu0 %v249
  %v251 = vpop.xlane.xlu0 %250
  %v252 = vsel %vm46, %v212, 0.0
  %253 = vadd.xlane.f32.xlu0 %v252
  %v254 = vpop.xlane.xlu0 %253
  %v255 = vsel %vm46, %v213, 0.0
  %256 = vadd.xlane.f32.xlu0 %v255
  %v257 = vpop.xlane.xlu0 %256
  %v258 = vsel %vm46, %v214, 0.0
  %259 = vadd.xlane.f32.xlu0 %v258
  %v260 = vpop.xlane.xlu0 %259
  %v261 = vsel %vm46, %v215, 0.0
  %262 = vadd.xlane.f32.xlu0 %v261
  %v263 = vpop.xlane.xlu0 %262
  %v264 = vsel %vm46, %v216, 0.0
  %265 = vadd.xlane.f32.xlu0 %v264
  %v266 = vpop.xlane.xlu0 %265
  %v267 = vsel %vm46, %v217, 0.0
  %268 = vadd.xlane.f32.xlu0 %v267
  %v269 = vpop.xlane.xlu0 %268
  %v270 = vsel %vm46, %v218, 0.0
  %271 = vadd.xlane.f32.xlu0 %v270
  %v272 = vpop.xlane.xlu0 %271
  %v273 = vsel %vm46, %v219, 0.0
  %274 = vadd.xlane.f32.xlu0 %v273
  %v275 = vpop.xlane.xlu0 %274
  %v276 = vsel %vm46, %v220, 0.0
  %277 = vadd.xlane.f32.xlu0 %v276
  %v278 = vpop.xlane.xlu0 %277
  %v279 = vsel %vm46, %v221, 0.0
  %280 = vadd.xlane.f32.xlu0 %v279
  %v281 = vpop.xlane.xlu0 %280
  %v282 = vsel %vm46, %v222, 0.0
  %283 = vadd.xlane.f32.xlu0 %v282
  %v284 = vpop.xlane.xlu0 %283
  %v285 = vsel %vm46, %v223, 0.0
  %286 = vadd.xlane.f32.xlu0 %v285
  %v287 = vpop.xlane.xlu0 %286
  %v288 = vsel %vm46, %v224, 0.0
  %289 = vadd.xlane.f32.xlu0 %v288
  %v290 = vpop.xlane.xlu0 %289
  %v291 = vsel %vm46, %v225, 0.0
  %292 = vadd.xlane.f32.xlu0 %v291
  %v293 = vpop.xlane.xlu0 %292
  %v294 = vsel %vm46, %v226, 0.0
  %295 = vadd.xlane.f32.xlu0 %v294
  %v296 = vpop.xlane.xlu0 %295
  %v297 = vsel %vm46, %v227, 0.0
  %298 = vadd.xlane.f32.xlu0 %v297
  %v299 = vpop.xlane.xlu0 %298
  %v300 = vsel %vm46, %v228, 0.0
  %301 = vadd.xlane.f32.xlu0 %v300
  %v302 = vpop.xlane.xlu0 %301
  %v303 = vsel %vm46, %v229, 0.0
  %304 = vadd.xlane.f32.xlu0 %v303
  %v305 = vpop.xlane.xlu0 %304
  %v306 = vsel %vm46, %v230, 0.0
  %307 = vadd.xlane.f32.xlu0 %v306
  %v308 = vpop.xlane.xlu0 %307
  %v309 = vsel %vm46, %v231, 0.0
  %310 = vadd.xlane.f32.xlu0 %v309
  %v311 = vpop.xlane.xlu0 %310
  %v312 = vsel %vm46, %v232, 0.0
  %313 = vadd.xlane.f32.xlu0 %v312
  %v314 = vpop.xlane.xlu0 %313
  %v315 = vsel %vm46, %v233, 0.0
  %316 = vadd.xlane.f32.xlu0 %v315
  %v317 = vpop.xlane.xlu0 %316
  %v318 = vsel %vm46, %v234, 0.0
  %319 = vadd.xlane.f32.xlu0 %v318
  %v320 = vpop.xlane.xlu0 %319
  %v321 = vsel %vm46, %v235, 0.0
  %322 = vadd.xlane.f32.xlu0 %v321
  %v323 = vpop.xlane.xlu0 %322
  %v324 = vsel %vm46, %v236, 0.0
  %325 = vadd.xlane.f32.xlu0 %v324
  %v326 = vpop.xlane.xlu0 %325
  %v327 = vsel %vm46, %v237, 0.0
  %328 = vadd.xlane.f32.xlu0 %v327
  %v329 = vpop.xlane.xlu0 %328
  %v330 = vsel %vm46, %v238, 0.0
  %331 = vadd.xlane.f32.xlu0 %v330
  %v332 = vpop.xlane.xlu0 %331
  %v333 = vsel %vm46, %v239, 0.0
  %334 = vadd.xlane.f32.xlu0 %v333
  %v335 = vpop.xlane.xlu0 %334
  %v336 = vmul.f32 %v242, %v143
  %v337 = vmul.f32 %v245, %v143
  %v338 = vmul.f32 %v248, %v143
  %v339 = vmul.f32 %v251, %v143
  %v340 = vmul.f32 %v254, %v143
  %v341 = vmul.f32 %v257, %v143
  %v342 = vmul.f32 %v260, %v143
  %v343 = vmul.f32 %v263, %v143
  %v344 = vmul.f32 %v266, %v143
  %v345 = vmul.f32 %v269, %v143
  %v346 = vmul.f32 %v272, %v143
  %v347 = vmul.f32 %v275, %v143
  %v348 = vmul.f32 %v278, %v143
  %v349 = vmul.f32 %v281, %v143
  %v350 = vmul.f32 %v284, %v143
  %v351 = vmul.f32 %v287, %v143
  %v352 = vmul.f32 %v290, %v143
  %v353 = vmul.f32 %v293, %v143
  %v354 = vmul.f32 %v296, %v143
  %v355 = vmul.f32 %v299, %v143
  %v356 = vmul.f32 %v302, %v143
  %v357 = vmul.f32 %v305, %v143
  %v358 = vmul.f32 %v308, %v143
  %v359 = vmul.f32 %v311, %v143
  %v360 = vmul.f32 %v314, %v143
  %v361 = vmul.f32 %v317, %v143
  %v362 = vmul.f32 %v320, %v143
  %v363 = vmul.f32 %v323, %v143
  %v364 = vmul.f32 %v326, %v143
  %v365 = vmul.f32 %v329, %v143
  %v366 = vmul.f32 %v332, %v143
  %v367 = vmul.f32 %v335, %v143
  %v368 = vadd.f32 %v336, 1e-05
  %v369 = vadd.f32 %v337, 1e-05
  %v370 = vadd.f32 %v338, 1e-05
  %v371 = vadd.f32 %v339, 1e-05
  %v372 = vadd.f32 %v340, 1e-05
  %v373 = vadd.f32 %v341, 1e-05
  %v374 = vadd.f32 %v342, 1e-05
  %v375 = vadd.f32 %v343, 1e-05
  %v376 = vadd.f32 %v344, 1e-05
  %v377 = vadd.f32 %v345, 1e-05
  %v378 = vadd.f32 %v346, 1e-05
  %v379 = vadd.f32 %v347, 1e-05
  %v380 = vadd.f32 %v348, 1e-05
  %v381 = vadd.f32 %v349, 1e-05
  %v382 = vadd.f32 %v350, 1e-05
  %v383 = vadd.f32 %v351, 1e-05
  %v384 = vadd.f32 %v352, 1e-05
  %v385 = vadd.f32 %v353, 1e-05
  %v386 = vadd.f32 %v354, 1e-05
  %v387 = vadd.f32 %v355, 1e-05
  %v388 = vadd.f32 %v356, 1e-05
  %v389 = vadd.f32 %v357, 1e-05
  %v390 = vadd.f32 %v358, 1e-05
  %v391 = vadd.f32 %v359, 1e-05
  %v392 = vadd.f32 %v360, 1e-05
  %v393 = vadd.f32 %v361, 1e-05
  %v394 = vadd.f32 %v362, 1e-05
  %v395 = vadd.f32 %v363, 1e-05
  %v396 = vadd.f32 %v364, 1e-05
  %v397 = vadd.f32 %v365, 1e-05
  %v398 = vadd.f32 %v366, 1e-05
  %v399 = vadd.f32 %v367, 1e-05
  %v400 = vrsqrt.pop %v368
  %v401 = vrsqrt.pop %v369
  %v402 = vrsqrt.pop %v370
  %v403 = vrsqrt.pop %v371
  %v404 = vrsqrt.pop %v372
  %v405 = vrsqrt.pop %v373
  %v406 = vrsqrt.pop %v374
  %v407 = vrsqrt.pop %v375
  %v408 = vrsqrt.pop %v376
  %v409 = vrsqrt.pop %v377
  %v410 = vrsqrt.pop %v378
  %v411 = vrsqrt.pop %v379
  %v412 = vrsqrt.pop %v380
  %v413 = vrsqrt.pop %v381
  %v414 = vrsqrt.pop %v382
  %v415 = vrsqrt.pop %v383
  %v416 = vrsqrt.pop %v384
  %v417 = vrsqrt.pop %v385
  %v418 = vrsqrt.pop %v386
  %v419 = vrsqrt.pop %v387
  %v420 = vrsqrt.pop %v388
  %v421 = vrsqrt.pop %v389
  %v422 = vrsqrt.pop %v390
  %v423 = vrsqrt.pop %v391
  %v424 = vrsqrt.pop %v392
  %v425 = vrsqrt.pop %v393
  %v426 = vrsqrt.pop %v394
  %v427 = vrsqrt.pop %v395
  %v428 = vrsqrt.pop %v396
  %v429 = vrsqrt.pop %v397
  %v430 = vrsqrt.pop %v398
  %v431 = vrsqrt.pop %v399
  %v432 = vmul.f32 %v176, %v400
  %v433 = vmul.f32 %v177, %v401
  %v434 = vmul.f32 %v178, %v402
  %v435 = vmul.f32 %v179, %v403
  %v436 = vmul.f32 %v180, %v404
  %v437 = vmul.f32 %v181, %v405
  %v438 = vmul.f32 %v182, %v406
  %v439 = vmul.f32 %v183, %v407
  %v440 = vmul.f32 %v184, %v408
  %v441 = vmul.f32 %v185, %v409
  %v442 = vmul.f32 %v186, %v410
  %v443 = vmul.f32 %v187, %v411
  %v444 = vmul.f32 %v188, %v412
  %v445 = vmul.f32 %v189, %v413
  %v446 = vmul.f32 %v190, %v414
  %v447 = vmul.f32 %v191, %v415
  %v448 = vmul.f32 %v192, %v416
  %v449 = vmul.f32 %v193, %v417
  %v450 = vmul.f32 %v194, %v418
  %v451 = vmul.f32 %v195, %v419
  %v452 = vmul.f32 %v196, %v420
  %v453 = vmul.f32 %v197, %v421
  %v454 = vmul.f32 %v198, %v422
  %v455 = vmul.f32 %v199, %v423
  %v456 = vmul.f32 %v200, %v424
  %v457 = vmul.f32 %v201, %v425
  %v458 = vmul.f32 %v202, %v426
  %v459 = vmul.f32 %v203, %v427
  %v460 = vmul.f32 %v204, %v428
  %v461 = vmul.f32 %v205, %v429
  %v462 = vmul.f32 %v206, %v430
  %v463 = vmul.f32 %v207, %v431
  %v464 = vld [vmem:[%s1] sm:$0xff]
  %v465 = vld [vmem:[%s1 + $0x8] sm:$0xff]
  %v466 = vld [vmem:[%s1 + $0x10] sm:$0xff]
  %v467 = vld [vmem:[%s1 + $0x18] sm:$0xff]
  %v469 = vsel %vm46, %v432, 0
  %v472 = vsel %vm46, %v433, 0
  %v475 = vsel %vm46, %v434, 0
  %v478 = vsel %vm46, %v435, 0
  %v481 = vsel %vm46, %v436, 0
  %v484 = vsel %vm46, %v437, 0
  %v487 = vsel %vm46, %v438, 0
  %v490 = vsel %vm46, %v439, 0
  %v493 = vsel %vm46, %v440, 0
  %v496 = vsel %vm46, %v441, 0
  %v499 = vsel %vm46, %v442, 0
  %v502 = vsel %vm46, %v443, 0
  %v505 = vsel %vm46, %v444, 0
  %v508 = vsel %vm46, %v445, 0
  %v511 = vsel %vm46, %v446, 0
  %v514 = vsel %vm46, %v447, 0
  %v517 = vsel %vm46, %v448, 0
  %v520 = vsel %vm46, %v449, 0
  %v523 = vsel %vm46, %v450, 0
  %v526 = vsel %vm46, %v451, 0
  %v529 = vsel %vm46, %v452, 0
  %v532 = vsel %vm46, %v453, 0
  %v535 = vsel %vm46, %v454, 0
  %v538 = vsel %vm46, %v455, 0
  %v541 = vsel %vm46, %v456, 0
  %v544 = vsel %vm46, %v457, 0
  %v547 = vsel %vm46, %v458, 0
  %v550 = vsel %vm46, %v459, 0
  %v553 = vsel %vm46, %v460, 0
  %v556 = vsel %vm46, %v461, 0
  %v559 = vsel %vm46, %v462, 0
  %v562 = vsel %vm46, %v463, 0
  %564 = vmatprep.subr.mxu0 0.0
  %565 = vmatpush1.msra.mxu0 %v464
  %566 = vmatprep.subr.mxu0 0.0
  %567 = vmatpush1.msra.mxu0 %v465
  %568 = vmatprep.subr.mxu0 0.0
  %569 = vmatpush1.msra.mxu0 %v466
  %570 = vmatprep.subr.mxu0 0.0
  %571 = vmatpush1.msra.mxu0 %v467
  %572 = vmatprep.subr.mxu0 0.0
  %573 = vmatpush1.msra.mxu0 0.0
  %574 = vmatprep.subr.mxu0 0.0
  %575 = vmatpush1.msra.mxu0 0.0
  %576 = vmatprep.subr.mxu0 0.0
  %577 = vmatpush1.msra.mxu0 0.0
  %578 = vmatprep.subr.mxu0 0.0
  %579 = vmatpush1.msra.mxu0 0.0
  %580 = vmatprep.subr.mxu0 0.0
  %581 = vmatpush1.msra.mxu0 0.0
  %582 = vmatprep.subr.mxu0 0.0
  %583 = vmatpush1.msra.mxu0 0.0
  %584 = vmatprep.subr.mxu0 0.0
  %585 = vmatpush1.msra.mxu0 0.0
  %586 = vmatprep.subr.mxu0 0.0
  %587 = vmatpush1.msra.mxu0 0.0
  %588 = vmatprep.subr.mxu0 0.0
  %589 = vmatpush1.msra.mxu0 0.0
  %590 = vmatprep.subr.mxu0 0.0
  %591 = vmatpush1.msra.mxu0 0.0
  %592 = vmatprep.subr.mxu0 0.0
  %593 = vmatpush1.msra.mxu0 0.0
  %594 = vmatprep.subr.mxu0 0.0
  %595 = vmatpush1.msra.mxu0 0.0
  %596 = vmatprep.subr.mxu0 0.0
  %597 = vmatpush1.msra.mxu0 0.0
  %598 = vmatprep.subr.mxu0 0.0
  %599 = vmatpush1.msra.mxu0 0.0
  %600 = vmatprep.subr.mxu0 0.0
  %601 = vmatpush1.msra.mxu0 0.0
  %602 = vmatprep.subr.mxu0 0.0
  %603 = vmatpush1.msra.mxu0 0.0
  %604 = vmatprep.subr.mxu0 0.0
  %605 = vmatpush1.msra.mxu0 0.0
  %606 = vmatprep.subr.mxu0 0.0
  %607 = vmatpush1.msra.mxu0 0.0
  %608 = vmatprep.subr.mxu0 0.0
  %609 = vmatpush1.msra.mxu0 0.0
  %610 = vmatprep.subr.mxu0 0.0
  %611 = vmatpush1.msra.mxu0 0.0
  %612 = vmatprep.subr.mxu0 0.0
  %613 = vmatpush1.msra.mxu0 0.0
  %614 = vmatprep.subr.mxu0 0.0
  %615 = vmatpush1.msra.mxu0 0.0
  %616 = vmatprep.subr.mxu0 0.0
  %617 = vmatpush1.msra.mxu0 0.0
  %618 = vmatprep.subr.mxu0 0.0
  %619 = vmatpush1.msra.mxu0 0.0
  %620 = vmatprep.subr.mxu0 0.0
  %621 = vmatpush1.msra.mxu0 0.0
  %622 = vmatprep.subr.mxu0 0.0
  %623 = vmatpush1.msra.mxu0 0.0
  %624 = vmatprep.subr.mxu0 0.0
  %625 = vmatpush1.msra.mxu0 0.0
  %626 = vmatprep.subr.mxu0 0.0
  %627 = vmatpush1.msra.mxu0 0.0
  %628 = vmatprep.mubr.f32.mxu0 0.0
  %629 = vmatmul.mubr.f32.gmra.mrb[0].mxu0 %v469
  %v630 = vpop.f32.mrb[0].mxu0
  %v631 = vadd.f32 0.0, %v630
  %v632 = vpop.f32.mrb[0].mxu0
  %633 = vmatprep.mubr.f32.mxu0 0.0
  %634 = vmatmul.mubr.f32.gmra.mrb[0].mxu0 %v472
  %v635 = vpop.f32.mrb[0].mxu0
  %v636 = vadd.f32 0.0, %v635
  %v637 = vpop.f32.mrb[0].mxu0
  %638 = vmatprep.mubr.f32.mxu0 0.0
  %639 = vmatmul.mubr.f32.gmra.mrb[0].mxu0 %v475
  %v640 = vpop.f32.mrb[0].mxu0
  %v641 = vadd.f32 0.0, %v640
  %v642 = vpop.f32.mrb[0].mxu0
  %643 = vmatprep.mubr.f32.mxu0 0.0
  %644 = vmatmul.mubr.f32.gmra.mrb[0].mxu0 %v478
  %v645 = vpop.f32.mrb[0].mxu0
  %v646 = vadd.f32 0.0, %v645
  %v647 = vpop.f32.mrb[0].mxu0
  %648 = vmatprep.mubr.f32.mxu0 0.0
  %649 = vmatmul.mubr.f32.gmra.mrb[0].mxu0 %v481
  %v650 = vpop.f32.mrb[0].mxu0
  %v651 = vadd.f32 0.0, %v650
  %v652 = vpop.f32.mrb[0].mxu0
  %653 = vmatprep.mubr.f32.mxu0 0.0
  %654 = vmatmul.mubr.f32.gmra.mrb[0].mxu0 %v484
  %v655 = vpop.f32.mrb[0].mxu0
  %v656 = vadd.f32 0.0, %v655
  %v657 = vpop.f32.mrb[0].mxu0
  %658 = vmatprep.mubr.f32.mxu0 0.0
  %659 = vmatmul.mubr.f32.gmra.mrb[0].mxu0 %v487
  %v660 = vpop.f32.mrb[0].mxu0
  %v661 = vadd.f32 0.0, %v660
  %v662 = vpop.f32.mrb[0].mxu0
  %663 = vmatprep.mubr.f32.mxu0 0.0
  %664 = vmatmul.mubr.f32.gmra.mrb[0].mxu0 %v490
  %v665 = vpop.f32.mrb[0].mxu0
  %v666 = vadd.f32 0.0, %v665
  %v667 = vpop.f32.mrb[0].mxu0
  %668 = vmatprep.mubr.f32.mxu0 0.0
  %669 = vmatmul.mubr.f32.gmra.mrb[0].mxu0 %v493
  %v670 = vpop.f32.mrb[0].mxu0
  %v671 = vadd.f32 0.0, %v670
  %v672 = vpop.f32.mrb[0].mxu0
  %673 = vmatprep.mubr.f32.mxu0 0.0
  %674 = vmatmul.mubr.f32.gmra.mrb[0].mxu0 %v496
  %v675 = vpop.f32.mrb[0].mxu0
  %v676 = vadd.f32 0.0, %v675
  %v677 = vpop.f32.mrb[0].mxu0
  %678 = vmatprep.mubr.f32.mxu0 0.0
  %679 = vmatmul.mubr.f32.gmra.mrb[0].mxu0 %v499
  %v680 = vpop.f32.mrb[0].mxu0
  %v681 = vadd.f32 0.0, %v680
  %v682 = vpop.f32.mrb[0].mxu0
  %683 = vmatprep.mubr.f32.mxu0 0.0
  %684 = vmatmul.mubr.f32.gmra.mrb[0].mxu0 %v502
  %v685 = vpop.f32.mrb[0].mxu0
  %v686 = vadd.f32 0.0, %v685
  %v687 = vpop.f32.mrb[0].mxu0
  %688 = vmatprep.mubr.f32.mxu0 0.0
  %689 = vmatmul.mubr.f32.gmra.mrb[0].mxu0 %v505
  %v690 = vpop.f32.mrb[0].mxu0
  %v691 = vadd.f32 0.0, %v690
  %v692 = vpop.f32.mrb[0].mxu0
  %693 = vmatprep.mubr.f32.mxu0 0.0
  %694 = vmatmul.mubr.f32.gmra.mrb[0].mxu0 %v508
  %v695 = vpop.f32.mrb[0].mxu0
  %v696 = vadd.f32 0.0, %v695
  %v697 = vpop.f32.mrb[0].mxu0
  %698 = vmatprep.mubr.f32.mxu0 0.0
  %699 = vmatmul.mubr.f32.gmra.mrb[0].mxu0 %v511
  %v700 = vpop.f32.mrb[0].mxu0
  %v701 = vadd.f32 0.0, %v700
  %v702 = vpop.f32.mrb[0].mxu0
  %703 = vmatprep.mubr.f32.mxu0 0.0
  %704 = vmatmul.mubr.f32.gmra.mrb[0].mxu0 %v514
  %v705 = vpop.f32.mrb[0].mxu0
  %v706 = vadd.f32 0.0, %v705
  %v707 = vpop.f32.mrb[0].mxu0
  %708 = vmatprep.mubr.f32.mxu0 0.0
  %709 = vmatmul.mubr.f32.gmra.mrb[0].mxu0 %v517
  %v710 = vpop.f32.mrb[0].mxu0
  %v711 = vadd.f32 0.0, %v710
  %v712 = vpop.f32.mrb[0].mxu0
  %713 = vmatprep.mubr.f32.mxu0 0.0
  %714 = vmatmul.mubr.f32.gmra.mrb[0].mxu0 %v520
  %v715 = vpop.f32.mrb[0].mxu0
  %v716 = vadd.f32 0.0, %v715
  %v717 = vpop.f32.mrb[0].mxu0
  %718 = vmatprep.mubr.f32.mxu0 0.0
  %719 = vmatmul.mubr.f32.gmra.mrb[0].mxu0 %v523
  %v720 = vpop.f32.mrb[0].mxu0
  %v721 = vadd.f32 0.0, %v720
  %v722 = vpop.f32.mrb[0].mxu0
  %723 = vmatprep.mubr.f32.mxu0 0.0
  %724 = vmatmul.mubr.f32.gmra.mrb[0].mxu0 %v526
  %v725 = vpop.f32.mrb[0].mxu0
  %v726 = vadd.f32 0.0, %v725
  %v727 = vpop.f32.mrb[0].mxu0
  %728 = vmatprep.mubr.f32.mxu0 0.0
  %729 = vmatmul.mubr.f32.gmra.mrb[0].mxu0 %v529
  %v730 = vpop.f32.mrb[0].mxu0
  %v731 = vadd.f32 0.0, %v730
  %v732 = vpop.f32.mrb[0].mxu0
  %733 = vmatprep.mubr.f32.mxu0 0.0
  %734 = vmatmul.mubr.f32.gmra.mrb[0].mxu0 %v532
  %v735 = vpop.f32.mrb[0].mxu0
  %v736 = vadd.f32 0.0, %v735
  %v737 = vpop.f32.mrb[0].mxu0
  %738 = vmatprep.mubr.f32.mxu0 0.0
  %739 = vmatmul.mubr.f32.gmra.mrb[0].mxu0 %v535
  %v740 = vpop.f32.mrb[0].mxu0
  %v741 = vadd.f32 0.0, %v740
  %v742 = vpop.f32.mrb[0].mxu0
  %743 = vmatprep.mubr.f32.mxu0 0.0
  %744 = vmatmul.mubr.f32.gmra.mrb[0].mxu0 %v538
  %v745 = vpop.f32.mrb[0].mxu0
  %v746 = vadd.f32 0.0, %v745
  %v747 = vpop.f32.mrb[0].mxu0
  %748 = vmatprep.mubr.f32.mxu0 0.0
  %749 = vmatmul.mubr.f32.gmra.mrb[0].mxu0 %v541
  %v750 = vpop.f32.mrb[0].mxu0
  %v751 = vadd.f32 0.0, %v750
  %v752 = vpop.f32.mrb[0].mxu0
  %753 = vmatprep.mubr.f32.mxu0 0.0
  %754 = vmatmul.mubr.f32.gmra.mrb[0].mxu0 %v544
  %v755 = vpop.f32.mrb[0].mxu0
  %v756 = vadd.f32 0.0, %v755
  %v757 = vpop.f32.mrb[0].mxu0
  %758 = vmatprep.mubr.f32.mxu0 0.0
  %759 = vmatmul.mubr.f32.gmra.mrb[0].mxu0 %v547
  %v760 = vpop.f32.mrb[0].mxu0
  %v761 = vadd.f32 0.0, %v760
  %v762 = vpop.f32.mrb[0].mxu0
  %763 = vmatprep.mubr.f32.mxu0 0.0
  %764 = vmatmul.mubr.f32.gmra.mrb[0].mxu0 %v550
  %v765 = vpop.f32.mrb[0].mxu0
  %v766 = vadd.f32 0.0, %v765
  %v767 = vpop.f32.mrb[0].mxu0
  %768 = vmatprep.mubr.f32.mxu0 0.0
  %769 = vmatmul.mubr.f32.gmra.mrb[0].mxu0 %v553
  %v770 = vpop.f32.mrb[0].mxu0
  %v771 = vadd.f32 0.0, %v770
  %v772 = vpop.f32.mrb[0].mxu0
  %773 = vmatprep.mubr.f32.mxu0 0.0
  %774 = vmatmul.mubr.f32.gmra.mrb[0].mxu0 %v556
  %v775 = vpop.f32.mrb[0].mxu0
  %v776 = vadd.f32 0.0, %v775
  %v777 = vpop.f32.mrb[0].mxu0
  %778 = vmatprep.mubr.f32.mxu0 0.0
  %779 = vmatmul.mubr.f32.gmra.mrb[0].mxu0 %v559
  %v780 = vpop.f32.mrb[0].mxu0
  %v781 = vadd.f32 0.0, %v780
  %v782 = vpop.f32.mrb[0].mxu0
  %783 = vmatprep.mubr.f32.mxu0 0.0
  %784 = vmatmul.mubr.f32.gmra.mrb[0].mxu0 %v562
  %v785 = vpop.f32.mrb[0].mxu0
  %v786 = vadd.f32 0.0, %v785
  %v787 = vpop.f32.mrb[0].mxu0
  %788 = vdwg.mxu0
  %v789 = vld [vmem:[%s2] sm:$0xff]
  %v790 = vld [vmem:[%s2 + $0x8] sm:$0xff]
  %vm791 = vcmask 130048
  %v793 = vsel %vm791, %v631, 0
  %v796 = vsel %vm791, %v636, 0
  %v799 = vsel %vm791, %v641, 0
  %v802 = vsel %vm791, %v646, 0
  %v805 = vsel %vm791, %v651, 0
  %v808 = vsel %vm791, %v656, 0
  %v811 = vsel %vm791, %v661, 0
  %v814 = vsel %vm791, %v666, 0
  %v817 = vsel %vm791, %v671, 0
  %v820 = vsel %vm791, %v676, 0
  %v823 = vsel %vm791, %v681, 0
  %v826 = vsel %vm791, %v686, 0
  %v829 = vsel %vm791, %v691, 0
  %v832 = vsel %vm791, %v696, 0
  %v835 = vsel %vm791, %v701, 0
  %v838 = vsel %vm791, %v706, 0
  %v841 = vsel %vm791, %v711, 0
  %v844 = vsel %vm791, %v716, 0
  %v847 = vsel %vm791, %v721, 0
  %v850 = vsel %vm791, %v726, 0
  %v853 = vsel %vm791, %v731, 0
  %v856 = vsel %vm791, %v736, 0
  %v859 = vsel %vm791, %v741, 0
  %v862 = vsel %vm791, %v746, 0
  %v865 = vsel %vm791, %v751, 0
  %v868 = vsel %vm791, %v756, 0
  %v871 = vsel %vm791, %v761, 0
  %v874 = vsel %vm791, %v766, 0
  %v877 = vsel %vm791, %v771, 0
  %v880 = vsel %vm791, %v776, 0
  %v883 = vsel %vm791, %v781, 0
  %v886 = vsel %vm791, %v786, 0
  %888 = vmatprep.subr.mxu0 0.0
  %889 = vmatpush1.msra.mxu0 %v789
  %890 = vmatprep.subr.mxu0 0.0
  %891 = vmatpush1.msra.mxu0 %v790
  %892 = vmatprep.subr.mxu0 0.0
  %893 = vmatpush1.msra.mxu0 0.0
  %894 = vmatprep.subr.mxu0 0.0
  %895 = vmatpush1.msra.mxu0 0.0
  %896 = vmatprep.subr.mxu0 0.0
  %897 = vmatpush1.msra.mxu0 0.0
  %898 = vmatprep.subr.mxu0 0.0
  %899 = vmatpush1.msra.mxu0 0.0
  %900 = vmatprep.subr.mxu0 0.0
  %901 = vmatpush1.msra.mxu0 0.0
  %902 = vmatprep.subr.mxu0 0.0
  %903 = vmatpush1.msra.mxu0 0.0
  %904 = vmatprep.subr.mxu0 0.0
  %905 = vmatpush1.msra.mxu0 0.0
  %906 = vmatprep.subr.mxu0 0.0
  %907 = vmatpush1.msra.mxu0 0.0
  %908 = vmatprep.subr.mxu0 0.0
  %909 = vmatpush1.msra.mxu0 0.0
  %910 = vmatprep.subr.mxu0 0.0
  %911 = vmatpush1.msra.mxu0 0.0
  %912 = vmatprep.subr.mxu0 0.0
  %913 = vmatpush1.msra.mxu0 0.0
  %914 = vmatprep.subr.mxu0 0.0
  %915 = vmatpush1.msra.mxu0 0.0
  %916 = vmatprep.subr.mxu0 0.0
  %917 = vmatpush1.msra.mxu0 0.0
  %918 = vmatprep.subr.mxu0 0.0
  %919 = vmatpush1.msra.mxu0 0.0
  %920 = vmatprep.subr.mxu0 0.0
  %921 = vmatpush1.msra.mxu0 0.0
  %922 = vmatprep.subr.mxu0 0.0
  %923 = vmatpush1.msra.mxu0 0.0
  %924 = vmatprep.subr.mxu0 0.0
  %925 = vmatpush1.msra.mxu0 0.0
  %926 = vmatprep.subr.mxu0 0.0
  %927 = vmatpush1.msra.mxu0 0.0
  %928 = vmatprep.subr.mxu0 0.0
  %929 = vmatpush1.msra.mxu0 0.0
  %930 = vmatprep.subr.mxu0 0.0
  %931 = vmatpush1.msra.mxu0 0.0
  %932 = vmatprep.subr.mxu0 0.0
  %933 = vmatpush1.msra.mxu0 0.0
  %934 = vmatprep.subr.mxu0 0.0
  %935 = vmatpush1.msra.mxu0 0.0
  %936 = vmatprep.subr.mxu0 0.0
  %937 = vmatpush1.msra.mxu0 0.0
  %938 = vmatprep.subr.mxu0 0.0
  %939 = vmatpush1.msra.mxu0 0.0
  %940 = vmatprep.subr.mxu0 0.0
  %941 = vmatpush1.msra.mxu0 0.0
  %942 = vmatprep.subr.mxu0 0.0
  %943 = vmatpush1.msra.mxu0 0.0
  %944 = vmatprep.subr.mxu0 0.0
  %945 = vmatpush1.msra.mxu0 0.0
  %946 = vmatprep.subr.mxu0 0.0
  %947 = vmatpush1.msra.mxu0 0.0
  %948 = vmatprep.subr.mxu0 0.0
  %949 = vmatpush1.msra.mxu0 0.0
  %950 = vmatprep.subr.mxu0 0.0
  %951 = vmatpush1.msra.mxu0 0.0
  %952 = vmatprep.mubr.f32.mxu0 0.0
  %953 = vmatmul.mubr.f32.gmra.mrb[0].mxu0 %v793
  %v954 = vpop.f32.mrb[0].mxu0
  %v955 = vadd.f32 0.0, %v954
  %v956 = vpop.f32.mrb[0].mxu0
  %957 = vmatprep.mubr.f32.mxu0 0.0
  %958 = vmatmul.mubr.f32.gmra.mrb[0].mxu0 %v796
  %v959 = vpop.f32.mrb[0].mxu0
  %v960 = vadd.f32 0.0, %v959
  %v961 = vpop.f32.mrb[0].mxu0
  %962 = vmatprep.mubr.f32.mxu0 0.0
  %963 = vmatmul.mubr.f32.gmra.mrb[0].mxu0 %v799
  %v964 = vpop.f32.mrb[0].mxu0
  %v965 = vadd.f32 0.0, %v964
  %v966 = vpop.f32.mrb[0].mxu0
  %967 = vmatprep.mubr.f32.mxu0 0.0
  %968 = vmatmul.mubr.f32.gmra.mrb[0].mxu0 %v802
  %v969 = vpop.f32.mrb[0].mxu0
  %v970 = vadd.f32 0.0, %v969
  %v971 = vpop.f32.mrb[0].mxu0
  %972 = vmatprep.mubr.f32.mxu0 0.0
  %973 = vmatmul.mubr.f32.gmra.mrb[0].mxu0 %v805
  %v974 = vpop.f32.mrb[0].mxu0
  %v975 = vadd.f32 0.0, %v974
  %v976 = vpop.f32.mrb[0].mxu0
  %977 = vmatprep.mubr.f32.mxu0 0.0
  %978 = vmatmul.mubr.f32.gmra.mrb[0].mxu0 %v808
  %v979 = vpop.f32.mrb[0].mxu0
  %v980 = vadd.f32 0.0, %v979
  %v981 = vpop.f32.mrb[0].mxu0
  %982 = vmatprep.mubr.f32.mxu0 0.0
  %983 = vmatmul.mubr.f32.gmra.mrb[0].mxu0 %v811
  %v984 = vpop.f32.mrb[0].mxu0
  %v985 = vadd.f32 0.0, %v984
  %v986 = vpop.f32.mrb[0].mxu0
  %987 = vmatprep.mubr.f32.mxu0 0.0
  %988 = vmatmul.mubr.f32.gmra.mrb[0].mxu0 %v814
  %v989 = vpop.f32.mrb[0].mxu0
  %v990 = vadd.f32 0.0, %v989
  %v991 = vpop.f32.mrb[0].mxu0
  %992 = vmatprep.mubr.f32.mxu0 0.0
  %993 = vmatmul.mubr.f32.gmra.mrb[0].mxu0 %v817
  %v994 = vpop.f32.mrb[0].mxu0
  %v995 = vadd.f32 0.0, %v994
  %v996 = vpop.f32.mrb[0].mxu0
  %997 = vmatprep.mubr.f32.mxu0 0.0
  %998 = vmatmul.mubr.f32.gmra.mrb[0].mxu0 %v820
  %v999 = vpop.f32.mrb[0].mxu0
  %v1000 = vadd.f32 0.0, %v999
  %v1001 = vpop.f32.mrb[0].mxu0
  %1002 = vmatprep.mubr.f32.mxu0 0.0
  %1003 = vmatmul.mubr.f32.gmra.mrb[0].mxu0 %v823
  %v1004 = vpop.f32.mrb[0].mxu0
  %v1005 = vadd.f32 0.0, %v1004
  %v1006 = vpop.f32.mrb[0].mxu0
  %1007 = vmatprep.mubr.f32.mxu0 0.0
  %1008 = vmatmul.mubr.f32.gmra.mrb[0].mxu0 %v826
  %v1009 = vpop.f32.mrb[0].mxu0
  %v1010 = vadd.f32 0.0, %v1009
  %v1011 = vpop.f32.mrb[0].mxu0
  %1012 = vmatprep.mubr.f32.mxu0 0.0
  %1013 = vmatmul.mubr.f32.gmra.mrb[0].mxu0 %v829
  %v1014 = vpop.f32.mrb[0].mxu0
  %v1015 = vadd.f32 0.0, %v1014
  %v1016 = vpop.f32.mrb[0].mxu0
  %1017 = vmatprep.mubr.f32.mxu0 0.0
  %1018 = vmatmul.mubr.f32.gmra.mrb[0].mxu0 %v832
  %v1019 = vpop.f32.mrb[0].mxu0
  %v1020 = vadd.f32 0.0, %v1019
  %v1021 = vpop.f32.mrb[0].mxu0
  %1022 = vmatprep.mubr.f32.mxu0 0.0
  %1023 = vmatmul.mubr.f32.gmra.mrb[0].mxu0 %v835
  %v1024 = vpop.f32.mrb[0].mxu0
  %v1025 = vadd.f32 0.0, %v1024
  %v1026 = vpop.f32.mrb[0].mxu0
  %1027 = vmatprep.mubr.f32.mxu0 0.0
  %1028 = vmatmul.mubr.f32.gmra.mrb[0].mxu0 %v838
  %v1029 = vpop.f32.mrb[0].mxu0
  %v1030 = vadd.f32 0.0, %v1029
  %v1031 = vpop.f32.mrb[0].mxu0
  %1032 = vmatprep.mubr.f32.mxu0 0.0
  %1033 = vmatmul.mubr.f32.gmra.mrb[0].mxu0 %v841
  %v1034 = vpop.f32.mrb[0].mxu0
  %v1035 = vadd.f32 0.0, %v1034
  %v1036 = vpop.f32.mrb[0].mxu0
  %1037 = vmatprep.mubr.f32.mxu0 0.0
  %1038 = vmatmul.mubr.f32.gmra.mrb[0].mxu0 %v844
  %v1039 = vpop.f32.mrb[0].mxu0
  %v1040 = vadd.f32 0.0, %v1039
  %v1041 = vpop.f32.mrb[0].mxu0
  %1042 = vmatprep.mubr.f32.mxu0 0.0
  %1043 = vmatmul.mubr.f32.gmra.mrb[0].mxu0 %v847
  %v1044 = vpop.f32.mrb[0].mxu0
  %v1045 = vadd.f32 0.0, %v1044
  %v1046 = vpop.f32.mrb[0].mxu0
  %1047 = vmatprep.mubr.f32.mxu0 0.0
  %1048 = vmatmul.mubr.f32.gmra.mrb[0].mxu0 %v850
  %v1049 = vpop.f32.mrb[0].mxu0
  %v1050 = vadd.f32 0.0, %v1049
  %v1051 = vpop.f32.mrb[0].mxu0
  %1052 = vmatprep.mubr.f32.mxu0 0.0
  %1053 = vmatmul.mubr.f32.gmra.mrb[0].mxu0 %v853
  %v1054 = vpop.f32.mrb[0].mxu0
  %v1055 = vadd.f32 0.0, %v1054
  %v1056 = vpop.f32.mrb[0].mxu0
  %1057 = vmatprep.mubr.f32.mxu0 0.0
  %1058 = vmatmul.mubr.f32.gmra.mrb[0].mxu0 %v856
  %v1059 = vpop.f32.mrb[0].mxu0
  %v1060 = vadd.f32 0.0, %v1059
  %v1061 = vpop.f32.mrb[0].mxu0
  %1062 = vmatprep.mubr.f32.mxu0 0.0
  %1063 = vmatmul.mubr.f32.gmra.mrb[0].mxu0 %v859
  %v1064 = vpop.f32.mrb[0].mxu0
  %v1065 = vadd.f32 0.0, %v1064
  %v1066 = vpop.f32.mrb[0].mxu0
  %1067 = vmatprep.mubr.f32.mxu0 0.0
  %1068 = vmatmul.mubr.f32.gmra.mrb[0].mxu0 %v862
  %v1069 = vpop.f32.mrb[0].mxu0
  %v1070 = vadd.f32 0.0, %v1069
  %v1071 = vpop.f32.mrb[0].mxu0
  %1072 = vmatprep.mubr.f32.mxu0 0.0
  %1073 = vmatmul.mubr.f32.gmra.mrb[0].mxu0 %v865
  %v1074 = vpop.f32.mrb[0].mxu0
  %v1075 = vadd.f32 0.0, %v1074
  %v1076 = vpop.f32.mrb[0].mxu0
  %1077 = vmatprep.mubr.f32.mxu0 0.0
  %1078 = vmatmul.mubr.f32.gmra.mrb[0].mxu0 %v868
  %v1079 = vpop.f32.mrb[0].mxu0
  %v1080 = vadd.f32 0.0, %v1079
  %v1081 = vpop.f32.mrb[0].mxu0
  %1082 = vmatprep.mubr.f32.mxu0 0.0
  %1083 = vmatmul.mubr.f32.gmra.mrb[0].mxu0 %v871
  %v1084 = vpop.f32.mrb[0].mxu0
  %v1085 = vadd.f32 0.0, %v1084
  %v1086 = vpop.f32.mrb[0].mxu0
  %1087 = vmatprep.mubr.f32.mxu0 0.0
  %1088 = vmatmul.mubr.f32.gmra.mrb[0].mxu0 %v874
  %v1089 = vpop.f32.mrb[0].mxu0
  %v1090 = vadd.f32 0.0, %v1089
  %v1091 = vpop.f32.mrb[0].mxu0
  %1092 = vmatprep.mubr.f32.mxu0 0.0
  %1093 = vmatmul.mubr.f32.gmra.mrb[0].mxu0 %v877
  %v1094 = vpop.f32.mrb[0].mxu0
  %v1095 = vadd.f32 0.0, %v1094
  %v1096 = vpop.f32.mrb[0].mxu0
  %1097 = vmatprep.mubr.f32.mxu0 0.0
  %1098 = vmatmul.mubr.f32.gmra.mrb[0].mxu0 %v880
  %v1099 = vpop.f32.mrb[0].mxu0
  %v1100 = vadd.f32 0.0, %v1099
  %v1101 = vpop.f32.mrb[0].mxu0
  %1102 = vmatprep.mubr.f32.mxu0 0.0
  %1103 = vmatmul.mubr.f32.gmra.mrb[0].mxu0 %v883
  %v1104 = vpop.f32.mrb[0].mxu0
  %v1105 = vadd.f32 0.0, %v1104
  %v1106 = vpop.f32.mrb[0].mxu0
  %1107 = vmatprep.mubr.f32.mxu0 0.0
  %1108 = vmatmul.mubr.f32.gmra.mrb[0].mxu0 %v886
  %v1109 = vpop.f32.mrb[0].mxu0
  %v1110 = vadd.f32 0.0, %v1109
  %v1111 = vpop.f32.mrb[0].mxu0
  %1112 = vdwg.mxu0
  %vm1113 = vcmask 523264
  %v1114 = vsel %vm1113, %v955, -inf
  %1115 = vmax.xlane.f32.xlu0 %v1114
  %v1116 = vpop.xlane.xlu0 %1115
  %v1117 = vsel %vm1113, %v960, -inf
  %1118 = vmax.xlane.f32.xlu0 %v1117
  %v1119 = vpop.xlane.xlu0 %1118
  %v1120 = vsel %vm1113, %v965, -inf
  %1121 = vmax.xlane.f32.xlu0 %v1120
  %v1122 = vpop.xlane.xlu0 %1121
  %v1123 = vsel %vm1113, %v970, -inf
  %1124 = vmax.xlane.f32.xlu0 %v1123
  %v1125 = vpop.xlane.xlu0 %1124
  %v1126 = vsel %vm1113, %v975, -inf
  %1127 = vmax.xlane.f32.xlu0 %v1126
  %v1128 = vpop.xlane.xlu0 %1127
  %v1129 = vsel %vm1113, %v980, -inf
  %1130 = vmax.xlane.f32.xlu0 %v1129
  %v1131 = vpop.xlane.xlu0 %1130
  %v1132 = vsel %vm1113, %v985, -inf
  %1133 = vmax.xlane.f32.xlu0 %v1132
  %v1134 = vpop.xlane.xlu0 %1133
  %v1135 = vsel %vm1113, %v990, -inf
  %1136 = vmax.xlane.f32.xlu0 %v1135
  %v1137 = vpop.xlane.xlu0 %1136
  %v1138 = vsel %vm1113, %v995, -inf
  %1139 = vmax.xlane.f32.xlu0 %v1138
  %v1140 = vpop.xlane.xlu0 %1139
  %v1141 = vsel %vm1113, %v1000, -inf
  %1142 = vmax.xlane.f32.xlu0 %v1141
  %v1143 = vpop.xlane.xlu0 %1142
  %v1144 = vsel %vm1113, %v1005, -inf
  %1145 = vmax.xlane.f32.xlu0 %v1144
  %v1146 = vpop.xlane.xlu0 %1145
  %v1147 = vsel %vm1113, %v1010, -inf
  %1148 = vmax.xlane.f32.xlu0 %v1147
  %v1149 = vpop.xlane.xlu0 %1148
  %v1150 = vsel %vm1113, %v1015, -inf
  %1151 = vmax.xlane.f32.xlu0 %v1150
  %v1152 = vpop.xlane.xlu0 %1151
  %v1153 = vsel %vm1113, %v1020, -inf
  %1154 = vmax.xlane.f32.xlu0 %v1153
  %v1155 = vpop.xlane.xlu0 %1154
  %v1156 = vsel %vm1113, %v1025, -inf
  %1157 = vmax.xlane.f32.xlu0 %v1156
  %v1158 = vpop.xlane.xlu0 %1157
  %v1159 = vsel %vm1113, %v1030, -inf
  %1160 = vmax.xlane.f32.xlu0 %v1159
  %v1161 = vpop.xlane.xlu0 %1160
  %v1162 = vsel %vm1113, %v1035, -inf
  %1163 = vmax.xlane.f32.xlu0 %v1162
  %v1164 = vpop.xlane.xlu0 %1163
  %v1165 = vsel %vm1113, %v1040, -inf
  %1166 = vmax.xlane.f32.xlu0 %v1165
  %v1167 = vpop.xlane.xlu0 %1166
  %v1168 = vsel %vm1113, %v1045, -inf
  %1169 = vmax.xlane.f32.xlu0 %v1168
  %v1170 = vpop.xlane.xlu0 %1169
  %v1171 = vsel %vm1113, %v1050, -inf
  %1172 = vmax.xlane.f32.xlu0 %v1171
  %v1173 = vpop.xlane.xlu0 %1172
  %v1174 = vsel %vm1113, %v1055, -inf
  %1175 = vmax.xlane.f32.xlu0 %v1174
  %v1176 = vpop.xlane.xlu0 %1175
  %v1177 = vsel %vm1113, %v1060, -inf
  %1178 = vmax.xlane.f32.xlu0 %v1177
  %v1179 = vpop.xlane.xlu0 %1178
  %v1180 = vsel %vm1113, %v1065, -inf
  %1181 = vmax.xlane.f32.xlu0 %v1180
  %v1182 = vpop.xlane.xlu0 %1181
  %v1183 = vsel %vm1113, %v1070, -inf
  %1184 = vmax.xlane.f32.xlu0 %v1183
  %v1185 = vpop.xlane.xlu0 %1184
  %v1186 = vsel %vm1113, %v1075, -inf
  %1187 = vmax.xlane.f32.xlu0 %v1186
  %v1188 = vpop.xlane.xlu0 %1187
  %v1189 = vsel %vm1113, %v1080, -inf
  %1190 = vmax.xlane.f32.xlu0 %v1189
  %v1191 = vpop.xlane.xlu0 %1190
  %v1192 = vsel %vm1113, %v1085, -inf
  %1193 = vmax.xlane.f32.xlu0 %v1192
  %v1194 = vpop.xlane.xlu0 %1193
  %v1195 = vsel %vm1113, %v1090, -inf
  %1196 = vmax.xlane.f32.xlu0 %v1195
  %v1197 = vpop.xlane.xlu0 %1196
  %v1198 = vsel %vm1113, %v1095, -inf
  %1199 = vmax.xlane.f32.xlu0 %v1198
  %v1200 = vpop.xlane.xlu0 %1199
  %v1201 = vsel %vm1113, %v1100, -inf
  %1202 = vmax.xlane.f32.xlu0 %v1201
  %v1203 = vpop.xlane.xlu0 %1202
  %v1204 = vsel %vm1113, %v1105, -inf
  %1205 = vmax.xlane.f32.xlu0 %v1204
  %v1206 = vpop.xlane.xlu0 %1205
  %v1207 = vsel %vm1113, %v1110, -inf
  %1208 = vmax.xlane.f32.xlu0 %v1207
  %v1209 = vpop.xlane.xlu0 %1208
  %v1210 = vlaneseq
  %v1211 = vand.u32 %v1210, 127
  %vm1212 = vcmp.eq.f32.partialorder %v955, %v1116
  %vm1213 = vcmp.eq.f32.partialorder %v960, %v1119
  %vm1214 = vcmp.eq.f32.partialorder %v965, %v1122
  %vm1215 = vcmp.eq.f32.partialorder %v970, %v1125
  %vm1216 = vcmp.eq.f32.partialorder %v975, %v1128
  %vm1217 = vcmp.eq.f32.partialorder %v980, %v1131
  %vm1218 = vcmp.eq.f32.partialorder %v985, %v1134
  %vm1219 = vcmp.eq.f32.partialorder %v990, %v1137
  %vm1220 = vcmp.eq.f32.partialorder %v995, %v1140
  %vm1221 = vcmp.eq.f32.partialorder %v1000, %v1143
  %vm1222 = vcmp.eq.f32.partialorder %v1005, %v1146
  %vm1223 = vcmp.eq.f32.partialorder %v1010, %v1149
  %vm1224 = vcmp.eq.f32.partialorder %v1015, %v1152
  %vm1225 = vcmp.eq.f32.partialorder %v1020, %v1155
  %vm1226 = vcmp.eq.f32.partialorder %v1025, %v1158
  %vm1227 = vcmp.eq.f32.partialorder %v1030, %v1161
  %vm1228 = vcmp.eq.f32.partialorder %v1035, %v1164
  %vm1229 = vcmp.eq.f32.partialorder %v1040, %v1167
  %vm1230 = vcmp.eq.f32.partialorder %v1045, %v1170
  %vm1231 = vcmp.eq.f32.partialorder %v1050, %v1173
  %vm1232 = vcmp.eq.f32.partialorder %v1055, %v1176
  %vm1233 = vcmp.eq.f32.partialorder %v1060, %v1179
  %vm1234 = vcmp.eq.f32.partialorder %v1065, %v1182
  %vm1235 = vcmp.eq.f32.partialorder %v1070, %v1185
  %vm1236 = vcmp.eq.f32.partialorder %v1075, %v1188
  %vm1237 = vcmp.eq.f32.partialorder %v1080, %v1191
  %vm1238 = vcmp.eq.f32.partialorder %v1085, %v1194
  %vm1239 = vcmp.eq.f32.partialorder %v1090, %v1197
  %vm1240 = vcmp.eq.f32.partialorder %v1095, %v1200
  %vm1241 = vcmp.eq.f32.partialorder %v1100, %v1203
  %vm1242 = vcmp.eq.f32.partialorder %v1105, %v1206
  %vm1243 = vcmp.eq.f32.partialorder %v1110, %v1209
  %v1244 = vsel %vm1212, %v1211, 64
  %v1245 = vsel %vm1213, %v1211, 64
  %v1246 = vsel %vm1214, %v1211, 64
  %v1247 = vsel %vm1215, %v1211, 64
  %v1248 = vsel %vm1216, %v1211, 64
  %v1249 = vsel %vm1217, %v1211, 64
  %v1250 = vsel %vm1218, %v1211, 64
  %v1251 = vsel %vm1219, %v1211, 64
  %v1252 = vsel %vm1220, %v1211, 64
  %v1253 = vsel %vm1221, %v1211, 64
  %v1254 = vsel %vm1222, %v1211, 64
  %v1255 = vsel %vm1223, %v1211, 64
  %v1256 = vsel %vm1224, %v1211, 64
  %v1257 = vsel %vm1225, %v1211, 64
  %v1258 = vsel %vm1226, %v1211, 64
  %v1259 = vsel %vm1227, %v1211, 64
  %v1260 = vsel %vm1228, %v1211, 64
  %v1261 = vsel %vm1229, %v1211, 64
  %v1262 = vsel %vm1230, %v1211, 64
  %v1263 = vsel %vm1231, %v1211, 64
  %v1264 = vsel %vm1232, %v1211, 64
  %v1265 = vsel %vm1233, %v1211, 64
  %v1266 = vsel %vm1234, %v1211, 64
  %v1267 = vsel %vm1235, %v1211, 64
  %v1268 = vsel %vm1236, %v1211, 64
  %v1269 = vsel %vm1237, %v1211, 64
  %v1270 = vsel %vm1238, %v1211, 64
  %v1271 = vsel %vm1239, %v1211, 64
  %v1272 = vsel %vm1240, %v1211, 64
  %v1273 = vsel %vm1241, %v1211, 64
  %v1274 = vsel %vm1242, %v1211, 64
  %v1275 = vsel %vm1243, %v1211, 64
  %v1276 = vsel %vm1113, %v1244, 2147483647
  %v1277 = vand.u32 %v1276, 65535
  %v1278 = vshra.s32 %v1276, 16
  %v1279 = vcvt.s32.f32 %v1277
  %v1280 = vcvt.s32.f32 %v1278
  %1281 = vmin.xlane.f32.xlu0 %v1280
  %v1282 = vpop.xlane.xlu0 %1281
  %vm1283 = vcmp.eq.f32.partialorder %v1280, %v1282
  %v1284 = vsel %vm1283, %v1279, inf
  %1285 = vmin.xlane.f32.xlu0 %v1284
  %v1286 = vpop.xlane.xlu0 %1285
  %v1287 = vcvt.f32.s32 %v1286
  %v1288 = vcvt.f32.s32 %v1282
  %v1289 = vshll.u32 %v1288, 16
  %v1290 = vadd.s32 %v1289, %v1287
  %v1291 = vsel %vm1113, %v1245, 2147483647
  %v1292 = vand.u32 %v1291, 65535
  %v1293 = vshra.s32 %v1291, 16
  %v1294 = vcvt.s32.f32 %v1292
  %v1295 = vcvt.s32.f32 %v1293
  %1296 = vmin.xlane.f32.xlu0 %v1295
  %v1297 = vpop.xlane.xlu0 %1296
  %vm1298 = vcmp.eq.f32.partialorder %v1295, %v1297
  %v1299 = vsel %vm1298, %v1294, inf
  %1300 = vmin.xlane.f32.xlu0 %v1299
  %v1301 = vpop.xlane.xlu0 %1300
  %v1302 = vcvt.f32.s32 %v1301
  %v1303 = vcvt.f32.s32 %v1297
  %v1304 = vshll.u32 %v1303, 16
  %v1305 = vadd.s32 %v1304, %v1302
  %v1306 = vsel %vm1113, %v1246, 2147483647
  %v1307 = vand.u32 %v1306, 65535
  %v1308 = vshra.s32 %v1306, 16
  %v1309 = vcvt.s32.f32 %v1307
  %v1310 = vcvt.s32.f32 %v1308
  %1311 = vmin.xlane.f32.xlu0 %v1310
  %v1312 = vpop.xlane.xlu0 %1311
  %vm1313 = vcmp.eq.f32.partialorder %v1310, %v1312
  %v1314 = vsel %vm1313, %v1309, inf
  %1315 = vmin.xlane.f32.xlu0 %v1314
  %v1316 = vpop.xlane.xlu0 %1315
  %v1317 = vcvt.f32.s32 %v1316
  %v1318 = vcvt.f32.s32 %v1312
  %v1319 = vshll.u32 %v1318, 16
  %v1320 = vadd.s32 %v1319, %v1317
  %v1321 = vsel %vm1113, %v1247, 2147483647
  %v1322 = vand.u32 %v1321, 65535
  %v1323 = vshra.s32 %v1321, 16
  %v1324 = vcvt.s32.f32 %v1322
  %v1325 = vcvt.s32.f32 %v1323
  %1326 = vmin.xlane.f32.xlu0 %v1325
  %v1327 = vpop.xlane.xlu0 %1326
  %vm1328 = vcmp.eq.f32.partialorder %v1325, %v1327
  %v1329 = vsel %vm1328, %v1324, inf
  %1330 = vmin.xlane.f32.xlu0 %v1329
  %v1331 = vpop.xlane.xlu0 %1330
  %v1332 = vcvt.f32.s32 %v1331
  %v1333 = vcvt.f32.s32 %v1327
  %v1334 = vshll.u32 %v1333, 16
  %v1335 = vadd.s32 %v1334, %v1332
  %v1336 = vsel %vm1113, %v1248, 2147483647
  %v1337 = vand.u32 %v1336, 65535
  %v1338 = vshra.s32 %v1336, 16
  %v1339 = vcvt.s32.f32 %v1337
  %v1340 = vcvt.s32.f32 %v1338
  %1341 = vmin.xlane.f32.xlu0 %v1340
  %v1342 = vpop.xlane.xlu0 %1341
  %vm1343 = vcmp.eq.f32.partialorder %v1340, %v1342
  %v1344 = vsel %vm1343, %v1339, inf
  %1345 = vmin.xlane.f32.xlu0 %v1344
  %v1346 = vpop.xlane.xlu0 %1345
  %v1347 = vcvt.f32.s32 %v1346
  %v1348 = vcvt.f32.s32 %v1342
  %v1349 = vshll.u32 %v1348, 16
  %v1350 = vadd.s32 %v1349, %v1347
  %v1351 = vsel %vm1113, %v1249, 2147483647
  %v1352 = vand.u32 %v1351, 65535
  %v1353 = vshra.s32 %v1351, 16
  %v1354 = vcvt.s32.f32 %v1352
  %v1355 = vcvt.s32.f32 %v1353
  %1356 = vmin.xlane.f32.xlu0 %v1355
  %v1357 = vpop.xlane.xlu0 %1356
  %vm1358 = vcmp.eq.f32.partialorder %v1355, %v1357
  %v1359 = vsel %vm1358, %v1354, inf
  %1360 = vmin.xlane.f32.xlu0 %v1359
  %v1361 = vpop.xlane.xlu0 %1360
  %v1362 = vcvt.f32.s32 %v1361
  %v1363 = vcvt.f32.s32 %v1357
  %v1364 = vshll.u32 %v1363, 16
  %v1365 = vadd.s32 %v1364, %v1362
  %v1366 = vsel %vm1113, %v1250, 2147483647
  %v1367 = vand.u32 %v1366, 65535
  %v1368 = vshra.s32 %v1366, 16
  %v1369 = vcvt.s32.f32 %v1367
  %v1370 = vcvt.s32.f32 %v1368
  %1371 = vmin.xlane.f32.xlu0 %v1370
  %v1372 = vpop.xlane.xlu0 %1371
  %vm1373 = vcmp.eq.f32.partialorder %v1370, %v1372
  %v1374 = vsel %vm1373, %v1369, inf
  %1375 = vmin.xlane.f32.xlu0 %v1374
  %v1376 = vpop.xlane.xlu0 %1375
  %v1377 = vcvt.f32.s32 %v1376
  %v1378 = vcvt.f32.s32 %v1372
  %v1379 = vshll.u32 %v1378, 16
  %v1380 = vadd.s32 %v1379, %v1377
  %v1381 = vsel %vm1113, %v1251, 2147483647
  %v1382 = vand.u32 %v1381, 65535
  %v1383 = vshra.s32 %v1381, 16
  %v1384 = vcvt.s32.f32 %v1382
  %v1385 = vcvt.s32.f32 %v1383
  %1386 = vmin.xlane.f32.xlu0 %v1385
  %v1387 = vpop.xlane.xlu0 %1386
  %vm1388 = vcmp.eq.f32.partialorder %v1385, %v1387
  %v1389 = vsel %vm1388, %v1384, inf
  %1390 = vmin.xlane.f32.xlu0 %v1389
  %v1391 = vpop.xlane.xlu0 %1390
  %v1392 = vcvt.f32.s32 %v1391
  %v1393 = vcvt.f32.s32 %v1387
  %v1394 = vshll.u32 %v1393, 16
  %v1395 = vadd.s32 %v1394, %v1392
  %v1396 = vsel %vm1113, %v1252, 2147483647
  %v1397 = vand.u32 %v1396, 65535
  %v1398 = vshra.s32 %v1396, 16
  %v1399 = vcvt.s32.f32 %v1397
  %v1400 = vcvt.s32.f32 %v1398
  %1401 = vmin.xlane.f32.xlu0 %v1400
  %v1402 = vpop.xlane.xlu0 %1401
  %vm1403 = vcmp.eq.f32.partialorder %v1400, %v1402
  %v1404 = vsel %vm1403, %v1399, inf
  %1405 = vmin.xlane.f32.xlu0 %v1404
  %v1406 = vpop.xlane.xlu0 %1405
  %v1407 = vcvt.f32.s32 %v1406
  %v1408 = vcvt.f32.s32 %v1402
  %v1409 = vshll.u32 %v1408, 16
  %v1410 = vadd.s32 %v1409, %v1407
  %v1411 = vsel %vm1113, %v1253, 2147483647
  %v1412 = vand.u32 %v1411, 65535
  %v1413 = vshra.s32 %v1411, 16
  %v1414 = vcvt.s32.f32 %v1412
  %v1415 = vcvt.s32.f32 %v1413
  %1416 = vmin.xlane.f32.xlu0 %v1415
  %v1417 = vpop.xlane.xlu0 %1416
  %vm1418 = vcmp.eq.f32.partialorder %v1415, %v1417
  %v1419 = vsel %vm1418, %v1414, inf
  %1420 = vmin.xlane.f32.xlu0 %v1419
  %v1421 = vpop.xlane.xlu0 %1420
  %v1422 = vcvt.f32.s32 %v1421
  %v1423 = vcvt.f32.s32 %v1417
  %v1424 = vshll.u32 %v1423, 16
  %v1425 = vadd.s32 %v1424, %v1422
  %v1426 = vsel %vm1113, %v1254, 2147483647
  %v1427 = vand.u32 %v1426, 65535
  %v1428 = vshra.s32 %v1426, 16
  %v1429 = vcvt.s32.f32 %v1427
  %v1430 = vcvt.s32.f32 %v1428
  %1431 = vmin.xlane.f32.xlu0 %v1430
  %v1432 = vpop.xlane.xlu0 %1431
  %vm1433 = vcmp.eq.f32.partialorder %v1430, %v1432
  %v1434 = vsel %vm1433, %v1429, inf
  %1435 = vmin.xlane.f32.xlu0 %v1434
  %v1436 = vpop.xlane.xlu0 %1435
  %v1437 = vcvt.f32.s32 %v1436
  %v1438 = vcvt.f32.s32 %v1432
  %v1439 = vshll.u32 %v1438, 16
  %v1440 = vadd.s32 %v1439, %v1437
  %v1441 = vsel %vm1113, %v1255, 2147483647
  %v1442 = vand.u32 %v1441, 65535
  %v1443 = vshra.s32 %v1441, 16
  %v1444 = vcvt.s32.f32 %v1442
  %v1445 = vcvt.s32.f32 %v1443
  %1446 = vmin.xlane.f32.xlu0 %v1445
  %v1447 = vpop.xlane.xlu0 %1446
  %vm1448 = vcmp.eq.f32.partialorder %v1445, %v1447
  %v1449 = vsel %vm1448, %v1444, inf
  %1450 = vmin.xlane.f32.xlu0 %v1449
  %v1451 = vpop.xlane.xlu0 %1450
  %v1452 = vcvt.f32.s32 %v1451
  %v1453 = vcvt.f32.s32 %v1447
  %v1454 = vshll.u32 %v1453, 16
  %v1455 = vadd.s32 %v1454, %v1452
  %v1456 = vsel %vm1113, %v1256, 2147483647
  %v1457 = vand.u32 %v1456, 65535
  %v1458 = vshra.s32 %v1456, 16
  %v1459 = vcvt.s32.f32 %v1457
  %v1460 = vcvt.s32.f32 %v1458
  %1461 = vmin.xlane.f32.xlu0 %v1460
  %v1462 = vpop.xlane.xlu0 %1461
  %vm1463 = vcmp.eq.f32.partialorder %v1460, %v1462
  %v1464 = vsel %vm1463, %v1459, inf
  %1465 = vmin.xlane.f32.xlu0 %v1464
  %v1466 = vpop.xlane.xlu0 %1465
  %v1467 = vcvt.f32.s32 %v1466
  %v1468 = vcvt.f32.s32 %v1462
  %v1469 = vshll.u32 %v1468, 16
  %v1470 = vadd.s32 %v1469, %v1467
  %v1471 = vsel %vm1113, %v1257, 2147483647
  %v1472 = vand.u32 %v1471, 65535
  %v1473 = vshra.s32 %v1471, 16
  %v1474 = vcvt.s32.f32 %v1472
  %v1475 = vcvt.s32.f32 %v1473
  %1476 = vmin.xlane.f32.xlu0 %v1475
  %v1477 = vpop.xlane.xlu0 %1476
  %vm1478 = vcmp.eq.f32.partialorder %v1475, %v1477
  %v1479 = vsel %vm1478, %v1474, inf
  %1480 = vmin.xlane.f32.xlu0 %v1479
  %v1481 = vpop.xlane.xlu0 %1480
  %v1482 = vcvt.f32.s32 %v1481
  %v1483 = vcvt.f32.s32 %v1477
  %v1484 = vshll.u32 %v1483, 16
  %v1485 = vadd.s32 %v1484, %v1482
  %v1486 = vsel %vm1113, %v1258, 2147483647
  %v1487 = vand.u32 %v1486, 65535
  %v1488 = vshra.s32 %v1486, 16
  %v1489 = vcvt.s32.f32 %v1487
  %v1490 = vcvt.s32.f32 %v1488
  %1491 = vmin.xlane.f32.xlu0 %v1490
  %v1492 = vpop.xlane.xlu0 %1491
  %vm1493 = vcmp.eq.f32.partialorder %v1490, %v1492
  %v1494 = vsel %vm1493, %v1489, inf
  %1495 = vmin.xlane.f32.xlu0 %v1494
  %v1496 = vpop.xlane.xlu0 %1495
  %v1497 = vcvt.f32.s32 %v1496
  %v1498 = vcvt.f32.s32 %v1492
  %v1499 = vshll.u32 %v1498, 16
  %v1500 = vadd.s32 %v1499, %v1497
  %v1501 = vsel %vm1113, %v1259, 2147483647
  %v1502 = vand.u32 %v1501, 65535
  %v1503 = vshra.s32 %v1501, 16
  %v1504 = vcvt.s32.f32 %v1502
  %v1505 = vcvt.s32.f32 %v1503
  %1506 = vmin.xlane.f32.xlu0 %v1505
  %v1507 = vpop.xlane.xlu0 %1506
  %vm1508 = vcmp.eq.f32.partialorder %v1505, %v1507
  %v1509 = vsel %vm1508, %v1504, inf
  %1510 = vmin.xlane.f32.xlu0 %v1509
  %v1511 = vpop.xlane.xlu0 %1510
  %v1512 = vcvt.f32.s32 %v1511
  %v1513 = vcvt.f32.s32 %v1507
  %v1514 = vshll.u32 %v1513, 16
  %v1515 = vadd.s32 %v1514, %v1512
  %v1516 = vsel %vm1113, %v1260, 2147483647
  %v1517 = vand.u32 %v1516, 65535
  %v1518 = vshra.s32 %v1516, 16
  %v1519 = vcvt.s32.f32 %v1517
  %v1520 = vcvt.s32.f32 %v1518
  %1521 = vmin.xlane.f32.xlu0 %v1520
  %v1522 = vpop.xlane.xlu0 %1521
  %vm1523 = vcmp.eq.f32.partialorder %v1520, %v1522
  %v1524 = vsel %vm1523, %v1519, inf
  %1525 = vmin.xlane.f32.xlu0 %v1524
  %v1526 = vpop.xlane.xlu0 %1525
  %v1527 = vcvt.f32.s32 %v1526
  %v1528 = vcvt.f32.s32 %v1522
  %v1529 = vshll.u32 %v1528, 16
  %v1530 = vadd.s32 %v1529, %v1527
  %v1531 = vsel %vm1113, %v1261, 2147483647
  %v1532 = vand.u32 %v1531, 65535
  %v1533 = vshra.s32 %v1531, 16
  %v1534 = vcvt.s32.f32 %v1532
  %v1535 = vcvt.s32.f32 %v1533
  %1536 = vmin.xlane.f32.xlu0 %v1535
  %v1537 = vpop.xlane.xlu0 %1536
  %vm1538 = vcmp.eq.f32.partialorder %v1535, %v1537
  %v1539 = vsel %vm1538, %v1534, inf
  %1540 = vmin.xlane.f32.xlu0 %v1539
  %v1541 = vpop.xlane.xlu0 %1540
  %v1542 = vcvt.f32.s32 %v1541
  %v1543 = vcvt.f32.s32 %v1537
  %v1544 = vshll.u32 %v1543, 16
  %v1545 = vadd.s32 %v1544, %v1542
  %v1546 = vsel %vm1113, %v1262, 2147483647
  %v1547 = vand.u32 %v1546, 65535
  %v1548 = vshra.s32 %v1546, 16
  %v1549 = vcvt.s32.f32 %v1547
  %v1550 = vcvt.s32.f32 %v1548
  %1551 = vmin.xlane.f32.xlu0 %v1550
  %v1552 = vpop.xlane.xlu0 %1551
  %vm1553 = vcmp.eq.f32.partialorder %v1550, %v1552
  %v1554 = vsel %vm1553, %v1549, inf
  %1555 = vmin.xlane.f32.xlu0 %v1554
  %v1556 = vpop.xlane.xlu0 %1555
  %v1557 = vcvt.f32.s32 %v1556
  %v1558 = vcvt.f32.s32 %v1552
  %v1559 = vshll.u32 %v1558, 16
  %v1560 = vadd.s32 %v1559, %v1557
  %v1561 = vsel %vm1113, %v1263, 2147483647
  %v1562 = vand.u32 %v1561, 65535
  %v1563 = vshra.s32 %v1561, 16
  %v1564 = vcvt.s32.f32 %v1562
  %v1565 = vcvt.s32.f32 %v1563
  %1566 = vmin.xlane.f32.xlu0 %v1565
  %v1567 = vpop.xlane.xlu0 %1566
  %vm1568 = vcmp.eq.f32.partialorder %v1565, %v1567
  %v1569 = vsel %vm1568, %v1564, inf
  %1570 = vmin.xlane.f32.xlu0 %v1569
  %v1571 = vpop.xlane.xlu0 %1570
  %v1572 = vcvt.f32.s32 %v1571
  %v1573 = vcvt.f32.s32 %v1567
  %v1574 = vshll.u32 %v1573, 16
  %v1575 = vadd.s32 %v1574, %v1572
  %v1576 = vsel %vm1113, %v1264, 2147483647
  %v1577 = vand.u32 %v1576, 65535
  %v1578 = vshra.s32 %v1576, 16
  %v1579 = vcvt.s32.f32 %v1577
  %v1580 = vcvt.s32.f32 %v1578
  %1581 = vmin.xlane.f32.xlu0 %v1580
  %v1582 = vpop.xlane.xlu0 %1581
  %vm1583 = vcmp.eq.f32.partialorder %v1580, %v1582
  %v1584 = vsel %vm1583, %v1579, inf
  %1585 = vmin.xlane.f32.xlu0 %v1584
  %v1586 = vpop.xlane.xlu0 %1585
  %v1587 = vcvt.f32.s32 %v1586
  %v1588 = vcvt.f32.s32 %v1582
  %v1589 = vshll.u32 %v1588, 16
  %v1590 = vadd.s32 %v1589, %v1587
  %v1591 = vsel %vm1113, %v1265, 2147483647
  %v1592 = vand.u32 %v1591, 65535
  %v1593 = vshra.s32 %v1591, 16
  %v1594 = vcvt.s32.f32 %v1592
  %v1595 = vcvt.s32.f32 %v1593
  %1596 = vmin.xlane.f32.xlu0 %v1595
  %v1597 = vpop.xlane.xlu0 %1596
  %vm1598 = vcmp.eq.f32.partialorder %v1595, %v1597
  %v1599 = vsel %vm1598, %v1594, inf
  %1600 = vmin.xlane.f32.xlu0 %v1599
  %v1601 = vpop.xlane.xlu0 %1600
  %v1602 = vcvt.f32.s32 %v1601
  %v1603 = vcvt.f32.s32 %v1597
  %v1604 = vshll.u32 %v1603, 16
  %v1605 = vadd.s32 %v1604, %v1602
  %v1606 = vsel %vm1113, %v1266, 2147483647
  %v1607 = vand.u32 %v1606, 65535
  %v1608 = vshra.s32 %v1606, 16
  %v1609 = vcvt.s32.f32 %v1607
  %v1610 = vcvt.s32.f32 %v1608
  %1611 = vmin.xlane.f32.xlu0 %v1610
  %v1612 = vpop.xlane.xlu0 %1611
  %vm1613 = vcmp.eq.f32.partialorder %v1610, %v1612
  %v1614 = vsel %vm1613, %v1609, inf
  %1615 = vmin.xlane.f32.xlu0 %v1614
  %v1616 = vpop.xlane.xlu0 %1615
  %v1617 = vcvt.f32.s32 %v1616
  %v1618 = vcvt.f32.s32 %v1612
  %v1619 = vshll.u32 %v1618, 16
  %v1620 = vadd.s32 %v1619, %v1617
  %v1621 = vsel %vm1113, %v1267, 2147483647
  %v1622 = vand.u32 %v1621, 65535
  %v1623 = vshra.s32 %v1621, 16
  %v1624 = vcvt.s32.f32 %v1622
  %v1625 = vcvt.s32.f32 %v1623
  %1626 = vmin.xlane.f32.xlu0 %v1625
  %v1627 = vpop.xlane.xlu0 %1626
  %vm1628 = vcmp.eq.f32.partialorder %v1625, %v1627
  %v1629 = vsel %vm1628, %v1624, inf
  %1630 = vmin.xlane.f32.xlu0 %v1629
  %v1631 = vpop.xlane.xlu0 %1630
  %v1632 = vcvt.f32.s32 %v1631
  %v1633 = vcvt.f32.s32 %v1627
  %v1634 = vshll.u32 %v1633, 16
  %v1635 = vadd.s32 %v1634, %v1632
  %v1636 = vsel %vm1113, %v1268, 2147483647
  %v1637 = vand.u32 %v1636, 65535
  %v1638 = vshra.s32 %v1636, 16
  %v1639 = vcvt.s32.f32 %v1637
  %v1640 = vcvt.s32.f32 %v1638
  %1641 = vmin.xlane.f32.xlu0 %v1640
  %v1642 = vpop.xlane.xlu0 %1641
  %vm1643 = vcmp.eq.f32.partialorder %v1640, %v1642
  %v1644 = vsel %vm1643, %v1639, inf
  %1645 = vmin.xlane.f32.xlu0 %v1644
  %v1646 = vpop.xlane.xlu0 %1645
  %v1647 = vcvt.f32.s32 %v1646
  %v1648 = vcvt.f32.s32 %v1642
  %v1649 = vshll.u32 %v1648, 16
  %v1650 = vadd.s32 %v1649, %v1647
  %v1651 = vsel %vm1113, %v1269, 2147483647
  %v1652 = vand.u32 %v1651, 65535
  %v1653 = vshra.s32 %v1651, 16
  %v1654 = vcvt.s32.f32 %v1652
  %v1655 = vcvt.s32.f32 %v1653
  %1656 = vmin.xlane.f32.xlu0 %v1655
  %v1657 = vpop.xlane.xlu0 %1656
  %vm1658 = vcmp.eq.f32.partialorder %v1655, %v1657
  %v1659 = vsel %vm1658, %v1654, inf
  %1660 = vmin.xlane.f32.xlu0 %v1659
  %v1661 = vpop.xlane.xlu0 %1660
  %v1662 = vcvt.f32.s32 %v1661
  %v1663 = vcvt.f32.s32 %v1657
  %v1664 = vshll.u32 %v1663, 16
  %v1665 = vadd.s32 %v1664, %v1662
  %v1666 = vsel %vm1113, %v1270, 2147483647
  %v1667 = vand.u32 %v1666, 65535
  %v1668 = vshra.s32 %v1666, 16
  %v1669 = vcvt.s32.f32 %v1667
  %v1670 = vcvt.s32.f32 %v1668
  %1671 = vmin.xlane.f32.xlu0 %v1670
  %v1672 = vpop.xlane.xlu0 %1671
  %vm1673 = vcmp.eq.f32.partialorder %v1670, %v1672
  %v1674 = vsel %vm1673, %v1669, inf
  %1675 = vmin.xlane.f32.xlu0 %v1674
  %v1676 = vpop.xlane.xlu0 %1675
  %v1677 = vcvt.f32.s32 %v1676
  %v1678 = vcvt.f32.s32 %v1672
  %v1679 = vshll.u32 %v1678, 16
  %v1680 = vadd.s32 %v1679, %v1677
  %v1681 = vsel %vm1113, %v1271, 2147483647
  %v1682 = vand.u32 %v1681, 65535
  %v1683 = vshra.s32 %v1681, 16
  %v1684 = vcvt.s32.f32 %v1682
  %v1685 = vcvt.s32.f32 %v1683
  %1686 = vmin.xlane.f32.xlu0 %v1685
  %v1687 = vpop.xlane.xlu0 %1686
  %vm1688 = vcmp.eq.f32.partialorder %v1685, %v1687
  %v1689 = vsel %vm1688, %v1684, inf
  %1690 = vmin.xlane.f32.xlu0 %v1689
  %v1691 = vpop.xlane.xlu0 %1690
  %v1692 = vcvt.f32.s32 %v1691
  %v1693 = vcvt.f32.s32 %v1687
  %v1694 = vshll.u32 %v1693, 16
  %v1695 = vadd.s32 %v1694, %v1692
  %v1696 = vsel %vm1113, %v1272, 2147483647
  %v1697 = vand.u32 %v1696, 65535
  %v1698 = vshra.s32 %v1696, 16
  %v1699 = vcvt.s32.f32 %v1697
  %v1700 = vcvt.s32.f32 %v1698
  %1701 = vmin.xlane.f32.xlu0 %v1700
  %v1702 = vpop.xlane.xlu0 %1701
  %vm1703 = vcmp.eq.f32.partialorder %v1700, %v1702
  %v1704 = vsel %vm1703, %v1699, inf
  %1705 = vmin.xlane.f32.xlu0 %v1704
  %v1706 = vpop.xlane.xlu0 %1705
  %v1707 = vcvt.f32.s32 %v1706
  %v1708 = vcvt.f32.s32 %v1702
  %v1709 = vshll.u32 %v1708, 16
  %v1710 = vadd.s32 %v1709, %v1707
  %v1711 = vsel %vm1113, %v1273, 2147483647
  %v1712 = vand.u32 %v1711, 65535
  %v1713 = vshra.s32 %v1711, 16
  %v1714 = vcvt.s32.f32 %v1712
  %v1715 = vcvt.s32.f32 %v1713
  %1716 = vmin.xlane.f32.xlu0 %v1715
  %v1717 = vpop.xlane.xlu0 %1716
  %vm1718 = vcmp.eq.f32.partialorder %v1715, %v1717
  %v1719 = vsel %vm1718, %v1714, inf
  %1720 = vmin.xlane.f32.xlu0 %v1719
  %v1721 = vpop.xlane.xlu0 %1720
  %v1722 = vcvt.f32.s32 %v1721
  %v1723 = vcvt.f32.s32 %v1717
  %v1724 = vshll.u32 %v1723, 16
  %v1725 = vadd.s32 %v1724, %v1722
  %v1726 = vsel %vm1113, %v1274, 2147483647
  %v1727 = vand.u32 %v1726, 65535
  %v1728 = vshra.s32 %v1726, 16
  %v1729 = vcvt.s32.f32 %v1727
  %v1730 = vcvt.s32.f32 %v1728
  %1731 = vmin.xlane.f32.xlu0 %v1730
  %v1732 = vpop.xlane.xlu0 %1731
  %vm1733 = vcmp.eq.f32.partialorder %v1730, %v1732
  %v1734 = vsel %vm1733, %v1729, inf
  %1735 = vmin.xlane.f32.xlu0 %v1734
  %v1736 = vpop.xlane.xlu0 %1735
  %v1737 = vcvt.f32.s32 %v1736
  %v1738 = vcvt.f32.s32 %v1732
  %v1739 = vshll.u32 %v1738, 16
  %v1740 = vadd.s32 %v1739, %v1737
  %v1741 = vsel %vm1113, %v1275, 2147483647
  %v1742 = vand.u32 %v1741, 65535
  %v1743 = vshra.s32 %v1741, 16
  %v1744 = vcvt.s32.f32 %v1742
  %v1745 = vcvt.s32.f32 %v1743
  %1746 = vmin.xlane.f32.xlu0 %v1745
  %v1747 = vpop.xlane.xlu0 %1746
  %vm1748 = vcmp.eq.f32.partialorder %v1745, %v1747
  %v1749 = vsel %vm1748, %v1744, inf
  %1750 = vmin.xlane.f32.xlu0 %v1749
  %v1751 = vpop.xlane.xlu0 %1750
  %v1752 = vcvt.f32.s32 %v1751
  %v1753 = vcvt.f32.s32 %v1747
  %v1754 = vshll.u32 %v1753, 16
  %v1755 = vadd.s32 %v1754, %v1752
  %v1756 = vlaneseq
  %v1757 = vshrl.u32 %v1756, 7
  %v1758 = vsub.s32 0, %v1757
  %v1759 = vrot.slane %v1290, %v1758
  %v1760 = vlaneseq
  %v1761 = vshrl.u32 %v1760, 7
  %v1762 = vsub.s32 1, %v1761
  %v1763 = vrot.slane %v1290, %v1762
  %v1764 = vlaneseq
  %v1765 = vshrl.u32 %v1764, 7
  %v1766 = vsub.s32 2, %v1765
  %v1767 = vrot.slane %v1290, %v1766
  %v1768 = vlaneseq
  %v1769 = vshrl.u32 %v1768, 7
  %v1770 = vsub.s32 3, %v1769
  %v1771 = vrot.slane %v1290, %v1770
  %v1772 = vlaneseq
  %v1773 = vshrl.u32 %v1772, 7
  %v1774 = vsub.s32 4, %v1773
  %v1775 = vrot.slane %v1290, %v1774
  %v1776 = vlaneseq
  %v1777 = vshrl.u32 %v1776, 7
  %v1778 = vsub.s32 5, %v1777
  %v1779 = vrot.slane %v1290, %v1778
  %v1780 = vlaneseq
  %v1781 = vshrl.u32 %v1780, 7
  %v1782 = vsub.s32 6, %v1781
  %v1783 = vrot.slane %v1290, %v1782
  %v1784 = vlaneseq
  %v1785 = vshrl.u32 %v1784, 7
  %v1786 = vsub.s32 7, %v1785
  %v1787 = vrot.slane %v1290, %v1786
  %v1788 = vlaneseq
  %v1789 = vshrl.u32 %v1788, 7
  %v1790 = vsub.s32 0, %v1789
  %v1791 = vrot.slane %v1305, %v1790
  %v1792 = vlaneseq
  %v1793 = vshrl.u32 %v1792, 7
  %v1794 = vsub.s32 1, %v1793
  %v1795 = vrot.slane %v1305, %v1794
  %v1796 = vlaneseq
  %v1797 = vshrl.u32 %v1796, 7
  %v1798 = vsub.s32 2, %v1797
  %v1799 = vrot.slane %v1305, %v1798
  %v1800 = vlaneseq
  %v1801 = vshrl.u32 %v1800, 7
  %v1802 = vsub.s32 3, %v1801
  %v1803 = vrot.slane %v1305, %v1802
  %v1804 = vlaneseq
  %v1805 = vshrl.u32 %v1804, 7
  %v1806 = vsub.s32 4, %v1805
  %v1807 = vrot.slane %v1305, %v1806
  %v1808 = vlaneseq
  %v1809 = vshrl.u32 %v1808, 7
  %v1810 = vsub.s32 5, %v1809
  %v1811 = vrot.slane %v1305, %v1810
  %v1812 = vlaneseq
  %v1813 = vshrl.u32 %v1812, 7
  %v1814 = vsub.s32 6, %v1813
  %v1815 = vrot.slane %v1305, %v1814
  %v1816 = vlaneseq
  %v1817 = vshrl.u32 %v1816, 7
  %v1818 = vsub.s32 7, %v1817
  %v1819 = vrot.slane %v1305, %v1818
  %v1820 = vlaneseq
  %v1821 = vshrl.u32 %v1820, 7
  %v1822 = vsub.s32 0, %v1821
  %v1823 = vrot.slane %v1320, %v1822
  %v1824 = vlaneseq
  %v1825 = vshrl.u32 %v1824, 7
  %v1826 = vsub.s32 1, %v1825
  %v1827 = vrot.slane %v1320, %v1826
  %v1828 = vlaneseq
  %v1829 = vshrl.u32 %v1828, 7
  %v1830 = vsub.s32 2, %v1829
  %v1831 = vrot.slane %v1320, %v1830
  %v1832 = vlaneseq
  %v1833 = vshrl.u32 %v1832, 7
  %v1834 = vsub.s32 3, %v1833
  %v1835 = vrot.slane %v1320, %v1834
  %v1836 = vlaneseq
  %v1837 = vshrl.u32 %v1836, 7
  %v1838 = vsub.s32 4, %v1837
  %v1839 = vrot.slane %v1320, %v1838
  %v1840 = vlaneseq
  %v1841 = vshrl.u32 %v1840, 7
  %v1842 = vsub.s32 5, %v1841
  %v1843 = vrot.slane %v1320, %v1842
  %v1844 = vlaneseq
  %v1845 = vshrl.u32 %v1844, 7
  %v1846 = vsub.s32 6, %v1845
  %v1847 = vrot.slane %v1320, %v1846
  %v1848 = vlaneseq
  %v1849 = vshrl.u32 %v1848, 7
  %v1850 = vsub.s32 7, %v1849
  %v1851 = vrot.slane %v1320, %v1850
  %v1852 = vlaneseq
  %v1853 = vshrl.u32 %v1852, 7
  %v1854 = vsub.s32 0, %v1853
  %v1855 = vrot.slane %v1335, %v1854
  %v1856 = vlaneseq
  %v1857 = vshrl.u32 %v1856, 7
  %v1858 = vsub.s32 1, %v1857
  %v1859 = vrot.slane %v1335, %v1858
  %v1860 = vlaneseq
  %v1861 = vshrl.u32 %v1860, 7
  %v1862 = vsub.s32 2, %v1861
  %v1863 = vrot.slane %v1335, %v1862
  %v1864 = vlaneseq
  %v1865 = vshrl.u32 %v1864, 7
  %v1866 = vsub.s32 3, %v1865
  %v1867 = vrot.slane %v1335, %v1866
  %v1868 = vlaneseq
  %v1869 = vshrl.u32 %v1868, 7
  %v1870 = vsub.s32 4, %v1869
  %v1871 = vrot.slane %v1335, %v1870
  %v1872 = vlaneseq
  %v1873 = vshrl.u32 %v1872, 7
  %v1874 = vsub.s32 5, %v1873
  %v1875 = vrot.slane %v1335, %v1874
  %v1876 = vlaneseq
  %v1877 = vshrl.u32 %v1876, 7
  %v1878 = vsub.s32 6, %v1877
  %v1879 = vrot.slane %v1335, %v1878
  %v1880 = vlaneseq
  %v1881 = vshrl.u32 %v1880, 7
  %v1882 = vsub.s32 7, %v1881
  %v1883 = vrot.slane %v1335, %v1882
  %v1884 = vlaneseq
  %v1885 = vshrl.u32 %v1884, 7
  %v1886 = vsub.s32 0, %v1885
  %v1887 = vrot.slane %v1350, %v1886
  %v1888 = vlaneseq
  %v1889 = vshrl.u32 %v1888, 7
  %v1890 = vsub.s32 1, %v1889
  %v1891 = vrot.slane %v1350, %v1890
  %v1892 = vlaneseq
  %v1893 = vshrl.u32 %v1892, 7
  %v1894 = vsub.s32 2, %v1893
  %v1895 = vrot.slane %v1350, %v1894
  %v1896 = vlaneseq
  %v1897 = vshrl.u32 %v1896, 7
  %v1898 = vsub.s32 3, %v1897
  %v1899 = vrot.slane %v1350, %v1898
  %v1900 = vlaneseq
  %v1901 = vshrl.u32 %v1900, 7
  %v1902 = vsub.s32 4, %v1901
  %v1903 = vrot.slane %v1350, %v1902
  %v1904 = vlaneseq
  %v1905 = vshrl.u32 %v1904, 7
  %v1906 = vsub.s32 5, %v1905
  %v1907 = vrot.slane %v1350, %v1906
  %v1908 = vlaneseq
  %v1909 = vshrl.u32 %v1908, 7
  %v1910 = vsub.s32 6, %v1909
  %v1911 = vrot.slane %v1350, %v1910
  %v1912 = vlaneseq
  %v1913 = vshrl.u32 %v1912, 7
  %v1914 = vsub.s32 7, %v1913
  %v1915 = vrot.slane %v1350, %v1914
  %v1916 = vlaneseq
  %v1917 = vshrl.u32 %v1916, 7
  %v1918 = vsub.s32 0, %v1917
  %v1919 = vrot.slane %v1365, %v1918
  %v1920 = vlaneseq
  %v1921 = vshrl.u32 %v1920, 7
  %v1922 = vsub.s32 1, %v1921
  %v1923 = vrot.slane %v1365, %v1922
  %v1924 = vlaneseq
  %v1925 = vshrl.u32 %v1924, 7
  %v1926 = vsub.s32 2, %v1925
  %v1927 = vrot.slane %v1365, %v1926
  %v1928 = vlaneseq
  %v1929 = vshrl.u32 %v1928, 7
  %v1930 = vsub.s32 3, %v1929
  %v1931 = vrot.slane %v1365, %v1930
  %v1932 = vlaneseq
  %v1933 = vshrl.u32 %v1932, 7
  %v1934 = vsub.s32 4, %v1933
  %v1935 = vrot.slane %v1365, %v1934
  %v1936 = vlaneseq
  %v1937 = vshrl.u32 %v1936, 7
  %v1938 = vsub.s32 5, %v1937
  %v1939 = vrot.slane %v1365, %v1938
  %v1940 = vlaneseq
  %v1941 = vshrl.u32 %v1940, 7
  %v1942 = vsub.s32 6, %v1941
  %v1943 = vrot.slane %v1365, %v1942
  %v1944 = vlaneseq
  %v1945 = vshrl.u32 %v1944, 7
  %v1946 = vsub.s32 7, %v1945
  %v1947 = vrot.slane %v1365, %v1946
  %v1948 = vlaneseq
  %v1949 = vshrl.u32 %v1948, 7
  %v1950 = vsub.s32 0, %v1949
  %v1951 = vrot.slane %v1380, %v1950
  %v1952 = vlaneseq
  %v1953 = vshrl.u32 %v1952, 7
  %v1954 = vsub.s32 1, %v1953
  %v1955 = vrot.slane %v1380, %v1954
  %v1956 = vlaneseq
  %v1957 = vshrl.u32 %v1956, 7
  %v1958 = vsub.s32 2, %v1957
  %v1959 = vrot.slane %v1380, %v1958
  %v1960 = vlaneseq
  %v1961 = vshrl.u32 %v1960, 7
  %v1962 = vsub.s32 3, %v1961
  %v1963 = vrot.slane %v1380, %v1962
  %v1964 = vlaneseq
  %v1965 = vshrl.u32 %v1964, 7
  %v1966 = vsub.s32 4, %v1965
  %v1967 = vrot.slane %v1380, %v1966
  %v1968 = vlaneseq
  %v1969 = vshrl.u32 %v1968, 7
  %v1970 = vsub.s32 5, %v1969
  %v1971 = vrot.slane %v1380, %v1970
  %v1972 = vlaneseq
  %v1973 = vshrl.u32 %v1972, 7
  %v1974 = vsub.s32 6, %v1973
  %v1975 = vrot.slane %v1380, %v1974
  %v1976 = vlaneseq
  %v1977 = vshrl.u32 %v1976, 7
  %v1978 = vsub.s32 7, %v1977
  %v1979 = vrot.slane %v1380, %v1978
  %v1980 = vlaneseq
  %v1981 = vshrl.u32 %v1980, 7
  %v1982 = vsub.s32 0, %v1981
  %v1983 = vrot.slane %v1395, %v1982
  %v1984 = vlaneseq
  %v1985 = vshrl.u32 %v1984, 7
  %v1986 = vsub.s32 1, %v1985
  %v1987 = vrot.slane %v1395, %v1986
  %v1988 = vlaneseq
  %v1989 = vshrl.u32 %v1988, 7
  %v1990 = vsub.s32 2, %v1989
  %v1991 = vrot.slane %v1395, %v1990
  %v1992 = vlaneseq
  %v1993 = vshrl.u32 %v1992, 7
  %v1994 = vsub.s32 3, %v1993
  %v1995 = vrot.slane %v1395, %v1994
  %v1996 = vlaneseq
  %v1997 = vshrl.u32 %v1996, 7
  %v1998 = vsub.s32 4, %v1997
  %v1999 = vrot.slane %v1395, %v1998
  %v2000 = vlaneseq
  %v2001 = vshrl.u32 %v2000, 7
  %v2002 = vsub.s32 5, %v2001
  %v2003 = vrot.slane %v1395, %v2002
  %v2004 = vlaneseq
  %v2005 = vshrl.u32 %v2004, 7
  %v2006 = vsub.s32 6, %v2005
  %v2007 = vrot.slane %v1395, %v2006
  %v2008 = vlaneseq
  %v2009 = vshrl.u32 %v2008, 7
  %v2010 = vsub.s32 7, %v2009
  %v2011 = vrot.slane %v1395, %v2010
  %v2012 = vlaneseq
  %v2013 = vshrl.u32 %v2012, 7
  %v2014 = vsub.s32 0, %v2013
  %v2015 = vrot.slane %v1410, %v2014
  %v2016 = vlaneseq
  %v2017 = vshrl.u32 %v2016, 7
  %v2018 = vsub.s32 1, %v2017
  %v2019 = vrot.slane %v1410, %v2018
  %v2020 = vlaneseq
  %v2021 = vshrl.u32 %v2020, 7
  %v2022 = vsub.s32 2, %v2021
  %v2023 = vrot.slane %v1410, %v2022
  %v2024 = vlaneseq
  %v2025 = vshrl.u32 %v2024, 7
  %v2026 = vsub.s32 3, %v2025
  %v2027 = vrot.slane %v1410, %v2026
  %v2028 = vlaneseq
  %v2029 = vshrl.u32 %v2028, 7
  %v2030 = vsub.s32 4, %v2029
  %v2031 = vrot.slane %v1410, %v2030
  %v2032 = vlaneseq
  %v2033 = vshrl.u32 %v2032, 7
  %v2034 = vsub.s32 5, %v2033
  %v2035 = vrot.slane %v1410, %v2034
  %v2036 = vlaneseq
  %v2037 = vshrl.u32 %v2036, 7
  %v2038 = vsub.s32 6, %v2037
  %v2039 = vrot.slane %v1410, %v2038
  %v2040 = vlaneseq
  %v2041 = vshrl.u32 %v2040, 7
  %v2042 = vsub.s32 7, %v2041
  %v2043 = vrot.slane %v1410, %v2042
  %v2044 = vlaneseq
  %v2045 = vshrl.u32 %v2044, 7
  %v2046 = vsub.s32 0, %v2045
  %v2047 = vrot.slane %v1425, %v2046
  %v2048 = vlaneseq
  %v2049 = vshrl.u32 %v2048, 7
  %v2050 = vsub.s32 1, %v2049
  %v2051 = vrot.slane %v1425, %v2050
  %v2052 = vlaneseq
  %v2053 = vshrl.u32 %v2052, 7
  %v2054 = vsub.s32 2, %v2053
  %v2055 = vrot.slane %v1425, %v2054
  %v2056 = vlaneseq
  %v2057 = vshrl.u32 %v2056, 7
  %v2058 = vsub.s32 3, %v2057
  %v2059 = vrot.slane %v1425, %v2058
  %v2060 = vlaneseq
  %v2061 = vshrl.u32 %v2060, 7
  %v2062 = vsub.s32 4, %v2061
  %v2063 = vrot.slane %v1425, %v2062
  %v2064 = vlaneseq
  %v2065 = vshrl.u32 %v2064, 7
  %v2066 = vsub.s32 5, %v2065
  %v2067 = vrot.slane %v1425, %v2066
  %v2068 = vlaneseq
  %v2069 = vshrl.u32 %v2068, 7
  %v2070 = vsub.s32 6, %v2069
  %v2071 = vrot.slane %v1425, %v2070
  %v2072 = vlaneseq
  %v2073 = vshrl.u32 %v2072, 7
  %v2074 = vsub.s32 7, %v2073
  %v2075 = vrot.slane %v1425, %v2074
  %v2076 = vlaneseq
  %v2077 = vshrl.u32 %v2076, 7
  %v2078 = vsub.s32 0, %v2077
  %v2079 = vrot.slane %v1440, %v2078
  %v2080 = vlaneseq
  %v2081 = vshrl.u32 %v2080, 7
  %v2082 = vsub.s32 1, %v2081
  %v2083 = vrot.slane %v1440, %v2082
  %v2084 = vlaneseq
  %v2085 = vshrl.u32 %v2084, 7
  %v2086 = vsub.s32 2, %v2085
  %v2087 = vrot.slane %v1440, %v2086
  %v2088 = vlaneseq
  %v2089 = vshrl.u32 %v2088, 7
  %v2090 = vsub.s32 3, %v2089
  %v2091 = vrot.slane %v1440, %v2090
  %v2092 = vlaneseq
  %v2093 = vshrl.u32 %v2092, 7
  %v2094 = vsub.s32 4, %v2093
  %v2095 = vrot.slane %v1440, %v2094
  %v2096 = vlaneseq
  %v2097 = vshrl.u32 %v2096, 7
  %v2098 = vsub.s32 5, %v2097
  %v2099 = vrot.slane %v1440, %v2098
  %v2100 = vlaneseq
  %v2101 = vshrl.u32 %v2100, 7
  %v2102 = vsub.s32 6, %v2101
  %v2103 = vrot.slane %v1440, %v2102
  %v2104 = vlaneseq
  %v2105 = vshrl.u32 %v2104, 7
  %v2106 = vsub.s32 7, %v2105
  %v2107 = vrot.slane %v1440, %v2106
  %v2108 = vlaneseq
  %v2109 = vshrl.u32 %v2108, 7
  %v2110 = vsub.s32 0, %v2109
  %v2111 = vrot.slane %v1455, %v2110
  %v2112 = vlaneseq
  %v2113 = vshrl.u32 %v2112, 7
  %v2114 = vsub.s32 1, %v2113
  %v2115 = vrot.slane %v1455, %v2114
  %v2116 = vlaneseq
  %v2117 = vshrl.u32 %v2116, 7
  %v2118 = vsub.s32 2, %v2117
  %v2119 = vrot.slane %v1455, %v2118
  %v2120 = vlaneseq
  %v2121 = vshrl.u32 %v2120, 7
  %v2122 = vsub.s32 3, %v2121
  %v2123 = vrot.slane %v1455, %v2122
  %v2124 = vlaneseq
  %v2125 = vshrl.u32 %v2124, 7
  %v2126 = vsub.s32 4, %v2125
  %v2127 = vrot.slane %v1455, %v2126
  %v2128 = vlaneseq
  %v2129 = vshrl.u32 %v2128, 7
  %v2130 = vsub.s32 5, %v2129
  %v2131 = vrot.slane %v1455, %v2130
  %v2132 = vlaneseq
  %v2133 = vshrl.u32 %v2132, 7
  %v2134 = vsub.s32 6, %v2133
  %v2135 = vrot.slane %v1455, %v2134
  %v2136 = vlaneseq
  %v2137 = vshrl.u32 %v2136, 7
  %v2138 = vsub.s32 7, %v2137
  %v2139 = vrot.slane %v1455, %v2138
  %v2140 = vlaneseq
  %v2141 = vshrl.u32 %v2140, 7
  %v2142 = vsub.s32 0, %v2141
  %v2143 = vrot.slane %v1470, %v2142
  %v2144 = vlaneseq
  %v2145 = vshrl.u32 %v2144, 7
  %v2146 = vsub.s32 1, %v2145
  %v2147 = vrot.slane %v1470, %v2146
  %v2148 = vlaneseq
  %v2149 = vshrl.u32 %v2148, 7
  %v2150 = vsub.s32 2, %v2149
  %v2151 = vrot.slane %v1470, %v2150
  %v2152 = vlaneseq
  %v2153 = vshrl.u32 %v2152, 7
  %v2154 = vsub.s32 3, %v2153
  %v2155 = vrot.slane %v1470, %v2154
  %v2156 = vlaneseq
  %v2157 = vshrl.u32 %v2156, 7
  %v2158 = vsub.s32 4, %v2157
  %v2159 = vrot.slane %v1470, %v2158
  %v2160 = vlaneseq
  %v2161 = vshrl.u32 %v2160, 7
  %v2162 = vsub.s32 5, %v2161
  %v2163 = vrot.slane %v1470, %v2162
  %v2164 = vlaneseq
  %v2165 = vshrl.u32 %v2164, 7
  %v2166 = vsub.s32 6, %v2165
  %v2167 = vrot.slane %v1470, %v2166
  %v2168 = vlaneseq
  %v2169 = vshrl.u32 %v2168, 7
  %v2170 = vsub.s32 7, %v2169
  %v2171 = vrot.slane %v1470, %v2170
  %v2172 = vlaneseq
  %v2173 = vshrl.u32 %v2172, 7
  %v2174 = vsub.s32 0, %v2173
  %v2175 = vrot.slane %v1485, %v2174
  %v2176 = vlaneseq
  %v2177 = vshrl.u32 %v2176, 7
  %v2178 = vsub.s32 1, %v2177
  %v2179 = vrot.slane %v1485, %v2178
  %v2180 = vlaneseq
  %v2181 = vshrl.u32 %v2180, 7
  %v2182 = vsub.s32 2, %v2181
  %v2183 = vrot.slane %v1485, %v2182
  %v2184 = vlaneseq
  %v2185 = vshrl.u32 %v2184, 7
  %v2186 = vsub.s32 3, %v2185
  %v2187 = vrot.slane %v1485, %v2186
  %v2188 = vlaneseq
  %v2189 = vshrl.u32 %v2188, 7
  %v2190 = vsub.s32 4, %v2189
  %v2191 = vrot.slane %v1485, %v2190
  %v2192 = vlaneseq
  %v2193 = vshrl.u32 %v2192, 7
  %v2194 = vsub.s32 5, %v2193
  %v2195 = vrot.slane %v1485, %v2194
  %v2196 = vlaneseq
  %v2197 = vshrl.u32 %v2196, 7
  %v2198 = vsub.s32 6, %v2197
  %v2199 = vrot.slane %v1485, %v2198
  %v2200 = vlaneseq
  %v2201 = vshrl.u32 %v2200, 7
  %v2202 = vsub.s32 7, %v2201
  %v2203 = vrot.slane %v1485, %v2202
  %v2204 = vlaneseq
  %v2205 = vshrl.u32 %v2204, 7
  %v2206 = vsub.s32 0, %v2205
  %v2207 = vrot.slane %v1500, %v2206
  %v2208 = vlaneseq
  %v2209 = vshrl.u32 %v2208, 7
  %v2210 = vsub.s32 1, %v2209
  %v2211 = vrot.slane %v1500, %v2210
  %v2212 = vlaneseq
  %v2213 = vshrl.u32 %v2212, 7
  %v2214 = vsub.s32 2, %v2213
  %v2215 = vrot.slane %v1500, %v2214
  %v2216 = vlaneseq
  %v2217 = vshrl.u32 %v2216, 7
  %v2218 = vsub.s32 3, %v2217
  %v2219 = vrot.slane %v1500, %v2218
  %v2220 = vlaneseq
  %v2221 = vshrl.u32 %v2220, 7
  %v2222 = vsub.s32 4, %v2221
  %v2223 = vrot.slane %v1500, %v2222
  %v2224 = vlaneseq
  %v2225 = vshrl.u32 %v2224, 7
  %v2226 = vsub.s32 5, %v2225
  %v2227 = vrot.slane %v1500, %v2226
  %v2228 = vlaneseq
  %v2229 = vshrl.u32 %v2228, 7
  %v2230 = vsub.s32 6, %v2229
  %v2231 = vrot.slane %v1500, %v2230
  %v2232 = vlaneseq
  %v2233 = vshrl.u32 %v2232, 7
  %v2234 = vsub.s32 7, %v2233
  %v2235 = vrot.slane %v1500, %v2234
  %v2236 = vlaneseq
  %v2237 = vshrl.u32 %v2236, 7
  %v2238 = vsub.s32 0, %v2237
  %v2239 = vrot.slane %v1515, %v2238
  %v2240 = vlaneseq
  %v2241 = vshrl.u32 %v2240, 7
  %v2242 = vsub.s32 1, %v2241
  %v2243 = vrot.slane %v1515, %v2242
  %v2244 = vlaneseq
  %v2245 = vshrl.u32 %v2244, 7
  %v2246 = vsub.s32 2, %v2245
  %v2247 = vrot.slane %v1515, %v2246
  %v2248 = vlaneseq
  %v2249 = vshrl.u32 %v2248, 7
  %v2250 = vsub.s32 3, %v2249
  %v2251 = vrot.slane %v1515, %v2250
  %v2252 = vlaneseq
  %v2253 = vshrl.u32 %v2252, 7
  %v2254 = vsub.s32 4, %v2253
  %v2255 = vrot.slane %v1515, %v2254
  %v2256 = vlaneseq
  %v2257 = vshrl.u32 %v2256, 7
  %v2258 = vsub.s32 5, %v2257
  %v2259 = vrot.slane %v1515, %v2258
  %v2260 = vlaneseq
  %v2261 = vshrl.u32 %v2260, 7
  %v2262 = vsub.s32 6, %v2261
  %v2263 = vrot.slane %v1515, %v2262
  %v2264 = vlaneseq
  %v2265 = vshrl.u32 %v2264, 7
  %v2266 = vsub.s32 7, %v2265
  %v2267 = vrot.slane %v1515, %v2266
  %v2268 = vlaneseq
  %v2269 = vshrl.u32 %v2268, 7
  %v2270 = vsub.s32 0, %v2269
  %v2271 = vrot.slane %v1530, %v2270
  %v2272 = vlaneseq
  %v2273 = vshrl.u32 %v2272, 7
  %v2274 = vsub.s32 1, %v2273
  %v2275 = vrot.slane %v1530, %v2274
  %v2276 = vlaneseq
  %v2277 = vshrl.u32 %v2276, 7
  %v2278 = vsub.s32 2, %v2277
  %v2279 = vrot.slane %v1530, %v2278
  %v2280 = vlaneseq
  %v2281 = vshrl.u32 %v2280, 7
  %v2282 = vsub.s32 3, %v2281
  %v2283 = vrot.slane %v1530, %v2282
  %v2284 = vlaneseq
  %v2285 = vshrl.u32 %v2284, 7
  %v2286 = vsub.s32 4, %v2285
  %v2287 = vrot.slane %v1530, %v2286
  %v2288 = vlaneseq
  %v2289 = vshrl.u32 %v2288, 7
  %v2290 = vsub.s32 5, %v2289
  %v2291 = vrot.slane %v1530, %v2290
  %v2292 = vlaneseq
  %v2293 = vshrl.u32 %v2292, 7
  %v2294 = vsub.s32 6, %v2293
  %v2295 = vrot.slane %v1530, %v2294
  %v2296 = vlaneseq
  %v2297 = vshrl.u32 %v2296, 7
  %v2298 = vsub.s32 7, %v2297
  %v2299 = vrot.slane %v1530, %v2298
  %v2300 = vlaneseq
  %v2301 = vshrl.u32 %v2300, 7
  %v2302 = vsub.s32 0, %v2301
  %v2303 = vrot.slane %v1545, %v2302
  %v2304 = vlaneseq
  %v2305 = vshrl.u32 %v2304, 7
  %v2306 = vsub.s32 1, %v2305
  %v2307 = vrot.slane %v1545, %v2306
  %v2308 = vlaneseq
  %v2309 = vshrl.u32 %v2308, 7
  %v2310 = vsub.s32 2, %v2309
  %v2311 = vrot.slane %v1545, %v2310
  %v2312 = vlaneseq
  %v2313 = vshrl.u32 %v2312, 7
  %v2314 = vsub.s32 3, %v2313
  %v2315 = vrot.slane %v1545, %v2314
  %v2316 = vlaneseq
  %v2317 = vshrl.u32 %v2316, 7
  %v2318 = vsub.s32 4, %v2317
  %v2319 = vrot.slane %v1545, %v2318
  %v2320 = vlaneseq
  %v2321 = vshrl.u32 %v2320, 7
  %v2322 = vsub.s32 5, %v2321
  %v2323 = vrot.slane %v1545, %v2322
  %v2324 = vlaneseq
  %v2325 = vshrl.u32 %v2324, 7
  %v2326 = vsub.s32 6, %v2325
  %v2327 = vrot.slane %v1545, %v2326
  %v2328 = vlaneseq
  %v2329 = vshrl.u32 %v2328, 7
  %v2330 = vsub.s32 7, %v2329
  %v2331 = vrot.slane %v1545, %v2330
  %v2332 = vlaneseq
  %v2333 = vshrl.u32 %v2332, 7
  %v2334 = vsub.s32 0, %v2333
  %v2335 = vrot.slane %v1560, %v2334
  %v2336 = vlaneseq
  %v2337 = vshrl.u32 %v2336, 7
  %v2338 = vsub.s32 1, %v2337
  %v2339 = vrot.slane %v1560, %v2338
  %v2340 = vlaneseq
  %v2341 = vshrl.u32 %v2340, 7
  %v2342 = vsub.s32 2, %v2341
  %v2343 = vrot.slane %v1560, %v2342
  %v2344 = vlaneseq
  %v2345 = vshrl.u32 %v2344, 7
  %v2346 = vsub.s32 3, %v2345
  %v2347 = vrot.slane %v1560, %v2346
  %v2348 = vlaneseq
  %v2349 = vshrl.u32 %v2348, 7
  %v2350 = vsub.s32 4, %v2349
  %v2351 = vrot.slane %v1560, %v2350
  %v2352 = vlaneseq
  %v2353 = vshrl.u32 %v2352, 7
  %v2354 = vsub.s32 5, %v2353
  %v2355 = vrot.slane %v1560, %v2354
  %v2356 = vlaneseq
  %v2357 = vshrl.u32 %v2356, 7
  %v2358 = vsub.s32 6, %v2357
  %v2359 = vrot.slane %v1560, %v2358
  %v2360 = vlaneseq
  %v2361 = vshrl.u32 %v2360, 7
  %v2362 = vsub.s32 7, %v2361
  %v2363 = vrot.slane %v1560, %v2362
  %v2364 = vlaneseq
  %v2365 = vshrl.u32 %v2364, 7
  %v2366 = vsub.s32 0, %v2365
  %v2367 = vrot.slane %v1575, %v2366
  %v2368 = vlaneseq
  %v2369 = vshrl.u32 %v2368, 7
  %v2370 = vsub.s32 1, %v2369
  %v2371 = vrot.slane %v1575, %v2370
  %v2372 = vlaneseq
  %v2373 = vshrl.u32 %v2372, 7
  %v2374 = vsub.s32 2, %v2373
  %v2375 = vrot.slane %v1575, %v2374
  %v2376 = vlaneseq
  %v2377 = vshrl.u32 %v2376, 7
  %v2378 = vsub.s32 3, %v2377
  %v2379 = vrot.slane %v1575, %v2378
  %v2380 = vlaneseq
  %v2381 = vshrl.u32 %v2380, 7
  %v2382 = vsub.s32 4, %v2381
  %v2383 = vrot.slane %v1575, %v2382
  %v2384 = vlaneseq
  %v2385 = vshrl.u32 %v2384, 7
  %v2386 = vsub.s32 5, %v2385
  %v2387 = vrot.slane %v1575, %v2386
  %v2388 = vlaneseq
  %v2389 = vshrl.u32 %v2388, 7
  %v2390 = vsub.s32 6, %v2389
  %v2391 = vrot.slane %v1575, %v2390
  %v2392 = vlaneseq
  %v2393 = vshrl.u32 %v2392, 7
  %v2394 = vsub.s32 7, %v2393
  %v2395 = vrot.slane %v1575, %v2394
  %v2396 = vlaneseq
  %v2397 = vshrl.u32 %v2396, 7
  %v2398 = vsub.s32 0, %v2397
  %v2399 = vrot.slane %v1590, %v2398
  %v2400 = vlaneseq
  %v2401 = vshrl.u32 %v2400, 7
  %v2402 = vsub.s32 1, %v2401
  %v2403 = vrot.slane %v1590, %v2402
  %v2404 = vlaneseq
  %v2405 = vshrl.u32 %v2404, 7
  %v2406 = vsub.s32 2, %v2405
  %v2407 = vrot.slane %v1590, %v2406
  %v2408 = vlaneseq
  %v2409 = vshrl.u32 %v2408, 7
  %v2410 = vsub.s32 3, %v2409
  %v2411 = vrot.slane %v1590, %v2410
  %v2412 = vlaneseq
  %v2413 = vshrl.u32 %v2412, 7
  %v2414 = vsub.s32 4, %v2413
  %v2415 = vrot.slane %v1590, %v2414
  %v2416 = vlaneseq
  %v2417 = vshrl.u32 %v2416, 7
  %v2418 = vsub.s32 5, %v2417
  %v2419 = vrot.slane %v1590, %v2418
  %v2420 = vlaneseq
  %v2421 = vshrl.u32 %v2420, 7
  %v2422 = vsub.s32 6, %v2421
  %v2423 = vrot.slane %v1590, %v2422
  %v2424 = vlaneseq
  %v2425 = vshrl.u32 %v2424, 7
  %v2426 = vsub.s32 7, %v2425
  %v2427 = vrot.slane %v1590, %v2426
  %v2428 = vlaneseq
  %v2429 = vshrl.u32 %v2428, 7
  %v2430 = vsub.s32 0, %v2429
  %v2431 = vrot.slane %v1605, %v2430
  %v2432 = vlaneseq
  %v2433 = vshrl.u32 %v2432, 7
  %v2434 = vsub.s32 1, %v2433
  %v2435 = vrot.slane %v1605, %v2434
  %v2436 = vlaneseq
  %v2437 = vshrl.u32 %v2436, 7
  %v2438 = vsub.s32 2, %v2437
  %v2439 = vrot.slane %v1605, %v2438
  %v2440 = vlaneseq
  %v2441 = vshrl.u32 %v2440, 7
  %v2442 = vsub.s32 3, %v2441
  %v2443 = vrot.slane %v1605, %v2442
  %v2444 = vlaneseq
  %v2445 = vshrl.u32 %v2444, 7
  %v2446 = vsub.s32 4, %v2445
  %v2447 = vrot.slane %v1605, %v2446
  %v2448 = vlaneseq
  %v2449 = vshrl.u32 %v2448, 7
  %v2450 = vsub.s32 5, %v2449
  %v2451 = vrot.slane %v1605, %v2450
  %v2452 = vlaneseq
  %v2453 = vshrl.u32 %v2452, 7
  %v2454 = vsub.s32 6, %v2453
  %v2455 = vrot.slane %v1605, %v2454
  %v2456 = vlaneseq
  %v2457 = vshrl.u32 %v2456, 7
  %v2458 = vsub.s32 7, %v2457
  %v2459 = vrot.slane %v1605, %v2458
  %v2460 = vlaneseq
  %v2461 = vshrl.u32 %v2460, 7
  %v2462 = vsub.s32 0, %v2461
  %v2463 = vrot.slane %v1620, %v2462
  %v2464 = vlaneseq
  %v2465 = vshrl.u32 %v2464, 7
  %v2466 = vsub.s32 1, %v2465
  %v2467 = vrot.slane %v1620, %v2466
  %v2468 = vlaneseq
  %v2469 = vshrl.u32 %v2468, 7
  %v2470 = vsub.s32 2, %v2469
  %v2471 = vrot.slane %v1620, %v2470
  %v2472 = vlaneseq
  %v2473 = vshrl.u32 %v2472, 7
  %v2474 = vsub.s32 3, %v2473
  %v2475 = vrot.slane %v1620, %v2474
  %v2476 = vlaneseq
  %v2477 = vshrl.u32 %v2476, 7
  %v2478 = vsub.s32 4, %v2477
  %v2479 = vrot.slane %v1620, %v2478
  %v2480 = vlaneseq
  %v2481 = vshrl.u32 %v2480, 7
  %v2482 = vsub.s32 5, %v2481
  %v2483 = vrot.slane %v1620, %v2482
  %v2484 = vlaneseq
  %v2485 = vshrl.u32 %v2484, 7
  %v2486 = vsub.s32 6, %v2485
  %v2487 = vrot.slane %v1620, %v2486
  %v2488 = vlaneseq
  %v2489 = vshrl.u32 %v2488, 7
  %v2490 = vsub.s32 7, %v2489
  %v2491 = vrot.slane %v1620, %v2490
  %v2492 = vlaneseq
  %v2493 = vshrl.u32 %v2492, 7
  %v2494 = vsub.s32 0, %v2493
  %v2495 = vrot.slane %v1635, %v2494
  %v2496 = vlaneseq
  %v2497 = vshrl.u32 %v2496, 7
  %v2498 = vsub.s32 1, %v2497
  %v2499 = vrot.slane %v1635, %v2498
  %v2500 = vlaneseq
  %v2501 = vshrl.u32 %v2500, 7
  %v2502 = vsub.s32 2, %v2501
  %v2503 = vrot.slane %v1635, %v2502
  %v2504 = vlaneseq
  %v2505 = vshrl.u32 %v2504, 7
  %v2506 = vsub.s32 3, %v2505
  %v2507 = vrot.slane %v1635, %v2506
  %v2508 = vlaneseq
  %v2509 = vshrl.u32 %v2508, 7
  %v2510 = vsub.s32 4, %v2509
  %v2511 = vrot.slane %v1635, %v2510
  %v2512 = vlaneseq
  %v2513 = vshrl.u32 %v2512, 7
  %v2514 = vsub.s32 5, %v2513
  %v2515 = vrot.slane %v1635, %v2514
  %v2516 = vlaneseq
  %v2517 = vshrl.u32 %v2516, 7
  %v2518 = vsub.s32 6, %v2517
  %v2519 = vrot.slane %v1635, %v2518
  %v2520 = vlaneseq
  %v2521 = vshrl.u32 %v2520, 7
  %v2522 = vsub.s32 7, %v2521
  %v2523 = vrot.slane %v1635, %v2522
  %v2524 = vlaneseq
  %v2525 = vshrl.u32 %v2524, 7
  %v2526 = vsub.s32 0, %v2525
  %v2527 = vrot.slane %v1650, %v2526
  %v2528 = vlaneseq
  %v2529 = vshrl.u32 %v2528, 7
  %v2530 = vsub.s32 1, %v2529
  %v2531 = vrot.slane %v1650, %v2530
  %v2532 = vlaneseq
  %v2533 = vshrl.u32 %v2532, 7
  %v2534 = vsub.s32 2, %v2533
  %v2535 = vrot.slane %v1650, %v2534
  %v2536 = vlaneseq
  %v2537 = vshrl.u32 %v2536, 7
  %v2538 = vsub.s32 3, %v2537
  %v2539 = vrot.slane %v1650, %v2538
  %v2540 = vlaneseq
  %v2541 = vshrl.u32 %v2540, 7
  %v2542 = vsub.s32 4, %v2541
  %v2543 = vrot.slane %v1650, %v2542
  %v2544 = vlaneseq
  %v2545 = vshrl.u32 %v2544, 7
  %v2546 = vsub.s32 5, %v2545
  %v2547 = vrot.slane %v1650, %v2546
  %v2548 = vlaneseq
  %v2549 = vshrl.u32 %v2548, 7
  %v2550 = vsub.s32 6, %v2549
  %v2551 = vrot.slane %v1650, %v2550
  %v2552 = vlaneseq
  %v2553 = vshrl.u32 %v2552, 7
  %v2554 = vsub.s32 7, %v2553
  %v2555 = vrot.slane %v1650, %v2554
  %v2556 = vlaneseq
  %v2557 = vshrl.u32 %v2556, 7
  %v2558 = vsub.s32 0, %v2557
  %v2559 = vrot.slane %v1665, %v2558
  %v2560 = vlaneseq
  %v2561 = vshrl.u32 %v2560, 7
  %v2562 = vsub.s32 1, %v2561
  %v2563 = vrot.slane %v1665, %v2562
  %v2564 = vlaneseq
  %v2565 = vshrl.u32 %v2564, 7
  %v2566 = vsub.s32 2, %v2565
  %v2567 = vrot.slane %v1665, %v2566
  %v2568 = vlaneseq
  %v2569 = vshrl.u32 %v2568, 7
  %v2570 = vsub.s32 3, %v2569
  %v2571 = vrot.slane %v1665, %v2570
  %v2572 = vlaneseq
  %v2573 = vshrl.u32 %v2572, 7
  %v2574 = vsub.s32 4, %v2573
  %v2575 = vrot.slane %v1665, %v2574
  %v2576 = vlaneseq
  %v2577 = vshrl.u32 %v2576, 7
  %v2578 = vsub.s32 5, %v2577
  %v2579 = vrot.slane %v1665, %v2578
  %v2580 = vlaneseq
  %v2581 = vshrl.u32 %v2580, 7
  %v2582 = vsub.s32 6, %v2581
  %v2583 = vrot.slane %v1665, %v2582
  %v2584 = vlaneseq
  %v2585 = vshrl.u32 %v2584, 7
  %v2586 = vsub.s32 7, %v2585
  %v2587 = vrot.slane %v1665, %v2586
  %v2588 = vlaneseq
  %v2589 = vshrl.u32 %v2588, 7
  %v2590 = vsub.s32 0, %v2589
  %v2591 = vrot.slane %v1680, %v2590
  %v2592 = vlaneseq
  %v2593 = vshrl.u32 %v2592, 7
  %v2594 = vsub.s32 1, %v2593
  %v2595 = vrot.slane %v1680, %v2594
  %v2596 = vlaneseq
  %v2597 = vshrl.u32 %v2596, 7
  %v2598 = vsub.s32 2, %v2597
  %v2599 = vrot.slane %v1680, %v2598
  %v2600 = vlaneseq
  %v2601 = vshrl.u32 %v2600, 7
  %v2602 = vsub.s32 3, %v2601
  %v2603 = vrot.slane %v1680, %v2602
  %v2604 = vlaneseq
  %v2605 = vshrl.u32 %v2604, 7
  %v2606 = vsub.s32 4, %v2605
  %v2607 = vrot.slane %v1680, %v2606
  %v2608 = vlaneseq
  %v2609 = vshrl.u32 %v2608, 7
  %v2610 = vsub.s32 5, %v2609
  %v2611 = vrot.slane %v1680, %v2610
  %v2612 = vlaneseq
  %v2613 = vshrl.u32 %v2612, 7
  %v2614 = vsub.s32 6, %v2613
  %v2615 = vrot.slane %v1680, %v2614
  %v2616 = vlaneseq
  %v2617 = vshrl.u32 %v2616, 7
  %v2618 = vsub.s32 7, %v2617
  %v2619 = vrot.slane %v1680, %v2618
  %v2620 = vlaneseq
  %v2621 = vshrl.u32 %v2620, 7
  %v2622 = vsub.s32 0, %v2621
  %v2623 = vrot.slane %v1695, %v2622
  %v2624 = vlaneseq
  %v2625 = vshrl.u32 %v2624, 7
  %v2626 = vsub.s32 1, %v2625
  %v2627 = vrot.slane %v1695, %v2626
  %v2628 = vlaneseq
  %v2629 = vshrl.u32 %v2628, 7
  %v2630 = vsub.s32 2, %v2629
  %v2631 = vrot.slane %v1695, %v2630
  %v2632 = vlaneseq
  %v2633 = vshrl.u32 %v2632, 7
  %v2634 = vsub.s32 3, %v2633
  %v2635 = vrot.slane %v1695, %v2634
  %v2636 = vlaneseq
  %v2637 = vshrl.u32 %v2636, 7
  %v2638 = vsub.s32 4, %v2637
  %v2639 = vrot.slane %v1695, %v2638
  %v2640 = vlaneseq
  %v2641 = vshrl.u32 %v2640, 7
  %v2642 = vsub.s32 5, %v2641
  %v2643 = vrot.slane %v1695, %v2642
  %v2644 = vlaneseq
  %v2645 = vshrl.u32 %v2644, 7
  %v2646 = vsub.s32 6, %v2645
  %v2647 = vrot.slane %v1695, %v2646
  %v2648 = vlaneseq
  %v2649 = vshrl.u32 %v2648, 7
  %v2650 = vsub.s32 7, %v2649
  %v2651 = vrot.slane %v1695, %v2650
  %v2652 = vlaneseq
  %v2653 = vshrl.u32 %v2652, 7
  %v2654 = vsub.s32 0, %v2653
  %v2655 = vrot.slane %v1710, %v2654
  %v2656 = vlaneseq
  %v2657 = vshrl.u32 %v2656, 7
  %v2658 = vsub.s32 1, %v2657
  %v2659 = vrot.slane %v1710, %v2658
  %v2660 = vlaneseq
  %v2661 = vshrl.u32 %v2660, 7
  %v2662 = vsub.s32 2, %v2661
  %v2663 = vrot.slane %v1710, %v2662
  %v2664 = vlaneseq
  %v2665 = vshrl.u32 %v2664, 7
  %v2666 = vsub.s32 3, %v2665
  %v2667 = vrot.slane %v1710, %v2666
  %v2668 = vlaneseq
  %v2669 = vshrl.u32 %v2668, 7
  %v2670 = vsub.s32 4, %v2669
  %v2671 = vrot.slane %v1710, %v2670
  %v2672 = vlaneseq
  %v2673 = vshrl.u32 %v2672, 7
  %v2674 = vsub.s32 5, %v2673
  %v2675 = vrot.slane %v1710, %v2674
  %v2676 = vlaneseq
  %v2677 = vshrl.u32 %v2676, 7
  %v2678 = vsub.s32 6, %v2677
  %v2679 = vrot.slane %v1710, %v2678
  %v2680 = vlaneseq
  %v2681 = vshrl.u32 %v2680, 7
  %v2682 = vsub.s32 7, %v2681
  %v2683 = vrot.slane %v1710, %v2682
  %v2684 = vlaneseq
  %v2685 = vshrl.u32 %v2684, 7
  %v2686 = vsub.s32 0, %v2685
  %v2687 = vrot.slane %v1725, %v2686
  %v2688 = vlaneseq
  %v2689 = vshrl.u32 %v2688, 7
  %v2690 = vsub.s32 1, %v2689
  %v2691 = vrot.slane %v1725, %v2690
  %v2692 = vlaneseq
  %v2693 = vshrl.u32 %v2692, 7
  %v2694 = vsub.s32 2, %v2693
  %v2695 = vrot.slane %v1725, %v2694
  %v2696 = vlaneseq
  %v2697 = vshrl.u32 %v2696, 7
  %v2698 = vsub.s32 3, %v2697
  %v2699 = vrot.slane %v1725, %v2698
  %v2700 = vlaneseq
  %v2701 = vshrl.u32 %v2700, 7
  %v2702 = vsub.s32 4, %v2701
  %v2703 = vrot.slane %v1725, %v2702
  %v2704 = vlaneseq
  %v2705 = vshrl.u32 %v2704, 7
  %v2706 = vsub.s32 5, %v2705
  %v2707 = vrot.slane %v1725, %v2706
  %v2708 = vlaneseq
  %v2709 = vshrl.u32 %v2708, 7
  %v2710 = vsub.s32 6, %v2709
  %v2711 = vrot.slane %v1725, %v2710
  %v2712 = vlaneseq
  %v2713 = vshrl.u32 %v2712, 7
  %v2714 = vsub.s32 7, %v2713
  %v2715 = vrot.slane %v1725, %v2714
  %v2716 = vlaneseq
  %v2717 = vshrl.u32 %v2716, 7
  %v2718 = vsub.s32 0, %v2717
  %v2719 = vrot.slane %v1740, %v2718
  %v2720 = vlaneseq
  %v2721 = vshrl.u32 %v2720, 7
  %v2722 = vsub.s32 1, %v2721
  %v2723 = vrot.slane %v1740, %v2722
  %v2724 = vlaneseq
  %v2725 = vshrl.u32 %v2724, 7
  %v2726 = vsub.s32 2, %v2725
  %v2727 = vrot.slane %v1740, %v2726
  %v2728 = vlaneseq
  %v2729 = vshrl.u32 %v2728, 7
  %v2730 = vsub.s32 3, %v2729
  %v2731 = vrot.slane %v1740, %v2730
  %v2732 = vlaneseq
  %v2733 = vshrl.u32 %v2732, 7
  %v2734 = vsub.s32 4, %v2733
  %v2735 = vrot.slane %v1740, %v2734
  %v2736 = vlaneseq
  %v2737 = vshrl.u32 %v2736, 7
  %v2738 = vsub.s32 5, %v2737
  %v2739 = vrot.slane %v1740, %v2738
  %v2740 = vlaneseq
  %v2741 = vshrl.u32 %v2740, 7
  %v2742 = vsub.s32 6, %v2741
  %v2743 = vrot.slane %v1740, %v2742
  %v2744 = vlaneseq
  %v2745 = vshrl.u32 %v2744, 7
  %v2746 = vsub.s32 7, %v2745
  %v2747 = vrot.slane %v1740, %v2746
  %v2748 = vlaneseq
  %v2749 = vshrl.u32 %v2748, 7
  %v2750 = vsub.s32 0, %v2749
  %v2751 = vrot.slane %v1755, %v2750
  %v2752 = vlaneseq
  %v2753 = vshrl.u32 %v2752, 7
  %v2754 = vsub.s32 1, %v2753
  %v2755 = vrot.slane %v1755, %v2754
  %v2756 = vlaneseq
  %v2757 = vshrl.u32 %v2756, 7
  %v2758 = vsub.s32 2, %v2757
  %v2759 = vrot.slane %v1755, %v2758
  %v2760 = vlaneseq
  %v2761 = vshrl.u32 %v2760, 7
  %v2762 = vsub.s32 3, %v2761
  %v2763 = vrot.slane %v1755, %v2762
  %v2764 = vlaneseq
  %v2765 = vshrl.u32 %v2764, 7
  %v2766 = vsub.s32 4, %v2765
  %v2767 = vrot.slane %v1755, %v2766
  %v2768 = vlaneseq
  %v2769 = vshrl.u32 %v2768, 7
  %v2770 = vsub.s32 5, %v2769
  %v2771 = vrot.slane %v1755, %v2770
  %v2772 = vlaneseq
  %v2773 = vshrl.u32 %v2772, 7
  %v2774 = vsub.s32 6, %v2773
  %v2775 = vrot.slane %v1755, %v2774
  %v2776 = vlaneseq
  %v2777 = vshrl.u32 %v2776, 7
  %v2778 = vsub.s32 7, %v2777
  %v2779 = vrot.slane %v1755, %v2778
  %v2780 = vcombine.low %v1759, %v1763
  %v2781 = vcombine.low %v1767, %v1771
  %v2782 = vcombine.low %v1775, %v1779
  %v2783 = vcombine.low %v1783, %v1787
  %v2785 = vunpack.c.l.s4 1966171168
  %v2786 = vunpack.c.0.s8 %v2785
  %v2787 = vlaneseq
  %v2788 = vshrl.u32 %v2787, 7
  %v2789 = vsub.s32 %v2786, %v2788
  %v2790 = vrot.slane %v2780, %v2789
  %v2792 = vunpack.c.l.s4 1966171168
  %v2793 = vunpack.c.0.s8 %v2792
  %v2794 = vlaneseq
  %v2795 = vshrl.u32 %v2794, 7
  %v2796 = vsub.s32 %v2793, %v2795
  %v2797 = vrot.slane %v2781, %v2796
  %v2799 = vunpack.c.l.s4 1966171168
  %v2800 = vunpack.c.0.s8 %v2799
  %v2801 = vlaneseq
  %v2802 = vshrl.u32 %v2801, 7
  %v2803 = vsub.s32 %v2800, %v2802
  %v2804 = vrot.slane %v2782, %v2803
  %v2806 = vunpack.c.l.s4 1966171168
  %v2807 = vunpack.c.0.s8 %v2806
  %v2808 = vlaneseq
  %v2809 = vshrl.u32 %v2808, 7
  %v2810 = vsub.s32 %v2807, %v2809
  %v2811 = vrot.slane %v2783, %v2810
  %v2812 = vcombine.low %v2790, %v2797
  %v2813 = vcombine.low %v2804, %v2811
  %v2815 = vunpack.c.l.s4 1966171168
  %v2816 = vunpack.c.0.s8 %v2815
  %v2817 = vlaneseq
  %v2818 = vshrl.u32 %v2817, 7
  %v2819 = vsub.s32 %v2816, %v2818
  %v2820 = vrot.slane %v2812, %v2819
  %v2822 = vunpack.c.l.s4 1966171168
  %v2823 = vunpack.c.0.s8 %v2822
  %v2824 = vlaneseq
  %v2825 = vshrl.u32 %v2824, 7
  %v2826 = vsub.s32 %v2823, %v2825
  %v2827 = vrot.slane %v2813, %v2826
  %v2828 = vcombine.low %v2820, %v2827
  %v2829 = vcombine.low %v1791, %v1795
  %v2830 = vcombine.low %v1799, %v1803
  %v2831 = vcombine.low %v1807, %v1811
  %v2832 = vcombine.low %v1815, %v1819
  %v2834 = vunpack.c.l.s4 1966171168
  %v2835 = vunpack.c.0.s8 %v2834
  %v2836 = vlaneseq
  %v2837 = vshrl.u32 %v2836, 7
  %v2838 = vsub.s32 %v2835, %v2837
  %v2839 = vrot.slane %v2829, %v2838
  %v2841 = vunpack.c.l.s4 1966171168
  %v2842 = vunpack.c.0.s8 %v2841
  %v2843 = vlaneseq
  %v2844 = vshrl.u32 %v2843, 7
  %v2845 = vsub.s32 %v2842, %v2844
  %v2846 = vrot.slane %v2830, %v2845
  %v2848 = vunpack.c.l.s4 1966171168
  %v2849 = vunpack.c.0.s8 %v2848
  %v2850 = vlaneseq
  %v2851 = vshrl.u32 %v2850, 7
  %v2852 = vsub.s32 %v2849, %v2851
  %v2853 = vrot.slane %v2831, %v2852
  %v2855 = vunpack.c.l.s4 1966171168
  %v2856 = vunpack.c.0.s8 %v2855
  %v2857 = vlaneseq
  %v2858 = vshrl.u32 %v2857, 7
  %v2859 = vsub.s32 %v2856, %v2858
  %v2860 = vrot.slane %v2832, %v2859
  %v2861 = vcombine.low %v2839, %v2846
  %v2862 = vcombine.low %v2853, %v2860
  %v2864 = vunpack.c.l.s4 1966171168
  %v2865 = vunpack.c.0.s8 %v2864
  %v2866 = vlaneseq
  %v2867 = vshrl.u32 %v2866, 7
  %v2868 = vsub.s32 %v2865, %v2867
  %v2869 = vrot.slane %v2861, %v2868
  %v2871 = vunpack.c.l.s4 1966171168
  %v2872 = vunpack.c.0.s8 %v2871
  %v2873 = vlaneseq
  %v2874 = vshrl.u32 %v2873, 7
  %v2875 = vsub.s32 %v2872, %v2874
  %v2876 = vrot.slane %v2862, %v2875
  %v2877 = vcombine.low %v2869, %v2876
  %v2878 = vcombine.low %v1823, %v1827
  %v2879 = vcombine.low %v1831, %v1835
  %v2880 = vcombine.low %v1839, %v1843
  %v2881 = vcombine.low %v1847, %v1851
  %v2883 = vunpack.c.l.s4 1966171168
  %v2884 = vunpack.c.0.s8 %v2883
  %v2885 = vlaneseq
  %v2886 = vshrl.u32 %v2885, 7
  %v2887 = vsub.s32 %v2884, %v2886
  %v2888 = vrot.slane %v2878, %v2887
  %v2890 = vunpack.c.l.s4 1966171168
  %v2891 = vunpack.c.0.s8 %v2890
  %v2892 = vlaneseq
  %v2893 = vshrl.u32 %v2892, 7
  %v2894 = vsub.s32 %v2891, %v2893
  %v2895 = vrot.slane %v2879, %v2894
  %v2897 = vunpack.c.l.s4 1966171168
  %v2898 = vunpack.c.0.s8 %v2897
  %v2899 = vlaneseq
  %v2900 = vshrl.u32 %v2899, 7
  %v2901 = vsub.s32 %v2898, %v2900
  %v2902 = vrot.slane %v2880, %v2901
  %v2904 = vunpack.c.l.s4 1966171168
  %v2905 = vunpack.c.0.s8 %v2904
  %v2906 = vlaneseq
  %v2907 = vshrl.u32 %v2906, 7
  %v2908 = vsub.s32 %v2905, %v2907
  %v2909 = vrot.slane %v2881, %v2908
  %v2910 = vcombine.low %v2888, %v2895
  %v2911 = vcombine.low %v2902, %v2909
  %v2913 = vunpack.c.l.s4 1966171168
  %v2914 = vunpack.c.0.s8 %v2913
  %v2915 = vlaneseq
  %v2916 = vshrl.u32 %v2915, 7
  %v2917 = vsub.s32 %v2914, %v2916
  %v2918 = vrot.slane %v2910, %v2917
  %v2920 = vunpack.c.l.s4 1966171168
  %v2921 = vunpack.c.0.s8 %v2920
  %v2922 = vlaneseq
  %v2923 = vshrl.u32 %v2922, 7
  %v2924 = vsub.s32 %v2921, %v2923
  %v2925 = vrot.slane %v2911, %v2924
  %v2926 = vcombine.low %v2918, %v2925
  %v2927 = vcombine.low %v1855, %v1859
  %v2928 = vcombine.low %v1863, %v1867
  %v2929 = vcombine.low %v1871, %v1875
  %v2930 = vcombine.low %v1879, %v1883
  %v2932 = vunpack.c.l.s4 1966171168
  %v2933 = vunpack.c.0.s8 %v2932
  %v2934 = vlaneseq
  %v2935 = vshrl.u32 %v2934, 7
  %v2936 = vsub.s32 %v2933, %v2935
  %v2937 = vrot.slane %v2927, %v2936
  %v2939 = vunpack.c.l.s4 1966171168
  %v2940 = vunpack.c.0.s8 %v2939
  %v2941 = vlaneseq
  %v2942 = vshrl.u32 %v2941, 7
  %v2943 = vsub.s32 %v2940, %v2942
  %v2944 = vrot.slane %v2928, %v2943
  %v2946 = vunpack.c.l.s4 1966171168
  %v2947 = vunpack.c.0.s8 %v2946
  %v2948 = vlaneseq
  %v2949 = vshrl.u32 %v2948, 7
  %v2950 = vsub.s32 %v2947, %v2949
  %v2951 = vrot.slane %v2929, %v2950
  %v2953 = vunpack.c.l.s4 1966171168
  %v2954 = vunpack.c.0.s8 %v2953
  %v2955 = vlaneseq
  %v2956 = vshrl.u32 %v2955, 7
  %v2957 = vsub.s32 %v2954, %v2956
  %v2958 = vrot.slane %v2930, %v2957
  %v2959 = vcombine.low %v2937, %v2944
  %v2960 = vcombine.low %v2951, %v2958
  %v2962 = vunpack.c.l.s4 1966171168
  %v2963 = vunpack.c.0.s8 %v2962
  %v2964 = vlaneseq
  %v2965 = vshrl.u32 %v2964, 7
  %v2966 = vsub.s32 %v2963, %v2965
  %v2967 = vrot.slane %v2959, %v2966
  %v2969 = vunpack.c.l.s4 1966171168
  %v2970 = vunpack.c.0.s8 %v2969
  %v2971 = vlaneseq
  %v2972 = vshrl.u32 %v2971, 7
  %v2973 = vsub.s32 %v2970, %v2972
  %v2974 = vrot.slane %v2960, %v2973
  %v2975 = vcombine.low %v2967, %v2974
  %v2976 = vcombine.low %v1887, %v1891
  %v2977 = vcombine.low %v1895, %v1899
  %v2978 = vcombine.low %v1903, %v1907
  %v2979 = vcombine.low %v1911, %v1915
  %v2981 = vunpack.c.l.s4 1966171168
  %v2982 = vunpack.c.0.s8 %v2981
  %v2983 = vlaneseq
  %v2984 = vshrl.u32 %v2983, 7
  %v2985 = vsub.s32 %v2982, %v2984
  %v2986 = vrot.slane %v2976, %v2985
  %v2988 = vunpack.c.l.s4 1966171168
  %v2989 = vunpack.c.0.s8 %v2988
  %v2990 = vlaneseq
  %v2991 = vshrl.u32 %v2990, 7
  %v2992 = vsub.s32 %v2989, %v2991
  %v2993 = vrot.slane %v2977, %v2992
  %v2995 = vunpack.c.l.s4 1966171168
  %v2996 = vunpack.c.0.s8 %v2995
  %v2997 = vlaneseq
  %v2998 = vshrl.u32 %v2997, 7
  %v2999 = vsub.s32 %v2996, %v2998
  %v3000 = vrot.slane %v2978, %v2999
  %v3002 = vunpack.c.l.s4 1966171168
  %v3003 = vunpack.c.0.s8 %v3002
  %v3004 = vlaneseq
  %v3005 = vshrl.u32 %v3004, 7
  %v3006 = vsub.s32 %v3003, %v3005
  %v3007 = vrot.slane %v2979, %v3006
  %v3008 = vcombine.low %v2986, %v2993
  %v3009 = vcombine.low %v3000, %v3007
  %v3011 = vunpack.c.l.s4 1966171168
  %v3012 = vunpack.c.0.s8 %v3011
  %v3013 = vlaneseq
  %v3014 = vshrl.u32 %v3013, 7
  %v3015 = vsub.s32 %v3012, %v3014
  %v3016 = vrot.slane %v3008, %v3015
  %v3018 = vunpack.c.l.s4 1966171168
  %v3019 = vunpack.c.0.s8 %v3018
  %v3020 = vlaneseq
  %v3021 = vshrl.u32 %v3020, 7
  %v3022 = vsub.s32 %v3019, %v3021
  %v3023 = vrot.slane %v3009, %v3022
  %v3024 = vcombine.low %v3016, %v3023
  %v3025 = vcombine.low %v1919, %v1923
  %v3026 = vcombine.low %v1927, %v1931
  %v3027 = vcombine.low %v1935, %v1939
  %v3028 = vcombine.low %v1943, %v1947
  %v3030 = vunpack.c.l.s4 1966171168
  %v3031 = vunpack.c.0.s8 %v3030
  %v3032 = vlaneseq
  %v3033 = vshrl.u32 %v3032, 7
  %v3034 = vsub.s32 %v3031, %v3033
  %v3035 = vrot.slane %v3025, %v3034
  %v3037 = vunpack.c.l.s4 1966171168
  %v3038 = vunpack.c.0.s8 %v3037
  %v3039 = vlaneseq
  %v3040 = vshrl.u32 %v3039, 7
  %v3041 = vsub.s32 %v3038, %v3040
  %v3042 = vrot.slane %v3026, %v3041
  %v3044 = vunpack.c.l.s4 1966171168
  %v3045 = vunpack.c.0.s8 %v3044
  %v3046 = vlaneseq
  %v3047 = vshrl.u32 %v3046, 7
  %v3048 = vsub.s32 %v3045, %v3047
  %v3049 = vrot.slane %v3027, %v3048
  %v3051 = vunpack.c.l.s4 1966171168
  %v3052 = vunpack.c.0.s8 %v3051
  %v3053 = vlaneseq
  %v3054 = vshrl.u32 %v3053, 7
  %v3055 = vsub.s32 %v3052, %v3054
  %v3056 = vrot.slane %v3028, %v3055
  %v3057 = vcombine.low %v3035, %v3042
  %v3058 = vcombine.low %v3049, %v3056
  %v3060 = vunpack.c.l.s4 1966171168
  %v3061 = vunpack.c.0.s8 %v3060
  %v3062 = vlaneseq
  %v3063 = vshrl.u32 %v3062, 7
  %v3064 = vsub.s32 %v3061, %v3063
  %v3065 = vrot.slane %v3057, %v3064
  %v3067 = vunpack.c.l.s4 1966171168
  %v3068 = vunpack.c.0.s8 %v3067
  %v3069 = vlaneseq
  %v3070 = vshrl.u32 %v3069, 7
  %v3071 = vsub.s32 %v3068, %v3070
  %v3072 = vrot.slane %v3058, %v3071
  %v3073 = vcombine.low %v3065, %v3072
  %v3074 = vcombine.low %v1951, %v1955
  %v3075 = vcombine.low %v1959, %v1963
  %v3076 = vcombine.low %v1967, %v1971
  %v3077 = vcombine.low %v1975, %v1979
  %v3079 = vunpack.c.l.s4 1966171168
  %v3080 = vunpack.c.0.s8 %v3079
  %v3081 = vlaneseq
  %v3082 = vshrl.u32 %v3081, 7
  %v3083 = vsub.s32 %v3080, %v3082
  %v3084 = vrot.slane %v3074, %v3083
  %v3086 = vunpack.c.l.s4 1966171168
  %v3087 = vunpack.c.0.s8 %v3086
  %v3088 = vlaneseq
  %v3089 = vshrl.u32 %v3088, 7
  %v3090 = vsub.s32 %v3087, %v3089
  %v3091 = vrot.slane %v3075, %v3090
  %v3093 = vunpack.c.l.s4 1966171168
  %v3094 = vunpack.c.0.s8 %v3093
  %v3095 = vlaneseq
  %v3096 = vshrl.u32 %v3095, 7
  %v3097 = vsub.s32 %v3094, %v3096
  %v3098 = vrot.slane %v3076, %v3097
  %v3100 = vunpack.c.l.s4 1966171168
  %v3101 = vunpack.c.0.s8 %v3100
  %v3102 = vlaneseq
  %v3103 = vshrl.u32 %v3102, 7
  %v3104 = vsub.s32 %v3101, %v3103
  %v3105 = vrot.slane %v3077, %v3104
  %v3106 = vcombine.low %v3084, %v3091
  %v3107 = vcombine.low %v3098, %v3105
  %v3109 = vunpack.c.l.s4 1966171168
  %v3110 = vunpack.c.0.s8 %v3109
  %v3111 = vlaneseq
  %v3112 = vshrl.u32 %v3111, 7
  %v3113 = vsub.s32 %v3110, %v3112
  %v3114 = vrot.slane %v3106, %v3113
  %v3116 = vunpack.c.l.s4 1966171168
  %v3117 = vunpack.c.0.s8 %v3116
  %v3118 = vlaneseq
  %v3119 = vshrl.u32 %v3118, 7
  %v3120 = vsub.s32 %v3117, %v3119
  %v3121 = vrot.slane %v3107, %v3120
  %v3122 = vcombine.low %v3114, %v3121
  %v3123 = vcombine.low %v1983, %v1987
  %v3124 = vcombine.low %v1991, %v1995
  %v3125 = vcombine.low %v1999, %v2003
  %v3126 = vcombine.low %v2007, %v2011
  %v3128 = vunpack.c.l.s4 1966171168
  %v3129 = vunpack.c.0.s8 %v3128
  %v3130 = vlaneseq
  %v3131 = vshrl.u32 %v3130, 7
  %v3132 = vsub.s32 %v3129, %v3131
  %v3133 = vrot.slane %v3123, %v3132
  %v3135 = vunpack.c.l.s4 1966171168
  %v3136 = vunpack.c.0.s8 %v3135
  %v3137 = vlaneseq
  %v3138 = vshrl.u32 %v3137, 7
  %v3139 = vsub.s32 %v3136, %v3138
  %v3140 = vrot.slane %v3124, %v3139
  %v3142 = vunpack.c.l.s4 1966171168
  %v3143 = vunpack.c.0.s8 %v3142
  %v3144 = vlaneseq
  %v3145 = vshrl.u32 %v3144, 7
  %v3146 = vsub.s32 %v3143, %v3145
  %v3147 = vrot.slane %v3125, %v3146
  %v3149 = vunpack.c.l.s4 1966171168
  %v3150 = vunpack.c.0.s8 %v3149
  %v3151 = vlaneseq
  %v3152 = vshrl.u32 %v3151, 7
  %v3153 = vsub.s32 %v3150, %v3152
  %v3154 = vrot.slane %v3126, %v3153
  %v3155 = vcombine.low %v3133, %v3140
  %v3156 = vcombine.low %v3147, %v3154
  %v3158 = vunpack.c.l.s4 1966171168
  %v3159 = vunpack.c.0.s8 %v3158
  %v3160 = vlaneseq
  %v3161 = vshrl.u32 %v3160, 7
  %v3162 = vsub.s32 %v3159, %v3161
  %v3163 = vrot.slane %v3155, %v3162
  %v3165 = vunpack.c.l.s4 1966171168
  %v3166 = vunpack.c.0.s8 %v3165
  %v3167 = vlaneseq
  %v3168 = vshrl.u32 %v3167, 7
  %v3169 = vsub.s32 %v3166, %v3168
  %v3170 = vrot.slane %v3156, %v3169
  %v3171 = vcombine.low %v3163, %v3170
  %v3172 = vcombine.low %v2015, %v2019
  %v3173 = vcombine.low %v2023, %v2027
  %v3174 = vcombine.low %v2031, %v2035
  %v3175 = vcombine.low %v2039, %v2043
  %v3177 = vunpack.c.l.s4 1966171168
  %v3178 = vunpack.c.0.s8 %v3177
  %v3179 = vlaneseq
  %v3180 = vshrl.u32 %v3179, 7
  %v3181 = vsub.s32 %v3178, %v3180
  %v3182 = vrot.slane %v3172, %v3181
  %v3184 = vunpack.c.l.s4 1966171168
  %v3185 = vunpack.c.0.s8 %v3184
  %v3186 = vlaneseq
  %v3187 = vshrl.u32 %v3186, 7
  %v3188 = vsub.s32 %v3185, %v3187
  %v3189 = vrot.slane %v3173, %v3188
  %v3191 = vunpack.c.l.s4 1966171168
  %v3192 = vunpack.c.0.s8 %v3191
  %v3193 = vlaneseq
  %v3194 = vshrl.u32 %v3193, 7
  %v3195 = vsub.s32 %v3192, %v3194
  %v3196 = vrot.slane %v3174, %v3195
  %v3198 = vunpack.c.l.s4 1966171168
  %v3199 = vunpack.c.0.s8 %v3198
  %v3200 = vlaneseq
  %v3201 = vshrl.u32 %v3200, 7
  %v3202 = vsub.s32 %v3199, %v3201
  %v3203 = vrot.slane %v3175, %v3202
  %v3204 = vcombine.low %v3182, %v3189
  %v3205 = vcombine.low %v3196, %v3203
  %v3207 = vunpack.c.l.s4 1966171168
  %v3208 = vunpack.c.0.s8 %v3207
  %v3209 = vlaneseq
  %v3210 = vshrl.u32 %v3209, 7
  %v3211 = vsub.s32 %v3208, %v3210
  %v3212 = vrot.slane %v3204, %v3211
  %v3214 = vunpack.c.l.s4 1966171168
  %v3215 = vunpack.c.0.s8 %v3214
  %v3216 = vlaneseq
  %v3217 = vshrl.u32 %v3216, 7
  %v3218 = vsub.s32 %v3215, %v3217
  %v3219 = vrot.slane %v3205, %v3218
  %v3220 = vcombine.low %v3212, %v3219
  %v3221 = vcombine.low %v2047, %v2051
  %v3222 = vcombine.low %v2055, %v2059
  %v3223 = vcombine.low %v2063, %v2067
  %v3224 = vcombine.low %v2071, %v2075
  %v3226 = vunpack.c.l.s4 1966171168
  %v3227 = vunpack.c.0.s8 %v3226
  %v3228 = vlaneseq
  %v3229 = vshrl.u32 %v3228, 7
  %v3230 = vsub.s32 %v3227, %v3229
  %v3231 = vrot.slane %v3221, %v3230
  %v3233 = vunpack.c.l.s4 1966171168
  %v3234 = vunpack.c.0.s8 %v3233
  %v3235 = vlaneseq
  %v3236 = vshrl.u32 %v3235, 7
  %v3237 = vsub.s32 %v3234, %v3236
  %v3238 = vrot.slane %v3222, %v3237
  %v3240 = vunpack.c.l.s4 1966171168
  %v3241 = vunpack.c.0.s8 %v3240
  %v3242 = vlaneseq
  %v3243 = vshrl.u32 %v3242, 7
  %v3244 = vsub.s32 %v3241, %v3243
  %v3245 = vrot.slane %v3223, %v3244
  %v3247 = vunpack.c.l.s4 1966171168
  %v3248 = vunpack.c.0.s8 %v3247
  %v3249 = vlaneseq
  %v3250 = vshrl.u32 %v3249, 7
  %v3251 = vsub.s32 %v3248, %v3250
  %v3252 = vrot.slane %v3224, %v3251
  %v3253 = vcombine.low %v3231, %v3238
  %v3254 = vcombine.low %v3245, %v3252
  %v3256 = vunpack.c.l.s4 1966171168
  %v3257 = vunpack.c.0.s8 %v3256
  %v3258 = vlaneseq
  %v3259 = vshrl.u32 %v3258, 7
  %v3260 = vsub.s32 %v3257, %v3259
  %v3261 = vrot.slane %v3253, %v3260
  %v3263 = vunpack.c.l.s4 1966171168
  %v3264 = vunpack.c.0.s8 %v3263
  %v3265 = vlaneseq
  %v3266 = vshrl.u32 %v3265, 7
  %v3267 = vsub.s32 %v3264, %v3266
  %v3268 = vrot.slane %v3254, %v3267
  %v3269 = vcombine.low %v3261, %v3268
  %v3270 = vcombine.low %v2079, %v2083
  %v3271 = vcombine.low %v2087, %v2091
  %v3272 = vcombine.low %v2095, %v2099
  %v3273 = vcombine.low %v2103, %v2107
  %v3275 = vunpack.c.l.s4 1966171168
  %v3276 = vunpack.c.0.s8 %v3275
  %v3277 = vlaneseq
  %v3278 = vshrl.u32 %v3277, 7
  %v3279 = vsub.s32 %v3276, %v3278
  %v3280 = vrot.slane %v3270, %v3279
  %v3282 = vunpack.c.l.s4 1966171168
  %v3283 = vunpack.c.0.s8 %v3282
  %v3284 = vlaneseq
  %v3285 = vshrl.u32 %v3284, 7
  %v3286 = vsub.s32 %v3283, %v3285
  %v3287 = vrot.slane %v3271, %v3286
  %v3289 = vunpack.c.l.s4 1966171168
  %v3290 = vunpack.c.0.s8 %v3289
  %v3291 = vlaneseq
  %v3292 = vshrl.u32 %v3291, 7
  %v3293 = vsub.s32 %v3290, %v3292
  %v3294 = vrot.slane %v3272, %v3293
  %v3296 = vunpack.c.l.s4 1966171168
  %v3297 = vunpack.c.0.s8 %v3296
  %v3298 = vlaneseq
  %v3299 = vshrl.u32 %v3298, 7
  %v3300 = vsub.s32 %v3297, %v3299
  %v3301 = vrot.slane %v3273, %v3300
  %v3302 = vcombine.low %v3280, %v3287
  %v3303 = vcombine.low %v3294, %v3301
  %v3305 = vunpack.c.l.s4 1966171168
  %v3306 = vunpack.c.0.s8 %v3305
  %v3307 = vlaneseq
  %v3308 = vshrl.u32 %v3307, 7
  %v3309 = vsub.s32 %v3306, %v3308
  %v3310 = vrot.slane %v3302, %v3309
  %v3312 = vunpack.c.l.s4 1966171168
  %v3313 = vunpack.c.0.s8 %v3312
  %v3314 = vlaneseq
  %v3315 = vshrl.u32 %v3314, 7
  %v3316 = vsub.s32 %v3313, %v3315
  %v3317 = vrot.slane %v3303, %v3316
  %v3318 = vcombine.low %v3310, %v3317
  %v3319 = vcombine.low %v2111, %v2115
  %v3320 = vcombine.low %v2119, %v2123
  %v3321 = vcombine.low %v2127, %v2131
  %v3322 = vcombine.low %v2135, %v2139
  %v3324 = vunpack.c.l.s4 1966171168
  %v3325 = vunpack.c.0.s8 %v3324
  %v3326 = vlaneseq
  %v3327 = vshrl.u32 %v3326, 7
  %v3328 = vsub.s32 %v3325, %v3327
  %v3329 = vrot.slane %v3319, %v3328
  %v3331 = vunpack.c.l.s4 1966171168
  %v3332 = vunpack.c.0.s8 %v3331
  %v3333 = vlaneseq
  %v3334 = vshrl.u32 %v3333, 7
  %v3335 = vsub.s32 %v3332, %v3334
  %v3336 = vrot.slane %v3320, %v3335
  %v3338 = vunpack.c.l.s4 1966171168
  %v3339 = vunpack.c.0.s8 %v3338
  %v3340 = vlaneseq
  %v3341 = vshrl.u32 %v3340, 7
  %v3342 = vsub.s32 %v3339, %v3341
  %v3343 = vrot.slane %v3321, %v3342
  %v3345 = vunpack.c.l.s4 1966171168
  %v3346 = vunpack.c.0.s8 %v3345
  %v3347 = vlaneseq
  %v3348 = vshrl.u32 %v3347, 7
  %v3349 = vsub.s32 %v3346, %v3348
  %v3350 = vrot.slane %v3322, %v3349
  %v3351 = vcombine.low %v3329, %v3336
  %v3352 = vcombine.low %v3343, %v3350
  %v3354 = vunpack.c.l.s4 1966171168
  %v3355 = vunpack.c.0.s8 %v3354
  %v3356 = vlaneseq
  %v3357 = vshrl.u32 %v3356, 7
  %v3358 = vsub.s32 %v3355, %v3357
  %v3359 = vrot.slane %v3351, %v3358
  %v3361 = vunpack.c.l.s4 1966171168
  %v3362 = vunpack.c.0.s8 %v3361
  %v3363 = vlaneseq
  %v3364 = vshrl.u32 %v3363, 7
  %v3365 = vsub.s32 %v3362, %v3364
  %v3366 = vrot.slane %v3352, %v3365
  %v3367 = vcombine.low %v3359, %v3366
  %v3368 = vcombine.low %v2143, %v2147
  %v3369 = vcombine.low %v2151, %v2155
  %v3370 = vcombine.low %v2159, %v2163
  %v3371 = vcombine.low %v2167, %v2171
  %v3373 = vunpack.c.l.s4 1966171168
  %v3374 = vunpack.c.0.s8 %v3373
  %v3375 = vlaneseq
  %v3376 = vshrl.u32 %v3375, 7
  %v3377 = vsub.s32 %v3374, %v3376
  %v3378 = vrot.slane %v3368, %v3377
  %v3380 = vunpack.c.l.s4 1966171168
  %v3381 = vunpack.c.0.s8 %v3380
  %v3382 = vlaneseq
  %v3383 = vshrl.u32 %v3382, 7
  %v3384 = vsub.s32 %v3381, %v3383
  %v3385 = vrot.slane %v3369, %v3384
  %v3387 = vunpack.c.l.s4 1966171168
  %v3388 = vunpack.c.0.s8 %v3387
  %v3389 = vlaneseq
  %v3390 = vshrl.u32 %v3389, 7
  %v3391 = vsub.s32 %v3388, %v3390
  %v3392 = vrot.slane %v3370, %v3391
  %v3394 = vunpack.c.l.s4 1966171168
  %v3395 = vunpack.c.0.s8 %v3394
  %v3396 = vlaneseq
  %v3397 = vshrl.u32 %v3396, 7
  %v3398 = vsub.s32 %v3395, %v3397
  %v3399 = vrot.slane %v3371, %v3398
  %v3400 = vcombine.low %v3378, %v3385
  %v3401 = vcombine.low %v3392, %v3399
  %v3403 = vunpack.c.l.s4 1966171168
  %v3404 = vunpack.c.0.s8 %v3403
  %v3405 = vlaneseq
  %v3406 = vshrl.u32 %v3405, 7
  %v3407 = vsub.s32 %v3404, %v3406
  %v3408 = vrot.slane %v3400, %v3407
  %v3410 = vunpack.c.l.s4 1966171168
  %v3411 = vunpack.c.0.s8 %v3410
  %v3412 = vlaneseq
  %v3413 = vshrl.u32 %v3412, 7
  %v3414 = vsub.s32 %v3411, %v3413
  %v3415 = vrot.slane %v3401, %v3414
  %v3416 = vcombine.low %v3408, %v3415
  %v3417 = vcombine.low %v2175, %v2179
  %v3418 = vcombine.low %v2183, %v2187
  %v3419 = vcombine.low %v2191, %v2195
  %v3420 = vcombine.low %v2199, %v2203
  %v3422 = vunpack.c.l.s4 1966171168
  %v3423 = vunpack.c.0.s8 %v3422
  %v3424 = vlaneseq
  %v3425 = vshrl.u32 %v3424, 7
  %v3426 = vsub.s32 %v3423, %v3425
  %v3427 = vrot.slane %v3417, %v3426
  %v3429 = vunpack.c.l.s4 1966171168
  %v3430 = vunpack.c.0.s8 %v3429
  %v3431 = vlaneseq
  %v3432 = vshrl.u32 %v3431, 7
  %v3433 = vsub.s32 %v3430, %v3432
  %v3434 = vrot.slane %v3418, %v3433
  %v3436 = vunpack.c.l.s4 1966171168
  %v3437 = vunpack.c.0.s8 %v3436
  %v3438 = vlaneseq
  %v3439 = vshrl.u32 %v3438, 7
  %v3440 = vsub.s32 %v3437, %v3439
  %v3441 = vrot.slane %v3419, %v3440
  %v3443 = vunpack.c.l.s4 1966171168
  %v3444 = vunpack.c.0.s8 %v3443
  %v3445 = vlaneseq
  %v3446 = vshrl.u32 %v3445, 7
  %v3447 = vsub.s32 %v3444, %v3446
  %v3448 = vrot.slane %v3420, %v3447
  %v3449 = vcombine.low %v3427, %v3434
  %v3450 = vcombine.low %v3441, %v3448
  %v3452 = vunpack.c.l.s4 1966171168
  %v3453 = vunpack.c.0.s8 %v3452
  %v3454 = vlaneseq
  %v3455 = vshrl.u32 %v3454, 7
  %v3456 = vsub.s32 %v3453, %v3455
  %v3457 = vrot.slane %v3449, %v3456
  %v3459 = vunpack.c.l.s4 1966171168
  %v3460 = vunpack.c.0.s8 %v3459
  %v3461 = vlaneseq
  %v3462 = vshrl.u32 %v3461, 7
  %v3463 = vsub.s32 %v3460, %v3462
  %v3464 = vrot.slane %v3450, %v3463
  %v3465 = vcombine.low %v3457, %v3464
  %v3466 = vcombine.low %v2207, %v2211
  %v3467 = vcombine.low %v2215, %v2219
  %v3468 = vcombine.low %v2223, %v2227
  %v3469 = vcombine.low %v2231, %v2235
  %v3471 = vunpack.c.l.s4 1966171168
  %v3472 = vunpack.c.0.s8 %v3471
  %v3473 = vlaneseq
  %v3474 = vshrl.u32 %v3473, 7
  %v3475 = vsub.s32 %v3472, %v3474
  %v3476 = vrot.slane %v3466, %v3475
  %v3478 = vunpack.c.l.s4 1966171168
  %v3479 = vunpack.c.0.s8 %v3478
  %v3480 = vlaneseq
  %v3481 = vshrl.u32 %v3480, 7
  %v3482 = vsub.s32 %v3479, %v3481
  %v3483 = vrot.slane %v3467, %v3482
  %v3485 = vunpack.c.l.s4 1966171168
  %v3486 = vunpack.c.0.s8 %v3485
  %v3487 = vlaneseq
  %v3488 = vshrl.u32 %v3487, 7
  %v3489 = vsub.s32 %v3486, %v3488
  %v3490 = vrot.slane %v3468, %v3489
  %v3492 = vunpack.c.l.s4 1966171168
  %v3493 = vunpack.c.0.s8 %v3492
  %v3494 = vlaneseq
  %v3495 = vshrl.u32 %v3494, 7
  %v3496 = vsub.s32 %v3493, %v3495
  %v3497 = vrot.slane %v3469, %v3496
  %v3498 = vcombine.low %v3476, %v3483
  %v3499 = vcombine.low %v3490, %v3497
  %v3501 = vunpack.c.l.s4 1966171168
  %v3502 = vunpack.c.0.s8 %v3501
  %v3503 = vlaneseq
  %v3504 = vshrl.u32 %v3503, 7
  %v3505 = vsub.s32 %v3502, %v3504
  %v3506 = vrot.slane %v3498, %v3505
  %v3508 = vunpack.c.l.s4 1966171168
  %v3509 = vunpack.c.0.s8 %v3508
  %v3510 = vlaneseq
  %v3511 = vshrl.u32 %v3510, 7
  %v3512 = vsub.s32 %v3509, %v3511
  %v3513 = vrot.slane %v3499, %v3512
  %v3514 = vcombine.low %v3506, %v3513
  %v3515 = vcombine.low %v2239, %v2243
  %v3516 = vcombine.low %v2247, %v2251
  %v3517 = vcombine.low %v2255, %v2259
  %v3518 = vcombine.low %v2263, %v2267
  %v3520 = vunpack.c.l.s4 1966171168
  %v3521 = vunpack.c.0.s8 %v3520
  %v3522 = vlaneseq
  %v3523 = vshrl.u32 %v3522, 7
  %v3524 = vsub.s32 %v3521, %v3523
  %v3525 = vrot.slane %v3515, %v3524
  %v3527 = vunpack.c.l.s4 1966171168
  %v3528 = vunpack.c.0.s8 %v3527
  %v3529 = vlaneseq
  %v3530 = vshrl.u32 %v3529, 7
  %v3531 = vsub.s32 %v3528, %v3530
  %v3532 = vrot.slane %v3516, %v3531
  %v3534 = vunpack.c.l.s4 1966171168
  %v3535 = vunpack.c.0.s8 %v3534
  %v3536 = vlaneseq
  %v3537 = vshrl.u32 %v3536, 7
  %v3538 = vsub.s32 %v3535, %v3537
  %v3539 = vrot.slane %v3517, %v3538
  %v3541 = vunpack.c.l.s4 1966171168
  %v3542 = vunpack.c.0.s8 %v3541
  %v3543 = vlaneseq
  %v3544 = vshrl.u32 %v3543, 7
  %v3545 = vsub.s32 %v3542, %v3544
  %v3546 = vrot.slane %v3518, %v3545
  %v3547 = vcombine.low %v3525, %v3532
  %v3548 = vcombine.low %v3539, %v3546
  %v3550 = vunpack.c.l.s4 1966171168
  %v3551 = vunpack.c.0.s8 %v3550
  %v3552 = vlaneseq
  %v3553 = vshrl.u32 %v3552, 7
  %v3554 = vsub.s32 %v3551, %v3553
  %v3555 = vrot.slane %v3547, %v3554
  %v3557 = vunpack.c.l.s4 1966171168
  %v3558 = vunpack.c.0.s8 %v3557
  %v3559 = vlaneseq
  %v3560 = vshrl.u32 %v3559, 7
  %v3561 = vsub.s32 %v3558, %v3560
  %v3562 = vrot.slane %v3548, %v3561
  %v3563 = vcombine.low %v3555, %v3562
  %v3564 = vcombine.low %v2271, %v2275
  %v3565 = vcombine.low %v2279, %v2283
  %v3566 = vcombine.low %v2287, %v2291
  %v3567 = vcombine.low %v2295, %v2299
  %v3569 = vunpack.c.l.s4 1966171168
  %v3570 = vunpack.c.0.s8 %v3569
  %v3571 = vlaneseq
  %v3572 = vshrl.u32 %v3571, 7
  %v3573 = vsub.s32 %v3570, %v3572
  %v3574 = vrot.slane %v3564, %v3573
  %v3576 = vunpack.c.l.s4 1966171168
  %v3577 = vunpack.c.0.s8 %v3576
  %v3578 = vlaneseq
  %v3579 = vshrl.u32 %v3578, 7
  %v3580 = vsub.s32 %v3577, %v3579
  %v3581 = vrot.slane %v3565, %v3580
  %v3583 = vunpack.c.l.s4 1966171168
  %v3584 = vunpack.c.0.s8 %v3583
  %v3585 = vlaneseq
  %v3586 = vshrl.u32 %v3585, 7
  %v3587 = vsub.s32 %v3584, %v3586
  %v3588 = vrot.slane %v3566, %v3587
  %v3590 = vunpack.c.l.s4 1966171168
  %v3591 = vunpack.c.0.s8 %v3590
  %v3592 = vlaneseq
  %v3593 = vshrl.u32 %v3592, 7
  %v3594 = vsub.s32 %v3591, %v3593
  %v3595 = vrot.slane %v3567, %v3594
  %v3596 = vcombine.low %v3574, %v3581
  %v3597 = vcombine.low %v3588, %v3595
  %v3599 = vunpack.c.l.s4 1966171168
  %v3600 = vunpack.c.0.s8 %v3599
  %v3601 = vlaneseq
  %v3602 = vshrl.u32 %v3601, 7
  %v3603 = vsub.s32 %v3600, %v3602
  %v3604 = vrot.slane %v3596, %v3603
  %v3606 = vunpack.c.l.s4 1966171168
  %v3607 = vunpack.c.0.s8 %v3606
  %v3608 = vlaneseq
  %v3609 = vshrl.u32 %v3608, 7
  %v3610 = vsub.s32 %v3607, %v3609
  %v3611 = vrot.slane %v3597, %v3610
  %v3612 = vcombine.low %v3604, %v3611
  %v3613 = vcombine.low %v2303, %v2307
  %v3614 = vcombine.low %v2311, %v2315
  %v3615 = vcombine.low %v2319, %v2323
  %v3616 = vcombine.low %v2327, %v2331
  %v3618 = vunpack.c.l.s4 1966171168
  %v3619 = vunpack.c.0.s8 %v3618
  %v3620 = vlaneseq
  %v3621 = vshrl.u32 %v3620, 7
  %v3622 = vsub.s32 %v3619, %v3621
  %v3623 = vrot.slane %v3613, %v3622
  %v3625 = vunpack.c.l.s4 1966171168
  %v3626 = vunpack.c.0.s8 %v3625
  %v3627 = vlaneseq
  %v3628 = vshrl.u32 %v3627, 7
  %v3629 = vsub.s32 %v3626, %v3628
  %v3630 = vrot.slane %v3614, %v3629
  %v3632 = vunpack.c.l.s4 1966171168
  %v3633 = vunpack.c.0.s8 %v3632
  %v3634 = vlaneseq
  %v3635 = vshrl.u32 %v3634, 7
  %v3636 = vsub.s32 %v3633, %v3635
  %v3637 = vrot.slane %v3615, %v3636
  %v3639 = vunpack.c.l.s4 1966171168
  %v3640 = vunpack.c.0.s8 %v3639
  %v3641 = vlaneseq
  %v3642 = vshrl.u32 %v3641, 7
  %v3643 = vsub.s32 %v3640, %v3642
  %v3644 = vrot.slane %v3616, %v3643
  %v3645 = vcombine.low %v3623, %v3630
  %v3646 = vcombine.low %v3637, %v3644
  %v3648 = vunpack.c.l.s4 1966171168
  %v3649 = vunpack.c.0.s8 %v3648
  %v3650 = vlaneseq
  %v3651 = vshrl.u32 %v3650, 7
  %v3652 = vsub.s32 %v3649, %v3651
  %v3653 = vrot.slane %v3645, %v3652
  %v3655 = vunpack.c.l.s4 1966171168
  %v3656 = vunpack.c.0.s8 %v3655
  %v3657 = vlaneseq
  %v3658 = vshrl.u32 %v3657, 7
  %v3659 = vsub.s32 %v3656, %v3658
  %v3660 = vrot.slane %v3646, %v3659
  %v3661 = vcombine.low %v3653, %v3660
  %v3662 = vcombine.low %v2335, %v2339
  %v3663 = vcombine.low %v2343, %v2347
  %v3664 = vcombine.low %v2351, %v2355
  %v3665 = vcombine.low %v2359, %v2363
  %v3667 = vunpack.c.l.s4 1966171168
  %v3668 = vunpack.c.0.s8 %v3667
  %v3669 = vlaneseq
  %v3670 = vshrl.u32 %v3669, 7
  %v3671 = vsub.s32 %v3668, %v3670
  %v3672 = vrot.slane %v3662, %v3671
  %v3674 = vunpack.c.l.s4 1966171168
  %v3675 = vunpack.c.0.s8 %v3674
  %v3676 = vlaneseq
  %v3677 = vshrl.u32 %v3676, 7
  %v3678 = vsub.s32 %v3675, %v3677
  %v3679 = vrot.slane %v3663, %v3678
  %v3681 = vunpack.c.l.s4 1966171168
  %v3682 = vunpack.c.0.s8 %v3681
  %v3683 = vlaneseq
  %v3684 = vshrl.u32 %v3683, 7
  %v3685 = vsub.s32 %v3682, %v3684
  %v3686 = vrot.slane %v3664, %v3685
  %v3688 = vunpack.c.l.s4 1966171168
  %v3689 = vunpack.c.0.s8 %v3688
  %v3690 = vlaneseq
  %v3691 = vshrl.u32 %v3690, 7
  %v3692 = vsub.s32 %v3689, %v3691
  %v3693 = vrot.slane %v3665, %v3692
  %v3694 = vcombine.low %v3672, %v3679
  %v3695 = vcombine.low %v3686, %v3693
  %v3697 = vunpack.c.l.s4 1966171168
  %v3698 = vunpack.c.0.s8 %v3697
  %v3699 = vlaneseq
  %v3700 = vshrl.u32 %v3699, 7
  %v3701 = vsub.s32 %v3698, %v3700
  %v3702 = vrot.slane %v3694, %v3701
  %v3704 = vunpack.c.l.s4 1966171168
  %v3705 = vunpack.c.0.s8 %v3704
  %v3706 = vlaneseq
  %v3707 = vshrl.u32 %v3706, 7
  %v3708 = vsub.s32 %v3705, %v3707
  %v3709 = vrot.slane %v3695, %v3708
  %v3710 = vcombine.low %v3702, %v3709
  %v3711 = vcombine.low %v2367, %v2371
  %v3712 = vcombine.low %v2375, %v2379
  %v3713 = vcombine.low %v2383, %v2387
  %v3714 = vcombine.low %v2391, %v2395
  %v3716 = vunpack.c.l.s4 1966171168
  %v3717 = vunpack.c.0.s8 %v3716
  %v3718 = vlaneseq
  %v3719 = vshrl.u32 %v3718, 7
  %v3720 = vsub.s32 %v3717, %v3719
  %v3721 = vrot.slane %v3711, %v3720
  %v3723 = vunpack.c.l.s4 1966171168
  %v3724 = vunpack.c.0.s8 %v3723
  %v3725 = vlaneseq
  %v3726 = vshrl.u32 %v3725, 7
  %v3727 = vsub.s32 %v3724, %v3726
  %v3728 = vrot.slane %v3712, %v3727
  %v3730 = vunpack.c.l.s4 1966171168
  %v3731 = vunpack.c.0.s8 %v3730
  %v3732 = vlaneseq
  %v3733 = vshrl.u32 %v3732, 7
  %v3734 = vsub.s32 %v3731, %v3733
  %v3735 = vrot.slane %v3713, %v3734
  %v3737 = vunpack.c.l.s4 1966171168
  %v3738 = vunpack.c.0.s8 %v3737
  %v3739 = vlaneseq
  %v3740 = vshrl.u32 %v3739, 7
  %v3741 = vsub.s32 %v3738, %v3740
  %v3742 = vrot.slane %v3714, %v3741
  %v3743 = vcombine.low %v3721, %v3728
  %v3744 = vcombine.low %v3735, %v3742
  %v3746 = vunpack.c.l.s4 1966171168
  %v3747 = vunpack.c.0.s8 %v3746
  %v3748 = vlaneseq
  %v3749 = vshrl.u32 %v3748, 7
  %v3750 = vsub.s32 %v3747, %v3749
  %v3751 = vrot.slane %v3743, %v3750
  %v3753 = vunpack.c.l.s4 1966171168
  %v3754 = vunpack.c.0.s8 %v3753
  %v3755 = vlaneseq
  %v3756 = vshrl.u32 %v3755, 7
  %v3757 = vsub.s32 %v3754, %v3756
  %v3758 = vrot.slane %v3744, %v3757
  %v3759 = vcombine.low %v3751, %v3758
  %v3760 = vcombine.low %v2399, %v2403
  %v3761 = vcombine.low %v2407, %v2411
  %v3762 = vcombine.low %v2415, %v2419
  %v3763 = vcombine.low %v2423, %v2427
  %v3765 = vunpack.c.l.s4 1966171168
  %v3766 = vunpack.c.0.s8 %v3765
  %v3767 = vlaneseq
  %v3768 = vshrl.u32 %v3767, 7
  %v3769 = vsub.s32 %v3766, %v3768
  %v3770 = vrot.slane %v3760, %v3769
  %v3772 = vunpack.c.l.s4 1966171168
  %v3773 = vunpack.c.0.s8 %v3772
  %v3774 = vlaneseq
  %v3775 = vshrl.u32 %v3774, 7
  %v3776 = vsub.s32 %v3773, %v3775
  %v3777 = vrot.slane %v3761, %v3776
  %v3779 = vunpack.c.l.s4 1966171168
  %v3780 = vunpack.c.0.s8 %v3779
  %v3781 = vlaneseq
  %v3782 = vshrl.u32 %v3781, 7
  %v3783 = vsub.s32 %v3780, %v3782
  %v3784 = vrot.slane %v3762, %v3783
  %v3786 = vunpack.c.l.s4 1966171168
  %v3787 = vunpack.c.0.s8 %v3786
  %v3788 = vlaneseq
  %v3789 = vshrl.u32 %v3788, 7
  %v3790 = vsub.s32 %v3787, %v3789
  %v3791 = vrot.slane %v3763, %v3790
  %v3792 = vcombine.low %v3770, %v3777
  %v3793 = vcombine.low %v3784, %v3791
  %v3795 = vunpack.c.l.s4 1966171168
  %v3796 = vunpack.c.0.s8 %v3795
  %v3797 = vlaneseq
  %v3798 = vshrl.u32 %v3797, 7
  %v3799 = vsub.s32 %v3796, %v3798
  %v3800 = vrot.slane %v3792, %v3799
  %v3802 = vunpack.c.l.s4 1966171168
  %v3803 = vunpack.c.0.s8 %v3802
  %v3804 = vlaneseq
  %v3805 = vshrl.u32 %v3804, 7
  %v3806 = vsub.s32 %v3803, %v3805
  %v3807 = vrot.slane %v3793, %v3806
  %v3808 = vcombine.low %v3800, %v3807
  %v3809 = vcombine.low %v2431, %v2435
  %v3810 = vcombine.low %v2439, %v2443
  %v3811 = vcombine.low %v2447, %v2451
  %v3812 = vcombine.low %v2455, %v2459
  %v3814 = vunpack.c.l.s4 1966171168
  %v3815 = vunpack.c.0.s8 %v3814
  %v3816 = vlaneseq
  %v3817 = vshrl.u32 %v3816, 7
  %v3818 = vsub.s32 %v3815, %v3817
  %v3819 = vrot.slane %v3809, %v3818
  %v3821 = vunpack.c.l.s4 1966171168
  %v3822 = vunpack.c.0.s8 %v3821
  %v3823 = vlaneseq
  %v3824 = vshrl.u32 %v3823, 7
  %v3825 = vsub.s32 %v3822, %v3824
  %v3826 = vrot.slane %v3810, %v3825
  %v3828 = vunpack.c.l.s4 1966171168
  %v3829 = vunpack.c.0.s8 %v3828
  %v3830 = vlaneseq
  %v3831 = vshrl.u32 %v3830, 7
  %v3832 = vsub.s32 %v3829, %v3831
  %v3833 = vrot.slane %v3811, %v3832
  %v3835 = vunpack.c.l.s4 1966171168
  %v3836 = vunpack.c.0.s8 %v3835
  %v3837 = vlaneseq
  %v3838 = vshrl.u32 %v3837, 7
  %v3839 = vsub.s32 %v3836, %v3838
  %v3840 = vrot.slane %v3812, %v3839
  %v3841 = vcombine.low %v3819, %v3826
  %v3842 = vcombine.low %v3833, %v3840
  %v3844 = vunpack.c.l.s4 1966171168
  %v3845 = vunpack.c.0.s8 %v3844
  %v3846 = vlaneseq
  %v3847 = vshrl.u32 %v3846, 7
  %v3848 = vsub.s32 %v3845, %v3847
  %v3849 = vrot.slane %v3841, %v3848
  %v3851 = vunpack.c.l.s4 1966171168
  %v3852 = vunpack.c.0.s8 %v3851
  %v3853 = vlaneseq
  %v3854 = vshrl.u32 %v3853, 7
  %v3855 = vsub.s32 %v3852, %v3854
  %v3856 = vrot.slane %v3842, %v3855
  %v3857 = vcombine.low %v3849, %v3856
  %v3858 = vcombine.low %v2463, %v2467
  %v3859 = vcombine.low %v2471, %v2475
  %v3860 = vcombine.low %v2479, %v2483
  %v3861 = vcombine.low %v2487, %v2491
  %v3863 = vunpack.c.l.s4 1966171168
  %v3864 = vunpack.c.0.s8 %v3863
  %v3865 = vlaneseq
  %v3866 = vshrl.u32 %v3865, 7
  %v3867 = vsub.s32 %v3864, %v3866
  %v3868 = vrot.slane %v3858, %v3867
  %v3870 = vunpack.c.l.s4 1966171168
  %v3871 = vunpack.c.0.s8 %v3870
  %v3872 = vlaneseq
  %v3873 = vshrl.u32 %v3872, 7
  %v3874 = vsub.s32 %v3871, %v3873
  %v3875 = vrot.slane %v3859, %v3874
  %v3877 = vunpack.c.l.s4 1966171168
  %v3878 = vunpack.c.0.s8 %v3877
  %v3879 = vlaneseq
  %v3880 = vshrl.u32 %v3879, 7
  %v3881 = vsub.s32 %v3878, %v3880
  %v3882 = vrot.slane %v3860, %v3881
  %v3884 = vunpack.c.l.s4 1966171168
  %v3885 = vunpack.c.0.s8 %v3884
  %v3886 = vlaneseq
  %v3887 = vshrl.u32 %v3886, 7
  %v3888 = vsub.s32 %v3885, %v3887
  %v3889 = vrot.slane %v3861, %v3888
  %v3890 = vcombine.low %v3868, %v3875
  %v3891 = vcombine.low %v3882, %v3889
  %v3893 = vunpack.c.l.s4 1966171168
  %v3894 = vunpack.c.0.s8 %v3893
  %v3895 = vlaneseq
  %v3896 = vshrl.u32 %v3895, 7
  %v3897 = vsub.s32 %v3894, %v3896
  %v3898 = vrot.slane %v3890, %v3897
  %v3900 = vunpack.c.l.s4 1966171168
  %v3901 = vunpack.c.0.s8 %v3900
  %v3902 = vlaneseq
  %v3903 = vshrl.u32 %v3902, 7
  %v3904 = vsub.s32 %v3901, %v3903
  %v3905 = vrot.slane %v3891, %v3904
  %v3906 = vcombine.low %v3898, %v3905
  %v3907 = vcombine.low %v2495, %v2499
  %v3908 = vcombine.low %v2503, %v2507
  %v3909 = vcombine.low %v2511, %v2515
  %v3910 = vcombine.low %v2519, %v2523
  %v3912 = vunpack.c.l.s4 1966171168
  %v3913 = vunpack.c.0.s8 %v3912
  %v3914 = vlaneseq
  %v3915 = vshrl.u32 %v3914, 7
  %v3916 = vsub.s32 %v3913, %v3915
  %v3917 = vrot.slane %v3907, %v3916
  %v3919 = vunpack.c.l.s4 1966171168
  %v3920 = vunpack.c.0.s8 %v3919
  %v3921 = vlaneseq
  %v3922 = vshrl.u32 %v3921, 7
  %v3923 = vsub.s32 %v3920, %v3922
  %v3924 = vrot.slane %v3908, %v3923
  %v3926 = vunpack.c.l.s4 1966171168
  %v3927 = vunpack.c.0.s8 %v3926
  %v3928 = vlaneseq
  %v3929 = vshrl.u32 %v3928, 7
  %v3930 = vsub.s32 %v3927, %v3929
  %v3931 = vrot.slane %v3909, %v3930
  %v3933 = vunpack.c.l.s4 1966171168
  %v3934 = vunpack.c.0.s8 %v3933
  %v3935 = vlaneseq
  %v3936 = vshrl.u32 %v3935, 7
  %v3937 = vsub.s32 %v3934, %v3936
  %v3938 = vrot.slane %v3910, %v3937
  %v3939 = vcombine.low %v3917, %v3924
  %v3940 = vcombine.low %v3931, %v3938
  %v3942 = vunpack.c.l.s4 1966171168
  %v3943 = vunpack.c.0.s8 %v3942
  %v3944 = vlaneseq
  %v3945 = vshrl.u32 %v3944, 7
  %v3946 = vsub.s32 %v3943, %v3945
  %v3947 = vrot.slane %v3939, %v3946
  %v3949 = vunpack.c.l.s4 1966171168
  %v3950 = vunpack.c.0.s8 %v3949
  %v3951 = vlaneseq
  %v3952 = vshrl.u32 %v3951, 7
  %v3953 = vsub.s32 %v3950, %v3952
  %v3954 = vrot.slane %v3940, %v3953
  %v3955 = vcombine.low %v3947, %v3954
  %v3956 = vcombine.low %v2527, %v2531
  %v3957 = vcombine.low %v2535, %v2539
  %v3958 = vcombine.low %v2543, %v2547
  %v3959 = vcombine.low %v2551, %v2555
  %v3961 = vunpack.c.l.s4 1966171168
  %v3962 = vunpack.c.0.s8 %v3961
  %v3963 = vlaneseq
  %v3964 = vshrl.u32 %v3963, 7
  %v3965 = vsub.s32 %v3962, %v3964
  %v3966 = vrot.slane %v3956, %v3965
  %v3968 = vunpack.c.l.s4 1966171168
  %v3969 = vunpack.c.0.s8 %v3968
  %v3970 = vlaneseq
  %v3971 = vshrl.u32 %v3970, 7
  %v3972 = vsub.s32 %v3969, %v3971
  %v3973 = vrot.slane %v3957, %v3972
  %v3975 = vunpack.c.l.s4 1966171168
  %v3976 = vunpack.c.0.s8 %v3975
  %v3977 = vlaneseq
  %v3978 = vshrl.u32 %v3977, 7
  %v3979 = vsub.s32 %v3976, %v3978
  %v3980 = vrot.slane %v3958, %v3979
  %v3982 = vunpack.c.l.s4 1966171168
  %v3983 = vunpack.c.0.s8 %v3982
  %v3984 = vlaneseq
  %v3985 = vshrl.u32 %v3984, 7
  %v3986 = vsub.s32 %v3983, %v3985
  %v3987 = vrot.slane %v3959, %v3986
  %v3988 = vcombine.low %v3966, %v3973
  %v3989 = vcombine.low %v3980, %v3987
  %v3991 = vunpack.c.l.s4 1966171168
  %v3992 = vunpack.c.0.s8 %v3991
  %v3993 = vlaneseq
  %v3994 = vshrl.u32 %v3993, 7
  %v3995 = vsub.s32 %v3992, %v3994
  %v3996 = vrot.slane %v3988, %v3995
  %v3998 = vunpack.c.l.s4 1966171168
  %v3999 = vunpack.c.0.s8 %v3998
  %v4000 = vlaneseq
  %v4001 = vshrl.u32 %v4000, 7
  %v4002 = vsub.s32 %v3999, %v4001
  %v4003 = vrot.slane %v3989, %v4002
  %v4004 = vcombine.low %v3996, %v4003
  %v4005 = vcombine.low %v2559, %v2563
  %v4006 = vcombine.low %v2567, %v2571
  %v4007 = vcombine.low %v2575, %v2579
  %v4008 = vcombine.low %v2583, %v2587
  %v4010 = vunpack.c.l.s4 1966171168
  %v4011 = vunpack.c.0.s8 %v4010
  %v4012 = vlaneseq
  %v4013 = vshrl.u32 %v4012, 7
  %v4014 = vsub.s32 %v4011, %v4013
  %v4015 = vrot.slane %v4005, %v4014
  %v4017 = vunpack.c.l.s4 1966171168
  %v4018 = vunpack.c.0.s8 %v4017
  %v4019 = vlaneseq
  %v4020 = vshrl.u32 %v4019, 7
  %v4021 = vsub.s32 %v4018, %v4020
  %v4022 = vrot.slane %v4006, %v4021
  %v4024 = vunpack.c.l.s4 1966171168
  %v4025 = vunpack.c.0.s8 %v4024
  %v4026 = vlaneseq
  %v4027 = vshrl.u32 %v4026, 7
  %v4028 = vsub.s32 %v4025, %v4027
  %v4029 = vrot.slane %v4007, %v4028
  %v4031 = vunpack.c.l.s4 1966171168
  %v4032 = vunpack.c.0.s8 %v4031
  %v4033 = vlaneseq
  %v4034 = vshrl.u32 %v4033, 7
  %v4035 = vsub.s32 %v4032, %v4034
  %v4036 = vrot.slane %v4008, %v4035
  %v4037 = vcombine.low %v4015, %v4022
  %v4038 = vcombine.low %v4029, %v4036
  %v4040 = vunpack.c.l.s4 1966171168
  %v4041 = vunpack.c.0.s8 %v4040
  %v4042 = vlaneseq
  %v4043 = vshrl.u32 %v4042, 7
  %v4044 = vsub.s32 %v4041, %v4043
  %v4045 = vrot.slane %v4037, %v4044
  %v4047 = vunpack.c.l.s4 1966171168
  %v4048 = vunpack.c.0.s8 %v4047
  %v4049 = vlaneseq
  %v4050 = vshrl.u32 %v4049, 7
  %v4051 = vsub.s32 %v4048, %v4050
  %v4052 = vrot.slane %v4038, %v4051
  %v4053 = vcombine.low %v4045, %v4052
  %v4054 = vcombine.low %v2591, %v2595
  %v4055 = vcombine.low %v2599, %v2603
  %v4056 = vcombine.low %v2607, %v2611
  %v4057 = vcombine.low %v2615, %v2619
  %v4059 = vunpack.c.l.s4 1966171168
  %v4060 = vunpack.c.0.s8 %v4059
  %v4061 = vlaneseq
  %v4062 = vshrl.u32 %v4061, 7
  %v4063 = vsub.s32 %v4060, %v4062
  %v4064 = vrot.slane %v4054, %v4063
  %v4066 = vunpack.c.l.s4 1966171168
  %v4067 = vunpack.c.0.s8 %v4066
  %v4068 = vlaneseq
  %v4069 = vshrl.u32 %v4068, 7
  %v4070 = vsub.s32 %v4067, %v4069
  %v4071 = vrot.slane %v4055, %v4070
  %v4073 = vunpack.c.l.s4 1966171168
  %v4074 = vunpack.c.0.s8 %v4073
  %v4075 = vlaneseq
  %v4076 = vshrl.u32 %v4075, 7
  %v4077 = vsub.s32 %v4074, %v4076
  %v4078 = vrot.slane %v4056, %v4077
  %v4080 = vunpack.c.l.s4 1966171168
  %v4081 = vunpack.c.0.s8 %v4080
  %v4082 = vlaneseq
  %v4083 = vshrl.u32 %v4082, 7
  %v4084 = vsub.s32 %v4081, %v4083
  %v4085 = vrot.slane %v4057, %v4084
  %v4086 = vcombine.low %v4064, %v4071
  %v4087 = vcombine.low %v4078, %v4085
  %v4089 = vunpack.c.l.s4 1966171168
  %v4090 = vunpack.c.0.s8 %v4089
  %v4091 = vlaneseq
  %v4092 = vshrl.u32 %v4091, 7
  %v4093 = vsub.s32 %v4090, %v4092
  %v4094 = vrot.slane %v4086, %v4093
  %v4096 = vunpack.c.l.s4 1966171168
  %v4097 = vunpack.c.0.s8 %v4096
  %v4098 = vlaneseq
  %v4099 = vshrl.u32 %v4098, 7
  %v4100 = vsub.s32 %v4097, %v4099
  %v4101 = vrot.slane %v4087, %v4100
  %v4102 = vcombine.low %v4094, %v4101
  %v4103 = vcombine.low %v2623, %v2627
  %v4104 = vcombine.low %v2631, %v2635
  %v4105 = vcombine.low %v2639, %v2643
  %v4106 = vcombine.low %v2647, %v2651
  %v4108 = vunpack.c.l.s4 1966171168
  %v4109 = vunpack.c.0.s8 %v4108
  %v4110 = vlaneseq
  %v4111 = vshrl.u32 %v4110, 7
  %v4112 = vsub.s32 %v4109, %v4111
  %v4113 = vrot.slane %v4103, %v4112
  %v4115 = vunpack.c.l.s4 1966171168
  %v4116 = vunpack.c.0.s8 %v4115
  %v4117 = vlaneseq
  %v4118 = vshrl.u32 %v4117, 7
  %v4119 = vsub.s32 %v4116, %v4118
  %v4120 = vrot.slane %v4104, %v4119
  %v4122 = vunpack.c.l.s4 1966171168
  %v4123 = vunpack.c.0.s8 %v4122
  %v4124 = vlaneseq
  %v4125 = vshrl.u32 %v4124, 7
  %v4126 = vsub.s32 %v4123, %v4125
  %v4127 = vrot.slane %v4105, %v4126
  %v4129 = vunpack.c.l.s4 1966171168
  %v4130 = vunpack.c.0.s8 %v4129
  %v4131 = vlaneseq
  %v4132 = vshrl.u32 %v4131, 7
  %v4133 = vsub.s32 %v4130, %v4132
  %v4134 = vrot.slane %v4106, %v4133
  %v4135 = vcombine.low %v4113, %v4120
  %v4136 = vcombine.low %v4127, %v4134
  %v4138 = vunpack.c.l.s4 1966171168
  %v4139 = vunpack.c.0.s8 %v4138
  %v4140 = vlaneseq
  %v4141 = vshrl.u32 %v4140, 7
  %v4142 = vsub.s32 %v4139, %v4141
  %v4143 = vrot.slane %v4135, %v4142
  %v4145 = vunpack.c.l.s4 1966171168
  %v4146 = vunpack.c.0.s8 %v4145
  %v4147 = vlaneseq
  %v4148 = vshrl.u32 %v4147, 7
  %v4149 = vsub.s32 %v4146, %v4148
  %v4150 = vrot.slane %v4136, %v4149
  %v4151 = vcombine.low %v4143, %v4150
  %v4152 = vcombine.low %v2655, %v2659
  %v4153 = vcombine.low %v2663, %v2667
  %v4154 = vcombine.low %v2671, %v2675
  %v4155 = vcombine.low %v2679, %v2683
  %v4157 = vunpack.c.l.s4 1966171168
  %v4158 = vunpack.c.0.s8 %v4157
  %v4159 = vlaneseq
  %v4160 = vshrl.u32 %v4159, 7
  %v4161 = vsub.s32 %v4158, %v4160
  %v4162 = vrot.slane %v4152, %v4161
  %v4164 = vunpack.c.l.s4 1966171168
  %v4165 = vunpack.c.0.s8 %v4164
  %v4166 = vlaneseq
  %v4167 = vshrl.u32 %v4166, 7
  %v4168 = vsub.s32 %v4165, %v4167
  %v4169 = vrot.slane %v4153, %v4168
  %v4171 = vunpack.c.l.s4 1966171168
  %v4172 = vunpack.c.0.s8 %v4171
  %v4173 = vlaneseq
  %v4174 = vshrl.u32 %v4173, 7
  %v4175 = vsub.s32 %v4172, %v4174
  %v4176 = vrot.slane %v4154, %v4175
  %v4178 = vunpack.c.l.s4 1966171168
  %v4179 = vunpack.c.0.s8 %v4178
  %v4180 = vlaneseq
  %v4181 = vshrl.u32 %v4180, 7
  %v4182 = vsub.s32 %v4179, %v4181
  %v4183 = vrot.slane %v4155, %v4182
  %v4184 = vcombine.low %v4162, %v4169
  %v4185 = vcombine.low %v4176, %v4183
  %v4187 = vunpack.c.l.s4 1966171168
  %v4188 = vunpack.c.0.s8 %v4187
  %v4189 = vlaneseq
  %v4190 = vshrl.u32 %v4189, 7
  %v4191 = vsub.s32 %v4188, %v4190
  %v4192 = vrot.slane %v4184, %v4191
  %v4194 = vunpack.c.l.s4 1966171168
  %v4195 = vunpack.c.0.s8 %v4194
  %v4196 = vlaneseq
  %v4197 = vshrl.u32 %v4196, 7
  %v4198 = vsub.s32 %v4195, %v4197
  %v4199 = vrot.slane %v4185, %v4198
  %v4200 = vcombine.low %v4192, %v4199
  %v4201 = vcombine.low %v2687, %v2691
  %v4202 = vcombine.low %v2695, %v2699
  %v4203 = vcombine.low %v2703, %v2707
  %v4204 = vcombine.low %v2711, %v2715
  %v4206 = vunpack.c.l.s4 1966171168
  %v4207 = vunpack.c.0.s8 %v4206
  %v4208 = vlaneseq
  %v4209 = vshrl.u32 %v4208, 7
  %v4210 = vsub.s32 %v4207, %v4209
  %v4211 = vrot.slane %v4201, %v4210
  %v4213 = vunpack.c.l.s4 1966171168
  %v4214 = vunpack.c.0.s8 %v4213
  %v4215 = vlaneseq
  %v4216 = vshrl.u32 %v4215, 7
  %v4217 = vsub.s32 %v4214, %v4216
  %v4218 = vrot.slane %v4202, %v4217
  %v4220 = vunpack.c.l.s4 1966171168
  %v4221 = vunpack.c.0.s8 %v4220
  %v4222 = vlaneseq
  %v4223 = vshrl.u32 %v4222, 7
  %v4224 = vsub.s32 %v4221, %v4223
  %v4225 = vrot.slane %v4203, %v4224
  %v4227 = vunpack.c.l.s4 1966171168
  %v4228 = vunpack.c.0.s8 %v4227
  %v4229 = vlaneseq
  %v4230 = vshrl.u32 %v4229, 7
  %v4231 = vsub.s32 %v4228, %v4230
  %v4232 = vrot.slane %v4204, %v4231
  %v4233 = vcombine.low %v4211, %v4218
  %v4234 = vcombine.low %v4225, %v4232
  %v4236 = vunpack.c.l.s4 1966171168
  %v4237 = vunpack.c.0.s8 %v4236
  %v4238 = vlaneseq
  %v4239 = vshrl.u32 %v4238, 7
  %v4240 = vsub.s32 %v4237, %v4239
  %v4241 = vrot.slane %v4233, %v4240
  %v4243 = vunpack.c.l.s4 1966171168
  %v4244 = vunpack.c.0.s8 %v4243
  %v4245 = vlaneseq
  %v4246 = vshrl.u32 %v4245, 7
  %v4247 = vsub.s32 %v4244, %v4246
  %v4248 = vrot.slane %v4234, %v4247
  %v4249 = vcombine.low %v4241, %v4248
  %v4250 = vcombine.low %v2719, %v2723
  %v4251 = vcombine.low %v2727, %v2731
  %v4252 = vcombine.low %v2735, %v2739
  %v4253 = vcombine.low %v2743, %v2747
  %v4255 = vunpack.c.l.s4 1966171168
  %v4256 = vunpack.c.0.s8 %v4255
  %v4257 = vlaneseq
  %v4258 = vshrl.u32 %v4257, 7
  %v4259 = vsub.s32 %v4256, %v4258
  %v4260 = vrot.slane %v4250, %v4259
  %v4262 = vunpack.c.l.s4 1966171168
  %v4263 = vunpack.c.0.s8 %v4262
  %v4264 = vlaneseq
  %v4265 = vshrl.u32 %v4264, 7
  %v4266 = vsub.s32 %v4263, %v4265
  %v4267 = vrot.slane %v4251, %v4266
  %v4269 = vunpack.c.l.s4 1966171168
  %v4270 = vunpack.c.0.s8 %v4269
  %v4271 = vlaneseq
  %v4272 = vshrl.u32 %v4271, 7
  %v4273 = vsub.s32 %v4270, %v4272
  %v4274 = vrot.slane %v4252, %v4273
  %v4276 = vunpack.c.l.s4 1966171168
  %v4277 = vunpack.c.0.s8 %v4276
  %v4278 = vlaneseq
  %v4279 = vshrl.u32 %v4278, 7
  %v4280 = vsub.s32 %v4277, %v4279
  %v4281 = vrot.slane %v4253, %v4280
  %v4282 = vcombine.low %v4260, %v4267
  %v4283 = vcombine.low %v4274, %v4281
  %v4285 = vunpack.c.l.s4 1966171168
  %v4286 = vunpack.c.0.s8 %v4285
  %v4287 = vlaneseq
  %v4288 = vshrl.u32 %v4287, 7
  %v4289 = vsub.s32 %v4286, %v4288
  %v4290 = vrot.slane %v4282, %v4289
  %v4292 = vunpack.c.l.s4 1966171168
  %v4293 = vunpack.c.0.s8 %v4292
  %v4294 = vlaneseq
  %v4295 = vshrl.u32 %v4294, 7
  %v4296 = vsub.s32 %v4293, %v4295
  %v4297 = vrot.slane %v4283, %v4296
  %v4298 = vcombine.low %v4290, %v4297
  %v4299 = vcombine.low %v2751, %v2755
  %v4300 = vcombine.low %v2759, %v2763
  %v4301 = vcombine.low %v2767, %v2771
  %v4302 = vcombine.low %v2775, %v2779
  %v4304 = vunpack.c.l.s4 1966171168
  %v4305 = vunpack.c.0.s8 %v4304
  %v4306 = vlaneseq
  %v4307 = vshrl.u32 %v4306, 7
  %v4308 = vsub.s32 %v4305, %v4307
  %v4309 = vrot.slane %v4299, %v4308
  %v4311 = vunpack.c.l.s4 1966171168
  %v4312 = vunpack.c.0.s8 %v4311
  %v4313 = vlaneseq
  %v4314 = vshrl.u32 %v4313, 7
  %v4315 = vsub.s32 %v4312, %v4314
  %v4316 = vrot.slane %v4300, %v4315
  %v4318 = vunpack.c.l.s4 1966171168
  %v4319 = vunpack.c.0.s8 %v4318
  %v4320 = vlaneseq
  %v4321 = vshrl.u32 %v4320, 7
  %v4322 = vsub.s32 %v4319, %v4321
  %v4323 = vrot.slane %v4301, %v4322
  %v4325 = vunpack.c.l.s4 1966171168
  %v4326 = vunpack.c.0.s8 %v4325
  %v4327 = vlaneseq
  %v4328 = vshrl.u32 %v4327, 7
  %v4329 = vsub.s32 %v4326, %v4328
  %v4330 = vrot.slane %v4302, %v4329
  %v4331 = vcombine.low %v4309, %v4316
  %v4332 = vcombine.low %v4323, %v4330
  %v4334 = vunpack.c.l.s4 1966171168
  %v4335 = vunpack.c.0.s8 %v4334
  %v4336 = vlaneseq
  %v4337 = vshrl.u32 %v4336, 7
  %v4338 = vsub.s32 %v4335, %v4337
  %v4339 = vrot.slane %v4331, %v4338
  %v4341 = vunpack.c.l.s4 1966171168
  %v4342 = vunpack.c.0.s8 %v4341
  %v4343 = vlaneseq
  %v4344 = vshrl.u32 %v4343, 7
  %v4345 = vsub.s32 %v4342, %v4344
  %v4346 = vrot.slane %v4332, %v4345
  %v4347 = vcombine.low %v4339, %v4346
  %4348 = vset.pattern.permute.xlu0 0
  %4349 = vperm.xlu0 %4348, %v2828
  %v4350 = vpop.permute.xlu0 %4349
  %4351 = vset.pattern.permute.xlu0 0
  %4352 = vperm.xlu0 %4351, %v2877
  %v4353 = vpop.permute.xlu0 %4352
  %4354 = vset.pattern.permute.xlu0 0
  %4355 = vperm.xlu0 %4354, %v2926
  %v4356 = vpop.permute.xlu0 %4355
  %4357 = vset.pattern.permute.xlu0 0
  %4358 = vperm.xlu0 %4357, %v2975
  %v4359 = vpop.permute.xlu0 %4358
  %4360 = vset.pattern.permute.xlu0 0
  %4361 = vperm.xlu0 %4360, %v3024
  %v4362 = vpop.permute.xlu0 %4361
  %4363 = vset.pattern.permute.xlu0 0
  %4364 = vperm.xlu0 %4363, %v3073
  %v4365 = vpop.permute.xlu0 %4364
  %4366 = vset.pattern.permute.xlu0 0
  %4367 = vperm.xlu0 %4366, %v3122
  %v4368 = vpop.permute.xlu0 %4367
  %4369 = vset.pattern.permute.xlu0 0
  %4370 = vperm.xlu0 %4369, %v3171
  %v4371 = vpop.permute.xlu0 %4370
  %4372 = vset.pattern.permute.xlu0 0
  %4373 = vperm.xlu0 %4372, %v3220
  %v4374 = vpop.permute.xlu0 %4373
  %4375 = vset.pattern.permute.xlu0 0
  %4376 = vperm.xlu0 %4375, %v3269
  %v4377 = vpop.permute.xlu0 %4376
  %4378 = vset.pattern.permute.xlu0 0
  %4379 = vperm.xlu0 %4378, %v3318
  %v4380 = vpop.permute.xlu0 %4379
  %4381 = vset.pattern.permute.xlu0 0
  %4382 = vperm.xlu0 %4381, %v3367
  %v4383 = vpop.permute.xlu0 %4382
  %4384 = vset.pattern.permute.xlu0 0
  %4385 = vperm.xlu0 %4384, %v3416
  %v4386 = vpop.permute.xlu0 %4385
  %4387 = vset.pattern.permute.xlu0 0
  %4388 = vperm.xlu0 %4387, %v3465
  %v4389 = vpop.permute.xlu0 %4388
  %4390 = vset.pattern.permute.xlu0 0
  %4391 = vperm.xlu0 %4390, %v3514
  %v4392 = vpop.permute.xlu0 %4391
  %4393 = vset.pattern.permute.xlu0 0
  %4394 = vperm.xlu0 %4393, %v3563
  %v4395 = vpop.permute.xlu0 %4394
  %4396 = vset.pattern.permute.xlu0 0
  %4397 = vperm.xlu0 %4396, %v3612
  %v4398 = vpop.permute.xlu0 %4397
  %4399 = vset.pattern.permute.xlu0 0
  %4400 = vperm.xlu0 %4399, %v3661
  %v4401 = vpop.permute.xlu0 %4400
  %4402 = vset.pattern.permute.xlu0 0
  %4403 = vperm.xlu0 %4402, %v3710
  %v4404 = vpop.permute.xlu0 %4403
  %4405 = vset.pattern.permute.xlu0 0
  %4406 = vperm.xlu0 %4405, %v3759
  %v4407 = vpop.permute.xlu0 %4406
  %4408 = vset.pattern.permute.xlu0 0
  %4409 = vperm.xlu0 %4408, %v3808
  %v4410 = vpop.permute.xlu0 %4409
  %4411 = vset.pattern.permute.xlu0 0
  %4412 = vperm.xlu0 %4411, %v3857
  %v4413 = vpop.permute.xlu0 %4412
  %4414 = vset.pattern.permute.xlu0 0
  %4415 = vperm.xlu0 %4414, %v3906
  %v4416 = vpop.permute.xlu0 %4415
  %4417 = vset.pattern.permute.xlu0 0
  %4418 = vperm.xlu0 %4417, %v3955
  %v4419 = vpop.permute.xlu0 %4418
  %4420 = vset.pattern.permute.xlu0 0
  %4421 = vperm.xlu0 %4420, %v4004
  %v4422 = vpop.permute.xlu0 %4421
  %4423 = vset.pattern.permute.xlu0 0
  %4424 = vperm.xlu0 %4423, %v4053
  %v4425 = vpop.permute.xlu0 %4424
  %4426 = vset.pattern.permute.xlu0 0
  %4427 = vperm.xlu0 %4426, %v4102
  %v4428 = vpop.permute.xlu0 %4427
  %4429 = vset.pattern.permute.xlu0 0
  %4430 = vperm.xlu0 %4429, %v4151
  %v4431 = vpop.permute.xlu0 %4430
  %4432 = vset.pattern.permute.xlu0 0
  %4433 = vperm.xlu0 %4432, %v4200
  %v4434 = vpop.permute.xlu0 %4433
  %4435 = vset.pattern.permute.xlu0 0
  %4436 = vperm.xlu0 %4435, %v4249
  %v4437 = vpop.permute.xlu0 %4436
  %4438 = vset.pattern.permute.xlu0 0
  %4439 = vperm.xlu0 %4438, %v4298
  %v4440 = vpop.permute.xlu0 %4439
  %4441 = vset.pattern.permute.xlu0 0
  %4442 = vperm.xlu0 %4441, %v4347
  %v4443 = vpop.permute.xlu0 %4442
  %v4444 = vlaneseq
  %v4445 = vshrl.u32 %v4444, 7
  %v4446 = vsub.s32 %v1211, %v4445
  %v4447 = vrot.slane %v4350, %v4446
  %v4448 = vadd.s32 %v1211, 4294967288
  %v4449 = vlaneseq
  %v4450 = vshrl.u32 %v4449, 7
  %v4451 = vsub.s32 %v4448, %v4450
  %v4452 = vrot.slane %v4353, %v4451
  %vm4453 = vcmask 130112
  %v4454 = vsel %vm4453, %v4452, %v4447
  %v4455 = vadd.s32 %v1211, 4294967280
  %v4456 = vlaneseq
  %v4457 = vshrl.u32 %v4456, 7
  %v4458 = vsub.s32 %v4455, %v4457
  %v4459 = vrot.slane %v4356, %v4458
  %vm4460 = vcmask 195712
  %v4461 = vsel %vm4460, %v4459, %v4454
  %v4462 = vadd.s32 %v1211, 4294967272
  %v4463 = vlaneseq
  %v4464 = vshrl.u32 %v4463, 7
  %v4465 = vsub.s32 %v4462, %v4464
  %v4466 = vrot.slane %v4359, %v4465
  %vm4467 = vcmask 261312
  %v4468 = vsel %vm4467, %v4466, %v4461
  %v4469 = vadd.s32 %v1211, 4294967264
  %v4470 = vlaneseq
  %v4471 = vshrl.u32 %v4470, 7
  %v4472 = vsub.s32 %v4469, %v4471
  %v4473 = vrot.slane %v4362, %v4472
  %vm4474 = vcmask 326912
  %v4475 = vsel %vm4474, %v4473, %v4468
  %v4476 = vadd.s32 %v1211, 4294967256
  %v4477 = vlaneseq
  %v4478 = vshrl.u32 %v4477, 7
  %v4479 = vsub.s32 %v4476, %v4478
  %v4480 = vrot.slane %v4365, %v4479
  %vm4481 = vcmask 392512
  %v4482 = vsel %vm4481, %v4480, %v4475
  %v4483 = vadd.s32 %v1211, 4294967248
  %v4484 = vlaneseq
  %v4485 = vshrl.u32 %v4484, 7
  %v4486 = vsub.s32 %v4483, %v4485
  %v4487 = vrot.slane %v4368, %v4486
  %vm4488 = vcmask 458112
  %v4489 = vsel %vm4488, %v4487, %v4482
  %v4490 = vadd.s32 %v1211, 4294967240
  %v4491 = vlaneseq
  %v4492 = vshrl.u32 %v4491, 7
  %v4493 = vsub.s32 %v4490, %v4492
  %v4494 = vrot.slane %v4371, %v4493
  %vm4495 = vcmask 523712
  %v4496 = vsel %vm4495, %v4494, %v4489
  %v4497 = vadd.s32 %v1211, 4294967232
  %v4498 = vlaneseq
  %v4499 = vshrl.u32 %v4498, 7
  %v4500 = vsub.s32 %v4497, %v4499
  %v4501 = vrot.slane %v4374, %v4500
  %vm4502 = vcmask 589312
  %v4503 = vsel %vm4502, %v4501, %v4496
  %v4504 = vadd.s32 %v1211, 4294967224
  %v4505 = vlaneseq
  %v4506 = vshrl.u32 %v4505, 7
  %v4507 = vsub.s32 %v4504, %v4506
  %v4508 = vrot.slane %v4377, %v4507
  %vm4509 = vcmask 654912
  %v4510 = vsel %vm4509, %v4508, %v4503
  %v4511 = vadd.s32 %v1211, 4294967216
  %v4512 = vlaneseq
  %v4513 = vshrl.u32 %v4512, 7
  %v4514 = vsub.s32 %v4511, %v4513
  %v4515 = vrot.slane %v4380, %v4514
  %vm4516 = vcmask 720512
  %v4517 = vsel %vm4516, %v4515, %v4510
  %v4518 = vadd.s32 %v1211, 4294967208
  %v4519 = vlaneseq
  %v4520 = vshrl.u32 %v4519, 7
  %v4521 = vsub.s32 %v4518, %v4520
  %v4522 = vrot.slane %v4383, %v4521
  %vm4523 = vcmask 786112
  %v4524 = vsel %vm4523, %v4522, %v4517
  %v4525 = vadd.s32 %v1211, 4294967200
  %v4526 = vlaneseq
  %v4527 = vshrl.u32 %v4526, 7
  %v4528 = vsub.s32 %v4525, %v4527
  %v4529 = vrot.slane %v4386, %v4528
  %vm4530 = vcmask 851712
  %v4531 = vsel %vm4530, %v4529, %v4524
  %v4532 = vadd.s32 %v1211, 4294967192
  %v4533 = vlaneseq
  %v4534 = vshrl.u32 %v4533, 7
  %v4535 = vsub.s32 %v4532, %v4534
  %v4536 = vrot.slane %v4389, %v4535
  %vm4537 = vcmask 917312
  %v4538 = vsel %vm4537, %v4536, %v4531
  %v4539 = vadd.s32 %v1211, 4294967184
  %v4540 = vlaneseq
  %v4541 = vshrl.u32 %v4540, 7
  %v4542 = vsub.s32 %v4539, %v4541
  %v4543 = vrot.slane %v4392, %v4542
  %vm4544 = vcmask 982912
  %v4545 = vsel %vm4544, %v4543, %v4538
  %v4546 = vadd.s32 %v1211, 4294967176
  %v4547 = vlaneseq
  %v4548 = vshrl.u32 %v4547, 7
  %v4549 = vsub.s32 %v4546, %v4548
  %v4550 = vrot.slane %v4395, %v4549
  %vm4551 = vcmask 1048512
  %v4552 = vsel %vm4551, %v4550, %v4545
  %v4553 = vlaneseq
  %v4554 = vshrl.u32 %v4553, 7
  %v4555 = vsub.s32 %v1211, %v4554
  %v4556 = vrot.slane %v4398, %v4555
  %v4557 = vlaneseq
  %v4558 = vshrl.u32 %v4557, 7
  %v4559 = vsub.s32 %v4448, %v4558
  %v4560 = vrot.slane %v4401, %v4559
  %v4561 = vsel %vm4453, %v4560, %v4556
  %v4562 = vlaneseq
  %v4563 = vshrl.u32 %v4562, 7
  %v4564 = vsub.s32 %v4455, %v4563
  %v4565 = vrot.slane %v4404, %v4564
  %v4566 = vsel %vm4460, %v4565, %v4561
  %v4567 = vlaneseq
  %v4568 = vshrl.u32 %v4567, 7
  %v4569 = vsub.s32 %v4462, %v4568
  %v4570 = vrot.slane %v4407, %v4569
  %v4571 = vsel %vm4467, %v4570, %v4566
  %v4572 = vlaneseq
  %v4573 = vshrl.u32 %v4572, 7
  %v4574 = vsub.s32 %v4469, %v4573
  %v4575 = vrot.slane %v4410, %v4574
  %v4576 = vsel %vm4474, %v4575, %v4571
  %v4577 = vlaneseq
  %v4578 = vshrl.u32 %v4577, 7
  %v4579 = vsub.s32 %v4476, %v4578
  %v4580 = vrot.slane %v4413, %v4579
  %v4581 = vsel %vm4481, %v4580, %v4576
  %v4582 = vlaneseq
  %v4583 = vshrl.u32 %v4582, 7
  %v4584 = vsub.s32 %v4483, %v4583
  %v4585 = vrot.slane %v4416, %v4584
  %v4586 = vsel %vm4488, %v4585, %v4581
  %v4587 = vlaneseq
  %v4588 = vshrl.u32 %v4587, 7
  %v4589 = vsub.s32 %v4490, %v4588
  %v4590 = vrot.slane %v4419, %v4589
  %v4591 = vsel %vm4495, %v4590, %v4586
  %v4592 = vlaneseq
  %v4593 = vshrl.u32 %v4592, 7
  %v4594 = vsub.s32 %v4497, %v4593
  %v4595 = vrot.slane %v4422, %v4594
  %v4596 = vsel %vm4502, %v4595, %v4591
  %v4597 = vlaneseq
  %v4598 = vshrl.u32 %v4597, 7
  %v4599 = vsub.s32 %v4504, %v4598
  %v4600 = vrot.slane %v4425, %v4599
  %v4601 = vsel %vm4509, %v4600, %v4596
  %v4602 = vlaneseq
  %v4603 = vshrl.u32 %v4602, 7
  %v4604 = vsub.s32 %v4511, %v4603
  %v4605 = vrot.slane %v4428, %v4604
  %v4606 = vsel %vm4516, %v4605, %v4601
  %v4607 = vlaneseq
  %v4608 = vshrl.u32 %v4607, 7
  %v4609 = vsub.s32 %v4518, %v4608
  %v4610 = vrot.slane %v4431, %v4609
  %v4611 = vsel %vm4523, %v4610, %v4606
  %v4612 = vlaneseq
  %v4613 = vshrl.u32 %v4612, 7
  %v4614 = vsub.s32 %v4525, %v4613
  %v4615 = vrot.slane %v4434, %v4614
  %v4616 = vsel %vm4530, %v4615, %v4611
  %v4617 = vlaneseq
  %v4618 = vshrl.u32 %v4617, 7
  %v4619 = vsub.s32 %v4532, %v4618
  %v4620 = vrot.slane %v4437, %v4619
  %v4621 = vsel %vm4537, %v4620, %v4616
  %v4622 = vlaneseq
  %v4623 = vshrl.u32 %v4622, 7
  %v4624 = vsub.s32 %v4539, %v4623
  %v4625 = vrot.slane %v4440, %v4624
  %v4626 = vsel %vm4544, %v4625, %v4621
  %v4627 = vlaneseq
  %v4628 = vshrl.u32 %v4627, 7
  %v4629 = vsub.s32 %v4546, %v4628
  %v4630 = vrot.slane %v4443, %v4629
  %v4631 = vsel %vm4551, %v4630, %v4626
  %v4632 = vcombine.low %v4552, %v4631
  %v4634 = vunpack.c.l.s4 1966171168
  %v4635 = vunpack.c.0.s8 %v4634
  %v4636 = vlaneseq
  %v4637 = vshrl.u32 %v4636, 7
  %v4638 = vsub.s32 %v4635, %v4637
  %v4639 = vrot.slane %v4632, %v4638
  %v4641 = vunpack.c.l.s4 1966171168
  %v4642 = vunpack.c.0.s8 %v4641
  %v4643 = vlaneseq
  %v4644 = vshrl.u32 %v4643, 7
  %v4645 = vsub.s32 %v4642, %v4644
  %v4646 = vrot.slane %v4639, %v4645
  %v4647 = vlaneseq
  %vm4648 = vcmp.ge.s32.totalorder %v4647, 0
  %vm4649 = vcmp.lt.s32.totalorder %v4647, 256
  %vm4650 = vmand %vm4648, %vm4649
  %4651 = vst.msk [vmem:[%s3] ss:$2 sm:$0x3] %vm4650, %v4646
  %s4652 = scalar_lea.vmem %s2, 16
  %v4653 = vld [vmem:[%s4652] sm:$0xff]
  %v4654 = vld [vmem:[%s4652 + $0x8] sm:$0xff]
  %4655 = vrot.lane.b32.xlu0 %v631, 112
  %v4656 = vpop.permute.xlu0 %4655
  %4657 = vrot.lane.b32.xlu0 %v636, 112
  %v4658 = vpop.permute.xlu0 %4657
  %4659 = vrot.lane.b32.xlu0 %v641, 112
  %v4660 = vpop.permute.xlu0 %4659
  %4661 = vrot.lane.b32.xlu0 %v646, 112
  %v4662 = vpop.permute.xlu0 %4661
  %4663 = vrot.lane.b32.xlu0 %v651, 112
  %v4664 = vpop.permute.xlu0 %4663
  %4665 = vrot.lane.b32.xlu0 %v656, 112
  %v4666 = vpop.permute.xlu0 %4665
  %4667 = vrot.lane.b32.xlu0 %v661, 112
  %v4668 = vpop.permute.xlu0 %4667
  %4669 = vrot.lane.b32.xlu0 %v666, 112
  %v4670 = vpop.permute.xlu0 %4669
  %4671 = vrot.lane.b32.xlu0 %v671, 112
  %v4672 = vpop.permute.xlu0 %4671
  %4673 = vrot.lane.b32.xlu0 %v676, 112
  %v4674 = vpop.permute.xlu0 %4673
  %4675 = vrot.lane.b32.xlu0 %v681, 112
  %v4676 = vpop.permute.xlu0 %4675
  %4677 = vrot.lane.b32.xlu0 %v686, 112
  %v4678 = vpop.permute.xlu0 %4677
  %4679 = vrot.lane.b32.xlu0 %v691, 112
  %v4680 = vpop.permute.xlu0 %4679
  %4681 = vrot.lane.b32.xlu0 %v696, 112
  %v4682 = vpop.permute.xlu0 %4681
  %4683 = vrot.lane.b32.xlu0 %v701, 112
  %v4684 = vpop.permute.xlu0 %4683
  %4685 = vrot.lane.b32.xlu0 %v706, 112
  %v4686 = vpop.permute.xlu0 %4685
  %4687 = vrot.lane.b32.xlu0 %v711, 112
  %v4688 = vpop.permute.xlu0 %4687
  %4689 = vrot.lane.b32.xlu0 %v716, 112
  %v4690 = vpop.permute.xlu0 %4689
  %4691 = vrot.lane.b32.xlu0 %v721, 112
  %v4692 = vpop.permute.xlu0 %4691
  %4693 = vrot.lane.b32.xlu0 %v726, 112
  %v4694 = vpop.permute.xlu0 %4693
  %4695 = vrot.lane.b32.xlu0 %v731, 112
  %v4696 = vpop.permute.xlu0 %4695
  %4697 = vrot.lane.b32.xlu0 %v736, 112
  %v4698 = vpop.permute.xlu0 %4697
  %4699 = vrot.lane.b32.xlu0 %v741, 112
  %v4700 = vpop.permute.xlu0 %4699
  %4701 = vrot.lane.b32.xlu0 %v746, 112
  %v4702 = vpop.permute.xlu0 %4701
  %4703 = vrot.lane.b32.xlu0 %v751, 112
  %v4704 = vpop.permute.xlu0 %4703
  %4705 = vrot.lane.b32.xlu0 %v756, 112
  %v4706 = vpop.permute.xlu0 %4705
  %4707 = vrot.lane.b32.xlu0 %v761, 112
  %v4708 = vpop.permute.xlu0 %4707
  %4709 = vrot.lane.b32.xlu0 %v766, 112
  %v4710 = vpop.permute.xlu0 %4709
  %4711 = vrot.lane.b32.xlu0 %v771, 112
  %v4712 = vpop.permute.xlu0 %4711
  %4713 = vrot.lane.b32.xlu0 %v776, 112
  %v4714 = vpop.permute.xlu0 %4713
  %4715 = vrot.lane.b32.xlu0 %v781, 112
  %v4716 = vpop.permute.xlu0 %4715
  %4717 = vrot.lane.b32.xlu0 %v786, 112
  %v4718 = vpop.permute.xlu0 %4717
  %v4719 = vsel %vm791, %v4656, 0
  %v4721 = vsel %vm791, %v4658, 0
  %v4723 = vsel %vm791, %v4660, 0
  %v4725 = vsel %vm791, %v4662, 0
  %v4727 = vsel %vm791, %v4664, 0
  %v4729 = vsel %vm791, %v4666, 0
  %v4731 = vsel %vm791, %v4668, 0
  %v4733 = vsel %vm791, %v4670, 0
  %v4735 = vsel %vm791, %v4672, 0
  %v4737 = vsel %vm791, %v4674, 0
  %v4739 = vsel %vm791, %v4676, 0
  %v4741 = vsel %vm791, %v4678, 0
  %v4743 = vsel %vm791, %v4680, 0
  %v4745 = vsel %vm791, %v4682, 0
  %v4747 = vsel %vm791, %v4684, 0
  %v4749 = vsel %vm791, %v4686, 0
  %v4751 = vsel %vm791, %v4688, 0
  %v4753 = vsel %vm791, %v4690, 0
  %v4755 = vsel %vm791, %v4692, 0
  %v4757 = vsel %vm791, %v4694, 0
  %v4759 = vsel %vm791, %v4696, 0
  %v4761 = vsel %vm791, %v4698, 0
  %v4763 = vsel %vm791, %v4700, 0
  %v4765 = vsel %vm791, %v4702, 0
  %v4767 = vsel %vm791, %v4704, 0
  %v4769 = vsel %vm791, %v4706, 0
  %v4771 = vsel %vm791, %v4708, 0
  %v4773 = vsel %vm791, %v4710, 0
  %v4775 = vsel %vm791, %v4712, 0
  %v4777 = vsel %vm791, %v4714, 0
  %v4779 = vsel %vm791, %v4716, 0
  %v4781 = vsel %vm791, %v4718, 0
  %4783 = vmatprep.subr.mxu0 0.0
  %4784 = vmatpush1.msra.mxu0 %v4653
  %4785 = vmatprep.subr.mxu0 0.0
  %4786 = vmatpush1.msra.mxu0 %v4654
  %4787 = vmatprep.subr.mxu0 0.0
  %4788 = vmatpush1.msra.mxu0 0.0
  %4789 = vmatprep.subr.mxu0 0.0
  %4790 = vmatpush1.msra.mxu0 0.0
  %4791 = vmatprep.subr.mxu0 0.0
  %4792 = vmatpush1.msra.mxu0 0.0
  %4793 = vmatprep.subr.mxu0 0.0
  %4794 = vmatpush1.msra.mxu0 0.0
  %4795 = vmatprep.subr.mxu0 0.0
  %4796 = vmatpush1.msra.mxu0 0.0
  %4797 = vmatprep.subr.mxu0 0.0
  %4798 = vmatpush1.msra.mxu0 0.0
  %4799 = vmatprep.subr.mxu0 0.0
  %4800 = vmatpush1.msra.mxu0 0.0
  %4801 = vmatprep.subr.mxu0 0.0
  %4802 = vmatpush1.msra.mxu0 0.0
  %4803 = vmatprep.subr.mxu0 0.0
  %4804 = vmatpush1.msra.mxu0 0.0
  %4805 = vmatprep.subr.mxu0 0.0
  %4806 = vmatpush1.msra.mxu0 0.0
  %4807 = vmatprep.subr.mxu0 0.0
  %4808 = vmatpush1.msra.mxu0 0.0
  %4809 = vmatprep.subr.mxu0 0.0
  %4810 = vmatpush1.msra.mxu0 0.0
  %4811 = vmatprep.subr.mxu0 0.0
  %4812 = vmatpush1.msra.mxu0 0.0
  %4813 = vmatprep.subr.mxu0 0.0
  %4814 = vmatpush1.msra.mxu0 0.0
  %4815 = vmatprep.subr.mxu0 0.0
  %4816 = vmatpush1.msra.mxu0 0.0
  %4817 = vmatprep.subr.mxu0 0.0
  %4818 = vmatpush1.msra.mxu0 0.0
  %4819 = vmatprep.subr.mxu0 0.0
  %4820 = vmatpush1.msra.mxu0 0.0
  %4821 = vmatprep.subr.mxu0 0.0
  %4822 = vmatpush1.msra.mxu0 0.0
  %4823 = vmatprep.subr.mxu0 0.0
  %4824 = vmatpush1.msra.mxu0 0.0
  %4825 = vmatprep.subr.mxu0 0.0
  %4826 = vmatpush1.msra.mxu0 0.0
  %4827 = vmatprep.subr.mxu0 0.0
  %4828 = vmatpush1.msra.mxu0 0.0
  %4829 = vmatprep.subr.mxu0 0.0
  %4830 = vmatpush1.msra.mxu0 0.0
  %4831 = vmatprep.subr.mxu0 0.0
  %4832 = vmatpush1.msra.mxu0 0.0
  %4833 = vmatprep.subr.mxu0 0.0
  %4834 = vmatpush1.msra.mxu0 0.0
  %4835 = vmatprep.subr.mxu0 0.0
  %4836 = vmatpush1.msra.mxu0 0.0
  %4837 = vmatprep.subr.mxu0 0.0
  %4838 = vmatpush1.msra.mxu0 0.0
  %4839 = vmatprep.subr.mxu0 0.0
  %4840 = vmatpush1.msra.mxu0 0.0
  %4841 = vmatprep.subr.mxu0 0.0
  %4842 = vmatpush1.msra.mxu0 0.0
  %4843 = vmatprep.subr.mxu0 0.0
  %4844 = vmatpush1.msra.mxu0 0.0
  %4845 = vmatprep.subr.mxu0 0.0
  %4846 = vmatpush1.msra.mxu0 0.0
  %4847 = vmatprep.mubr.f32.mxu0 0.0
  %4848 = vmatmul.mubr.f32.gmra.mrb[0].mxu0 %v4719
  %v4849 = vpop.f32.mrb[0].mxu0
  %v4850 = vadd.f32 0.0, %v4849
  %v4851 = vpop.f32.mrb[0].mxu0
  %4852 = vmatprep.mubr.f32.mxu0 0.0
  %4853 = vmatmul.mubr.f32.gmra.mrb[0].mxu0 %v4721
  %v4854 = vpop.f32.mrb[0].mxu0
  %v4855 = vadd.f32 0.0, %v4854
  %v4856 = vpop.f32.mrb[0].mxu0
  %4857 = vmatprep.mubr.f32.mxu0 0.0
  %4858 = vmatmul.mubr.f32.gmra.mrb[0].mxu0 %v4723
  %v4859 = vpop.f32.mrb[0].mxu0
  %v4860 = vadd.f32 0.0, %v4859
  %v4861 = vpop.f32.mrb[0].mxu0
  %4862 = vmatprep.mubr.f32.mxu0 0.0
  %4863 = vmatmul.mubr.f32.gmra.mrb[0].mxu0 %v4725
  %v4864 = vpop.f32.mrb[0].mxu0
  %v4865 = vadd.f32 0.0, %v4864
  %v4866 = vpop.f32.mrb[0].mxu0
  %4867 = vmatprep.mubr.f32.mxu0 0.0
  %4868 = vmatmul.mubr.f32.gmra.mrb[0].mxu0 %v4727
  %v4869 = vpop.f32.mrb[0].mxu0
  %v4870 = vadd.f32 0.0, %v4869
  %v4871 = vpop.f32.mrb[0].mxu0
  %4872 = vmatprep.mubr.f32.mxu0 0.0
  %4873 = vmatmul.mubr.f32.gmra.mrb[0].mxu0 %v4729
  %v4874 = vpop.f32.mrb[0].mxu0
  %v4875 = vadd.f32 0.0, %v4874
  %v4876 = vpop.f32.mrb[0].mxu0
  %4877 = vmatprep.mubr.f32.mxu0 0.0
  %4878 = vmatmul.mubr.f32.gmra.mrb[0].mxu0 %v4731
  %v4879 = vpop.f32.mrb[0].mxu0
  %v4880 = vadd.f32 0.0, %v4879
  %v4881 = vpop.f32.mrb[0].mxu0
  %4882 = vmatprep.mubr.f32.mxu0 0.0
  %4883 = vmatmul.mubr.f32.gmra.mrb[0].mxu0 %v4733
  %v4884 = vpop.f32.mrb[0].mxu0
  %v4885 = vadd.f32 0.0, %v4884
  %v4886 = vpop.f32.mrb[0].mxu0
  %4887 = vmatprep.mubr.f32.mxu0 0.0
  %4888 = vmatmul.mubr.f32.gmra.mrb[0].mxu0 %v4735
  %v4889 = vpop.f32.mrb[0].mxu0
  %v4890 = vadd.f32 0.0, %v4889
  %v4891 = vpop.f32.mrb[0].mxu0
  %4892 = vmatprep.mubr.f32.mxu0 0.0
  %4893 = vmatmul.mubr.f32.gmra.mrb[0].mxu0 %v4737
  %v4894 = vpop.f32.mrb[0].mxu0
  %v4895 = vadd.f32 0.0, %v4894
  %v4896 = vpop.f32.mrb[0].mxu0
  %4897 = vmatprep.mubr.f32.mxu0 0.0
  %4898 = vmatmul.mubr.f32.gmra.mrb[0].mxu0 %v4739
  %v4899 = vpop.f32.mrb[0].mxu0
  %v4900 = vadd.f32 0.0, %v4899
  %v4901 = vpop.f32.mrb[0].mxu0
  %4902 = vmatprep.mubr.f32.mxu0 0.0
  %4903 = vmatmul.mubr.f32.gmra.mrb[0].mxu0 %v4741
  %v4904 = vpop.f32.mrb[0].mxu0
  %v4905 = vadd.f32 0.0, %v4904
  %v4906 = vpop.f32.mrb[0].mxu0
  %4907 = vmatprep.mubr.f32.mxu0 0.0
  %4908 = vmatmul.mubr.f32.gmra.mrb[0].mxu0 %v4743
  %v4909 = vpop.f32.mrb[0].mxu0
  %v4910 = vadd.f32 0.0, %v4909
  %v4911 = vpop.f32.mrb[0].mxu0
  %4912 = vmatprep.mubr.f32.mxu0 0.0
  %4913 = vmatmul.mubr.f32.gmra.mrb[0].mxu0 %v4745
  %v4914 = vpop.f32.mrb[0].mxu0
  %v4915 = vadd.f32 0.0, %v4914
  %v4916 = vpop.f32.mrb[0].mxu0
  %4917 = vmatprep.mubr.f32.mxu0 0.0
  %4918 = vmatmul.mubr.f32.gmra.mrb[0].mxu0 %v4747
  %v4919 = vpop.f32.mrb[0].mxu0
  %v4920 = vadd.f32 0.0, %v4919
  %v4921 = vpop.f32.mrb[0].mxu0
  %4922 = vmatprep.mubr.f32.mxu0 0.0
  %4923 = vmatmul.mubr.f32.gmra.mrb[0].mxu0 %v4749
  %v4924 = vpop.f32.mrb[0].mxu0
  %v4925 = vadd.f32 0.0, %v4924
  %v4926 = vpop.f32.mrb[0].mxu0
  %4927 = vmatprep.mubr.f32.mxu0 0.0
  %4928 = vmatmul.mubr.f32.gmra.mrb[0].mxu0 %v4751
  %v4929 = vpop.f32.mrb[0].mxu0
  %v4930 = vadd.f32 0.0, %v4929
  %v4931 = vpop.f32.mrb[0].mxu0
  %4932 = vmatprep.mubr.f32.mxu0 0.0
  %4933 = vmatmul.mubr.f32.gmra.mrb[0].mxu0 %v4753
  %v4934 = vpop.f32.mrb[0].mxu0
  %v4935 = vadd.f32 0.0, %v4934
  %v4936 = vpop.f32.mrb[0].mxu0
  %4937 = vmatprep.mubr.f32.mxu0 0.0
  %4938 = vmatmul.mubr.f32.gmra.mrb[0].mxu0 %v4755
  %v4939 = vpop.f32.mrb[0].mxu0
  %v4940 = vadd.f32 0.0, %v4939
  %v4941 = vpop.f32.mrb[0].mxu0
  %4942 = vmatprep.mubr.f32.mxu0 0.0
  %4943 = vmatmul.mubr.f32.gmra.mrb[0].mxu0 %v4757
  %v4944 = vpop.f32.mrb[0].mxu0
  %v4945 = vadd.f32 0.0, %v4944
  %v4946 = vpop.f32.mrb[0].mxu0
  %4947 = vmatprep.mubr.f32.mxu0 0.0
  %4948 = vmatmul.mubr.f32.gmra.mrb[0].mxu0 %v4759
  %v4949 = vpop.f32.mrb[0].mxu0
  %v4950 = vadd.f32 0.0, %v4949
  %v4951 = vpop.f32.mrb[0].mxu0
  %4952 = vmatprep.mubr.f32.mxu0 0.0
  %4953 = vmatmul.mubr.f32.gmra.mrb[0].mxu0 %v4761
  %v4954 = vpop.f32.mrb[0].mxu0
  %v4955 = vadd.f32 0.0, %v4954
  %v4956 = vpop.f32.mrb[0].mxu0
  %4957 = vmatprep.mubr.f32.mxu0 0.0
  %4958 = vmatmul.mubr.f32.gmra.mrb[0].mxu0 %v4763
  %v4959 = vpop.f32.mrb[0].mxu0
  %v4960 = vadd.f32 0.0, %v4959
  %v4961 = vpop.f32.mrb[0].mxu0
  %4962 = vmatprep.mubr.f32.mxu0 0.0
  %4963 = vmatmul.mubr.f32.gmra.mrb[0].mxu0 %v4765
  %v4964 = vpop.f32.mrb[0].mxu0
  %v4965 = vadd.f32 0.0, %v4964
  %v4966 = vpop.f32.mrb[0].mxu0
  %4967 = vmatprep.mubr.f32.mxu0 0.0
  %4968 = vmatmul.mubr.f32.gmra.mrb[0].mxu0 %v4767
  %v4969 = vpop.f32.mrb[0].mxu0
  %v4970 = vadd.f32 0.0, %v4969
  %v4971 = vpop.f32.mrb[0].mxu0
  %4972 = vmatprep.mubr.f32.mxu0 0.0
  %4973 = vmatmul.mubr.f32.gmra.mrb[0].mxu0 %v4769
  %v4974 = vpop.f32.mrb[0].mxu0
  %v4975 = vadd.f32 0.0, %v4974
  %v4976 = vpop.f32.mrb[0].mxu0
  %4977 = vmatprep.mubr.f32.mxu0 0.0
  %4978 = vmatmul.mubr.f32.gmra.mrb[0].mxu0 %v4771
  %v4979 = vpop.f32.mrb[0].mxu0
  %v4980 = vadd.f32 0.0, %v4979
  %v4981 = vpop.f32.mrb[0].mxu0
  %4982 = vmatprep.mubr.f32.mxu0 0.0
  %4983 = vmatmul.mubr.f32.gmra.mrb[0].mxu0 %v4773
  %v4984 = vpop.f32.mrb[0].mxu0
  %v4985 = vadd.f32 0.0, %v4984
  %v4986 = vpop.f32.mrb[0].mxu0
  %4987 = vmatprep.mubr.f32.mxu0 0.0
  %4988 = vmatmul.mubr.f32.gmra.mrb[0].mxu0 %v4775
  %v4989 = vpop.f32.mrb[0].mxu0
  %v4990 = vadd.f32 0.0, %v4989
  %v4991 = vpop.f32.mrb[0].mxu0
  %4992 = vmatprep.mubr.f32.mxu0 0.0
  %4993 = vmatmul.mubr.f32.gmra.mrb[0].mxu0 %v4777
  %v4994 = vpop.f32.mrb[0].mxu0
  %v4995 = vadd.f32 0.0, %v4994
  %v4996 = vpop.f32.mrb[0].mxu0
  %4997 = vmatprep.mubr.f32.mxu0 0.0
  %4998 = vmatmul.mubr.f32.gmra.mrb[0].mxu0 %v4779
  %v4999 = vpop.f32.mrb[0].mxu0
  %v5000 = vadd.f32 0.0, %v4999
  %v5001 = vpop.f32.mrb[0].mxu0
  %5002 = vmatprep.mubr.f32.mxu0 0.0
  %5003 = vmatmul.mubr.f32.gmra.mrb[0].mxu0 %v4781
  %v5004 = vpop.f32.mrb[0].mxu0
  %v5005 = vadd.f32 0.0, %v5004
  %v5006 = vpop.f32.mrb[0].mxu0
  %5007 = vdwg.mxu0
  %v5008 = vsel %vm1113, %v4850, -inf
  %5009 = vmax.xlane.f32.xlu0 %v5008
  %v5010 = vpop.xlane.xlu0 %5009
  %v5011 = vsel %vm1113, %v4855, -inf
  %5012 = vmax.xlane.f32.xlu0 %v5011
  %v5013 = vpop.xlane.xlu0 %5012
  %v5014 = vsel %vm1113, %v4860, -inf
  %5015 = vmax.xlane.f32.xlu0 %v5014
  %v5016 = vpop.xlane.xlu0 %5015
  %v5017 = vsel %vm1113, %v4865, -inf
  %5018 = vmax.xlane.f32.xlu0 %v5017
  %v5019 = vpop.xlane.xlu0 %5018
  %v5020 = vsel %vm1113, %v4870, -inf
  %5021 = vmax.xlane.f32.xlu0 %v5020
  %v5022 = vpop.xlane.xlu0 %5021
  %v5023 = vsel %vm1113, %v4875, -inf
  %5024 = vmax.xlane.f32.xlu0 %v5023
  %v5025 = vpop.xlane.xlu0 %5024
  %v5026 = vsel %vm1113, %v4880, -inf
  %5027 = vmax.xlane.f32.xlu0 %v5026
  %v5028 = vpop.xlane.xlu0 %5027
  %v5029 = vsel %vm1113, %v4885, -inf
  %5030 = vmax.xlane.f32.xlu0 %v5029
  %v5031 = vpop.xlane.xlu0 %5030
  %v5032 = vsel %vm1113, %v4890, -inf
  %5033 = vmax.xlane.f32.xlu0 %v5032
  %v5034 = vpop.xlane.xlu0 %5033
  %v5035 = vsel %vm1113, %v4895, -inf
  %5036 = vmax.xlane.f32.xlu0 %v5035
  %v5037 = vpop.xlane.xlu0 %5036
  %v5038 = vsel %vm1113, %v4900, -inf
  %5039 = vmax.xlane.f32.xlu0 %v5038
  %v5040 = vpop.xlane.xlu0 %5039
  %v5041 = vsel %vm1113, %v4905, -inf
  %5042 = vmax.xlane.f32.xlu0 %v5041
  %v5043 = vpop.xlane.xlu0 %5042
  %v5044 = vsel %vm1113, %v4910, -inf
  %5045 = vmax.xlane.f32.xlu0 %v5044
  %v5046 = vpop.xlane.xlu0 %5045
  %v5047 = vsel %vm1113, %v4915, -inf
  %5048 = vmax.xlane.f32.xlu0 %v5047
  %v5049 = vpop.xlane.xlu0 %5048
  %v5050 = vsel %vm1113, %v4920, -inf
  %5051 = vmax.xlane.f32.xlu0 %v5050
  %v5052 = vpop.xlane.xlu0 %5051
  %v5053 = vsel %vm1113, %v4925, -inf
  %5054 = vmax.xlane.f32.xlu0 %v5053
  %v5055 = vpop.xlane.xlu0 %5054
  %v5056 = vsel %vm1113, %v4930, -inf
  %5057 = vmax.xlane.f32.xlu0 %v5056
  %v5058 = vpop.xlane.xlu0 %5057
  %v5059 = vsel %vm1113, %v4935, -inf
  %5060 = vmax.xlane.f32.xlu0 %v5059
  %v5061 = vpop.xlane.xlu0 %5060
  %v5062 = vsel %vm1113, %v4940, -inf
  %5063 = vmax.xlane.f32.xlu0 %v5062
  %v5064 = vpop.xlane.xlu0 %5063
  %v5065 = vsel %vm1113, %v4945, -inf
  %5066 = vmax.xlane.f32.xlu0 %v5065
  %v5067 = vpop.xlane.xlu0 %5066
  %v5068 = vsel %vm1113, %v4950, -inf
  %5069 = vmax.xlane.f32.xlu0 %v5068
  %v5070 = vpop.xlane.xlu0 %5069
  %v5071 = vsel %vm1113, %v4955, -inf
  %5072 = vmax.xlane.f32.xlu0 %v5071
  %v5073 = vpop.xlane.xlu0 %5072
  %v5074 = vsel %vm1113, %v4960, -inf
  %5075 = vmax.xlane.f32.xlu0 %v5074
  %v5076 = vpop.xlane.xlu0 %5075
  %v5077 = vsel %vm1113, %v4965, -inf
  %5078 = vmax.xlane.f32.xlu0 %v5077
  %v5079 = vpop.xlane.xlu0 %5078
  %v5080 = vsel %vm1113, %v4970, -inf
  %5081 = vmax.xlane.f32.xlu0 %v5080
  %v5082 = vpop.xlane.xlu0 %5081
  %v5083 = vsel %vm1113, %v4975, -inf
  %5084 = vmax.xlane.f32.xlu0 %v5083
  %v5085 = vpop.xlane.xlu0 %5084
  %v5086 = vsel %vm1113, %v4980, -inf
  %5087 = vmax.xlane.f32.xlu0 %v5086
  %v5088 = vpop.xlane.xlu0 %5087
  %v5089 = vsel %vm1113, %v4985, -inf
  %5090 = vmax.xlane.f32.xlu0 %v5089
  %v5091 = vpop.xlane.xlu0 %5090
  %v5092 = vsel %vm1113, %v4990, -inf
  %5093 = vmax.xlane.f32.xlu0 %v5092
  %v5094 = vpop.xlane.xlu0 %5093
  %v5095 = vsel %vm1113, %v4995, -inf
  %5096 = vmax.xlane.f32.xlu0 %v5095
  %v5097 = vpop.xlane.xlu0 %5096
  %v5098 = vsel %vm1113, %v5000, -inf
  %5099 = vmax.xlane.f32.xlu0 %v5098
  %v5100 = vpop.xlane.xlu0 %5099
  %v5101 = vsel %vm1113, %v5005, -inf
  %5102 = vmax.xlane.f32.xlu0 %v5101
  %v5103 = vpop.xlane.xlu0 %5102
  %vm5104 = vcmp.eq.f32.partialorder %v4850, %v5010
  %vm5105 = vcmp.eq.f32.partialorder %v4855, %v5013
  %vm5106 = vcmp.eq.f32.partialorder %v4860, %v5016
  %vm5107 = vcmp.eq.f32.partialorder %v4865, %v5019
  %vm5108 = vcmp.eq.f32.partialorder %v4870, %v5022
  %vm5109 = vcmp.eq.f32.partialorder %v4875, %v5025
  %vm5110 = vcmp.eq.f32.partialorder %v4880, %v5028
  %vm5111 = vcmp.eq.f32.partialorder %v4885, %v5031
  %vm5112 = vcmp.eq.f32.partialorder %v4890, %v5034
  %vm5113 = vcmp.eq.f32.partialorder %v4895, %v5037
  %vm5114 = vcmp.eq.f32.partialorder %v4900, %v5040
  %vm5115 = vcmp.eq.f32.partialorder %v4905, %v5043
  %vm5116 = vcmp.eq.f32.partialorder %v4910, %v5046
  %vm5117 = vcmp.eq.f32.partialorder %v4915, %v5049
  %vm5118 = vcmp.eq.f32.partialorder %v4920, %v5052
  %vm5119 = vcmp.eq.f32.partialorder %v4925, %v5055
  %vm5120 = vcmp.eq.f32.partialorder %v4930, %v5058
  %vm5121 = vcmp.eq.f32.partialorder %v4935, %v5061
  %vm5122 = vcmp.eq.f32.partialorder %v4940, %v5064
  %vm5123 = vcmp.eq.f32.partialorder %v4945, %v5067
  %vm5124 = vcmp.eq.f32.partialorder %v4950, %v5070
  %vm5125 = vcmp.eq.f32.partialorder %v4955, %v5073
  %vm5126 = vcmp.eq.f32.partialorder %v4960, %v5076
  %vm5127 = vcmp.eq.f32.partialorder %v4965, %v5079
  %vm5128 = vcmp.eq.f32.partialorder %v4970, %v5082
  %vm5129 = vcmp.eq.f32.partialorder %v4975, %v5085
  %vm5130 = vcmp.eq.f32.partialorder %v4980, %v5088
  %vm5131 = vcmp.eq.f32.partialorder %v4985, %v5091
  %vm5132 = vcmp.eq.f32.partialorder %v4990, %v5094
  %vm5133 = vcmp.eq.f32.partialorder %v4995, %v5097
  %vm5134 = vcmp.eq.f32.partialorder %v5000, %v5100
  %vm5135 = vcmp.eq.f32.partialorder %v5005, %v5103
  %v5136 = vsel %vm5104, %v1211, 64
  %v5137 = vsel %vm5105, %v1211, 64
  %v5138 = vsel %vm5106, %v1211, 64
  %v5139 = vsel %vm5107, %v1211, 64
  %v5140 = vsel %vm5108, %v1211, 64
  %v5141 = vsel %vm5109, %v1211, 64
  %v5142 = vsel %vm5110, %v1211, 64
  %v5143 = vsel %vm5111, %v1211, 64
  %v5144 = vsel %vm5112, %v1211, 64
  %v5145 = vsel %vm5113, %v1211, 64
  %v5146 = vsel %vm5114, %v1211, 64
  %v5147 = vsel %vm5115, %v1211, 64
  %v5148 = vsel %vm5116, %v1211, 64
  %v5149 = vsel %vm5117, %v1211, 64
  %v5150 = vsel %vm5118, %v1211, 64
  %v5151 = vsel %vm5119, %v1211, 64
  %v5152 = vsel %vm5120, %v1211, 64
  %v5153 = vsel %vm5121, %v1211, 64
  %v5154 = vsel %vm5122, %v1211, 64
  %v5155 = vsel %vm5123, %v1211, 64
  %v5156 = vsel %vm5124, %v1211, 64
  %v5157 = vsel %vm5125, %v1211, 64
  %v5158 = vsel %vm5126, %v1211, 64
  %v5159 = vsel %vm5127, %v1211, 64
  %v5160 = vsel %vm5128, %v1211, 64
  %v5161 = vsel %vm5129, %v1211, 64
  %v5162 = vsel %vm5130, %v1211, 64
  %v5163 = vsel %vm5131, %v1211, 64
  %v5164 = vsel %vm5132, %v1211, 64
  %v5165 = vsel %vm5133, %v1211, 64
  %v5166 = vsel %vm5134, %v1211, 64
  %v5167 = vsel %vm5135, %v1211, 64
  %v5168 = vsel %vm1113, %v5136, 2147483647
  %v5169 = vand.u32 %v5168, 65535
  %v5170 = vshra.s32 %v5168, 16
  %v5171 = vcvt.s32.f32 %v5169
  %v5172 = vcvt.s32.f32 %v5170
  %5173 = vmin.xlane.f32.xlu0 %v5172
  %v5174 = vpop.xlane.xlu0 %5173
  %vm5175 = vcmp.eq.f32.partialorder %v5172, %v5174
  %v5176 = vsel %vm5175, %v5171, inf
  %5177 = vmin.xlane.f32.xlu0 %v5176
  %v5178 = vpop.xlane.xlu0 %5177
  %v5179 = vcvt.f32.s32 %v5178
  %v5180 = vcvt.f32.s32 %v5174
  %v5181 = vshll.u32 %v5180, 16
  %v5182 = vadd.s32 %v5181, %v5179
  %v5183 = vsel %vm1113, %v5137, 2147483647
  %v5184 = vand.u32 %v5183, 65535
  %v5185 = vshra.s32 %v5183, 16
  %v5186 = vcvt.s32.f32 %v5184
  %v5187 = vcvt.s32.f32 %v5185
  %5188 = vmin.xlane.f32.xlu0 %v5187
  %v5189 = vpop.xlane.xlu0 %5188
  %vm5190 = vcmp.eq.f32.partialorder %v5187, %v5189
  %v5191 = vsel %vm5190, %v5186, inf
  %5192 = vmin.xlane.f32.xlu0 %v5191
  %v5193 = vpop.xlane.xlu0 %5192
  %v5194 = vcvt.f32.s32 %v5193
  %v5195 = vcvt.f32.s32 %v5189
  %v5196 = vshll.u32 %v5195, 16
  %v5197 = vadd.s32 %v5196, %v5194
  %v5198 = vsel %vm1113, %v5138, 2147483647
  %v5199 = vand.u32 %v5198, 65535
  %v5200 = vshra.s32 %v5198, 16
  %v5201 = vcvt.s32.f32 %v5199
  %v5202 = vcvt.s32.f32 %v5200
  %5203 = vmin.xlane.f32.xlu0 %v5202
  %v5204 = vpop.xlane.xlu0 %5203
  %vm5205 = vcmp.eq.f32.partialorder %v5202, %v5204
  %v5206 = vsel %vm5205, %v5201, inf
  %5207 = vmin.xlane.f32.xlu0 %v5206
  %v5208 = vpop.xlane.xlu0 %5207
  %v5209 = vcvt.f32.s32 %v5208
  %v5210 = vcvt.f32.s32 %v5204
  %v5211 = vshll.u32 %v5210, 16
  %v5212 = vadd.s32 %v5211, %v5209
  %v5213 = vsel %vm1113, %v5139, 2147483647
  %v5214 = vand.u32 %v5213, 65535
  %v5215 = vshra.s32 %v5213, 16
  %v5216 = vcvt.s32.f32 %v5214
  %v5217 = vcvt.s32.f32 %v5215
  %5218 = vmin.xlane.f32.xlu0 %v5217
  %v5219 = vpop.xlane.xlu0 %5218
  %vm5220 = vcmp.eq.f32.partialorder %v5217, %v5219
  %v5221 = vsel %vm5220, %v5216, inf
  %5222 = vmin.xlane.f32.xlu0 %v5221
  %v5223 = vpop.xlane.xlu0 %5222
  %v5224 = vcvt.f32.s32 %v5223
  %v5225 = vcvt.f32.s32 %v5219
  %v5226 = vshll.u32 %v5225, 16
  %v5227 = vadd.s32 %v5226, %v5224
  %v5228 = vsel %vm1113, %v5140, 2147483647
  %v5229 = vand.u32 %v5228, 65535
  %v5230 = vshra.s32 %v5228, 16
  %v5231 = vcvt.s32.f32 %v5229
  %v5232 = vcvt.s32.f32 %v5230
  %5233 = vmin.xlane.f32.xlu0 %v5232
  %v5234 = vpop.xlane.xlu0 %5233
  %vm5235 = vcmp.eq.f32.partialorder %v5232, %v5234
  %v5236 = vsel %vm5235, %v5231, inf
  %5237 = vmin.xlane.f32.xlu0 %v5236
  %v5238 = vpop.xlane.xlu0 %5237
  %v5239 = vcvt.f32.s32 %v5238
  %v5240 = vcvt.f32.s32 %v5234
  %v5241 = vshll.u32 %v5240, 16
  %v5242 = vadd.s32 %v5241, %v5239
  %v5243 = vsel %vm1113, %v5141, 2147483647
  %v5244 = vand.u32 %v5243, 65535
  %v5245 = vshra.s32 %v5243, 16
  %v5246 = vcvt.s32.f32 %v5244
  %v5247 = vcvt.s32.f32 %v5245
  %5248 = vmin.xlane.f32.xlu0 %v5247
  %v5249 = vpop.xlane.xlu0 %5248
  %vm5250 = vcmp.eq.f32.partialorder %v5247, %v5249
  %v5251 = vsel %vm5250, %v5246, inf
  %5252 = vmin.xlane.f32.xlu0 %v5251
  %v5253 = vpop.xlane.xlu0 %5252
  %v5254 = vcvt.f32.s32 %v5253
  %v5255 = vcvt.f32.s32 %v5249
  %v5256 = vshll.u32 %v5255, 16
  %v5257 = vadd.s32 %v5256, %v5254
  %v5258 = vsel %vm1113, %v5142, 2147483647
  %v5259 = vand.u32 %v5258, 65535
  %v5260 = vshra.s32 %v5258, 16
  %v5261 = vcvt.s32.f32 %v5259
  %v5262 = vcvt.s32.f32 %v5260
  %5263 = vmin.xlane.f32.xlu0 %v5262
  %v5264 = vpop.xlane.xlu0 %5263
  %vm5265 = vcmp.eq.f32.partialorder %v5262, %v5264
  %v5266 = vsel %vm5265, %v5261, inf
  %5267 = vmin.xlane.f32.xlu0 %v5266
  %v5268 = vpop.xlane.xlu0 %5267
  %v5269 = vcvt.f32.s32 %v5268
  %v5270 = vcvt.f32.s32 %v5264
  %v5271 = vshll.u32 %v5270, 16
  %v5272 = vadd.s32 %v5271, %v5269
  %v5273 = vsel %vm1113, %v5143, 2147483647
  %v5274 = vand.u32 %v5273, 65535
  %v5275 = vshra.s32 %v5273, 16
  %v5276 = vcvt.s32.f32 %v5274
  %v5277 = vcvt.s32.f32 %v5275
  %5278 = vmin.xlane.f32.xlu0 %v5277
  %v5279 = vpop.xlane.xlu0 %5278
  %vm5280 = vcmp.eq.f32.partialorder %v5277, %v5279
  %v5281 = vsel %vm5280, %v5276, inf
  %5282 = vmin.xlane.f32.xlu0 %v5281
  %v5283 = vpop.xlane.xlu0 %5282
  %v5284 = vcvt.f32.s32 %v5283
  %v5285 = vcvt.f32.s32 %v5279
  %v5286 = vshll.u32 %v5285, 16
  %v5287 = vadd.s32 %v5286, %v5284
  %v5288 = vsel %vm1113, %v5144, 2147483647
  %v5289 = vand.u32 %v5288, 65535
  %v5290 = vshra.s32 %v5288, 16
  %v5291 = vcvt.s32.f32 %v5289
  %v5292 = vcvt.s32.f32 %v5290
  %5293 = vmin.xlane.f32.xlu0 %v5292
  %v5294 = vpop.xlane.xlu0 %5293
  %vm5295 = vcmp.eq.f32.partialorder %v5292, %v5294
  %v5296 = vsel %vm5295, %v5291, inf
  %5297 = vmin.xlane.f32.xlu0 %v5296
  %v5298 = vpop.xlane.xlu0 %5297
  %v5299 = vcvt.f32.s32 %v5298
  %v5300 = vcvt.f32.s32 %v5294
  %v5301 = vshll.u32 %v5300, 16
  %v5302 = vadd.s32 %v5301, %v5299
  %v5303 = vsel %vm1113, %v5145, 2147483647
  %v5304 = vand.u32 %v5303, 65535
  %v5305 = vshra.s32 %v5303, 16
  %v5306 = vcvt.s32.f32 %v5304
  %v5307 = vcvt.s32.f32 %v5305
  %5308 = vmin.xlane.f32.xlu0 %v5307
  %v5309 = vpop.xlane.xlu0 %5308
  %vm5310 = vcmp.eq.f32.partialorder %v5307, %v5309
  %v5311 = vsel %vm5310, %v5306, inf
  %5312 = vmin.xlane.f32.xlu0 %v5311
  %v5313 = vpop.xlane.xlu0 %5312
  %v5314 = vcvt.f32.s32 %v5313
  %v5315 = vcvt.f32.s32 %v5309
  %v5316 = vshll.u32 %v5315, 16
  %v5317 = vadd.s32 %v5316, %v5314
  %v5318 = vsel %vm1113, %v5146, 2147483647
  %v5319 = vand.u32 %v5318, 65535
  %v5320 = vshra.s32 %v5318, 16
  %v5321 = vcvt.s32.f32 %v5319
  %v5322 = vcvt.s32.f32 %v5320
  %5323 = vmin.xlane.f32.xlu0 %v5322
  %v5324 = vpop.xlane.xlu0 %5323
  %vm5325 = vcmp.eq.f32.partialorder %v5322, %v5324
  %v5326 = vsel %vm5325, %v5321, inf
  %5327 = vmin.xlane.f32.xlu0 %v5326
  %v5328 = vpop.xlane.xlu0 %5327
  %v5329 = vcvt.f32.s32 %v5328
  %v5330 = vcvt.f32.s32 %v5324
  %v5331 = vshll.u32 %v5330, 16
  %v5332 = vadd.s32 %v5331, %v5329
  %v5333 = vsel %vm1113, %v5147, 2147483647
  %v5334 = vand.u32 %v5333, 65535
  %v5335 = vshra.s32 %v5333, 16
  %v5336 = vcvt.s32.f32 %v5334
  %v5337 = vcvt.s32.f32 %v5335
  %5338 = vmin.xlane.f32.xlu0 %v5337
  %v5339 = vpop.xlane.xlu0 %5338
  %vm5340 = vcmp.eq.f32.partialorder %v5337, %v5339
  %v5341 = vsel %vm5340, %v5336, inf
  %5342 = vmin.xlane.f32.xlu0 %v5341
  %v5343 = vpop.xlane.xlu0 %5342
  %v5344 = vcvt.f32.s32 %v5343
  %v5345 = vcvt.f32.s32 %v5339
  %v5346 = vshll.u32 %v5345, 16
  %v5347 = vadd.s32 %v5346, %v5344
  %v5348 = vsel %vm1113, %v5148, 2147483647
  %v5349 = vand.u32 %v5348, 65535
  %v5350 = vshra.s32 %v5348, 16
  %v5351 = vcvt.s32.f32 %v5349
  %v5352 = vcvt.s32.f32 %v5350
  %5353 = vmin.xlane.f32.xlu0 %v5352
  %v5354 = vpop.xlane.xlu0 %5353
  %vm5355 = vcmp.eq.f32.partialorder %v5352, %v5354
  %v5356 = vsel %vm5355, %v5351, inf
  %5357 = vmin.xlane.f32.xlu0 %v5356
  %v5358 = vpop.xlane.xlu0 %5357
  %v5359 = vcvt.f32.s32 %v5358
  %v5360 = vcvt.f32.s32 %v5354
  %v5361 = vshll.u32 %v5360, 16
  %v5362 = vadd.s32 %v5361, %v5359
  %v5363 = vsel %vm1113, %v5149, 2147483647
  %v5364 = vand.u32 %v5363, 65535
  %v5365 = vshra.s32 %v5363, 16
  %v5366 = vcvt.s32.f32 %v5364
  %v5367 = vcvt.s32.f32 %v5365
  %5368 = vmin.xlane.f32.xlu0 %v5367
  %v5369 = vpop.xlane.xlu0 %5368
  %vm5370 = vcmp.eq.f32.partialorder %v5367, %v5369
  %v5371 = vsel %vm5370, %v5366, inf
  %5372 = vmin.xlane.f32.xlu0 %v5371
  %v5373 = vpop.xlane.xlu0 %5372
  %v5374 = vcvt.f32.s32 %v5373
  %v5375 = vcvt.f32.s32 %v5369
  %v5376 = vshll.u32 %v5375, 16
  %v5377 = vadd.s32 %v5376, %v5374
  %v5378 = vsel %vm1113, %v5150, 2147483647
  %v5379 = vand.u32 %v5378, 65535
  %v5380 = vshra.s32 %v5378, 16
  %v5381 = vcvt.s32.f32 %v5379
  %v5382 = vcvt.s32.f32 %v5380
  %5383 = vmin.xlane.f32.xlu0 %v5382
  %v5384 = vpop.xlane.xlu0 %5383
  %vm5385 = vcmp.eq.f32.partialorder %v5382, %v5384
  %v5386 = vsel %vm5385, %v5381, inf
  %5387 = vmin.xlane.f32.xlu0 %v5386
  %v5388 = vpop.xlane.xlu0 %5387
  %v5389 = vcvt.f32.s32 %v5388
  %v5390 = vcvt.f32.s32 %v5384
  %v5391 = vshll.u32 %v5390, 16
  %v5392 = vadd.s32 %v5391, %v5389
  %v5393 = vsel %vm1113, %v5151, 2147483647
  %v5394 = vand.u32 %v5393, 65535
  %v5395 = vshra.s32 %v5393, 16
  %v5396 = vcvt.s32.f32 %v5394
  %v5397 = vcvt.s32.f32 %v5395
  %5398 = vmin.xlane.f32.xlu0 %v5397
  %v5399 = vpop.xlane.xlu0 %5398
  %vm5400 = vcmp.eq.f32.partialorder %v5397, %v5399
  %v5401 = vsel %vm5400, %v5396, inf
  %5402 = vmin.xlane.f32.xlu0 %v5401
  %v5403 = vpop.xlane.xlu0 %5402
  %v5404 = vcvt.f32.s32 %v5403
  %v5405 = vcvt.f32.s32 %v5399
  %v5406 = vshll.u32 %v5405, 16
  %v5407 = vadd.s32 %v5406, %v5404
  %v5408 = vsel %vm1113, %v5152, 2147483647
  %v5409 = vand.u32 %v5408, 65535
  %v5410 = vshra.s32 %v5408, 16
  %v5411 = vcvt.s32.f32 %v5409
  %v5412 = vcvt.s32.f32 %v5410
  %5413 = vmin.xlane.f32.xlu0 %v5412
  %v5414 = vpop.xlane.xlu0 %5413
  %vm5415 = vcmp.eq.f32.partialorder %v5412, %v5414
  %v5416 = vsel %vm5415, %v5411, inf
  %5417 = vmin.xlane.f32.xlu0 %v5416
  %v5418 = vpop.xlane.xlu0 %5417
  %v5419 = vcvt.f32.s32 %v5418
  %v5420 = vcvt.f32.s32 %v5414
  %v5421 = vshll.u32 %v5420, 16
  %v5422 = vadd.s32 %v5421, %v5419
  %v5423 = vsel %vm1113, %v5153, 2147483647
  %v5424 = vand.u32 %v5423, 65535
  %v5425 = vshra.s32 %v5423, 16
  %v5426 = vcvt.s32.f32 %v5424
  %v5427 = vcvt.s32.f32 %v5425
  %5428 = vmin.xlane.f32.xlu0 %v5427
  %v5429 = vpop.xlane.xlu0 %5428
  %vm5430 = vcmp.eq.f32.partialorder %v5427, %v5429
  %v5431 = vsel %vm5430, %v5426, inf
  %5432 = vmin.xlane.f32.xlu0 %v5431
  %v5433 = vpop.xlane.xlu0 %5432
  %v5434 = vcvt.f32.s32 %v5433
  %v5435 = vcvt.f32.s32 %v5429
  %v5436 = vshll.u32 %v5435, 16
  %v5437 = vadd.s32 %v5436, %v5434
  %v5438 = vsel %vm1113, %v5154, 2147483647
  %v5439 = vand.u32 %v5438, 65535
  %v5440 = vshra.s32 %v5438, 16
  %v5441 = vcvt.s32.f32 %v5439
  %v5442 = vcvt.s32.f32 %v5440
  %5443 = vmin.xlane.f32.xlu0 %v5442
  %v5444 = vpop.xlane.xlu0 %5443
  %vm5445 = vcmp.eq.f32.partialorder %v5442, %v5444
  %v5446 = vsel %vm5445, %v5441, inf
  %5447 = vmin.xlane.f32.xlu0 %v5446
  %v5448 = vpop.xlane.xlu0 %5447
  %v5449 = vcvt.f32.s32 %v5448
  %v5450 = vcvt.f32.s32 %v5444
  %v5451 = vshll.u32 %v5450, 16
  %v5452 = vadd.s32 %v5451, %v5449
  %v5453 = vsel %vm1113, %v5155, 2147483647
  %v5454 = vand.u32 %v5453, 65535
  %v5455 = vshra.s32 %v5453, 16
  %v5456 = vcvt.s32.f32 %v5454
  %v5457 = vcvt.s32.f32 %v5455
  %5458 = vmin.xlane.f32.xlu0 %v5457
  %v5459 = vpop.xlane.xlu0 %5458
  %vm5460 = vcmp.eq.f32.partialorder %v5457, %v5459
  %v5461 = vsel %vm5460, %v5456, inf
  %5462 = vmin.xlane.f32.xlu0 %v5461
  %v5463 = vpop.xlane.xlu0 %5462
  %v5464 = vcvt.f32.s32 %v5463
  %v5465 = vcvt.f32.s32 %v5459
  %v5466 = vshll.u32 %v5465, 16
  %v5467 = vadd.s32 %v5466, %v5464
  %v5468 = vsel %vm1113, %v5156, 2147483647
  %v5469 = vand.u32 %v5468, 65535
  %v5470 = vshra.s32 %v5468, 16
  %v5471 = vcvt.s32.f32 %v5469
  %v5472 = vcvt.s32.f32 %v5470
  %5473 = vmin.xlane.f32.xlu0 %v5472
  %v5474 = vpop.xlane.xlu0 %5473
  %vm5475 = vcmp.eq.f32.partialorder %v5472, %v5474
  %v5476 = vsel %vm5475, %v5471, inf
  %5477 = vmin.xlane.f32.xlu0 %v5476
  %v5478 = vpop.xlane.xlu0 %5477
  %v5479 = vcvt.f32.s32 %v5478
  %v5480 = vcvt.f32.s32 %v5474
  %v5481 = vshll.u32 %v5480, 16
  %v5482 = vadd.s32 %v5481, %v5479
  %v5483 = vsel %vm1113, %v5157, 2147483647
  %v5484 = vand.u32 %v5483, 65535
  %v5485 = vshra.s32 %v5483, 16
  %v5486 = vcvt.s32.f32 %v5484
  %v5487 = vcvt.s32.f32 %v5485
  %5488 = vmin.xlane.f32.xlu0 %v5487
  %v5489 = vpop.xlane.xlu0 %5488
  %vm5490 = vcmp.eq.f32.partialorder %v5487, %v5489
  %v5491 = vsel %vm5490, %v5486, inf
  %5492 = vmin.xlane.f32.xlu0 %v5491
  %v5493 = vpop.xlane.xlu0 %5492
  %v5494 = vcvt.f32.s32 %v5493
  %v5495 = vcvt.f32.s32 %v5489
  %v5496 = vshll.u32 %v5495, 16
  %v5497 = vadd.s32 %v5496, %v5494
  %v5498 = vsel %vm1113, %v5158, 2147483647
  %v5499 = vand.u32 %v5498, 65535
  %v5500 = vshra.s32 %v5498, 16
  %v5501 = vcvt.s32.f32 %v5499
  %v5502 = vcvt.s32.f32 %v5500
  %5503 = vmin.xlane.f32.xlu0 %v5502
  %v5504 = vpop.xlane.xlu0 %5503
  %vm5505 = vcmp.eq.f32.partialorder %v5502, %v5504
  %v5506 = vsel %vm5505, %v5501, inf
  %5507 = vmin.xlane.f32.xlu0 %v5506
  %v5508 = vpop.xlane.xlu0 %5507
  %v5509 = vcvt.f32.s32 %v5508
  %v5510 = vcvt.f32.s32 %v5504
  %v5511 = vshll.u32 %v5510, 16
  %v5512 = vadd.s32 %v5511, %v5509
  %v5513 = vsel %vm1113, %v5159, 2147483647
  %v5514 = vand.u32 %v5513, 65535
  %v5515 = vshra.s32 %v5513, 16
  %v5516 = vcvt.s32.f32 %v5514
  %v5517 = vcvt.s32.f32 %v5515
  %5518 = vmin.xlane.f32.xlu0 %v5517
  %v5519 = vpop.xlane.xlu0 %5518
  %vm5520 = vcmp.eq.f32.partialorder %v5517, %v5519
  %v5521 = vsel %vm5520, %v5516, inf
  %5522 = vmin.xlane.f32.xlu0 %v5521
  %v5523 = vpop.xlane.xlu0 %5522
  %v5524 = vcvt.f32.s32 %v5523
  %v5525 = vcvt.f32.s32 %v5519
  %v5526 = vshll.u32 %v5525, 16
  %v5527 = vadd.s32 %v5526, %v5524
  %v5528 = vsel %vm1113, %v5160, 2147483647
  %v5529 = vand.u32 %v5528, 65535
  %v5530 = vshra.s32 %v5528, 16
  %v5531 = vcvt.s32.f32 %v5529
  %v5532 = vcvt.s32.f32 %v5530
  %5533 = vmin.xlane.f32.xlu0 %v5532
  %v5534 = vpop.xlane.xlu0 %5533
  %vm5535 = vcmp.eq.f32.partialorder %v5532, %v5534
  %v5536 = vsel %vm5535, %v5531, inf
  %5537 = vmin.xlane.f32.xlu0 %v5536
  %v5538 = vpop.xlane.xlu0 %5537
  %v5539 = vcvt.f32.s32 %v5538
  %v5540 = vcvt.f32.s32 %v5534
  %v5541 = vshll.u32 %v5540, 16
  %v5542 = vadd.s32 %v5541, %v5539
  %v5543 = vsel %vm1113, %v5161, 2147483647
  %v5544 = vand.u32 %v5543, 65535
  %v5545 = vshra.s32 %v5543, 16
  %v5546 = vcvt.s32.f32 %v5544
  %v5547 = vcvt.s32.f32 %v5545
  %5548 = vmin.xlane.f32.xlu0 %v5547
  %v5549 = vpop.xlane.xlu0 %5548
  %vm5550 = vcmp.eq.f32.partialorder %v5547, %v5549
  %v5551 = vsel %vm5550, %v5546, inf
  %5552 = vmin.xlane.f32.xlu0 %v5551
  %v5553 = vpop.xlane.xlu0 %5552
  %v5554 = vcvt.f32.s32 %v5553
  %v5555 = vcvt.f32.s32 %v5549
  %v5556 = vshll.u32 %v5555, 16
  %v5557 = vadd.s32 %v5556, %v5554
  %v5558 = vsel %vm1113, %v5162, 2147483647
  %v5559 = vand.u32 %v5558, 65535
  %v5560 = vshra.s32 %v5558, 16
  %v5561 = vcvt.s32.f32 %v5559
  %v5562 = vcvt.s32.f32 %v5560
  %5563 = vmin.xlane.f32.xlu0 %v5562
  %v5564 = vpop.xlane.xlu0 %5563
  %vm5565 = vcmp.eq.f32.partialorder %v5562, %v5564
  %v5566 = vsel %vm5565, %v5561, inf
  %5567 = vmin.xlane.f32.xlu0 %v5566
  %v5568 = vpop.xlane.xlu0 %5567
  %v5569 = vcvt.f32.s32 %v5568
  %v5570 = vcvt.f32.s32 %v5564
  %v5571 = vshll.u32 %v5570, 16
  %v5572 = vadd.s32 %v5571, %v5569
  %v5573 = vsel %vm1113, %v5163, 2147483647
  %v5574 = vand.u32 %v5573, 65535
  %v5575 = vshra.s32 %v5573, 16
  %v5576 = vcvt.s32.f32 %v5574
  %v5577 = vcvt.s32.f32 %v5575
  %5578 = vmin.xlane.f32.xlu0 %v5577
  %v5579 = vpop.xlane.xlu0 %5578
  %vm5580 = vcmp.eq.f32.partialorder %v5577, %v5579
  %v5581 = vsel %vm5580, %v5576, inf
  %5582 = vmin.xlane.f32.xlu0 %v5581
  %v5583 = vpop.xlane.xlu0 %5582
  %v5584 = vcvt.f32.s32 %v5583
  %v5585 = vcvt.f32.s32 %v5579
  %v5586 = vshll.u32 %v5585, 16
  %v5587 = vadd.s32 %v5586, %v5584
  %v5588 = vsel %vm1113, %v5164, 2147483647
  %v5589 = vand.u32 %v5588, 65535
  %v5590 = vshra.s32 %v5588, 16
  %v5591 = vcvt.s32.f32 %v5589
  %v5592 = vcvt.s32.f32 %v5590
  %5593 = vmin.xlane.f32.xlu0 %v5592
  %v5594 = vpop.xlane.xlu0 %5593
  %vm5595 = vcmp.eq.f32.partialorder %v5592, %v5594
  %v5596 = vsel %vm5595, %v5591, inf
  %5597 = vmin.xlane.f32.xlu0 %v5596
  %v5598 = vpop.xlane.xlu0 %5597
  %v5599 = vcvt.f32.s32 %v5598
  %v5600 = vcvt.f32.s32 %v5594
  %v5601 = vshll.u32 %v5600, 16
  %v5602 = vadd.s32 %v5601, %v5599
  %v5603 = vsel %vm1113, %v5165, 2147483647
  %v5604 = vand.u32 %v5603, 65535
  %v5605 = vshra.s32 %v5603, 16
  %v5606 = vcvt.s32.f32 %v5604
  %v5607 = vcvt.s32.f32 %v5605
  %5608 = vmin.xlane.f32.xlu0 %v5607
  %v5609 = vpop.xlane.xlu0 %5608
  %vm5610 = vcmp.eq.f32.partialorder %v5607, %v5609
  %v5611 = vsel %vm5610, %v5606, inf
  %5612 = vmin.xlane.f32.xlu0 %v5611
  %v5613 = vpop.xlane.xlu0 %5612
  %v5614 = vcvt.f32.s32 %v5613
  %v5615 = vcvt.f32.s32 %v5609
  %v5616 = vshll.u32 %v5615, 16
  %v5617 = vadd.s32 %v5616, %v5614
  %v5618 = vsel %vm1113, %v5166, 2147483647
  %v5619 = vand.u32 %v5618, 65535
  %v5620 = vshra.s32 %v5618, 16
  %v5621 = vcvt.s32.f32 %v5619
  %v5622 = vcvt.s32.f32 %v5620
  %5623 = vmin.xlane.f32.xlu0 %v5622
  %v5624 = vpop.xlane.xlu0 %5623
  %vm5625 = vcmp.eq.f32.partialorder %v5622, %v5624
  %v5626 = vsel %vm5625, %v5621, inf
  %5627 = vmin.xlane.f32.xlu0 %v5626
  %v5628 = vpop.xlane.xlu0 %5627
  %v5629 = vcvt.f32.s32 %v5628
  %v5630 = vcvt.f32.s32 %v5624
  %v5631 = vshll.u32 %v5630, 16
  %v5632 = vadd.s32 %v5631, %v5629
  %v5633 = vsel %vm1113, %v5167, 2147483647
  %v5634 = vand.u32 %v5633, 65535
  %v5635 = vshra.s32 %v5633, 16
  %v5636 = vcvt.s32.f32 %v5634
  %v5637 = vcvt.s32.f32 %v5635
  %5638 = vmin.xlane.f32.xlu0 %v5637
  %v5639 = vpop.xlane.xlu0 %5638
  %vm5640 = vcmp.eq.f32.partialorder %v5637, %v5639
  %v5641 = vsel %vm5640, %v5636, inf
  %5642 = vmin.xlane.f32.xlu0 %v5641
  %v5643 = vpop.xlane.xlu0 %5642
  %v5644 = vcvt.f32.s32 %v5643
  %v5645 = vcvt.f32.s32 %v5639
  %v5646 = vshll.u32 %v5645, 16
  %v5647 = vadd.s32 %v5646, %v5644
  %v5648 = vlaneseq
  %v5649 = vshrl.u32 %v5648, 7
  %v5650 = vsub.s32 0, %v5649
  %v5651 = vrot.slane %v5182, %v5650
  %v5652 = vlaneseq
  %v5653 = vshrl.u32 %v5652, 7
  %v5654 = vsub.s32 1, %v5653
  %v5655 = vrot.slane %v5182, %v5654
  %v5656 = vlaneseq
  %v5657 = vshrl.u32 %v5656, 7
  %v5658 = vsub.s32 2, %v5657
  %v5659 = vrot.slane %v5182, %v5658
  %v5660 = vlaneseq
  %v5661 = vshrl.u32 %v5660, 7
  %v5662 = vsub.s32 3, %v5661
  %v5663 = vrot.slane %v5182, %v5662
  %v5664 = vlaneseq
  %v5665 = vshrl.u32 %v5664, 7
  %v5666 = vsub.s32 4, %v5665
  %v5667 = vrot.slane %v5182, %v5666
  %v5668 = vlaneseq
  %v5669 = vshrl.u32 %v5668, 7
  %v5670 = vsub.s32 5, %v5669
  %v5671 = vrot.slane %v5182, %v5670
  %v5672 = vlaneseq
  %v5673 = vshrl.u32 %v5672, 7
  %v5674 = vsub.s32 6, %v5673
  %v5675 = vrot.slane %v5182, %v5674
  %v5676 = vlaneseq
  %v5677 = vshrl.u32 %v5676, 7
  %v5678 = vsub.s32 7, %v5677
  %v5679 = vrot.slane %v5182, %v5678
  %v5680 = vlaneseq
  %v5681 = vshrl.u32 %v5680, 7
  %v5682 = vsub.s32 0, %v5681
  %v5683 = vrot.slane %v5197, %v5682
  %v5684 = vlaneseq
  %v5685 = vshrl.u32 %v5684, 7
  %v5686 = vsub.s32 1, %v5685
  %v5687 = vrot.slane %v5197, %v5686
  %v5688 = vlaneseq
  %v5689 = vshrl.u32 %v5688, 7
  %v5690 = vsub.s32 2, %v5689
  %v5691 = vrot.slane %v5197, %v5690
  %v5692 = vlaneseq
  %v5693 = vshrl.u32 %v5692, 7
  %v5694 = vsub.s32 3, %v5693
  %v5695 = vrot.slane %v5197, %v5694
  %v5696 = vlaneseq
  %v5697 = vshrl.u32 %v5696, 7
  %v5698 = vsub.s32 4, %v5697
  %v5699 = vrot.slane %v5197, %v5698
  %v5700 = vlaneseq
  %v5701 = vshrl.u32 %v5700, 7
  %v5702 = vsub.s32 5, %v5701
  %v5703 = vrot.slane %v5197, %v5702
  %v5704 = vlaneseq
  %v5705 = vshrl.u32 %v5704, 7
  %v5706 = vsub.s32 6, %v5705
  %v5707 = vrot.slane %v5197, %v5706
  %v5708 = vlaneseq
  %v5709 = vshrl.u32 %v5708, 7
  %v5710 = vsub.s32 7, %v5709
  %v5711 = vrot.slane %v5197, %v5710
  %v5712 = vlaneseq
  %v5713 = vshrl.u32 %v5712, 7
  %v5714 = vsub.s32 0, %v5713
  %v5715 = vrot.slane %v5212, %v5714
  %v5716 = vlaneseq
  %v5717 = vshrl.u32 %v5716, 7
  %v5718 = vsub.s32 1, %v5717
  %v5719 = vrot.slane %v5212, %v5718
  %v5720 = vlaneseq
  %v5721 = vshrl.u32 %v5720, 7
  %v5722 = vsub.s32 2, %v5721
  %v5723 = vrot.slane %v5212, %v5722
  %v5724 = vlaneseq
  %v5725 = vshrl.u32 %v5724, 7
  %v5726 = vsub.s32 3, %v5725
  %v5727 = vrot.slane %v5212, %v5726
  %v5728 = vlaneseq
  %v5729 = vshrl.u32 %v5728, 7
  %v5730 = vsub.s32 4, %v5729
  %v5731 = vrot.slane %v5212, %v5730
  %v5732 = vlaneseq
  %v5733 = vshrl.u32 %v5732, 7
  %v5734 = vsub.s32 5, %v5733
  %v5735 = vrot.slane %v5212, %v5734
  %v5736 = vlaneseq
  %v5737 = vshrl.u32 %v5736, 7
  %v5738 = vsub.s32 6, %v5737
  %v5739 = vrot.slane %v5212, %v5738
  %v5740 = vlaneseq
  %v5741 = vshrl.u32 %v5740, 7
  %v5742 = vsub.s32 7, %v5741
  %v5743 = vrot.slane %v5212, %v5742
  %v5744 = vlaneseq
  %v5745 = vshrl.u32 %v5744, 7
  %v5746 = vsub.s32 0, %v5745
  %v5747 = vrot.slane %v5227, %v5746
  %v5748 = vlaneseq
  %v5749 = vshrl.u32 %v5748, 7
  %v5750 = vsub.s32 1, %v5749
  %v5751 = vrot.slane %v5227, %v5750
  %v5752 = vlaneseq
  %v5753 = vshrl.u32 %v5752, 7
  %v5754 = vsub.s32 2, %v5753
  %v5755 = vrot.slane %v5227, %v5754
  %v5756 = vlaneseq
  %v5757 = vshrl.u32 %v5756, 7
  %v5758 = vsub.s32 3, %v5757
  %v5759 = vrot.slane %v5227, %v5758
  %v5760 = vlaneseq
  %v5761 = vshrl.u32 %v5760, 7
  %v5762 = vsub.s32 4, %v5761
  %v5763 = vrot.slane %v5227, %v5762
  %v5764 = vlaneseq
  %v5765 = vshrl.u32 %v5764, 7
  %v5766 = vsub.s32 5, %v5765
  %v5767 = vrot.slane %v5227, %v5766
  %v5768 = vlaneseq
  %v5769 = vshrl.u32 %v5768, 7
  %v5770 = vsub.s32 6, %v5769
  %v5771 = vrot.slane %v5227, %v5770
  %v5772 = vlaneseq
  %v5773 = vshrl.u32 %v5772, 7
  %v5774 = vsub.s32 7, %v5773
  %v5775 = vrot.slane %v5227, %v5774
  %v5776 = vlaneseq
  %v5777 = vshrl.u32 %v5776, 7
  %v5778 = vsub.s32 0, %v5777
  %v5779 = vrot.slane %v5242, %v5778
  %v5780 = vlaneseq
  %v5781 = vshrl.u32 %v5780, 7
  %v5782 = vsub.s32 1, %v5781
  %v5783 = vrot.slane %v5242, %v5782
  %v5784 = vlaneseq
  %v5785 = vshrl.u32 %v5784, 7
  %v5786 = vsub.s32 2, %v5785
  %v5787 = vrot.slane %v5242, %v5786
  %v5788 = vlaneseq
  %v5789 = vshrl.u32 %v5788, 7
  %v5790 = vsub.s32 3, %v5789
  %v5791 = vrot.slane %v5242, %v5790
  %v5792 = vlaneseq
  %v5793 = vshrl.u32 %v5792, 7
  %v5794 = vsub.s32 4, %v5793
  %v5795 = vrot.slane %v5242, %v5794
  %v5796 = vlaneseq
  %v5797 = vshrl.u32 %v5796, 7
  %v5798 = vsub.s32 5, %v5797
  %v5799 = vrot.slane %v5242, %v5798
  %v5800 = vlaneseq
  %v5801 = vshrl.u32 %v5800, 7
  %v5802 = vsub.s32 6, %v5801
  %v5803 = vrot.slane %v5242, %v5802
  %v5804 = vlaneseq
  %v5805 = vshrl.u32 %v5804, 7
  %v5806 = vsub.s32 7, %v5805
  %v5807 = vrot.slane %v5242, %v5806
  %v5808 = vlaneseq
  %v5809 = vshrl.u32 %v5808, 7
  %v5810 = vsub.s32 0, %v5809
  %v5811 = vrot.slane %v5257, %v5810
  %v5812 = vlaneseq
  %v5813 = vshrl.u32 %v5812, 7
  %v5814 = vsub.s32 1, %v5813
  %v5815 = vrot.slane %v5257, %v5814
  %v5816 = vlaneseq
  %v5817 = vshrl.u32 %v5816, 7
  %v5818 = vsub.s32 2, %v5817
  %v5819 = vrot.slane %v5257, %v5818
  %v5820 = vlaneseq
  %v5821 = vshrl.u32 %v5820, 7
  %v5822 = vsub.s32 3, %v5821
  %v5823 = vrot.slane %v5257, %v5822
  %v5824 = vlaneseq
  %v5825 = vshrl.u32 %v5824, 7
  %v5826 = vsub.s32 4, %v5825
  %v5827 = vrot.slane %v5257, %v5826
  %v5828 = vlaneseq
  %v5829 = vshrl.u32 %v5828, 7
  %v5830 = vsub.s32 5, %v5829
  %v5831 = vrot.slane %v5257, %v5830
  %v5832 = vlaneseq
  %v5833 = vshrl.u32 %v5832, 7
  %v5834 = vsub.s32 6, %v5833
  %v5835 = vrot.slane %v5257, %v5834
  %v5836 = vlaneseq
  %v5837 = vshrl.u32 %v5836, 7
  %v5838 = vsub.s32 7, %v5837
  %v5839 = vrot.slane %v5257, %v5838
  %v5840 = vlaneseq
  %v5841 = vshrl.u32 %v5840, 7
  %v5842 = vsub.s32 0, %v5841
  %v5843 = vrot.slane %v5272, %v5842
  %v5844 = vlaneseq
  %v5845 = vshrl.u32 %v5844, 7
  %v5846 = vsub.s32 1, %v5845
  %v5847 = vrot.slane %v5272, %v5846
  %v5848 = vlaneseq
  %v5849 = vshrl.u32 %v5848, 7
  %v5850 = vsub.s32 2, %v5849
  %v5851 = vrot.slane %v5272, %v5850
  %v5852 = vlaneseq
  %v5853 = vshrl.u32 %v5852, 7
  %v5854 = vsub.s32 3, %v5853
  %v5855 = vrot.slane %v5272, %v5854
  %v5856 = vlaneseq
  %v5857 = vshrl.u32 %v5856, 7
  %v5858 = vsub.s32 4, %v5857
  %v5859 = vrot.slane %v5272, %v5858
  %v5860 = vlaneseq
  %v5861 = vshrl.u32 %v5860, 7
  %v5862 = vsub.s32 5, %v5861
  %v5863 = vrot.slane %v5272, %v5862
  %v5864 = vlaneseq
  %v5865 = vshrl.u32 %v5864, 7
  %v5866 = vsub.s32 6, %v5865
  %v5867 = vrot.slane %v5272, %v5866
  %v5868 = vlaneseq
  %v5869 = vshrl.u32 %v5868, 7
  %v5870 = vsub.s32 7, %v5869
  %v5871 = vrot.slane %v5272, %v5870
  %v5872 = vlaneseq
  %v5873 = vshrl.u32 %v5872, 7
  %v5874 = vsub.s32 0, %v5873
  %v5875 = vrot.slane %v5287, %v5874
  %v5876 = vlaneseq
  %v5877 = vshrl.u32 %v5876, 7
  %v5878 = vsub.s32 1, %v5877
  %v5879 = vrot.slane %v5287, %v5878
  %v5880 = vlaneseq
  %v5881 = vshrl.u32 %v5880, 7
  %v5882 = vsub.s32 2, %v5881
  %v5883 = vrot.slane %v5287, %v5882
  %v5884 = vlaneseq
  %v5885 = vshrl.u32 %v5884, 7
  %v5886 = vsub.s32 3, %v5885
  %v5887 = vrot.slane %v5287, %v5886
  %v5888 = vlaneseq
  %v5889 = vshrl.u32 %v5888, 7
  %v5890 = vsub.s32 4, %v5889
  %v5891 = vrot.slane %v5287, %v5890
  %v5892 = vlaneseq
  %v5893 = vshrl.u32 %v5892, 7
  %v5894 = vsub.s32 5, %v5893
  %v5895 = vrot.slane %v5287, %v5894
  %v5896 = vlaneseq
  %v5897 = vshrl.u32 %v5896, 7
  %v5898 = vsub.s32 6, %v5897
  %v5899 = vrot.slane %v5287, %v5898
  %v5900 = vlaneseq
  %v5901 = vshrl.u32 %v5900, 7
  %v5902 = vsub.s32 7, %v5901
  %v5903 = vrot.slane %v5287, %v5902
  %v5904 = vlaneseq
  %v5905 = vshrl.u32 %v5904, 7
  %v5906 = vsub.s32 0, %v5905
  %v5907 = vrot.slane %v5302, %v5906
  %v5908 = vlaneseq
  %v5909 = vshrl.u32 %v5908, 7
  %v5910 = vsub.s32 1, %v5909
  %v5911 = vrot.slane %v5302, %v5910
  %v5912 = vlaneseq
  %v5913 = vshrl.u32 %v5912, 7
  %v5914 = vsub.s32 2, %v5913
  %v5915 = vrot.slane %v5302, %v5914
  %v5916 = vlaneseq
  %v5917 = vshrl.u32 %v5916, 7
  %v5918 = vsub.s32 3, %v5917
  %v5919 = vrot.slane %v5302, %v5918
  %v5920 = vlaneseq
  %v5921 = vshrl.u32 %v5920, 7
  %v5922 = vsub.s32 4, %v5921
  %v5923 = vrot.slane %v5302, %v5922
  %v5924 = vlaneseq
  %v5925 = vshrl.u32 %v5924, 7
  %v5926 = vsub.s32 5, %v5925
  %v5927 = vrot.slane %v5302, %v5926
  %v5928 = vlaneseq
  %v5929 = vshrl.u32 %v5928, 7
  %v5930 = vsub.s32 6, %v5929
  %v5931 = vrot.slane %v5302, %v5930
  %v5932 = vlaneseq
  %v5933 = vshrl.u32 %v5932, 7
  %v5934 = vsub.s32 7, %v5933
  %v5935 = vrot.slane %v5302, %v5934
  %v5936 = vlaneseq
  %v5937 = vshrl.u32 %v5936, 7
  %v5938 = vsub.s32 0, %v5937
  %v5939 = vrot.slane %v5317, %v5938
  %v5940 = vlaneseq
  %v5941 = vshrl.u32 %v5940, 7
  %v5942 = vsub.s32 1, %v5941
  %v5943 = vrot.slane %v5317, %v5942
  %v5944 = vlaneseq
  %v5945 = vshrl.u32 %v5944, 7
  %v5946 = vsub.s32 2, %v5945
  %v5947 = vrot.slane %v5317, %v5946
  %v5948 = vlaneseq
  %v5949 = vshrl.u32 %v5948, 7
  %v5950 = vsub.s32 3, %v5949
  %v5951 = vrot.slane %v5317, %v5950
  %v5952 = vlaneseq
  %v5953 = vshrl.u32 %v5952, 7
  %v5954 = vsub.s32 4, %v5953
  %v5955 = vrot.slane %v5317, %v5954
  %v5956 = vlaneseq
  %v5957 = vshrl.u32 %v5956, 7
  %v5958 = vsub.s32 5, %v5957
  %v5959 = vrot.slane %v5317, %v5958
  %v5960 = vlaneseq
  %v5961 = vshrl.u32 %v5960, 7
  %v5962 = vsub.s32 6, %v5961
  %v5963 = vrot.slane %v5317, %v5962
  %v5964 = vlaneseq
  %v5965 = vshrl.u32 %v5964, 7
  %v5966 = vsub.s32 7, %v5965
  %v5967 = vrot.slane %v5317, %v5966
  %v5968 = vlaneseq
  %v5969 = vshrl.u32 %v5968, 7
  %v5970 = vsub.s32 0, %v5969
  %v5971 = vrot.slane %v5332, %v5970
  %v5972 = vlaneseq
  %v5973 = vshrl.u32 %v5972, 7
  %v5974 = vsub.s32 1, %v5973
  %v5975 = vrot.slane %v5332, %v5974
  %v5976 = vlaneseq
  %v5977 = vshrl.u32 %v5976, 7
  %v5978 = vsub.s32 2, %v5977
  %v5979 = vrot.slane %v5332, %v5978
  %v5980 = vlaneseq
  %v5981 = vshrl.u32 %v5980, 7
  %v5982 = vsub.s32 3, %v5981
  %v5983 = vrot.slane %v5332, %v5982
  %v5984 = vlaneseq
  %v5985 = vshrl.u32 %v5984, 7
  %v5986 = vsub.s32 4, %v5985
  %v5987 = vrot.slane %v5332, %v5986
  %v5988 = vlaneseq
  %v5989 = vshrl.u32 %v5988, 7
  %v5990 = vsub.s32 5, %v5989
  %v5991 = vrot.slane %v5332, %v5990
  %v5992 = vlaneseq
  %v5993 = vshrl.u32 %v5992, 7
  %v5994 = vsub.s32 6, %v5993
  %v5995 = vrot.slane %v5332, %v5994
  %v5996 = vlaneseq
  %v5997 = vshrl.u32 %v5996, 7
  %v5998 = vsub.s32 7, %v5997
  %v5999 = vrot.slane %v5332, %v5998
  %v6000 = vlaneseq
  %v6001 = vshrl.u32 %v6000, 7
  %v6002 = vsub.s32 0, %v6001
  %v6003 = vrot.slane %v5347, %v6002
  %v6004 = vlaneseq
  %v6005 = vshrl.u32 %v6004, 7
  %v6006 = vsub.s32 1, %v6005
  %v6007 = vrot.slane %v5347, %v6006
  %v6008 = vlaneseq
  %v6009 = vshrl.u32 %v6008, 7
  %v6010 = vsub.s32 2, %v6009
  %v6011 = vrot.slane %v5347, %v6010
  %v6012 = vlaneseq
  %v6013 = vshrl.u32 %v6012, 7
  %v6014 = vsub.s32 3, %v6013
  %v6015 = vrot.slane %v5347, %v6014
  %v6016 = vlaneseq
  %v6017 = vshrl.u32 %v6016, 7
  %v6018 = vsub.s32 4, %v6017
  %v6019 = vrot.slane %v5347, %v6018
  %v6020 = vlaneseq
  %v6021 = vshrl.u32 %v6020, 7
  %v6022 = vsub.s32 5, %v6021
  %v6023 = vrot.slane %v5347, %v6022
  %v6024 = vlaneseq
  %v6025 = vshrl.u32 %v6024, 7
  %v6026 = vsub.s32 6, %v6025
  %v6027 = vrot.slane %v5347, %v6026
  %v6028 = vlaneseq
  %v6029 = vshrl.u32 %v6028, 7
  %v6030 = vsub.s32 7, %v6029
  %v6031 = vrot.slane %v5347, %v6030
  %v6032 = vlaneseq
  %v6033 = vshrl.u32 %v6032, 7
  %v6034 = vsub.s32 0, %v6033
  %v6035 = vrot.slane %v5362, %v6034
  %v6036 = vlaneseq
  %v6037 = vshrl.u32 %v6036, 7
  %v6038 = vsub.s32 1, %v6037
  %v6039 = vrot.slane %v5362, %v6038
  %v6040 = vlaneseq
  %v6041 = vshrl.u32 %v6040, 7
  %v6042 = vsub.s32 2, %v6041
  %v6043 = vrot.slane %v5362, %v6042
  %v6044 = vlaneseq
  %v6045 = vshrl.u32 %v6044, 7
  %v6046 = vsub.s32 3, %v6045
  %v6047 = vrot.slane %v5362, %v6046
  %v6048 = vlaneseq
  %v6049 = vshrl.u32 %v6048, 7
  %v6050 = vsub.s32 4, %v6049
  %v6051 = vrot.slane %v5362, %v6050
  %v6052 = vlaneseq
  %v6053 = vshrl.u32 %v6052, 7
  %v6054 = vsub.s32 5, %v6053
  %v6055 = vrot.slane %v5362, %v6054
  %v6056 = vlaneseq
  %v6057 = vshrl.u32 %v6056, 7
  %v6058 = vsub.s32 6, %v6057
  %v6059 = vrot.slane %v5362, %v6058
  %v6060 = vlaneseq
  %v6061 = vshrl.u32 %v6060, 7
  %v6062 = vsub.s32 7, %v6061
  %v6063 = vrot.slane %v5362, %v6062
  %v6064 = vlaneseq
  %v6065 = vshrl.u32 %v6064, 7
  %v6066 = vsub.s32 0, %v6065
  %v6067 = vrot.slane %v5377, %v6066
  %v6068 = vlaneseq
  %v6069 = vshrl.u32 %v6068, 7
  %v6070 = vsub.s32 1, %v6069
  %v6071 = vrot.slane %v5377, %v6070
  %v6072 = vlaneseq
  %v6073 = vshrl.u32 %v6072, 7
  %v6074 = vsub.s32 2, %v6073
  %v6075 = vrot.slane %v5377, %v6074
  %v6076 = vlaneseq
  %v6077 = vshrl.u32 %v6076, 7
  %v6078 = vsub.s32 3, %v6077
  %v6079 = vrot.slane %v5377, %v6078
  %v6080 = vlaneseq
  %v6081 = vshrl.u32 %v6080, 7
  %v6082 = vsub.s32 4, %v6081
  %v6083 = vrot.slane %v5377, %v6082
  %v6084 = vlaneseq
  %v6085 = vshrl.u32 %v6084, 7
  %v6086 = vsub.s32 5, %v6085
  %v6087 = vrot.slane %v5377, %v6086
  %v6088 = vlaneseq
  %v6089 = vshrl.u32 %v6088, 7
  %v6090 = vsub.s32 6, %v6089
  %v6091 = vrot.slane %v5377, %v6090
  %v6092 = vlaneseq
  %v6093 = vshrl.u32 %v6092, 7
  %v6094 = vsub.s32 7, %v6093
  %v6095 = vrot.slane %v5377, %v6094
  %v6096 = vlaneseq
  %v6097 = vshrl.u32 %v6096, 7
  %v6098 = vsub.s32 0, %v6097
  %v6099 = vrot.slane %v5392, %v6098
  %v6100 = vlaneseq
  %v6101 = vshrl.u32 %v6100, 7
  %v6102 = vsub.s32 1, %v6101
  %v6103 = vrot.slane %v5392, %v6102
  %v6104 = vlaneseq
  %v6105 = vshrl.u32 %v6104, 7
  %v6106 = vsub.s32 2, %v6105
  %v6107 = vrot.slane %v5392, %v6106
  %v6108 = vlaneseq
  %v6109 = vshrl.u32 %v6108, 7
  %v6110 = vsub.s32 3, %v6109
  %v6111 = vrot.slane %v5392, %v6110
  %v6112 = vlaneseq
  %v6113 = vshrl.u32 %v6112, 7
  %v6114 = vsub.s32 4, %v6113
  %v6115 = vrot.slane %v5392, %v6114
  %v6116 = vlaneseq
  %v6117 = vshrl.u32 %v6116, 7
  %v6118 = vsub.s32 5, %v6117
  %v6119 = vrot.slane %v5392, %v6118
  %v6120 = vlaneseq
  %v6121 = vshrl.u32 %v6120, 7
  %v6122 = vsub.s32 6, %v6121
  %v6123 = vrot.slane %v5392, %v6122
  %v6124 = vlaneseq
  %v6125 = vshrl.u32 %v6124, 7
  %v6126 = vsub.s32 7, %v6125
  %v6127 = vrot.slane %v5392, %v6126
  %v6128 = vlaneseq
  %v6129 = vshrl.u32 %v6128, 7
  %v6130 = vsub.s32 0, %v6129
  %v6131 = vrot.slane %v5407, %v6130
  %v6132 = vlaneseq
  %v6133 = vshrl.u32 %v6132, 7
  %v6134 = vsub.s32 1, %v6133
  %v6135 = vrot.slane %v5407, %v6134
  %v6136 = vlaneseq
  %v6137 = vshrl.u32 %v6136, 7
  %v6138 = vsub.s32 2, %v6137
  %v6139 = vrot.slane %v5407, %v6138
  %v6140 = vlaneseq
  %v6141 = vshrl.u32 %v6140, 7
  %v6142 = vsub.s32 3, %v6141
  %v6143 = vrot.slane %v5407, %v6142
  %v6144 = vlaneseq
  %v6145 = vshrl.u32 %v6144, 7
  %v6146 = vsub.s32 4, %v6145
  %v6147 = vrot.slane %v5407, %v6146
  %v6148 = vlaneseq
  %v6149 = vshrl.u32 %v6148, 7
  %v6150 = vsub.s32 5, %v6149
  %v6151 = vrot.slane %v5407, %v6150
  %v6152 = vlaneseq
  %v6153 = vshrl.u32 %v6152, 7
  %v6154 = vsub.s32 6, %v6153
  %v6155 = vrot.slane %v5407, %v6154
  %v6156 = vlaneseq
  %v6157 = vshrl.u32 %v6156, 7
  %v6158 = vsub.s32 7, %v6157
  %v6159 = vrot.slane %v5407, %v6158
  %v6160 = vlaneseq
  %v6161 = vshrl.u32 %v6160, 7
  %v6162 = vsub.s32 0, %v6161
  %v6163 = vrot.slane %v5422, %v6162
  %v6164 = vlaneseq
  %v6165 = vshrl.u32 %v6164, 7
  %v6166 = vsub.s32 1, %v6165
  %v6167 = vrot.slane %v5422, %v6166
  %v6168 = vlaneseq
  %v6169 = vshrl.u32 %v6168, 7
  %v6170 = vsub.s32 2, %v6169
  %v6171 = vrot.slane %v5422, %v6170
  %v6172 = vlaneseq
  %v6173 = vshrl.u32 %v6172, 7
  %v6174 = vsub.s32 3, %v6173
  %v6175 = vrot.slane %v5422, %v6174
  %v6176 = vlaneseq
  %v6177 = vshrl.u32 %v6176, 7
  %v6178 = vsub.s32 4, %v6177
  %v6179 = vrot.slane %v5422, %v6178
  %v6180 = vlaneseq
  %v6181 = vshrl.u32 %v6180, 7
  %v6182 = vsub.s32 5, %v6181
  %v6183 = vrot.slane %v5422, %v6182
  %v6184 = vlaneseq
  %v6185 = vshrl.u32 %v6184, 7
  %v6186 = vsub.s32 6, %v6185
  %v6187 = vrot.slane %v5422, %v6186
  %v6188 = vlaneseq
  %v6189 = vshrl.u32 %v6188, 7
  %v6190 = vsub.s32 7, %v6189
  %v6191 = vrot.slane %v5422, %v6190
  %v6192 = vlaneseq
  %v6193 = vshrl.u32 %v6192, 7
  %v6194 = vsub.s32 0, %v6193
  %v6195 = vrot.slane %v5437, %v6194
  %v6196 = vlaneseq
  %v6197 = vshrl.u32 %v6196, 7
  %v6198 = vsub.s32 1, %v6197
  %v6199 = vrot.slane %v5437, %v6198
  %v6200 = vlaneseq
  %v6201 = vshrl.u32 %v6200, 7
  %v6202 = vsub.s32 2, %v6201
  %v6203 = vrot.slane %v5437, %v6202
  %v6204 = vlaneseq
  %v6205 = vshrl.u32 %v6204, 7
  %v6206 = vsub.s32 3, %v6205
  %v6207 = vrot.slane %v5437, %v6206
  %v6208 = vlaneseq
  %v6209 = vshrl.u32 %v6208, 7
  %v6210 = vsub.s32 4, %v6209
  %v6211 = vrot.slane %v5437, %v6210
  %v6212 = vlaneseq
  %v6213 = vshrl.u32 %v6212, 7
  %v6214 = vsub.s32 5, %v6213
  %v6215 = vrot.slane %v5437, %v6214
  %v6216 = vlaneseq
  %v6217 = vshrl.u32 %v6216, 7
  %v6218 = vsub.s32 6, %v6217
  %v6219 = vrot.slane %v5437, %v6218
  %v6220 = vlaneseq
  %v6221 = vshrl.u32 %v6220, 7
  %v6222 = vsub.s32 7, %v6221
  %v6223 = vrot.slane %v5437, %v6222
  %v6224 = vlaneseq
  %v6225 = vshrl.u32 %v6224, 7
  %v6226 = vsub.s32 0, %v6225
  %v6227 = vrot.slane %v5452, %v6226
  %v6228 = vlaneseq
  %v6229 = vshrl.u32 %v6228, 7
  %v6230 = vsub.s32 1, %v6229
  %v6231 = vrot.slane %v5452, %v6230
  %v6232 = vlaneseq
  %v6233 = vshrl.u32 %v6232, 7
  %v6234 = vsub.s32 2, %v6233
  %v6235 = vrot.slane %v5452, %v6234
  %v6236 = vlaneseq
  %v6237 = vshrl.u32 %v6236, 7
  %v6238 = vsub.s32 3, %v6237
  %v6239 = vrot.slane %v5452, %v6238
  %v6240 = vlaneseq
  %v6241 = vshrl.u32 %v6240, 7
  %v6242 = vsub.s32 4, %v6241
  %v6243 = vrot.slane %v5452, %v6242
  %v6244 = vlaneseq
  %v6245 = vshrl.u32 %v6244, 7
  %v6246 = vsub.s32 5, %v6245
  %v6247 = vrot.slane %v5452, %v6246
  %v6248 = vlaneseq
  %v6249 = vshrl.u32 %v6248, 7
  %v6250 = vsub.s32 6, %v6249
  %v6251 = vrot.slane %v5452, %v6250
  %v6252 = vlaneseq
  %v6253 = vshrl.u32 %v6252, 7
  %v6254 = vsub.s32 7, %v6253
  %v6255 = vrot.slane %v5452, %v6254
  %v6256 = vlaneseq
  %v6257 = vshrl.u32 %v6256, 7
  %v6258 = vsub.s32 0, %v6257
  %v6259 = vrot.slane %v5467, %v6258
  %v6260 = vlaneseq
  %v6261 = vshrl.u32 %v6260, 7
  %v6262 = vsub.s32 1, %v6261
  %v6263 = vrot.slane %v5467, %v6262
  %v6264 = vlaneseq
  %v6265 = vshrl.u32 %v6264, 7
  %v6266 = vsub.s32 2, %v6265
  %v6267 = vrot.slane %v5467, %v6266
  %v6268 = vlaneseq
  %v6269 = vshrl.u32 %v6268, 7
  %v6270 = vsub.s32 3, %v6269
  %v6271 = vrot.slane %v5467, %v6270
  %v6272 = vlaneseq
  %v6273 = vshrl.u32 %v6272, 7
  %v6274 = vsub.s32 4, %v6273
  %v6275 = vrot.slane %v5467, %v6274
  %v6276 = vlaneseq
  %v6277 = vshrl.u32 %v6276, 7
  %v6278 = vsub.s32 5, %v6277
  %v6279 = vrot.slane %v5467, %v6278
  %v6280 = vlaneseq
  %v6281 = vshrl.u32 %v6280, 7
  %v6282 = vsub.s32 6, %v6281
  %v6283 = vrot.slane %v5467, %v6282
  %v6284 = vlaneseq
  %v6285 = vshrl.u32 %v6284, 7
  %v6286 = vsub.s32 7, %v6285
  %v6287 = vrot.slane %v5467, %v6286
  %v6288 = vlaneseq
  %v6289 = vshrl.u32 %v6288, 7
  %v6290 = vsub.s32 0, %v6289
  %v6291 = vrot.slane %v5482, %v6290
  %v6292 = vlaneseq
  %v6293 = vshrl.u32 %v6292, 7
  %v6294 = vsub.s32 1, %v6293
  %v6295 = vrot.slane %v5482, %v6294
  %v6296 = vlaneseq
  %v6297 = vshrl.u32 %v6296, 7
  %v6298 = vsub.s32 2, %v6297
  %v6299 = vrot.slane %v5482, %v6298
  %v6300 = vlaneseq
  %v6301 = vshrl.u32 %v6300, 7
  %v6302 = vsub.s32 3, %v6301
  %v6303 = vrot.slane %v5482, %v6302
  %v6304 = vlaneseq
  %v6305 = vshrl.u32 %v6304, 7
  %v6306 = vsub.s32 4, %v6305
  %v6307 = vrot.slane %v5482, %v6306
  %v6308 = vlaneseq
  %v6309 = vshrl.u32 %v6308, 7
  %v6310 = vsub.s32 5, %v6309
  %v6311 = vrot.slane %v5482, %v6310
  %v6312 = vlaneseq
  %v6313 = vshrl.u32 %v6312, 7
  %v6314 = vsub.s32 6, %v6313
  %v6315 = vrot.slane %v5482, %v6314
  %v6316 = vlaneseq
  %v6317 = vshrl.u32 %v6316, 7
  %v6318 = vsub.s32 7, %v6317
  %v6319 = vrot.slane %v5482, %v6318
  %v6320 = vlaneseq
  %v6321 = vshrl.u32 %v6320, 7
  %v6322 = vsub.s32 0, %v6321
  %v6323 = vrot.slane %v5497, %v6322
  %v6324 = vlaneseq
  %v6325 = vshrl.u32 %v6324, 7
  %v6326 = vsub.s32 1, %v6325
  %v6327 = vrot.slane %v5497, %v6326
  %v6328 = vlaneseq
  %v6329 = vshrl.u32 %v6328, 7
  %v6330 = vsub.s32 2, %v6329
  %v6331 = vrot.slane %v5497, %v6330
  %v6332 = vlaneseq
  %v6333 = vshrl.u32 %v6332, 7
  %v6334 = vsub.s32 3, %v6333
  %v6335 = vrot.slane %v5497, %v6334
  %v6336 = vlaneseq
  %v6337 = vshrl.u32 %v6336, 7
  %v6338 = vsub.s32 4, %v6337
  %v6339 = vrot.slane %v5497, %v6338
  %v6340 = vlaneseq
  %v6341 = vshrl.u32 %v6340, 7
  %v6342 = vsub.s32 5, %v6341
  %v6343 = vrot.slane %v5497, %v6342
  %v6344 = vlaneseq
  %v6345 = vshrl.u32 %v6344, 7
  %v6346 = vsub.s32 6, %v6345
  %v6347 = vrot.slane %v5497, %v6346
  %v6348 = vlaneseq
  %v6349 = vshrl.u32 %v6348, 7
  %v6350 = vsub.s32 7, %v6349
  %v6351 = vrot.slane %v5497, %v6350
  %v6352 = vlaneseq
  %v6353 = vshrl.u32 %v6352, 7
  %v6354 = vsub.s32 0, %v6353
  %v6355 = vrot.slane %v5512, %v6354
  %v6356 = vlaneseq
  %v6357 = vshrl.u32 %v6356, 7
  %v6358 = vsub.s32 1, %v6357
  %v6359 = vrot.slane %v5512, %v6358
  %v6360 = vlaneseq
  %v6361 = vshrl.u32 %v6360, 7
  %v6362 = vsub.s32 2, %v6361
  %v6363 = vrot.slane %v5512, %v6362
  %v6364 = vlaneseq
  %v6365 = vshrl.u32 %v6364, 7
  %v6366 = vsub.s32 3, %v6365
  %v6367 = vrot.slane %v5512, %v6366
  %v6368 = vlaneseq
  %v6369 = vshrl.u32 %v6368, 7
  %v6370 = vsub.s32 4, %v6369
  %v6371 = vrot.slane %v5512, %v6370
  %v6372 = vlaneseq
  %v6373 = vshrl.u32 %v6372, 7
  %v6374 = vsub.s32 5, %v6373
  %v6375 = vrot.slane %v5512, %v6374
  %v6376 = vlaneseq
  %v6377 = vshrl.u32 %v6376, 7
  %v6378 = vsub.s32 6, %v6377
  %v6379 = vrot.slane %v5512, %v6378
  %v6380 = vlaneseq
  %v6381 = vshrl.u32 %v6380, 7
  %v6382 = vsub.s32 7, %v6381
  %v6383 = vrot.slane %v5512, %v6382
  %v6384 = vlaneseq
  %v6385 = vshrl.u32 %v6384, 7
  %v6386 = vsub.s32 0, %v6385
  %v6387 = vrot.slane %v5527, %v6386
  %v6388 = vlaneseq
  %v6389 = vshrl.u32 %v6388, 7
  %v6390 = vsub.s32 1, %v6389
  %v6391 = vrot.slane %v5527, %v6390
  %v6392 = vlaneseq
  %v6393 = vshrl.u32 %v6392, 7
  %v6394 = vsub.s32 2, %v6393
  %v6395 = vrot.slane %v5527, %v6394
  %v6396 = vlaneseq
  %v6397 = vshrl.u32 %v6396, 7
  %v6398 = vsub.s32 3, %v6397
  %v6399 = vrot.slane %v5527, %v6398
  %v6400 = vlaneseq
  %v6401 = vshrl.u32 %v6400, 7
  %v6402 = vsub.s32 4, %v6401
  %v6403 = vrot.slane %v5527, %v6402
  %v6404 = vlaneseq
  %v6405 = vshrl.u32 %v6404, 7
  %v6406 = vsub.s32 5, %v6405
  %v6407 = vrot.slane %v5527, %v6406
  %v6408 = vlaneseq
  %v6409 = vshrl.u32 %v6408, 7
  %v6410 = vsub.s32 6, %v6409
  %v6411 = vrot.slane %v5527, %v6410
  %v6412 = vlaneseq
  %v6413 = vshrl.u32 %v6412, 7
  %v6414 = vsub.s32 7, %v6413
  %v6415 = vrot.slane %v5527, %v6414
  %v6416 = vlaneseq
  %v6417 = vshrl.u32 %v6416, 7
  %v6418 = vsub.s32 0, %v6417
  %v6419 = vrot.slane %v5542, %v6418
  %v6420 = vlaneseq
  %v6421 = vshrl.u32 %v6420, 7
  %v6422 = vsub.s32 1, %v6421
  %v6423 = vrot.slane %v5542, %v6422
  %v6424 = vlaneseq
  %v6425 = vshrl.u32 %v6424, 7
  %v6426 = vsub.s32 2, %v6425
  %v6427 = vrot.slane %v5542, %v6426
  %v6428 = vlaneseq
  %v6429 = vshrl.u32 %v6428, 7
  %v6430 = vsub.s32 3, %v6429
  %v6431 = vrot.slane %v5542, %v6430
  %v6432 = vlaneseq
  %v6433 = vshrl.u32 %v6432, 7
  %v6434 = vsub.s32 4, %v6433
  %v6435 = vrot.slane %v5542, %v6434
  %v6436 = vlaneseq
  %v6437 = vshrl.u32 %v6436, 7
  %v6438 = vsub.s32 5, %v6437
  %v6439 = vrot.slane %v5542, %v6438
  %v6440 = vlaneseq
  %v6441 = vshrl.u32 %v6440, 7
  %v6442 = vsub.s32 6, %v6441
  %v6443 = vrot.slane %v5542, %v6442
  %v6444 = vlaneseq
  %v6445 = vshrl.u32 %v6444, 7
  %v6446 = vsub.s32 7, %v6445
  %v6447 = vrot.slane %v5542, %v6446
  %v6448 = vlaneseq
  %v6449 = vshrl.u32 %v6448, 7
  %v6450 = vsub.s32 0, %v6449
  %v6451 = vrot.slane %v5557, %v6450
  %v6452 = vlaneseq
  %v6453 = vshrl.u32 %v6452, 7
  %v6454 = vsub.s32 1, %v6453
  %v6455 = vrot.slane %v5557, %v6454
  %v6456 = vlaneseq
  %v6457 = vshrl.u32 %v6456, 7
  %v6458 = vsub.s32 2, %v6457
  %v6459 = vrot.slane %v5557, %v6458
  %v6460 = vlaneseq
  %v6461 = vshrl.u32 %v6460, 7
  %v6462 = vsub.s32 3, %v6461
  %v6463 = vrot.slane %v5557, %v6462
  %v6464 = vlaneseq
  %v6465 = vshrl.u32 %v6464, 7
  %v6466 = vsub.s32 4, %v6465
  %v6467 = vrot.slane %v5557, %v6466
  %v6468 = vlaneseq
  %v6469 = vshrl.u32 %v6468, 7
  %v6470 = vsub.s32 5, %v6469
  %v6471 = vrot.slane %v5557, %v6470
  %v6472 = vlaneseq
  %v6473 = vshrl.u32 %v6472, 7
  %v6474 = vsub.s32 6, %v6473
  %v6475 = vrot.slane %v5557, %v6474
  %v6476 = vlaneseq
  %v6477 = vshrl.u32 %v6476, 7
  %v6478 = vsub.s32 7, %v6477
  %v6479 = vrot.slane %v5557, %v6478
  %v6480 = vlaneseq
  %v6481 = vshrl.u32 %v6480, 7
  %v6482 = vsub.s32 0, %v6481
  %v6483 = vrot.slane %v5572, %v6482
  %v6484 = vlaneseq
  %v6485 = vshrl.u32 %v6484, 7
  %v6486 = vsub.s32 1, %v6485
  %v6487 = vrot.slane %v5572, %v6486
  %v6488 = vlaneseq
  %v6489 = vshrl.u32 %v6488, 7
  %v6490 = vsub.s32 2, %v6489
  %v6491 = vrot.slane %v5572, %v6490
  %v6492 = vlaneseq
  %v6493 = vshrl.u32 %v6492, 7
  %v6494 = vsub.s32 3, %v6493
  %v6495 = vrot.slane %v5572, %v6494
  %v6496 = vlaneseq
  %v6497 = vshrl.u32 %v6496, 7
  %v6498 = vsub.s32 4, %v6497
  %v6499 = vrot.slane %v5572, %v6498
  %v6500 = vlaneseq
  %v6501 = vshrl.u32 %v6500, 7
  %v6502 = vsub.s32 5, %v6501
  %v6503 = vrot.slane %v5572, %v6502
  %v6504 = vlaneseq
  %v6505 = vshrl.u32 %v6504, 7
  %v6506 = vsub.s32 6, %v6505
  %v6507 = vrot.slane %v5572, %v6506
  %v6508 = vlaneseq
  %v6509 = vshrl.u32 %v6508, 7
  %v6510 = vsub.s32 7, %v6509
  %v6511 = vrot.slane %v5572, %v6510
  %v6512 = vlaneseq
  %v6513 = vshrl.u32 %v6512, 7
  %v6514 = vsub.s32 0, %v6513
  %v6515 = vrot.slane %v5587, %v6514
  %v6516 = vlaneseq
  %v6517 = vshrl.u32 %v6516, 7
  %v6518 = vsub.s32 1, %v6517
  %v6519 = vrot.slane %v5587, %v6518
  %v6520 = vlaneseq
  %v6521 = vshrl.u32 %v6520, 7
  %v6522 = vsub.s32 2, %v6521
  %v6523 = vrot.slane %v5587, %v6522
  %v6524 = vlaneseq
  %v6525 = vshrl.u32 %v6524, 7
  %v6526 = vsub.s32 3, %v6525
  %v6527 = vrot.slane %v5587, %v6526
  %v6528 = vlaneseq
  %v6529 = vshrl.u32 %v6528, 7
  %v6530 = vsub.s32 4, %v6529
  %v6531 = vrot.slane %v5587, %v6530
  %v6532 = vlaneseq
  %v6533 = vshrl.u32 %v6532, 7
  %v6534 = vsub.s32 5, %v6533
  %v6535 = vrot.slane %v5587, %v6534
  %v6536 = vlaneseq
  %v6537 = vshrl.u32 %v6536, 7
  %v6538 = vsub.s32 6, %v6537
  %v6539 = vrot.slane %v5587, %v6538
  %v6540 = vlaneseq
  %v6541 = vshrl.u32 %v6540, 7
  %v6542 = vsub.s32 7, %v6541
  %v6543 = vrot.slane %v5587, %v6542
  %v6544 = vlaneseq
  %v6545 = vshrl.u32 %v6544, 7
  %v6546 = vsub.s32 0, %v6545
  %v6547 = vrot.slane %v5602, %v6546
  %v6548 = vlaneseq
  %v6549 = vshrl.u32 %v6548, 7
  %v6550 = vsub.s32 1, %v6549
  %v6551 = vrot.slane %v5602, %v6550
  %v6552 = vlaneseq
  %v6553 = vshrl.u32 %v6552, 7
  %v6554 = vsub.s32 2, %v6553
  %v6555 = vrot.slane %v5602, %v6554
  %v6556 = vlaneseq
  %v6557 = vshrl.u32 %v6556, 7
  %v6558 = vsub.s32 3, %v6557
  %v6559 = vrot.slane %v5602, %v6558
  %v6560 = vlaneseq
  %v6561 = vshrl.u32 %v6560, 7
  %v6562 = vsub.s32 4, %v6561
  %v6563 = vrot.slane %v5602, %v6562
  %v6564 = vlaneseq
  %v6565 = vshrl.u32 %v6564, 7
  %v6566 = vsub.s32 5, %v6565
  %v6567 = vrot.slane %v5602, %v6566
  %v6568 = vlaneseq
  %v6569 = vshrl.u32 %v6568, 7
  %v6570 = vsub.s32 6, %v6569
  %v6571 = vrot.slane %v5602, %v6570
  %v6572 = vlaneseq
  %v6573 = vshrl.u32 %v6572, 7
  %v6574 = vsub.s32 7, %v6573
  %v6575 = vrot.slane %v5602, %v6574
  %v6576 = vlaneseq
  %v6577 = vshrl.u32 %v6576, 7
  %v6578 = vsub.s32 0, %v6577
  %v6579 = vrot.slane %v5617, %v6578
  %v6580 = vlaneseq
  %v6581 = vshrl.u32 %v6580, 7
  %v6582 = vsub.s32 1, %v6581
  %v6583 = vrot.slane %v5617, %v6582
  %v6584 = vlaneseq
  %v6585 = vshrl.u32 %v6584, 7
  %v6586 = vsub.s32 2, %v6585
  %v6587 = vrot.slane %v5617, %v6586
  %v6588 = vlaneseq
  %v6589 = vshrl.u32 %v6588, 7
  %v6590 = vsub.s32 3, %v6589
  %v6591 = vrot.slane %v5617, %v6590
  %v6592 = vlaneseq
  %v6593 = vshrl.u32 %v6592, 7
  %v6594 = vsub.s32 4, %v6593
  %v6595 = vrot.slane %v5617, %v6594
  %v6596 = vlaneseq
  %v6597 = vshrl.u32 %v6596, 7
  %v6598 = vsub.s32 5, %v6597
  %v6599 = vrot.slane %v5617, %v6598
  %v6600 = vlaneseq
  %v6601 = vshrl.u32 %v6600, 7
  %v6602 = vsub.s32 6, %v6601
  %v6603 = vrot.slane %v5617, %v6602
  %v6604 = vlaneseq
  %v6605 = vshrl.u32 %v6604, 7
  %v6606 = vsub.s32 7, %v6605
  %v6607 = vrot.slane %v5617, %v6606
  %v6608 = vlaneseq
  %v6609 = vshrl.u32 %v6608, 7
  %v6610 = vsub.s32 0, %v6609
  %v6611 = vrot.slane %v5632, %v6610
  %v6612 = vlaneseq
  %v6613 = vshrl.u32 %v6612, 7
  %v6614 = vsub.s32 1, %v6613
  %v6615 = vrot.slane %v5632, %v6614
  %v6616 = vlaneseq
  %v6617 = vshrl.u32 %v6616, 7
  %v6618 = vsub.s32 2, %v6617
  %v6619 = vrot.slane %v5632, %v6618
  %v6620 = vlaneseq
  %v6621 = vshrl.u32 %v6620, 7
  %v6622 = vsub.s32 3, %v6621
  %v6623 = vrot.slane %v5632, %v6622
  %v6624 = vlaneseq
  %v6625 = vshrl.u32 %v6624, 7
  %v6626 = vsub.s32 4, %v6625
  %v6627 = vrot.slane %v5632, %v6626
  %v6628 = vlaneseq
  %v6629 = vshrl.u32 %v6628, 7
  %v6630 = vsub.s32 5, %v6629
  %v6631 = vrot.slane %v5632, %v6630
  %v6632 = vlaneseq
  %v6633 = vshrl.u32 %v6632, 7
  %v6634 = vsub.s32 6, %v6633
  %v6635 = vrot.slane %v5632, %v6634
  %v6636 = vlaneseq
  %v6637 = vshrl.u32 %v6636, 7
  %v6638 = vsub.s32 7, %v6637
  %v6639 = vrot.slane %v5632, %v6638
  %v6640 = vlaneseq
  %v6641 = vshrl.u32 %v6640, 7
  %v6642 = vsub.s32 0, %v6641
  %v6643 = vrot.slane %v5647, %v6642
  %v6644 = vlaneseq
  %v6645 = vshrl.u32 %v6644, 7
  %v6646 = vsub.s32 1, %v6645
  %v6647 = vrot.slane %v5647, %v6646
  %v6648 = vlaneseq
  %v6649 = vshrl.u32 %v6648, 7
  %v6650 = vsub.s32 2, %v6649
  %v6651 = vrot.slane %v5647, %v6650
  %v6652 = vlaneseq
  %v6653 = vshrl.u32 %v6652, 7
  %v6654 = vsub.s32 3, %v6653
  %v6655 = vrot.slane %v5647, %v6654
  %v6656 = vlaneseq
  %v6657 = vshrl.u32 %v6656, 7
  %v6658 = vsub.s32 4, %v6657
  %v6659 = vrot.slane %v5647, %v6658
  %v6660 = vlaneseq
  %v6661 = vshrl.u32 %v6660, 7
  %v6662 = vsub.s32 5, %v6661
  %v6663 = vrot.slane %v5647, %v6662
  %v6664 = vlaneseq
  %v6665 = vshrl.u32 %v6664, 7
  %v6666 = vsub.s32 6, %v6665
  %v6667 = vrot.slane %v5647, %v6666
  %v6668 = vlaneseq
  %v6669 = vshrl.u32 %v6668, 7
  %v6670 = vsub.s32 7, %v6669
  %v6671 = vrot.slane %v5647, %v6670
  %v6672 = vcombine.low %v5651, %v5655
  %v6673 = vcombine.low %v5659, %v5663
  %v6674 = vcombine.low %v5667, %v5671
  %v6675 = vcombine.low %v5675, %v5679
  %v6677 = vunpack.c.l.s4 1966171168
  %v6678 = vunpack.c.0.s8 %v6677
  %v6679 = vlaneseq
  %v6680 = vshrl.u32 %v6679, 7
  %v6681 = vsub.s32 %v6678, %v6680
  %v6682 = vrot.slane %v6672, %v6681
  %v6684 = vunpack.c.l.s4 1966171168
  %v6685 = vunpack.c.0.s8 %v6684
  %v6686 = vlaneseq
  %v6687 = vshrl.u32 %v6686, 7
  %v6688 = vsub.s32 %v6685, %v6687
  %v6689 = vrot.slane %v6673, %v6688
  %v6691 = vunpack.c.l.s4 1966171168
  %v6692 = vunpack.c.0.s8 %v6691
  %v6693 = vlaneseq
  %v6694 = vshrl.u32 %v6693, 7
  %v6695 = vsub.s32 %v6692, %v6694
  %v6696 = vrot.slane %v6674, %v6695
  %v6698 = vunpack.c.l.s4 1966171168
  %v6699 = vunpack.c.0.s8 %v6698
  %v6700 = vlaneseq
  %v6701 = vshrl.u32 %v6700, 7
  %v6702 = vsub.s32 %v6699, %v6701
  %v6703 = vrot.slane %v6675, %v6702
  %v6704 = vcombine.low %v6682, %v6689
  %v6705 = vcombine.low %v6696, %v6703
  %v6707 = vunpack.c.l.s4 1966171168
  %v6708 = vunpack.c.0.s8 %v6707
  %v6709 = vlaneseq
  %v6710 = vshrl.u32 %v6709, 7
  %v6711 = vsub.s32 %v6708, %v6710
  %v6712 = vrot.slane %v6704, %v6711
  %v6714 = vunpack.c.l.s4 1966171168
  %v6715 = vunpack.c.0.s8 %v6714
  %v6716 = vlaneseq
  %v6717 = vshrl.u32 %v6716, 7
  %v6718 = vsub.s32 %v6715, %v6717
  %v6719 = vrot.slane %v6705, %v6718
  %v6720 = vcombine.low %v6712, %v6719
  %v6721 = vcombine.low %v5683, %v5687
  %v6722 = vcombine.low %v5691, %v5695
  %v6723 = vcombine.low %v5699, %v5703
  %v6724 = vcombine.low %v5707, %v5711
  %v6726 = vunpack.c.l.s4 1966171168
  %v6727 = vunpack.c.0.s8 %v6726
  %v6728 = vlaneseq
  %v6729 = vshrl.u32 %v6728, 7
  %v6730 = vsub.s32 %v6727, %v6729
  %v6731 = vrot.slane %v6721, %v6730
  %v6733 = vunpack.c.l.s4 1966171168
  %v6734 = vunpack.c.0.s8 %v6733
  %v6735 = vlaneseq
  %v6736 = vshrl.u32 %v6735, 7
  %v6737 = vsub.s32 %v6734, %v6736
  %v6738 = vrot.slane %v6722, %v6737
  %v6740 = vunpack.c.l.s4 1966171168
  %v6741 = vunpack.c.0.s8 %v6740
  %v6742 = vlaneseq
  %v6743 = vshrl.u32 %v6742, 7
  %v6744 = vsub.s32 %v6741, %v6743
  %v6745 = vrot.slane %v6723, %v6744
  %v6747 = vunpack.c.l.s4 1966171168
  %v6748 = vunpack.c.0.s8 %v6747
  %v6749 = vlaneseq
  %v6750 = vshrl.u32 %v6749, 7
  %v6751 = vsub.s32 %v6748, %v6750
  %v6752 = vrot.slane %v6724, %v6751
  %v6753 = vcombine.low %v6731, %v6738
  %v6754 = vcombine.low %v6745, %v6752
  %v6756 = vunpack.c.l.s4 1966171168
  %v6757 = vunpack.c.0.s8 %v6756
  %v6758 = vlaneseq
  %v6759 = vshrl.u32 %v6758, 7
  %v6760 = vsub.s32 %v6757, %v6759
  %v6761 = vrot.slane %v6753, %v6760
  %v6763 = vunpack.c.l.s4 1966171168
  %v6764 = vunpack.c.0.s8 %v6763
  %v6765 = vlaneseq
  %v6766 = vshrl.u32 %v6765, 7
  %v6767 = vsub.s32 %v6764, %v6766
  %v6768 = vrot.slane %v6754, %v6767
  %v6769 = vcombine.low %v6761, %v6768
  %v6770 = vcombine.low %v5715, %v5719
  %v6771 = vcombine.low %v5723, %v5727
  %v6772 = vcombine.low %v5731, %v5735
  %v6773 = vcombine.low %v5739, %v5743
  %v6775 = vunpack.c.l.s4 1966171168
  %v6776 = vunpack.c.0.s8 %v6775
  %v6777 = vlaneseq
  %v6778 = vshrl.u32 %v6777, 7
  %v6779 = vsub.s32 %v6776, %v6778
  %v6780 = vrot.slane %v6770, %v6779
  %v6782 = vunpack.c.l.s4 1966171168
  %v6783 = vunpack.c.0.s8 %v6782
  %v6784 = vlaneseq
  %v6785 = vshrl.u32 %v6784, 7
  %v6786 = vsub.s32 %v6783, %v6785
  %v6787 = vrot.slane %v6771, %v6786
  %v6789 = vunpack.c.l.s4 1966171168
  %v6790 = vunpack.c.0.s8 %v6789
  %v6791 = vlaneseq
  %v6792 = vshrl.u32 %v6791, 7
  %v6793 = vsub.s32 %v6790, %v6792
  %v6794 = vrot.slane %v6772, %v6793
  %v6796 = vunpack.c.l.s4 1966171168
  %v6797 = vunpack.c.0.s8 %v6796
  %v6798 = vlaneseq
  %v6799 = vshrl.u32 %v6798, 7
  %v6800 = vsub.s32 %v6797, %v6799
  %v6801 = vrot.slane %v6773, %v6800
  %v6802 = vcombine.low %v6780, %v6787
  %v6803 = vcombine.low %v6794, %v6801
  %v6805 = vunpack.c.l.s4 1966171168
  %v6806 = vunpack.c.0.s8 %v6805
  %v6807 = vlaneseq
  %v6808 = vshrl.u32 %v6807, 7
  %v6809 = vsub.s32 %v6806, %v6808
  %v6810 = vrot.slane %v6802, %v6809
  %v6812 = vunpack.c.l.s4 1966171168
  %v6813 = vunpack.c.0.s8 %v6812
  %v6814 = vlaneseq
  %v6815 = vshrl.u32 %v6814, 7
  %v6816 = vsub.s32 %v6813, %v6815
  %v6817 = vrot.slane %v6803, %v6816
  %v6818 = vcombine.low %v6810, %v6817
  %v6819 = vcombine.low %v5747, %v5751
  %v6820 = vcombine.low %v5755, %v5759
  %v6821 = vcombine.low %v5763, %v5767
  %v6822 = vcombine.low %v5771, %v5775
  %v6824 = vunpack.c.l.s4 1966171168
  %v6825 = vunpack.c.0.s8 %v6824
  %v6826 = vlaneseq
  %v6827 = vshrl.u32 %v6826, 7
  %v6828 = vsub.s32 %v6825, %v6827
  %v6829 = vrot.slane %v6819, %v6828
  %v6831 = vunpack.c.l.s4 1966171168
  %v6832 = vunpack.c.0.s8 %v6831
  %v6833 = vlaneseq
  %v6834 = vshrl.u32 %v6833, 7
  %v6835 = vsub.s32 %v6832, %v6834
  %v6836 = vrot.slane %v6820, %v6835
  %v6838 = vunpack.c.l.s4 1966171168
  %v6839 = vunpack.c.0.s8 %v6838
  %v6840 = vlaneseq
  %v6841 = vshrl.u32 %v6840, 7
  %v6842 = vsub.s32 %v6839, %v6841
  %v6843 = vrot.slane %v6821, %v6842
  %v6845 = vunpack.c.l.s4 1966171168
  %v6846 = vunpack.c.0.s8 %v6845
  %v6847 = vlaneseq
  %v6848 = vshrl.u32 %v6847, 7
  %v6849 = vsub.s32 %v6846, %v6848
  %v6850 = vrot.slane %v6822, %v6849
  %v6851 = vcombine.low %v6829, %v6836
  %v6852 = vcombine.low %v6843, %v6850
  %v6854 = vunpack.c.l.s4 1966171168
  %v6855 = vunpack.c.0.s8 %v6854
  %v6856 = vlaneseq
  %v6857 = vshrl.u32 %v6856, 7
  %v6858 = vsub.s32 %v6855, %v6857
  %v6859 = vrot.slane %v6851, %v6858
  %v6861 = vunpack.c.l.s4 1966171168
  %v6862 = vunpack.c.0.s8 %v6861
  %v6863 = vlaneseq
  %v6864 = vshrl.u32 %v6863, 7
  %v6865 = vsub.s32 %v6862, %v6864
  %v6866 = vrot.slane %v6852, %v6865
  %v6867 = vcombine.low %v6859, %v6866
  %v6868 = vcombine.low %v5779, %v5783
  %v6869 = vcombine.low %v5787, %v5791
  %v6870 = vcombine.low %v5795, %v5799
  %v6871 = vcombine.low %v5803, %v5807
  %v6873 = vunpack.c.l.s4 1966171168
  %v6874 = vunpack.c.0.s8 %v6873
  %v6875 = vlaneseq
  %v6876 = vshrl.u32 %v6875, 7
  %v6877 = vsub.s32 %v6874, %v6876
  %v6878 = vrot.slane %v6868, %v6877
  %v6880 = vunpack.c.l.s4 1966171168
  %v6881 = vunpack.c.0.s8 %v6880
  %v6882 = vlaneseq
  %v6883 = vshrl.u32 %v6882, 7
  %v6884 = vsub.s32 %v6881, %v6883
  %v6885 = vrot.slane %v6869, %v6884
  %v6887 = vunpack.c.l.s4 1966171168
  %v6888 = vunpack.c.0.s8 %v6887
  %v6889 = vlaneseq
  %v6890 = vshrl.u32 %v6889, 7
  %v6891 = vsub.s32 %v6888, %v6890
  %v6892 = vrot.slane %v6870, %v6891
  %v6894 = vunpack.c.l.s4 1966171168
  %v6895 = vunpack.c.0.s8 %v6894
  %v6896 = vlaneseq
  %v6897 = vshrl.u32 %v6896, 7
  %v6898 = vsub.s32 %v6895, %v6897
  %v6899 = vrot.slane %v6871, %v6898
  %v6900 = vcombine.low %v6878, %v6885
  %v6901 = vcombine.low %v6892, %v6899
  %v6903 = vunpack.c.l.s4 1966171168
  %v6904 = vunpack.c.0.s8 %v6903
  %v6905 = vlaneseq
  %v6906 = vshrl.u32 %v6905, 7
  %v6907 = vsub.s32 %v6904, %v6906
  %v6908 = vrot.slane %v6900, %v6907
  %v6910 = vunpack.c.l.s4 1966171168
  %v6911 = vunpack.c.0.s8 %v6910
  %v6912 = vlaneseq
  %v6913 = vshrl.u32 %v6912, 7
  %v6914 = vsub.s32 %v6911, %v6913
  %v6915 = vrot.slane %v6901, %v6914
  %v6916 = vcombine.low %v6908, %v6915
  %v6917 = vcombine.low %v5811, %v5815
  %v6918 = vcombine.low %v5819, %v5823
  %v6919 = vcombine.low %v5827, %v5831
  %v6920 = vcombine.low %v5835, %v5839
  %v6922 = vunpack.c.l.s4 1966171168
  %v6923 = vunpack.c.0.s8 %v6922
  %v6924 = vlaneseq
  %v6925 = vshrl.u32 %v6924, 7
  %v6926 = vsub.s32 %v6923, %v6925
  %v6927 = vrot.slane %v6917, %v6926
  %v6929 = vunpack.c.l.s4 1966171168
  %v6930 = vunpack.c.0.s8 %v6929
  %v6931 = vlaneseq
  %v6932 = vshrl.u32 %v6931, 7
  %v6933 = vsub.s32 %v6930, %v6932
  %v6934 = vrot.slane %v6918, %v6933
  %v6936 = vunpack.c.l.s4 1966171168
  %v6937 = vunpack.c.0.s8 %v6936
  %v6938 = vlaneseq
  %v6939 = vshrl.u32 %v6938, 7
  %v6940 = vsub.s32 %v6937, %v6939
  %v6941 = vrot.slane %v6919, %v6940
  %v6943 = vunpack.c.l.s4 1966171168
  %v6944 = vunpack.c.0.s8 %v6943
  %v6945 = vlaneseq
  %v6946 = vshrl.u32 %v6945, 7
  %v6947 = vsub.s32 %v6944, %v6946
  %v6948 = vrot.slane %v6920, %v6947
  %v6949 = vcombine.low %v6927, %v6934
  %v6950 = vcombine.low %v6941, %v6948
  %v6952 = vunpack.c.l.s4 1966171168
  %v6953 = vunpack.c.0.s8 %v6952
  %v6954 = vlaneseq
  %v6955 = vshrl.u32 %v6954, 7
  %v6956 = vsub.s32 %v6953, %v6955
  %v6957 = vrot.slane %v6949, %v6956
  %v6959 = vunpack.c.l.s4 1966171168
  %v6960 = vunpack.c.0.s8 %v6959
  %v6961 = vlaneseq
  %v6962 = vshrl.u32 %v6961, 7
  %v6963 = vsub.s32 %v6960, %v6962
  %v6964 = vrot.slane %v6950, %v6963
  %v6965 = vcombine.low %v6957, %v6964
  %v6966 = vcombine.low %v5843, %v5847
  %v6967 = vcombine.low %v5851, %v5855
  %v6968 = vcombine.low %v5859, %v5863
  %v6969 = vcombine.low %v5867, %v5871
  %v6971 = vunpack.c.l.s4 1966171168
  %v6972 = vunpack.c.0.s8 %v6971
  %v6973 = vlaneseq
  %v6974 = vshrl.u32 %v6973, 7
  %v6975 = vsub.s32 %v6972, %v6974
  %v6976 = vrot.slane %v6966, %v6975
  %v6978 = vunpack.c.l.s4 1966171168
  %v6979 = vunpack.c.0.s8 %v6978
  %v6980 = vlaneseq
  %v6981 = vshrl.u32 %v6980, 7
  %v6982 = vsub.s32 %v6979, %v6981
  %v6983 = vrot.slane %v6967, %v6982
  %v6985 = vunpack.c.l.s4 1966171168
  %v6986 = vunpack.c.0.s8 %v6985
  %v6987 = vlaneseq
  %v6988 = vshrl.u32 %v6987, 7
  %v6989 = vsub.s32 %v6986, %v6988
  %v6990 = vrot.slane %v6968, %v6989
  %v6992 = vunpack.c.l.s4 1966171168
  %v6993 = vunpack.c.0.s8 %v6992
  %v6994 = vlaneseq
  %v6995 = vshrl.u32 %v6994, 7
  %v6996 = vsub.s32 %v6993, %v6995
  %v6997 = vrot.slane %v6969, %v6996
  %v6998 = vcombine.low %v6976, %v6983
  %v6999 = vcombine.low %v6990, %v6997
  %v7001 = vunpack.c.l.s4 1966171168
  %v7002 = vunpack.c.0.s8 %v7001
  %v7003 = vlaneseq
  %v7004 = vshrl.u32 %v7003, 7
  %v7005 = vsub.s32 %v7002, %v7004
  %v7006 = vrot.slane %v6998, %v7005
  %v7008 = vunpack.c.l.s4 1966171168
  %v7009 = vunpack.c.0.s8 %v7008
  %v7010 = vlaneseq
  %v7011 = vshrl.u32 %v7010, 7
  %v7012 = vsub.s32 %v7009, %v7011
  %v7013 = vrot.slane %v6999, %v7012
  %v7014 = vcombine.low %v7006, %v7013
  %v7015 = vcombine.low %v5875, %v5879
  %v7016 = vcombine.low %v5883, %v5887
  %v7017 = vcombine.low %v5891, %v5895
  %v7018 = vcombine.low %v5899, %v5903
  %v7020 = vunpack.c.l.s4 1966171168
  %v7021 = vunpack.c.0.s8 %v7020
  %v7022 = vlaneseq
  %v7023 = vshrl.u32 %v7022, 7
  %v7024 = vsub.s32 %v7021, %v7023
  %v7025 = vrot.slane %v7015, %v7024
  %v7027 = vunpack.c.l.s4 1966171168
  %v7028 = vunpack.c.0.s8 %v7027
  %v7029 = vlaneseq
  %v7030 = vshrl.u32 %v7029, 7
  %v7031 = vsub.s32 %v7028, %v7030
  %v7032 = vrot.slane %v7016, %v7031
  %v7034 = vunpack.c.l.s4 1966171168
  %v7035 = vunpack.c.0.s8 %v7034
  %v7036 = vlaneseq
  %v7037 = vshrl.u32 %v7036, 7
  %v7038 = vsub.s32 %v7035, %v7037
  %v7039 = vrot.slane %v7017, %v7038
  %v7041 = vunpack.c.l.s4 1966171168
  %v7042 = vunpack.c.0.s8 %v7041
  %v7043 = vlaneseq
  %v7044 = vshrl.u32 %v7043, 7
  %v7045 = vsub.s32 %v7042, %v7044
  %v7046 = vrot.slane %v7018, %v7045
  %v7047 = vcombine.low %v7025, %v7032
  %v7048 = vcombine.low %v7039, %v7046
  %v7050 = vunpack.c.l.s4 1966171168
  %v7051 = vunpack.c.0.s8 %v7050
  %v7052 = vlaneseq
  %v7053 = vshrl.u32 %v7052, 7
  %v7054 = vsub.s32 %v7051, %v7053
  %v7055 = vrot.slane %v7047, %v7054
  %v7057 = vunpack.c.l.s4 1966171168
  %v7058 = vunpack.c.0.s8 %v7057
  %v7059 = vlaneseq
  %v7060 = vshrl.u32 %v7059, 7
  %v7061 = vsub.s32 %v7058, %v7060
  %v7062 = vrot.slane %v7048, %v7061
  %v7063 = vcombine.low %v7055, %v7062
  %v7064 = vcombine.low %v5907, %v5911
  %v7065 = vcombine.low %v5915, %v5919
  %v7066 = vcombine.low %v5923, %v5927
  %v7067 = vcombine.low %v5931, %v5935
  %v7069 = vunpack.c.l.s4 1966171168
  %v7070 = vunpack.c.0.s8 %v7069
  %v7071 = vlaneseq
  %v7072 = vshrl.u32 %v7071, 7
  %v7073 = vsub.s32 %v7070, %v7072
  %v7074 = vrot.slane %v7064, %v7073
  %v7076 = vunpack.c.l.s4 1966171168
  %v7077 = vunpack.c.0.s8 %v7076
  %v7078 = vlaneseq
  %v7079 = vshrl.u32 %v7078, 7
  %v7080 = vsub.s32 %v7077, %v7079
  %v7081 = vrot.slane %v7065, %v7080
  %v7083 = vunpack.c.l.s4 1966171168
  %v7084 = vunpack.c.0.s8 %v7083
  %v7085 = vlaneseq
  %v7086 = vshrl.u32 %v7085, 7
  %v7087 = vsub.s32 %v7084, %v7086
  %v7088 = vrot.slane %v7066, %v7087
  %v7090 = vunpack.c.l.s4 1966171168
  %v7091 = vunpack.c.0.s8 %v7090
  %v7092 = vlaneseq
  %v7093 = vshrl.u32 %v7092, 7
  %v7094 = vsub.s32 %v7091, %v7093
  %v7095 = vrot.slane %v7067, %v7094
  %v7096 = vcombine.low %v7074, %v7081
  %v7097 = vcombine.low %v7088, %v7095
  %v7099 = vunpack.c.l.s4 1966171168
  %v7100 = vunpack.c.0.s8 %v7099
  %v7101 = vlaneseq
  %v7102 = vshrl.u32 %v7101, 7
  %v7103 = vsub.s32 %v7100, %v7102
  %v7104 = vrot.slane %v7096, %v7103
  %v7106 = vunpack.c.l.s4 1966171168
  %v7107 = vunpack.c.0.s8 %v7106
  %v7108 = vlaneseq
  %v7109 = vshrl.u32 %v7108, 7
  %v7110 = vsub.s32 %v7107, %v7109
  %v7111 = vrot.slane %v7097, %v7110
  %v7112 = vcombine.low %v7104, %v7111
  %v7113 = vcombine.low %v5939, %v5943
  %v7114 = vcombine.low %v5947, %v5951
  %v7115 = vcombine.low %v5955, %v5959
  %v7116 = vcombine.low %v5963, %v5967
  %v7118 = vunpack.c.l.s4 1966171168
  %v7119 = vunpack.c.0.s8 %v7118
  %v7120 = vlaneseq
  %v7121 = vshrl.u32 %v7120, 7
  %v7122 = vsub.s32 %v7119, %v7121
  %v7123 = vrot.slane %v7113, %v7122
  %v7125 = vunpack.c.l.s4 1966171168
  %v7126 = vunpack.c.0.s8 %v7125
  %v7127 = vlaneseq
  %v7128 = vshrl.u32 %v7127, 7
  %v7129 = vsub.s32 %v7126, %v7128
  %v7130 = vrot.slane %v7114, %v7129
  %v7132 = vunpack.c.l.s4 1966171168
  %v7133 = vunpack.c.0.s8 %v7132
  %v7134 = vlaneseq
  %v7135 = vshrl.u32 %v7134, 7
  %v7136 = vsub.s32 %v7133, %v7135
  %v7137 = vrot.slane %v7115, %v7136
  %v7139 = vunpack.c.l.s4 1966171168
  %v7140 = vunpack.c.0.s8 %v7139
  %v7141 = vlaneseq
  %v7142 = vshrl.u32 %v7141, 7
  %v7143 = vsub.s32 %v7140, %v7142
  %v7144 = vrot.slane %v7116, %v7143
  %v7145 = vcombine.low %v7123, %v7130
  %v7146 = vcombine.low %v7137, %v7144
  %v7148 = vunpack.c.l.s4 1966171168
  %v7149 = vunpack.c.0.s8 %v7148
  %v7150 = vlaneseq
  %v7151 = vshrl.u32 %v7150, 7
  %v7152 = vsub.s32 %v7149, %v7151
  %v7153 = vrot.slane %v7145, %v7152
  %v7155 = vunpack.c.l.s4 1966171168
  %v7156 = vunpack.c.0.s8 %v7155
  %v7157 = vlaneseq
  %v7158 = vshrl.u32 %v7157, 7
  %v7159 = vsub.s32 %v7156, %v7158
  %v7160 = vrot.slane %v7146, %v7159
  %v7161 = vcombine.low %v7153, %v7160
  %v7162 = vcombine.low %v5971, %v5975
  %v7163 = vcombine.low %v5979, %v5983
  %v7164 = vcombine.low %v5987, %v5991
  %v7165 = vcombine.low %v5995, %v5999
  %v7167 = vunpack.c.l.s4 1966171168
  %v7168 = vunpack.c.0.s8 %v7167
  %v7169 = vlaneseq
  %v7170 = vshrl.u32 %v7169, 7
  %v7171 = vsub.s32 %v7168, %v7170
  %v7172 = vrot.slane %v7162, %v7171
  %v7174 = vunpack.c.l.s4 1966171168
  %v7175 = vunpack.c.0.s8 %v7174
  %v7176 = vlaneseq
  %v7177 = vshrl.u32 %v7176, 7
  %v7178 = vsub.s32 %v7175, %v7177
  %v7179 = vrot.slane %v7163, %v7178
  %v7181 = vunpack.c.l.s4 1966171168
  %v7182 = vunpack.c.0.s8 %v7181
  %v7183 = vlaneseq
  %v7184 = vshrl.u32 %v7183, 7
  %v7185 = vsub.s32 %v7182, %v7184
  %v7186 = vrot.slane %v7164, %v7185
  %v7188 = vunpack.c.l.s4 1966171168
  %v7189 = vunpack.c.0.s8 %v7188
  %v7190 = vlaneseq
  %v7191 = vshrl.u32 %v7190, 7
  %v7192 = vsub.s32 %v7189, %v7191
  %v7193 = vrot.slane %v7165, %v7192
  %v7194 = vcombine.low %v7172, %v7179
  %v7195 = vcombine.low %v7186, %v7193
  %v7197 = vunpack.c.l.s4 1966171168
  %v7198 = vunpack.c.0.s8 %v7197
  %v7199 = vlaneseq
  %v7200 = vshrl.u32 %v7199, 7
  %v7201 = vsub.s32 %v7198, %v7200
  %v7202 = vrot.slane %v7194, %v7201
  %v7204 = vunpack.c.l.s4 1966171168
  %v7205 = vunpack.c.0.s8 %v7204
  %v7206 = vlaneseq
  %v7207 = vshrl.u32 %v7206, 7
  %v7208 = vsub.s32 %v7205, %v7207
  %v7209 = vrot.slane %v7195, %v7208
  %v7210 = vcombine.low %v7202, %v7209
  %v7211 = vcombine.low %v6003, %v6007
  %v7212 = vcombine.low %v6011, %v6015
  %v7213 = vcombine.low %v6019, %v6023
  %v7214 = vcombine.low %v6027, %v6031
  %v7216 = vunpack.c.l.s4 1966171168
  %v7217 = vunpack.c.0.s8 %v7216
  %v7218 = vlaneseq
  %v7219 = vshrl.u32 %v7218, 7
  %v7220 = vsub.s32 %v7217, %v7219
  %v7221 = vrot.slane %v7211, %v7220
  %v7223 = vunpack.c.l.s4 1966171168
  %v7224 = vunpack.c.0.s8 %v7223
  %v7225 = vlaneseq
  %v7226 = vshrl.u32 %v7225, 7
  %v7227 = vsub.s32 %v7224, %v7226
  %v7228 = vrot.slane %v7212, %v7227
  %v7230 = vunpack.c.l.s4 1966171168
  %v7231 = vunpack.c.0.s8 %v7230
  %v7232 = vlaneseq
  %v7233 = vshrl.u32 %v7232, 7
  %v7234 = vsub.s32 %v7231, %v7233
  %v7235 = vrot.slane %v7213, %v7234
  %v7237 = vunpack.c.l.s4 1966171168
  %v7238 = vunpack.c.0.s8 %v7237
  %v7239 = vlaneseq
  %v7240 = vshrl.u32 %v7239, 7
  %v7241 = vsub.s32 %v7238, %v7240
  %v7242 = vrot.slane %v7214, %v7241
  %v7243 = vcombine.low %v7221, %v7228
  %v7244 = vcombine.low %v7235, %v7242
  %v7246 = vunpack.c.l.s4 1966171168
  %v7247 = vunpack.c.0.s8 %v7246
  %v7248 = vlaneseq
  %v7249 = vshrl.u32 %v7248, 7
  %v7250 = vsub.s32 %v7247, %v7249
  %v7251 = vrot.slane %v7243, %v7250
  %v7253 = vunpack.c.l.s4 1966171168
  %v7254 = vunpack.c.0.s8 %v7253
  %v7255 = vlaneseq
  %v7256 = vshrl.u32 %v7255, 7
  %v7257 = vsub.s32 %v7254, %v7256
  %v7258 = vrot.slane %v7244, %v7257
  %v7259 = vcombine.low %v7251, %v7258
  %v7260 = vcombine.low %v6035, %v6039
  %v7261 = vcombine.low %v6043, %v6047
  %v7262 = vcombine.low %v6051, %v6055
  %v7263 = vcombine.low %v6059, %v6063
  %v7265 = vunpack.c.l.s4 1966171168
  %v7266 = vunpack.c.0.s8 %v7265
  %v7267 = vlaneseq
  %v7268 = vshrl.u32 %v7267, 7
  %v7269 = vsub.s32 %v7266, %v7268
  %v7270 = vrot.slane %v7260, %v7269
  %v7272 = vunpack.c.l.s4 1966171168
  %v7273 = vunpack.c.0.s8 %v7272
  %v7274 = vlaneseq
  %v7275 = vshrl.u32 %v7274, 7
  %v7276 = vsub.s32 %v7273, %v7275
  %v7277 = vrot.slane %v7261, %v7276
  %v7279 = vunpack.c.l.s4 1966171168
  %v7280 = vunpack.c.0.s8 %v7279
  %v7281 = vlaneseq
  %v7282 = vshrl.u32 %v7281, 7
  %v7283 = vsub.s32 %v7280, %v7282
  %v7284 = vrot.slane %v7262, %v7283
  %v7286 = vunpack.c.l.s4 1966171168
  %v7287 = vunpack.c.0.s8 %v7286
  %v7288 = vlaneseq
  %v7289 = vshrl.u32 %v7288, 7
  %v7290 = vsub.s32 %v7287, %v7289
  %v7291 = vrot.slane %v7263, %v7290
  %v7292 = vcombine.low %v7270, %v7277
  %v7293 = vcombine.low %v7284, %v7291
  %v7295 = vunpack.c.l.s4 1966171168
  %v7296 = vunpack.c.0.s8 %v7295
  %v7297 = vlaneseq
  %v7298 = vshrl.u32 %v7297, 7
  %v7299 = vsub.s32 %v7296, %v7298
  %v7300 = vrot.slane %v7292, %v7299
  %v7302 = vunpack.c.l.s4 1966171168
  %v7303 = vunpack.c.0.s8 %v7302
  %v7304 = vlaneseq
  %v7305 = vshrl.u32 %v7304, 7
  %v7306 = vsub.s32 %v7303, %v7305
  %v7307 = vrot.slane %v7293, %v7306
  %v7308 = vcombine.low %v7300, %v7307
  %v7309 = vcombine.low %v6067, %v6071
  %v7310 = vcombine.low %v6075, %v6079
  %v7311 = vcombine.low %v6083, %v6087
  %v7312 = vcombine.low %v6091, %v6095
  %v7314 = vunpack.c.l.s4 1966171168
  %v7315 = vunpack.c.0.s8 %v7314
  %v7316 = vlaneseq
  %v7317 = vshrl.u32 %v7316, 7
  %v7318 = vsub.s32 %v7315, %v7317
  %v7319 = vrot.slane %v7309, %v7318
  %v7321 = vunpack.c.l.s4 1966171168
  %v7322 = vunpack.c.0.s8 %v7321
  %v7323 = vlaneseq
  %v7324 = vshrl.u32 %v7323, 7
  %v7325 = vsub.s32 %v7322, %v7324
  %v7326 = vrot.slane %v7310, %v7325
  %v7328 = vunpack.c.l.s4 1966171168
  %v7329 = vunpack.c.0.s8 %v7328
  %v7330 = vlaneseq
  %v7331 = vshrl.u32 %v7330, 7
  %v7332 = vsub.s32 %v7329, %v7331
  %v7333 = vrot.slane %v7311, %v7332
  %v7335 = vunpack.c.l.s4 1966171168
  %v7336 = vunpack.c.0.s8 %v7335
  %v7337 = vlaneseq
  %v7338 = vshrl.u32 %v7337, 7
  %v7339 = vsub.s32 %v7336, %v7338
  %v7340 = vrot.slane %v7312, %v7339
  %v7341 = vcombine.low %v7319, %v7326
  %v7342 = vcombine.low %v7333, %v7340
  %v7344 = vunpack.c.l.s4 1966171168
  %v7345 = vunpack.c.0.s8 %v7344
  %v7346 = vlaneseq
  %v7347 = vshrl.u32 %v7346, 7
  %v7348 = vsub.s32 %v7345, %v7347
  %v7349 = vrot.slane %v7341, %v7348
  %v7351 = vunpack.c.l.s4 1966171168
  %v7352 = vunpack.c.0.s8 %v7351
  %v7353 = vlaneseq
  %v7354 = vshrl.u32 %v7353, 7
  %v7355 = vsub.s32 %v7352, %v7354
  %v7356 = vrot.slane %v7342, %v7355
  %v7357 = vcombine.low %v7349, %v7356
  %v7358 = vcombine.low %v6099, %v6103
  %v7359 = vcombine.low %v6107, %v6111
  %v7360 = vcombine.low %v6115, %v6119
  %v7361 = vcombine.low %v6123, %v6127
  %v7363 = vunpack.c.l.s4 1966171168
  %v7364 = vunpack.c.0.s8 %v7363
  %v7365 = vlaneseq
  %v7366 = vshrl.u32 %v7365, 7
  %v7367 = vsub.s32 %v7364, %v7366
  %v7368 = vrot.slane %v7358, %v7367
  %v7370 = vunpack.c.l.s4 1966171168
  %v7371 = vunpack.c.0.s8 %v7370
  %v7372 = vlaneseq
  %v7373 = vshrl.u32 %v7372, 7
  %v7374 = vsub.s32 %v7371, %v7373
  %v7375 = vrot.slane %v7359, %v7374
  %v7377 = vunpack.c.l.s4 1966171168
  %v7378 = vunpack.c.0.s8 %v7377
  %v7379 = vlaneseq
  %v7380 = vshrl.u32 %v7379, 7
  %v7381 = vsub.s32 %v7378, %v7380
  %v7382 = vrot.slane %v7360, %v7381
  %v7384 = vunpack.c.l.s4 1966171168
  %v7385 = vunpack.c.0.s8 %v7384
  %v7386 = vlaneseq
  %v7387 = vshrl.u32 %v7386, 7
  %v7388 = vsub.s32 %v7385, %v7387
  %v7389 = vrot.slane %v7361, %v7388
  %v7390 = vcombine.low %v7368, %v7375
  %v7391 = vcombine.low %v7382, %v7389
  %v7393 = vunpack.c.l.s4 1966171168
  %v7394 = vunpack.c.0.s8 %v7393
  %v7395 = vlaneseq
  %v7396 = vshrl.u32 %v7395, 7
  %v7397 = vsub.s32 %v7394, %v7396
  %v7398 = vrot.slane %v7390, %v7397
  %v7400 = vunpack.c.l.s4 1966171168
  %v7401 = vunpack.c.0.s8 %v7400
  %v7402 = vlaneseq
  %v7403 = vshrl.u32 %v7402, 7
  %v7404 = vsub.s32 %v7401, %v7403
  %v7405 = vrot.slane %v7391, %v7404
  %v7406 = vcombine.low %v7398, %v7405
  %v7407 = vcombine.low %v6131, %v6135
  %v7408 = vcombine.low %v6139, %v6143
  %v7409 = vcombine.low %v6147, %v6151
  %v7410 = vcombine.low %v6155, %v6159
  %v7412 = vunpack.c.l.s4 1966171168
  %v7413 = vunpack.c.0.s8 %v7412
  %v7414 = vlaneseq
  %v7415 = vshrl.u32 %v7414, 7
  %v7416 = vsub.s32 %v7413, %v7415
  %v7417 = vrot.slane %v7407, %v7416
  %v7419 = vunpack.c.l.s4 1966171168
  %v7420 = vunpack.c.0.s8 %v7419
  %v7421 = vlaneseq
  %v7422 = vshrl.u32 %v7421, 7
  %v7423 = vsub.s32 %v7420, %v7422
  %v7424 = vrot.slane %v7408, %v7423
  %v7426 = vunpack.c.l.s4 1966171168
  %v7427 = vunpack.c.0.s8 %v7426
  %v7428 = vlaneseq
  %v7429 = vshrl.u32 %v7428, 7
  %v7430 = vsub.s32 %v7427, %v7429
  %v7431 = vrot.slane %v7409, %v7430
  %v7433 = vunpack.c.l.s4 1966171168
  %v7434 = vunpack.c.0.s8 %v7433
  %v7435 = vlaneseq
  %v7436 = vshrl.u32 %v7435, 7
  %v7437 = vsub.s32 %v7434, %v7436
  %v7438 = vrot.slane %v7410, %v7437
  %v7439 = vcombine.low %v7417, %v7424
  %v7440 = vcombine.low %v7431, %v7438
  %v7442 = vunpack.c.l.s4 1966171168
  %v7443 = vunpack.c.0.s8 %v7442
  %v7444 = vlaneseq
  %v7445 = vshrl.u32 %v7444, 7
  %v7446 = vsub.s32 %v7443, %v7445
  %v7447 = vrot.slane %v7439, %v7446
  %v7449 = vunpack.c.l.s4 1966171168
  %v7450 = vunpack.c.0.s8 %v7449
  %v7451 = vlaneseq
  %v7452 = vshrl.u32 %v7451, 7
  %v7453 = vsub.s32 %v7450, %v7452
  %v7454 = vrot.slane %v7440, %v7453
  %v7455 = vcombine.low %v7447, %v7454
  %v7456 = vcombine.low %v6163, %v6167
  %v7457 = vcombine.low %v6171, %v6175
  %v7458 = vcombine.low %v6179, %v6183
  %v7459 = vcombine.low %v6187, %v6191
  %v7461 = vunpack.c.l.s4 1966171168
  %v7462 = vunpack.c.0.s8 %v7461
  %v7463 = vlaneseq
  %v7464 = vshrl.u32 %v7463, 7
  %v7465 = vsub.s32 %v7462, %v7464
  %v7466 = vrot.slane %v7456, %v7465
  %v7468 = vunpack.c.l.s4 1966171168
  %v7469 = vunpack.c.0.s8 %v7468
  %v7470 = vlaneseq
  %v7471 = vshrl.u32 %v7470, 7
  %v7472 = vsub.s32 %v7469, %v7471
  %v7473 = vrot.slane %v7457, %v7472
  %v7475 = vunpack.c.l.s4 1966171168
  %v7476 = vunpack.c.0.s8 %v7475
  %v7477 = vlaneseq
  %v7478 = vshrl.u32 %v7477, 7
  %v7479 = vsub.s32 %v7476, %v7478
  %v7480 = vrot.slane %v7458, %v7479
  %v7482 = vunpack.c.l.s4 1966171168
  %v7483 = vunpack.c.0.s8 %v7482
  %v7484 = vlaneseq
  %v7485 = vshrl.u32 %v7484, 7
  %v7486 = vsub.s32 %v7483, %v7485
  %v7487 = vrot.slane %v7459, %v7486
  %v7488 = vcombine.low %v7466, %v7473
  %v7489 = vcombine.low %v7480, %v7487
  %v7491 = vunpack.c.l.s4 1966171168
  %v7492 = vunpack.c.0.s8 %v7491
  %v7493 = vlaneseq
  %v7494 = vshrl.u32 %v7493, 7
  %v7495 = vsub.s32 %v7492, %v7494
  %v7496 = vrot.slane %v7488, %v7495
  %v7498 = vunpack.c.l.s4 1966171168
  %v7499 = vunpack.c.0.s8 %v7498
  %v7500 = vlaneseq
  %v7501 = vshrl.u32 %v7500, 7
  %v7502 = vsub.s32 %v7499, %v7501
  %v7503 = vrot.slane %v7489, %v7502
  %v7504 = vcombine.low %v7496, %v7503
  %v7505 = vcombine.low %v6195, %v6199
  %v7506 = vcombine.low %v6203, %v6207
  %v7507 = vcombine.low %v6211, %v6215
  %v7508 = vcombine.low %v6219, %v6223
  %v7510 = vunpack.c.l.s4 1966171168
  %v7511 = vunpack.c.0.s8 %v7510
  %v7512 = vlaneseq
  %v7513 = vshrl.u32 %v7512, 7
  %v7514 = vsub.s32 %v7511, %v7513
  %v7515 = vrot.slane %v7505, %v7514
  %v7517 = vunpack.c.l.s4 1966171168
  %v7518 = vunpack.c.0.s8 %v7517
  %v7519 = vlaneseq
  %v7520 = vshrl.u32 %v7519, 7
  %v7521 = vsub.s32 %v7518, %v7520
  %v7522 = vrot.slane %v7506, %v7521
  %v7524 = vunpack.c.l.s4 1966171168
  %v7525 = vunpack.c.0.s8 %v7524
  %v7526 = vlaneseq
  %v7527 = vshrl.u32 %v7526, 7
  %v7528 = vsub.s32 %v7525, %v7527
  %v7529 = vrot.slane %v7507, %v7528
  %v7531 = vunpack.c.l.s4 1966171168
  %v7532 = vunpack.c.0.s8 %v7531
  %v7533 = vlaneseq
  %v7534 = vshrl.u32 %v7533, 7
  %v7535 = vsub.s32 %v7532, %v7534
  %v7536 = vrot.slane %v7508, %v7535
  %v7537 = vcombine.low %v7515, %v7522
  %v7538 = vcombine.low %v7529, %v7536
  %v7540 = vunpack.c.l.s4 1966171168
  %v7541 = vunpack.c.0.s8 %v7540
  %v7542 = vlaneseq
  %v7543 = vshrl.u32 %v7542, 7
  %v7544 = vsub.s32 %v7541, %v7543
  %v7545 = vrot.slane %v7537, %v7544
  %v7547 = vunpack.c.l.s4 1966171168
  %v7548 = vunpack.c.0.s8 %v7547
  %v7549 = vlaneseq
  %v7550 = vshrl.u32 %v7549, 7
  %v7551 = vsub.s32 %v7548, %v7550
  %v7552 = vrot.slane %v7538, %v7551
  %v7553 = vcombine.low %v7545, %v7552
  %v7554 = vcombine.low %v6227, %v6231
  %v7555 = vcombine.low %v6235, %v6239
  %v7556 = vcombine.low %v6243, %v6247
  %v7557 = vcombine.low %v6251, %v6255
  %v7559 = vunpack.c.l.s4 1966171168
  %v7560 = vunpack.c.0.s8 %v7559
  %v7561 = vlaneseq
  %v7562 = vshrl.u32 %v7561, 7
  %v7563 = vsub.s32 %v7560, %v7562
  %v7564 = vrot.slane %v7554, %v7563
  %v7566 = vunpack.c.l.s4 1966171168
  %v7567 = vunpack.c.0.s8 %v7566
  %v7568 = vlaneseq
  %v7569 = vshrl.u32 %v7568, 7
  %v7570 = vsub.s32 %v7567, %v7569
  %v7571 = vrot.slane %v7555, %v7570
  %v7573 = vunpack.c.l.s4 1966171168
  %v7574 = vunpack.c.0.s8 %v7573
  %v7575 = vlaneseq
  %v7576 = vshrl.u32 %v7575, 7
  %v7577 = vsub.s32 %v7574, %v7576
  %v7578 = vrot.slane %v7556, %v7577
  %v7580 = vunpack.c.l.s4 1966171168
  %v7581 = vunpack.c.0.s8 %v7580
  %v7582 = vlaneseq
  %v7583 = vshrl.u32 %v7582, 7
  %v7584 = vsub.s32 %v7581, %v7583
  %v7585 = vrot.slane %v7557, %v7584
  %v7586 = vcombine.low %v7564, %v7571
  %v7587 = vcombine.low %v7578, %v7585
  %v7589 = vunpack.c.l.s4 1966171168
  %v7590 = vunpack.c.0.s8 %v7589
  %v7591 = vlaneseq
  %v7592 = vshrl.u32 %v7591, 7
  %v7593 = vsub.s32 %v7590, %v7592
  %v7594 = vrot.slane %v7586, %v7593
  %v7596 = vunpack.c.l.s4 1966171168
  %v7597 = vunpack.c.0.s8 %v7596
  %v7598 = vlaneseq
  %v7599 = vshrl.u32 %v7598, 7
  %v7600 = vsub.s32 %v7597, %v7599
  %v7601 = vrot.slane %v7587, %v7600
  %v7602 = vcombine.low %v7594, %v7601
  %v7603 = vcombine.low %v6259, %v6263
  %v7604 = vcombine.low %v6267, %v6271
  %v7605 = vcombine.low %v6275, %v6279
  %v7606 = vcombine.low %v6283, %v6287
  %v7608 = vunpack.c.l.s4 1966171168
  %v7609 = vunpack.c.0.s8 %v7608
  %v7610 = vlaneseq
  %v7611 = vshrl.u32 %v7610, 7
  %v7612 = vsub.s32 %v7609, %v7611
  %v7613 = vrot.slane %v7603, %v7612
  %v7615 = vunpack.c.l.s4 1966171168
  %v7616 = vunpack.c.0.s8 %v7615
  %v7617 = vlaneseq
  %v7618 = vshrl.u32 %v7617, 7
  %v7619 = vsub.s32 %v7616, %v7618
  %v7620 = vrot.slane %v7604, %v7619
  %v7622 = vunpack.c.l.s4 1966171168
  %v7623 = vunpack.c.0.s8 %v7622
  %v7624 = vlaneseq
  %v7625 = vshrl.u32 %v7624, 7
  %v7626 = vsub.s32 %v7623, %v7625
  %v7627 = vrot.slane %v7605, %v7626
  %v7629 = vunpack.c.l.s4 1966171168
  %v7630 = vunpack.c.0.s8 %v7629
  %v7631 = vlaneseq
  %v7632 = vshrl.u32 %v7631, 7
  %v7633 = vsub.s32 %v7630, %v7632
  %v7634 = vrot.slane %v7606, %v7633
  %v7635 = vcombine.low %v7613, %v7620
  %v7636 = vcombine.low %v7627, %v7634
  %v7638 = vunpack.c.l.s4 1966171168
  %v7639 = vunpack.c.0.s8 %v7638
  %v7640 = vlaneseq
  %v7641 = vshrl.u32 %v7640, 7
  %v7642 = vsub.s32 %v7639, %v7641
  %v7643 = vrot.slane %v7635, %v7642
  %v7645 = vunpack.c.l.s4 1966171168
  %v7646 = vunpack.c.0.s8 %v7645
  %v7647 = vlaneseq
  %v7648 = vshrl.u32 %v7647, 7
  %v7649 = vsub.s32 %v7646, %v7648
  %v7650 = vrot.slane %v7636, %v7649
  %v7651 = vcombine.low %v7643, %v7650
  %v7652 = vcombine.low %v6291, %v6295
  %v7653 = vcombine.low %v6299, %v6303
  %v7654 = vcombine.low %v6307, %v6311
  %v7655 = vcombine.low %v6315, %v6319
  %v7657 = vunpack.c.l.s4 1966171168
  %v7658 = vunpack.c.0.s8 %v7657
  %v7659 = vlaneseq
  %v7660 = vshrl.u32 %v7659, 7
  %v7661 = vsub.s32 %v7658, %v7660
  %v7662 = vrot.slane %v7652, %v7661
  %v7664 = vunpack.c.l.s4 1966171168
  %v7665 = vunpack.c.0.s8 %v7664
  %v7666 = vlaneseq
  %v7667 = vshrl.u32 %v7666, 7
  %v7668 = vsub.s32 %v7665, %v7667
  %v7669 = vrot.slane %v7653, %v7668
  %v7671 = vunpack.c.l.s4 1966171168
  %v7672 = vunpack.c.0.s8 %v7671
  %v7673 = vlaneseq
  %v7674 = vshrl.u32 %v7673, 7
  %v7675 = vsub.s32 %v7672, %v7674
  %v7676 = vrot.slane %v7654, %v7675
  %v7678 = vunpack.c.l.s4 1966171168
  %v7679 = vunpack.c.0.s8 %v7678
  %v7680 = vlaneseq
  %v7681 = vshrl.u32 %v7680, 7
  %v7682 = vsub.s32 %v7679, %v7681
  %v7683 = vrot.slane %v7655, %v7682
  %v7684 = vcombine.low %v7662, %v7669
  %v7685 = vcombine.low %v7676, %v7683
  %v7687 = vunpack.c.l.s4 1966171168
  %v7688 = vunpack.c.0.s8 %v7687
  %v7689 = vlaneseq
  %v7690 = vshrl.u32 %v7689, 7
  %v7691 = vsub.s32 %v7688, %v7690
  %v7692 = vrot.slane %v7684, %v7691
  %v7694 = vunpack.c.l.s4 1966171168
  %v7695 = vunpack.c.0.s8 %v7694
  %v7696 = vlaneseq
  %v7697 = vshrl.u32 %v7696, 7
  %v7698 = vsub.s32 %v7695, %v7697
  %v7699 = vrot.slane %v7685, %v7698
  %v7700 = vcombine.low %v7692, %v7699
  %v7701 = vcombine.low %v6323, %v6327
  %v7702 = vcombine.low %v6331, %v6335
  %v7703 = vcombine.low %v6339, %v6343
  %v7704 = vcombine.low %v6347, %v6351
  %v7706 = vunpack.c.l.s4 1966171168
  %v7707 = vunpack.c.0.s8 %v7706
  %v7708 = vlaneseq
  %v7709 = vshrl.u32 %v7708, 7
  %v7710 = vsub.s32 %v7707, %v7709
  %v7711 = vrot.slane %v7701, %v7710
  %v7713 = vunpack.c.l.s4 1966171168
  %v7714 = vunpack.c.0.s8 %v7713
  %v7715 = vlaneseq
  %v7716 = vshrl.u32 %v7715, 7
  %v7717 = vsub.s32 %v7714, %v7716
  %v7718 = vrot.slane %v7702, %v7717
  %v7720 = vunpack.c.l.s4 1966171168
  %v7721 = vunpack.c.0.s8 %v7720
  %v7722 = vlaneseq
  %v7723 = vshrl.u32 %v7722, 7
  %v7724 = vsub.s32 %v7721, %v7723
  %v7725 = vrot.slane %v7703, %v7724
  %v7727 = vunpack.c.l.s4 1966171168
  %v7728 = vunpack.c.0.s8 %v7727
  %v7729 = vlaneseq
  %v7730 = vshrl.u32 %v7729, 7
  %v7731 = vsub.s32 %v7728, %v7730
  %v7732 = vrot.slane %v7704, %v7731
  %v7733 = vcombine.low %v7711, %v7718
  %v7734 = vcombine.low %v7725, %v7732
  %v7736 = vunpack.c.l.s4 1966171168
  %v7737 = vunpack.c.0.s8 %v7736
  %v7738 = vlaneseq
  %v7739 = vshrl.u32 %v7738, 7
  %v7740 = vsub.s32 %v7737, %v7739
  %v7741 = vrot.slane %v7733, %v7740
  %v7743 = vunpack.c.l.s4 1966171168
  %v7744 = vunpack.c.0.s8 %v7743
  %v7745 = vlaneseq
  %v7746 = vshrl.u32 %v7745, 7
  %v7747 = vsub.s32 %v7744, %v7746
  %v7748 = vrot.slane %v7734, %v7747
  %v7749 = vcombine.low %v7741, %v7748
  %v7750 = vcombine.low %v6355, %v6359
  %v7751 = vcombine.low %v6363, %v6367
  %v7752 = vcombine.low %v6371, %v6375
  %v7753 = vcombine.low %v6379, %v6383
  %v7755 = vunpack.c.l.s4 1966171168
  %v7756 = vunpack.c.0.s8 %v7755
  %v7757 = vlaneseq
  %v7758 = vshrl.u32 %v7757, 7
  %v7759 = vsub.s32 %v7756, %v7758
  %v7760 = vrot.slane %v7750, %v7759
  %v7762 = vunpack.c.l.s4 1966171168
  %v7763 = vunpack.c.0.s8 %v7762
  %v7764 = vlaneseq
  %v7765 = vshrl.u32 %v7764, 7
  %v7766 = vsub.s32 %v7763, %v7765
  %v7767 = vrot.slane %v7751, %v7766
  %v7769 = vunpack.c.l.s4 1966171168
  %v7770 = vunpack.c.0.s8 %v7769
  %v7771 = vlaneseq
  %v7772 = vshrl.u32 %v7771, 7
  %v7773 = vsub.s32 %v7770, %v7772
  %v7774 = vrot.slane %v7752, %v7773
  %v7776 = vunpack.c.l.s4 1966171168
  %v7777 = vunpack.c.0.s8 %v7776
  %v7778 = vlaneseq
  %v7779 = vshrl.u32 %v7778, 7
  %v7780 = vsub.s32 %v7777, %v7779
  %v7781 = vrot.slane %v7753, %v7780
  %v7782 = vcombine.low %v7760, %v7767
  %v7783 = vcombine.low %v7774, %v7781
  %v7785 = vunpack.c.l.s4 1966171168
  %v7786 = vunpack.c.0.s8 %v7785
  %v7787 = vlaneseq
  %v7788 = vshrl.u32 %v7787, 7
  %v7789 = vsub.s32 %v7786, %v7788
  %v7790 = vrot.slane %v7782, %v7789
  %v7792 = vunpack.c.l.s4 1966171168
  %v7793 = vunpack.c.0.s8 %v7792
  %v7794 = vlaneseq
  %v7795 = vshrl.u32 %v7794, 7
  %v7796 = vsub.s32 %v7793, %v7795
  %v7797 = vrot.slane %v7783, %v7796
  %v7798 = vcombine.low %v7790, %v7797
  %v7799 = vcombine.low %v6387, %v6391
  %v7800 = vcombine.low %v6395, %v6399
  %v7801 = vcombine.low %v6403, %v6407
  %v7802 = vcombine.low %v6411, %v6415
  %v7804 = vunpack.c.l.s4 1966171168
  %v7805 = vunpack.c.0.s8 %v7804
  %v7806 = vlaneseq
  %v7807 = vshrl.u32 %v7806, 7
  %v7808 = vsub.s32 %v7805, %v7807
  %v7809 = vrot.slane %v7799, %v7808
  %v7811 = vunpack.c.l.s4 1966171168
  %v7812 = vunpack.c.0.s8 %v7811
  %v7813 = vlaneseq
  %v7814 = vshrl.u32 %v7813, 7
  %v7815 = vsub.s32 %v7812, %v7814
  %v7816 = vrot.slane %v7800, %v7815
  %v7818 = vunpack.c.l.s4 1966171168
  %v7819 = vunpack.c.0.s8 %v7818
  %v7820 = vlaneseq
  %v7821 = vshrl.u32 %v7820, 7
  %v7822 = vsub.s32 %v7819, %v7821
  %v7823 = vrot.slane %v7801, %v7822
  %v7825 = vunpack.c.l.s4 1966171168
  %v7826 = vunpack.c.0.s8 %v7825
  %v7827 = vlaneseq
  %v7828 = vshrl.u32 %v7827, 7
  %v7829 = vsub.s32 %v7826, %v7828
  %v7830 = vrot.slane %v7802, %v7829
  %v7831 = vcombine.low %v7809, %v7816
  %v7832 = vcombine.low %v7823, %v7830
  %v7834 = vunpack.c.l.s4 1966171168
  %v7835 = vunpack.c.0.s8 %v7834
  %v7836 = vlaneseq
  %v7837 = vshrl.u32 %v7836, 7
  %v7838 = vsub.s32 %v7835, %v7837
  %v7839 = vrot.slane %v7831, %v7838
  %v7841 = vunpack.c.l.s4 1966171168
  %v7842 = vunpack.c.0.s8 %v7841
  %v7843 = vlaneseq
  %v7844 = vshrl.u32 %v7843, 7
  %v7845 = vsub.s32 %v7842, %v7844
  %v7846 = vrot.slane %v7832, %v7845
  %v7847 = vcombine.low %v7839, %v7846
  %v7848 = vcombine.low %v6419, %v6423
  %v7849 = vcombine.low %v6427, %v6431
  %v7850 = vcombine.low %v6435, %v6439
  %v7851 = vcombine.low %v6443, %v6447
  %v7853 = vunpack.c.l.s4 1966171168
  %v7854 = vunpack.c.0.s8 %v7853
  %v7855 = vlaneseq
  %v7856 = vshrl.u32 %v7855, 7
  %v7857 = vsub.s32 %v7854, %v7856
  %v7858 = vrot.slane %v7848, %v7857
  %v7860 = vunpack.c.l.s4 1966171168
  %v7861 = vunpack.c.0.s8 %v7860
  %v7862 = vlaneseq
  %v7863 = vshrl.u32 %v7862, 7
  %v7864 = vsub.s32 %v7861, %v7863
  %v7865 = vrot.slane %v7849, %v7864
  %v7867 = vunpack.c.l.s4 1966171168
  %v7868 = vunpack.c.0.s8 %v7867
  %v7869 = vlaneseq
  %v7870 = vshrl.u32 %v7869, 7
  %v7871 = vsub.s32 %v7868, %v7870
  %v7872 = vrot.slane %v7850, %v7871
  %v7874 = vunpack.c.l.s4 1966171168
  %v7875 = vunpack.c.0.s8 %v7874
  %v7876 = vlaneseq
  %v7877 = vshrl.u32 %v7876, 7
  %v7878 = vsub.s32 %v7875, %v7877
  %v7879 = vrot.slane %v7851, %v7878
  %v7880 = vcombine.low %v7858, %v7865
  %v7881 = vcombine.low %v7872, %v7879
  %v7883 = vunpack.c.l.s4 1966171168
  %v7884 = vunpack.c.0.s8 %v7883
  %v7885 = vlaneseq
  %v7886 = vshrl.u32 %v7885, 7
  %v7887 = vsub.s32 %v7884, %v7886
  %v7888 = vrot.slane %v7880, %v7887
  %v7890 = vunpack.c.l.s4 1966171168
  %v7891 = vunpack.c.0.s8 %v7890
  %v7892 = vlaneseq
  %v7893 = vshrl.u32 %v7892, 7
  %v7894 = vsub.s32 %v7891, %v7893
  %v7895 = vrot.slane %v7881, %v7894
  %v7896 = vcombine.low %v7888, %v7895
  %v7897 = vcombine.low %v6451, %v6455
  %v7898 = vcombine.low %v6459, %v6463
  %v7899 = vcombine.low %v6467, %v6471
  %v7900 = vcombine.low %v6475, %v6479
  %v7902 = vunpack.c.l.s4 1966171168
  %v7903 = vunpack.c.0.s8 %v7902
  %v7904 = vlaneseq
  %v7905 = vshrl.u32 %v7904, 7
  %v7906 = vsub.s32 %v7903, %v7905
  %v7907 = vrot.slane %v7897, %v7906
  %v7909 = vunpack.c.l.s4 1966171168
  %v7910 = vunpack.c.0.s8 %v7909
  %v7911 = vlaneseq
  %v7912 = vshrl.u32 %v7911, 7
  %v7913 = vsub.s32 %v7910, %v7912
  %v7914 = vrot.slane %v7898, %v7913
  %v7916 = vunpack.c.l.s4 1966171168
  %v7917 = vunpack.c.0.s8 %v7916
  %v7918 = vlaneseq
  %v7919 = vshrl.u32 %v7918, 7
  %v7920 = vsub.s32 %v7917, %v7919
  %v7921 = vrot.slane %v7899, %v7920
  %v7923 = vunpack.c.l.s4 1966171168
  %v7924 = vunpack.c.0.s8 %v7923
  %v7925 = vlaneseq
  %v7926 = vshrl.u32 %v7925, 7
  %v7927 = vsub.s32 %v7924, %v7926
  %v7928 = vrot.slane %v7900, %v7927
  %v7929 = vcombine.low %v7907, %v7914
  %v7930 = vcombine.low %v7921, %v7928
  %v7932 = vunpack.c.l.s4 1966171168
  %v7933 = vunpack.c.0.s8 %v7932
  %v7934 = vlaneseq
  %v7935 = vshrl.u32 %v7934, 7
  %v7936 = vsub.s32 %v7933, %v7935
  %v7937 = vrot.slane %v7929, %v7936
  %v7939 = vunpack.c.l.s4 1966171168
  %v7940 = vunpack.c.0.s8 %v7939
  %v7941 = vlaneseq
  %v7942 = vshrl.u32 %v7941, 7
  %v7943 = vsub.s32 %v7940, %v7942
  %v7944 = vrot.slane %v7930, %v7943
  %v7945 = vcombine.low %v7937, %v7944
  %v7946 = vcombine.low %v6483, %v6487
  %v7947 = vcombine.low %v6491, %v6495
  %v7948 = vcombine.low %v6499, %v6503
  %v7949 = vcombine.low %v6507, %v6511
  %v7951 = vunpack.c.l.s4 1966171168
  %v7952 = vunpack.c.0.s8 %v7951
  %v7953 = vlaneseq
  %v7954 = vshrl.u32 %v7953, 7
  %v7955 = vsub.s32 %v7952, %v7954
  %v7956 = vrot.slane %v7946, %v7955
  %v7958 = vunpack.c.l.s4 1966171168
  %v7959 = vunpack.c.0.s8 %v7958
  %v7960 = vlaneseq
  %v7961 = vshrl.u32 %v7960, 7
  %v7962 = vsub.s32 %v7959, %v7961
  %v7963 = vrot.slane %v7947, %v7962
  %v7965 = vunpack.c.l.s4 1966171168
  %v7966 = vunpack.c.0.s8 %v7965
  %v7967 = vlaneseq
  %v7968 = vshrl.u32 %v7967, 7
  %v7969 = vsub.s32 %v7966, %v7968
  %v7970 = vrot.slane %v7948, %v7969
  %v7972 = vunpack.c.l.s4 1966171168
  %v7973 = vunpack.c.0.s8 %v7972
  %v7974 = vlaneseq
  %v7975 = vshrl.u32 %v7974, 7
  %v7976 = vsub.s32 %v7973, %v7975
  %v7977 = vrot.slane %v7949, %v7976
  %v7978 = vcombine.low %v7956, %v7963
  %v7979 = vcombine.low %v7970, %v7977
  %v7981 = vunpack.c.l.s4 1966171168
  %v7982 = vunpack.c.0.s8 %v7981
  %v7983 = vlaneseq
  %v7984 = vshrl.u32 %v7983, 7
  %v7985 = vsub.s32 %v7982, %v7984
  %v7986 = vrot.slane %v7978, %v7985
  %v7988 = vunpack.c.l.s4 1966171168
  %v7989 = vunpack.c.0.s8 %v7988
  %v7990 = vlaneseq
  %v7991 = vshrl.u32 %v7990, 7
  %v7992 = vsub.s32 %v7989, %v7991
  %v7993 = vrot.slane %v7979, %v7992
  %v7994 = vcombine.low %v7986, %v7993
  %v7995 = vcombine.low %v6515, %v6519
  %v7996 = vcombine.low %v6523, %v6527
  %v7997 = vcombine.low %v6531, %v6535
  %v7998 = vcombine.low %v6539, %v6543
  %v8000 = vunpack.c.l.s4 1966171168
  %v8001 = vunpack.c.0.s8 %v8000
  %v8002 = vlaneseq
  %v8003 = vshrl.u32 %v8002, 7
  %v8004 = vsub.s32 %v8001, %v8003
  %v8005 = vrot.slane %v7995, %v8004
  %v8007 = vunpack.c.l.s4 1966171168
  %v8008 = vunpack.c.0.s8 %v8007
  %v8009 = vlaneseq
  %v8010 = vshrl.u32 %v8009, 7
  %v8011 = vsub.s32 %v8008, %v8010
  %v8012 = vrot.slane %v7996, %v8011
  %v8014 = vunpack.c.l.s4 1966171168
  %v8015 = vunpack.c.0.s8 %v8014
  %v8016 = vlaneseq
  %v8017 = vshrl.u32 %v8016, 7
  %v8018 = vsub.s32 %v8015, %v8017
  %v8019 = vrot.slane %v7997, %v8018
  %v8021 = vunpack.c.l.s4 1966171168
  %v8022 = vunpack.c.0.s8 %v8021
  %v8023 = vlaneseq
  %v8024 = vshrl.u32 %v8023, 7
  %v8025 = vsub.s32 %v8022, %v8024
  %v8026 = vrot.slane %v7998, %v8025
  %v8027 = vcombine.low %v8005, %v8012
  %v8028 = vcombine.low %v8019, %v8026
  %v8030 = vunpack.c.l.s4 1966171168
  %v8031 = vunpack.c.0.s8 %v8030
  %v8032 = vlaneseq
  %v8033 = vshrl.u32 %v8032, 7
  %v8034 = vsub.s32 %v8031, %v8033
  %v8035 = vrot.slane %v8027, %v8034
  %v8037 = vunpack.c.l.s4 1966171168
  %v8038 = vunpack.c.0.s8 %v8037
  %v8039 = vlaneseq
  %v8040 = vshrl.u32 %v8039, 7
  %v8041 = vsub.s32 %v8038, %v8040
  %v8042 = vrot.slane %v8028, %v8041
  %v8043 = vcombine.low %v8035, %v8042
  %v8044 = vcombine.low %v6547, %v6551
  %v8045 = vcombine.low %v6555, %v6559
  %v8046 = vcombine.low %v6563, %v6567
  %v8047 = vcombine.low %v6571, %v6575
  %v8049 = vunpack.c.l.s4 1966171168
  %v8050 = vunpack.c.0.s8 %v8049
  %v8051 = vlaneseq
  %v8052 = vshrl.u32 %v8051, 7
  %v8053 = vsub.s32 %v8050, %v8052
  %v8054 = vrot.slane %v8044, %v8053
  %v8056 = vunpack.c.l.s4 1966171168
  %v8057 = vunpack.c.0.s8 %v8056
  %v8058 = vlaneseq
  %v8059 = vshrl.u32 %v8058, 7
  %v8060 = vsub.s32 %v8057, %v8059
  %v8061 = vrot.slane %v8045, %v8060
  %v8063 = vunpack.c.l.s4 1966171168
  %v8064 = vunpack.c.0.s8 %v8063
  %v8065 = vlaneseq
  %v8066 = vshrl.u32 %v8065, 7
  %v8067 = vsub.s32 %v8064, %v8066
  %v8068 = vrot.slane %v8046, %v8067
  %v8070 = vunpack.c.l.s4 1966171168
  %v8071 = vunpack.c.0.s8 %v8070
  %v8072 = vlaneseq
  %v8073 = vshrl.u32 %v8072, 7
  %v8074 = vsub.s32 %v8071, %v8073
  %v8075 = vrot.slane %v8047, %v8074
  %v8076 = vcombine.low %v8054, %v8061
  %v8077 = vcombine.low %v8068, %v8075
  %v8079 = vunpack.c.l.s4 1966171168
  %v8080 = vunpack.c.0.s8 %v8079
  %v8081 = vlaneseq
  %v8082 = vshrl.u32 %v8081, 7
  %v8083 = vsub.s32 %v8080, %v8082
  %v8084 = vrot.slane %v8076, %v8083
  %v8086 = vunpack.c.l.s4 1966171168
  %v8087 = vunpack.c.0.s8 %v8086
  %v8088 = vlaneseq
  %v8089 = vshrl.u32 %v8088, 7
  %v8090 = vsub.s32 %v8087, %v8089
  %v8091 = vrot.slane %v8077, %v8090
  %v8092 = vcombine.low %v8084, %v8091
  %v8093 = vcombine.low %v6579, %v6583
  %v8094 = vcombine.low %v6587, %v6591
  %v8095 = vcombine.low %v6595, %v6599
  %v8096 = vcombine.low %v6603, %v6607
  %v8098 = vunpack.c.l.s4 1966171168
  %v8099 = vunpack.c.0.s8 %v8098
  %v8100 = vlaneseq
  %v8101 = vshrl.u32 %v8100, 7
  %v8102 = vsub.s32 %v8099, %v8101
  %v8103 = vrot.slane %v8093, %v8102
  %v8105 = vunpack.c.l.s4 1966171168
  %v8106 = vunpack.c.0.s8 %v8105
  %v8107 = vlaneseq
  %v8108 = vshrl.u32 %v8107, 7
  %v8109 = vsub.s32 %v8106, %v8108
  %v8110 = vrot.slane %v8094, %v8109
  %v8112 = vunpack.c.l.s4 1966171168
  %v8113 = vunpack.c.0.s8 %v8112
  %v8114 = vlaneseq
  %v8115 = vshrl.u32 %v8114, 7
  %v8116 = vsub.s32 %v8113, %v8115
  %v8117 = vrot.slane %v8095, %v8116
  %v8119 = vunpack.c.l.s4 1966171168
  %v8120 = vunpack.c.0.s8 %v8119
  %v8121 = vlaneseq
  %v8122 = vshrl.u32 %v8121, 7
  %v8123 = vsub.s32 %v8120, %v8122
  %v8124 = vrot.slane %v8096, %v8123
  %v8125 = vcombine.low %v8103, %v8110
  %v8126 = vcombine.low %v8117, %v8124
  %v8128 = vunpack.c.l.s4 1966171168
  %v8129 = vunpack.c.0.s8 %v8128
  %v8130 = vlaneseq
  %v8131 = vshrl.u32 %v8130, 7
  %v8132 = vsub.s32 %v8129, %v8131
  %v8133 = vrot.slane %v8125, %v8132
  %v8135 = vunpack.c.l.s4 1966171168
  %v8136 = vunpack.c.0.s8 %v8135
  %v8137 = vlaneseq
  %v8138 = vshrl.u32 %v8137, 7
  %v8139 = vsub.s32 %v8136, %v8138
  %v8140 = vrot.slane %v8126, %v8139
  %v8141 = vcombine.low %v8133, %v8140
  %v8142 = vcombine.low %v6611, %v6615
  %v8143 = vcombine.low %v6619, %v6623
  %v8144 = vcombine.low %v6627, %v6631
  %v8145 = vcombine.low %v6635, %v6639
  %v8147 = vunpack.c.l.s4 1966171168
  %v8148 = vunpack.c.0.s8 %v8147
  %v8149 = vlaneseq
  %v8150 = vshrl.u32 %v8149, 7
  %v8151 = vsub.s32 %v8148, %v8150
  %v8152 = vrot.slane %v8142, %v8151
  %v8154 = vunpack.c.l.s4 1966171168
  %v8155 = vunpack.c.0.s8 %v8154
  %v8156 = vlaneseq
  %v8157 = vshrl.u32 %v8156, 7
  %v8158 = vsub.s32 %v8155, %v8157
  %v8159 = vrot.slane %v8143, %v8158
  %v8161 = vunpack.c.l.s4 1966171168
  %v8162 = vunpack.c.0.s8 %v8161
  %v8163 = vlaneseq
  %v8164 = vshrl.u32 %v8163, 7
  %v8165 = vsub.s32 %v8162, %v8164
  %v8166 = vrot.slane %v8144, %v8165
  %v8168 = vunpack.c.l.s4 1966171168
  %v8169 = vunpack.c.0.s8 %v8168
  %v8170 = vlaneseq
  %v8171 = vshrl.u32 %v8170, 7
  %v8172 = vsub.s32 %v8169, %v8171
  %v8173 = vrot.slane %v8145, %v8172
  %v8174 = vcombine.low %v8152, %v8159
  %v8175 = vcombine.low %v8166, %v8173
  %v8177 = vunpack.c.l.s4 1966171168
  %v8178 = vunpack.c.0.s8 %v8177
  %v8179 = vlaneseq
  %v8180 = vshrl.u32 %v8179, 7
  %v8181 = vsub.s32 %v8178, %v8180
  %v8182 = vrot.slane %v8174, %v8181
  %v8184 = vunpack.c.l.s4 1966171168
  %v8185 = vunpack.c.0.s8 %v8184
  %v8186 = vlaneseq
  %v8187 = vshrl.u32 %v8186, 7
  %v8188 = vsub.s32 %v8185, %v8187
  %v8189 = vrot.slane %v8175, %v8188
  %v8190 = vcombine.low %v8182, %v8189
  %v8191 = vcombine.low %v6643, %v6647
  %v8192 = vcombine.low %v6651, %v6655
  %v8193 = vcombine.low %v6659, %v6663
  %v8194 = vcombine.low %v6667, %v6671
  %v8196 = vunpack.c.l.s4 1966171168
  %v8197 = vunpack.c.0.s8 %v8196
  %v8198 = vlaneseq
  %v8199 = vshrl.u32 %v8198, 7
  %v8200 = vsub.s32 %v8197, %v8199
  %v8201 = vrot.slane %v8191, %v8200
  %v8203 = vunpack.c.l.s4 1966171168
  %v8204 = vunpack.c.0.s8 %v8203
  %v8205 = vlaneseq
  %v8206 = vshrl.u32 %v8205, 7
  %v8207 = vsub.s32 %v8204, %v8206
  %v8208 = vrot.slane %v8192, %v8207
  %v8210 = vunpack.c.l.s4 1966171168
  %v8211 = vunpack.c.0.s8 %v8210
  %v8212 = vlaneseq
  %v8213 = vshrl.u32 %v8212, 7
  %v8214 = vsub.s32 %v8211, %v8213
  %v8215 = vrot.slane %v8193, %v8214
  %v8217 = vunpack.c.l.s4 1966171168
  %v8218 = vunpack.c.0.s8 %v8217
  %v8219 = vlaneseq
  %v8220 = vshrl.u32 %v8219, 7
  %v8221 = vsub.s32 %v8218, %v8220
  %v8222 = vrot.slane %v8194, %v8221
  %v8223 = vcombine.low %v8201, %v8208
  %v8224 = vcombine.low %v8215, %v8222
  %v8226 = vunpack.c.l.s4 1966171168
  %v8227 = vunpack.c.0.s8 %v8226
  %v8228 = vlaneseq
  %v8229 = vshrl.u32 %v8228, 7
  %v8230 = vsub.s32 %v8227, %v8229
  %v8231 = vrot.slane %v8223, %v8230
  %v8233 = vunpack.c.l.s4 1966171168
  %v8234 = vunpack.c.0.s8 %v8233
  %v8235 = vlaneseq
  %v8236 = vshrl.u32 %v8235, 7
  %v8237 = vsub.s32 %v8234, %v8236
  %v8238 = vrot.slane %v8224, %v8237
  %v8239 = vcombine.low %v8231, %v8238
  %8240 = vset.pattern.permute.xlu0 0
  %8241 = vperm.xlu0 %8240, %v6720
  %v8242 = vpop.permute.xlu0 %8241
  %8243 = vset.pattern.permute.xlu0 0
  %8244 = vperm.xlu0 %8243, %v6769
  %v8245 = vpop.permute.xlu0 %8244
  %8246 = vset.pattern.permute.xlu0 0
  %8247 = vperm.xlu0 %8246, %v6818
  %v8248 = vpop.permute.xlu0 %8247
  %8249 = vset.pattern.permute.xlu0 0
  %8250 = vperm.xlu0 %8249, %v6867
  %v8251 = vpop.permute.xlu0 %8250
  %8252 = vset.pattern.permute.xlu0 0
  %8253 = vperm.xlu0 %8252, %v6916
  %v8254 = vpop.permute.xlu0 %8253
  %8255 = vset.pattern.permute.xlu0 0
  %8256 = vperm.xlu0 %8255, %v6965
  %v8257 = vpop.permute.xlu0 %8256
  %8258 = vset.pattern.permute.xlu0 0
  %8259 = vperm.xlu0 %8258, %v7014
  %v8260 = vpop.permute.xlu0 %8259
  %8261 = vset.pattern.permute.xlu0 0
  %8262 = vperm.xlu0 %8261, %v7063
  %v8263 = vpop.permute.xlu0 %8262
  %8264 = vset.pattern.permute.xlu0 0
  %8265 = vperm.xlu0 %8264, %v7112
  %v8266 = vpop.permute.xlu0 %8265
  %8267 = vset.pattern.permute.xlu0 0
  %8268 = vperm.xlu0 %8267, %v7161
  %v8269 = vpop.permute.xlu0 %8268
  %8270 = vset.pattern.permute.xlu0 0
  %8271 = vperm.xlu0 %8270, %v7210
  %v8272 = vpop.permute.xlu0 %8271
  %8273 = vset.pattern.permute.xlu0 0
  %8274 = vperm.xlu0 %8273, %v7259
  %v8275 = vpop.permute.xlu0 %8274
  %8276 = vset.pattern.permute.xlu0 0
  %8277 = vperm.xlu0 %8276, %v7308
  %v8278 = vpop.permute.xlu0 %8277
  %8279 = vset.pattern.permute.xlu0 0
  %8280 = vperm.xlu0 %8279, %v7357
  %v8281 = vpop.permute.xlu0 %8280
  %8282 = vset.pattern.permute.xlu0 0
  %8283 = vperm.xlu0 %8282, %v7406
  %v8284 = vpop.permute.xlu0 %8283
  %8285 = vset.pattern.permute.xlu0 0
  %8286 = vperm.xlu0 %8285, %v7455
  %v8287 = vpop.permute.xlu0 %8286
  %8288 = vset.pattern.permute.xlu0 0
  %8289 = vperm.xlu0 %8288, %v7504
  %v8290 = vpop.permute.xlu0 %8289
  %8291 = vset.pattern.permute.xlu0 0
  %8292 = vperm.xlu0 %8291, %v7553
  %v8293 = vpop.permute.xlu0 %8292
  %8294 = vset.pattern.permute.xlu0 0
  %8295 = vperm.xlu0 %8294, %v7602
  %v8296 = vpop.permute.xlu0 %8295
  %8297 = vset.pattern.permute.xlu0 0
  %8298 = vperm.xlu0 %8297, %v7651
  %v8299 = vpop.permute.xlu0 %8298
  %8300 = vset.pattern.permute.xlu0 0
  %8301 = vperm.xlu0 %8300, %v7700
  %v8302 = vpop.permute.xlu0 %8301
  %8303 = vset.pattern.permute.xlu0 0
  %8304 = vperm.xlu0 %8303, %v7749
  %v8305 = vpop.permute.xlu0 %8304
  %8306 = vset.pattern.permute.xlu0 0
  %8307 = vperm.xlu0 %8306, %v7798
  %v8308 = vpop.permute.xlu0 %8307
  %8309 = vset.pattern.permute.xlu0 0
  %8310 = vperm.xlu0 %8309, %v7847
  %v8311 = vpop.permute.xlu0 %8310
  %8312 = vset.pattern.permute.xlu0 0
  %8313 = vperm.xlu0 %8312, %v7896
  %v8314 = vpop.permute.xlu0 %8313
  %8315 = vset.pattern.permute.xlu0 0
  %8316 = vperm.xlu0 %8315, %v7945
  %v8317 = vpop.permute.xlu0 %8316
  %8318 = vset.pattern.permute.xlu0 0
  %8319 = vperm.xlu0 %8318, %v7994
  %v8320 = vpop.permute.xlu0 %8319
  %8321 = vset.pattern.permute.xlu0 0
  %8322 = vperm.xlu0 %8321, %v8043
  %v8323 = vpop.permute.xlu0 %8322
  %8324 = vset.pattern.permute.xlu0 0
  %8325 = vperm.xlu0 %8324, %v8092
  %v8326 = vpop.permute.xlu0 %8325
  %8327 = vset.pattern.permute.xlu0 0
  %8328 = vperm.xlu0 %8327, %v8141
  %v8329 = vpop.permute.xlu0 %8328
  %8330 = vset.pattern.permute.xlu0 0
  %8331 = vperm.xlu0 %8330, %v8190
  %v8332 = vpop.permute.xlu0 %8331
  %8333 = vset.pattern.permute.xlu0 0
  %8334 = vperm.xlu0 %8333, %v8239
  %v8335 = vpop.permute.xlu0 %8334
  %v8336 = vlaneseq
  %v8337 = vshrl.u32 %v8336, 7
  %v8338 = vsub.s32 %v1211, %v8337
  %v8339 = vrot.slane %v8242, %v8338
  %v8340 = vlaneseq
  %v8341 = vshrl.u32 %v8340, 7
  %v8342 = vsub.s32 %v4448, %v8341
  %v8343 = vrot.slane %v8245, %v8342
  %v8344 = vsel %vm4453, %v8343, %v8339
  %v8345 = vlaneseq
  %v8346 = vshrl.u32 %v8345, 7
  %v8347 = vsub.s32 %v4455, %v8346
  %v8348 = vrot.slane %v8248, %v8347
  %v8349 = vsel %vm4460, %v8348, %v8344
  %v8350 = vlaneseq
  %v8351 = vshrl.u32 %v8350, 7
  %v8352 = vsub.s32 %v4462, %v8351
  %v8353 = vrot.slane %v8251, %v8352
  %v8354 = vsel %vm4467, %v8353, %v8349
  %v8355 = vlaneseq
  %v8356 = vshrl.u32 %v8355, 7
  %v8357 = vsub.s32 %v4469, %v8356
  %v8358 = vrot.slane %v8254, %v8357
  %v8359 = vsel %vm4474, %v8358, %v8354
  %v8360 = vlaneseq
  %v8361 = vshrl.u32 %v8360, 7
  %v8362 = vsub.s32 %v4476, %v8361
  %v8363 = vrot.slane %v8257, %v8362
  %v8364 = vsel %vm4481, %v8363, %v8359
  %v8365 = vlaneseq
  %v8366 = vshrl.u32 %v8365, 7
  %v8367 = vsub.s32 %v4483, %v8366
  %v8368 = vrot.slane %v8260, %v8367
  %v8369 = vsel %vm4488, %v8368, %v8364
  %v8370 = vlaneseq
  %v8371 = vshrl.u32 %v8370, 7
  %v8372 = vsub.s32 %v4490, %v8371
  %v8373 = vrot.slane %v8263, %v8372
  %v8374 = vsel %vm4495, %v8373, %v8369
  %v8375 = vlaneseq
  %v8376 = vshrl.u32 %v8375, 7
  %v8377 = vsub.s32 %v4497, %v8376
  %v8378 = vrot.slane %v8266, %v8377
  %v8379 = vsel %vm4502, %v8378, %v8374
  %v8380 = vlaneseq
  %v8381 = vshrl.u32 %v8380, 7
  %v8382 = vsub.s32 %v4504, %v8381
  %v8383 = vrot.slane %v8269, %v8382
  %v8384 = vsel %vm4509, %v8383, %v8379
  %v8385 = vlaneseq
  %v8386 = vshrl.u32 %v8385, 7
  %v8387 = vsub.s32 %v4511, %v8386
  %v8388 = vrot.slane %v8272, %v8387
  %v8389 = vsel %vm4516, %v8388, %v8384
  %v8390 = vlaneseq
  %v8391 = vshrl.u32 %v8390, 7
  %v8392 = vsub.s32 %v4518, %v8391
  %v8393 = vrot.slane %v8275, %v8392
  %v8394 = vsel %vm4523, %v8393, %v8389
  %v8395 = vlaneseq
  %v8396 = vshrl.u32 %v8395, 7
  %v8397 = vsub.s32 %v4525, %v8396
  %v8398 = vrot.slane %v8278, %v8397
  %v8399 = vsel %vm4530, %v8398, %v8394
  %v8400 = vlaneseq
  %v8401 = vshrl.u32 %v8400, 7
  %v8402 = vsub.s32 %v4532, %v8401
  %v8403 = vrot.slane %v8281, %v8402
  %v8404 = vsel %vm4537, %v8403, %v8399
  %v8405 = vlaneseq
  %v8406 = vshrl.u32 %v8405, 7
  %v8407 = vsub.s32 %v4539, %v8406
  %v8408 = vrot.slane %v8284, %v8407
  %v8409 = vsel %vm4544, %v8408, %v8404
  %v8410 = vlaneseq
  %v8411 = vshrl.u32 %v8410, 7
  %v8412 = vsub.s32 %v4546, %v8411
  %v8413 = vrot.slane %v8287, %v8412
  %v8414 = vsel %vm4551, %v8413, %v8409
  %v8415 = vlaneseq
  %v8416 = vshrl.u32 %v8415, 7
  %v8417 = vsub.s32 %v1211, %v8416
  %v8418 = vrot.slane %v8290, %v8417
  %v8419 = vlaneseq
  %v8420 = vshrl.u32 %v8419, 7
  %v8421 = vsub.s32 %v4448, %v8420
  %v8422 = vrot.slane %v8293, %v8421
  %v8423 = vsel %vm4453, %v8422, %v8418
  %v8424 = vlaneseq
  %v8425 = vshrl.u32 %v8424, 7
  %v8426 = vsub.s32 %v4455, %v8425
  %v8427 = vrot.slane %v8296, %v8426
  %v8428 = vsel %vm4460, %v8427, %v8423
  %v8429 = vlaneseq
  %v8430 = vshrl.u32 %v8429, 7
  %v8431 = vsub.s32 %v4462, %v8430
  %v8432 = vrot.slane %v8299, %v8431
  %v8433 = vsel %vm4467, %v8432, %v8428
  %v8434 = vlaneseq
  %v8435 = vshrl.u32 %v8434, 7
  %v8436 = vsub.s32 %v4469, %v8435
  %v8437 = vrot.slane %v8302, %v8436
  %v8438 = vsel %vm4474, %v8437, %v8433
  %v8439 = vlaneseq
  %v8440 = vshrl.u32 %v8439, 7
  %v8441 = vsub.s32 %v4476, %v8440
  %v8442 = vrot.slane %v8305, %v8441
  %v8443 = vsel %vm4481, %v8442, %v8438
  %v8444 = vlaneseq
  %v8445 = vshrl.u32 %v8444, 7
  %v8446 = vsub.s32 %v4483, %v8445
  %v8447 = vrot.slane %v8308, %v8446
  %v8448 = vsel %vm4488, %v8447, %v8443
  %v8449 = vlaneseq
  %v8450 = vshrl.u32 %v8449, 7
  %v8451 = vsub.s32 %v4490, %v8450
  %v8452 = vrot.slane %v8311, %v8451
  %v8453 = vsel %vm4495, %v8452, %v8448
  %v8454 = vlaneseq
  %v8455 = vshrl.u32 %v8454, 7
  %v8456 = vsub.s32 %v4497, %v8455
  %v8457 = vrot.slane %v8314, %v8456
  %v8458 = vsel %vm4502, %v8457, %v8453
  %v8459 = vlaneseq
  %v8460 = vshrl.u32 %v8459, 7
  %v8461 = vsub.s32 %v4504, %v8460
  %v8462 = vrot.slane %v8317, %v8461
  %v8463 = vsel %vm4509, %v8462, %v8458
  %v8464 = vlaneseq
  %v8465 = vshrl.u32 %v8464, 7
  %v8466 = vsub.s32 %v4511, %v8465
  %v8467 = vrot.slane %v8320, %v8466
  %v8468 = vsel %vm4516, %v8467, %v8463
  %v8469 = vlaneseq
  %v8470 = vshrl.u32 %v8469, 7
  %v8471 = vsub.s32 %v4518, %v8470
  %v8472 = vrot.slane %v8323, %v8471
  %v8473 = vsel %vm4523, %v8472, %v8468
  %v8474 = vlaneseq
  %v8475 = vshrl.u32 %v8474, 7
  %v8476 = vsub.s32 %v4525, %v8475
  %v8477 = vrot.slane %v8326, %v8476
  %v8478 = vsel %vm4530, %v8477, %v8473
  %v8479 = vlaneseq
  %v8480 = vshrl.u32 %v8479, 7
  %v8481 = vsub.s32 %v4532, %v8480
  %v8482 = vrot.slane %v8329, %v8481
  %v8483 = vsel %vm4537, %v8482, %v8478
  %v8484 = vlaneseq
  %v8485 = vshrl.u32 %v8484, 7
  %v8486 = vsub.s32 %v4539, %v8485
  %v8487 = vrot.slane %v8332, %v8486
  %v8488 = vsel %vm4544, %v8487, %v8483
  %v8489 = vlaneseq
  %v8490 = vshrl.u32 %v8489, 7
  %v8491 = vsub.s32 %v4546, %v8490
  %v8492 = vrot.slane %v8335, %v8491
  %v8493 = vsel %vm4551, %v8492, %v8488
  %v8494 = vcombine.low %v8414, %v8493
  %v8496 = vunpack.c.l.s4 1966171168
  %v8497 = vunpack.c.0.s8 %v8496
  %v8498 = vlaneseq
  %v8499 = vshrl.u32 %v8498, 7
  %v8500 = vsub.s32 %v8497, %v8499
  %v8501 = vrot.slane %v8494, %v8500
  %v8503 = vunpack.c.l.s4 1966171168
  %v8504 = vunpack.c.0.s8 %v8503
  %v8505 = vlaneseq
  %v8506 = vshrl.u32 %v8505, 7
  %v8507 = vsub.s32 %v8504, %v8506
  %v8508 = vrot.slane %v8501, %v8507
  %s8509 = scalar_lea.vmem %s3, 1
  %8510 = vst.msk [vmem:[%s8509] ss:$2 sm:$0x3] %vm4650, %v8508
  // Predicated region
  $region14: #{random_projection_quantize.1} parent=0 // pred_check
    _
  $region15: #{random_projection_quantize.1} parent=0 // pred_check_branch
    %8512 = sbr.rel (0) target = $region17
  $region16: #{random_projection_quantize.1} parent=0 // pred_region
    _
  $region17: #{random_projection_quantize.1} parent=0 // pred_fallthru
    _
  // Predicated region
  $region18: #{random_projection_quantize.1} parent=0 // pred_check
    _
  $region19: #{random_projection_quantize.1} parent=0 // pred_check_branch
    %8514 = sbr.rel (0) target = $region21
  $region20: #{random_projection_quantize.1} parent=0 // pred_region
    _
  $region21: #{random_projection_quantize.1} parent=0 // pred_fallthru
    _

</llo_original>
